<compile_context>
chip_gen: v7x
topology: tpu7x:2x2x1
jax: 0.10.0
libtpu: 0.0.40
codegen_flags: <defaults>
</compile_context>

<pallas_src>
import functools

import jax
import jax.numpy as jnp
from jax.experimental import pallas as pl
from jax.experimental.pallas import tpu as pltpu

MAX_PAD = 18                 # = max dilation among the ASPP branches
DILATIONS = (12, 6, 18)      # conv2, conv3, conv4 (order of the PyTorch concat)


# ---------------------------------------------------------------------------
# Fused ASPP kernel: all branches + ReLU + concat-free conv5 projection.
# ---------------------------------------------------------------------------
def _aspp_kernel(x_ref, w1_ref, b1_ref, wd_ref, bd_ref, w5_ref, bimg_ref,
                 o_ref, *, rows):
    """One (image, row-strip) grid cell.

    x_ref   : (1, Hp, Wp, Cin)   bf16  padded input image (resident per image)
    w1_ref  : (Cin, Cout)        bf16  1x1 conv weight
    b1_ref  : (1, Cout)          f32   1x1 conv bias
    wd_ref  : (3, 9*Cin, Cout)   bf16  dilated 3x3 weights, taps stacked on K
    bd_ref  : (3, 1, Cout)       f32   dilated conv biases
    w5_ref  : (4*Cout, Cout)     bf16  conv5 weight for branches 1..4 (K-stacked)
    bimg_ref: (1, 1, Cout)       f32   conv5 bias + pooling branch (per image)
    o_ref   : (1, Cout, rows*W)  f32   output strip, lane-dense last dim
    """
    _, _, Wp, Cin = x_ref.shape
    Cout = w1_ref.shape[1]
    W = Wp - 2 * MAX_PAD
    M = rows * W
    f32, bf16 = jnp.float32, jnp.bfloat16

    h0 = pl.multiple_of(pl.program_id(1) * rows, rows)

    def window(roff, coff):
        # (rows, W, Cin) bf16 window whose top-left corner (padded coords) is
        # (h0 + roff, coff); roff / coff are static Python ints.
        return x_ref[0, pl.ds(h0 + roff, rows), pl.ds(coff, W), :]

    # ---- branch 1: 1x1 conv + bias + ReLU (M = rows*W, K = Cin) ------------
    xc = window(MAX_PAD, MAX_PAD).reshape(M, Cin)
    h1 = jnp.dot(xc, w1_ref[...], preferred_element_type=f32) + b1_ref[...]
    branches = [jnp.maximum(h1, 0.0).astype(bf16)]

    # ---- branches 2-4: dilated 3x3 convs, ONE dot each with K = 9*Cin ------
    for di, d in enumerate(DILATIONS):
        base = MAX_PAD - d                 # aligns padding=d with the pad=18 frame
        taps = [window(base + ki * d, base + kj * d)
                for ki in range(3) for kj in range(3)]
        op = jnp.concatenate(taps, axis=-1).reshape(M, 9 * Cin)
        hd = jnp.dot(op, wd_ref[di], preferred_element_type=f32) + bd_ref[di]
        branches.append(jnp.maximum(hd, 0.0).astype(bf16))

    # ---- fused conv5 projection: one dot with K = 4*Cout (=128) ------------
    hcat = jnp.concatenate(branches, axis=-1)              # (M, 4*Cout) bf16
    out = jnp.dot(hcat, w5_ref[...], preferred_element_type=f32) + bimg_ref[0]

    # Lane-dense store: last dim rows*W >= 128 -> unmasked vector stores.
    o_ref[0, :, :] = out.T.astype(o_ref.dtype)


# ---------------------------------------------------------------------------
# Wrapper: layout prep (once), pooling branch as plain jnp.dot, pallas_call.
# ---------------------------------------------------------------------------
@jax.jit
def aspp_forward(params, x_nchw):
    x = jnp.transpose(x_nchw, (0, 2, 3, 1)).astype(jnp.float32)   # NCHW -> NHWC
    N, H, W, Cin = x.shape
    Cout = params["conv1"]["w"].shape[0]
    P = MAX_PAD

    # Single spatial pad of x to the max dilation; all branches slice it.
    xp = jnp.pad(x, ((0, 0), (P, P), (P, P), (0, 0))).astype(jnp.bfloat16)
    Hp, Wp = H + 2 * P, W + 2 * P

    # ---- weight prep (once, O(weights)) ------------------------------------
    def as_matrix(w_oihw):                       # (Cout, Cin, 1, 1) -> (Cin, Cout)
        return jnp.transpose(w_oihw[:, :, 0, 0], (1, 0))

    w1 = as_matrix(params["conv1"]["w"]).astype(jnp.bfloat16)
    b1 = params["conv1"]["b"].reshape(1, Cout).astype(jnp.float32)

    def dil_w(p):          # (Cout, Cin, 3, 3) -> (9*Cin, Cout), tap-major then Cin
        return jnp.transpose(p["w"], (2, 3, 1, 0)).reshape(9 * Cin, Cout)

    wd = jnp.stack([dil_w(params["conv2"]), dil_w(params["conv3"]),
                    dil_w(params["conv4"])]).astype(jnp.bfloat16)
    bd = jnp.stack([params["conv2"]["b"], params["conv3"]["b"],
                    params["conv4"]["b"]]).reshape(3, 1, Cout).astype(jnp.float32)

    # conv5: (Cout, 5*Cout, 1, 1) -> (5*Cout, Cout); branches 1..4 K-stacked.
    w5_full = jnp.transpose(params["conv5"]["w"][:, :, 0, 0], (1, 0))
    w5_main = w5_full[:4 * Cout].astype(jnp.bfloat16)             # (4*Cout, Cout)
    b5 = params["conv5"]["b"].astype(jnp.float32)

    # ---- ASPPPooling branch: degenerate GEMM (M = batch), plain JAX, folded
    # (with the conv5 bias) into a per-image bias of the fused projection.
    w_pool = as_matrix(params["pool"]["w"]).astype(jnp.float32)
    x5 = jnp.maximum(jnp.mean(x, axis=(1, 2)) @ w_pool, 0.0)      # (N, Cout)
    bias_img = (b5[None, :] + x5 @ w5_full[4 * Cout:]
                ).reshape(N, 1, Cout).astype(jnp.float32)

    # ---- strip size: feed the MXU a real M tile, keep output blocks
    # 128-lane aligned, stay inside a conservative VMEM budget. --------------
    def strip_vmem(r):     # double-buffered x block + double-buffered out block
        return 2 * Hp * Wp * Cin * 2 + 2 * Cout * r * W * 4

    cands = [H] + [r for r in range(H - 1, 0, -1)
                   if H % r == 0 and (r * W) % 128 == 0]
    fit = [r for r in cands if strip_vmem(r) <= (24 << 20)] or [cands[-1]]
    rows = fit[0]
    if N < 2:                       # make sure both v7x TensorCores get work
        multi = [r for r in fit if H // r >= 2]
        if multi:
            rows = multi[0]
    # TODO(synk): H with no 128-lane-aligned divisor keeps rows = H; a masked
    # ragged last strip would remove that VMEM cliff for very large images.

    grid = (N, H // rows)

    weight_bytes = (w1.size * 2 + b1.size * 4 + wd.size * 2 + bd.size * 4
                    + w5_main.size * 2 + bias_img.size * 4)
    vmem_limit = int(min(max(strip_vmem(rows) + 2 * weight_bytes + (2 << 20),
                             32 << 20), 96 << 20))

    flops = 2 * N * H * W * (Cin * Cout + 3 * 9 * Cin * Cout + 4 * Cout * Cout)
    bytes_accessed = int(N * Hp * Wp * Cin * 2 + N * Cout * H * W * 4
                         + weight_bytes)

    out_flat = pl.pallas_call(
        functools.partial(_aspp_kernel, rows=rows),
        out_shape=jax.ShapeDtypeStruct((N, Cout, H * W), jnp.float32),
        grid=grid,
        in_specs=[
            pl.BlockSpec((1, Hp, Wp, Cin), lambda n, s: (n, 0, 0, 0)),
            pl.BlockSpec((Cin, Cout), lambda n, s: (0, 0)),
            pl.BlockSpec((1, Cout), lambda n, s: (0, 0)),
            pl.BlockSpec((3, 9 * Cin, Cout), lambda n, s: (0, 0, 0)),
            pl.BlockSpec((3, 1, Cout), lambda n, s: (0, 0, 0)),
            pl.BlockSpec((4 * Cout, Cout), lambda n, s: (0, 0)),
            pl.BlockSpec((1, 1, Cout), lambda n, s: (n, 0, 0)),
        ],
        out_specs=pl.BlockSpec((1, Cout, rows * W), lambda n, s: (n, 0, s)),
        compiler_params=pltpu.CompilerParams(
            dimension_semantics=("parallel", "parallel"),
            vmem_limit_bytes=vmem_limit),
        cost_estimate=pl.CostEstimate(flops=int(flops), transcendentals=0,
                                      bytes_accessed=bytes_accessed),
    )(xp, w1, b1, wd, bd, w5_main, bias_img)

    # (N, Cout, H*W) is already channel-first: a free reshape gives NCHW.
    return out_flat.reshape(N, Cout, H, W)


# ---------------------------------------------------------------------------
# Pure-JAX (XLA) reference with exact PyTorch ASPP semantics (for validation).
# ---------------------------------------------------------------------------
def aspp_reference(params, x_nchw):
    x = jnp.transpose(x_nchw, (0, 2, 3, 1))

    def conv(h, p, pad, dil, relu):
        w = jnp.transpose(p["w"], (2, 3, 1, 0))               # OIHW -> HWIO
        y = jax.lax.conv_general_dilated(
            h, w, window_strides=(1, 1),
            padding=((pad, pad), (pad, pad)),
            rhs_dilation=(dil, dil),
            dimension_numbers=("NHWC", "HWIO", "NHWC"))
        if p["b"] is not None:
            y = y + p["b"]
        return jnp.maximum(y, 0.0) if relu else y

    x1 = conv(x, params["conv1"], 0, 1, True)
    x2 = conv(x, params["conv2"], 12, 12, True)
    x3 = conv(x, params["conv3"], 6, 6, True)
    x4 = conv(x, params["conv4"], 18, 18, True)
    pooled = jnp.mean(x, axis=(1, 2), keepdims=True)
    x5 = jnp.broadcast_to(conv(pooled, params["pool"], 0, 1, True), x1.shape)
    xc = jnp.concatenate([x1, x2, x3, x4, x5], axis=-1)
    out = conv(xc, params["conv5"], 0, 1, False)
    return jnp.transpose(out, (0, 3, 1, 2))


# ---------------------------------------------------------------------------
# Deterministic PyTorch-shaped parameter init.
# ---------------------------------------------------------------------------
def init_aspp_params(key, in_ch, out_ch):
    def conv_init(k, cout, cin, ksz, bias=True):
        kw, kb = jax.random.split(k)
        bound = 1.0 / float((cin * ksz * ksz) ** 0.5)
        w = jax.random.uniform(kw, (cout, cin, ksz, ksz), jnp.float32,
                               -bound, bound)
        b = (jax.random.uniform(kb, (cout,), jnp.float32, -bound, bound)
             if bias else None)
        return {"w": w, "b": b}

    ks = jax.random.split(key, 6)
    return {
        "conv1": conv_init(ks[0], out_ch, in_ch, 1),
        "conv2": conv_init(ks[1], out_ch, in_ch, 3),
        "conv3": conv_init(ks[2], out_ch, in_ch, 3),
        "conv4": conv_init(ks[3], out_ch, in_ch, 3),
        "conv5": conv_init(ks[4], out_ch, out_ch * 5, 1),
        "pool": conv_init(ks[5], out_ch, in_ch, 1, bias=False),
    }


if __name__ == "__main__":
    key = jax.random.PRNGKey(0)
    k_param, k_x = jax.random.split(key)
    IN_CH, OUT_CH = 4, 32
    N, H, W = 2, 16, 16

    params = init_aspp_params(k_param, IN_CH, OUT_CH)
    x = jax.random.normal(k_x, (N, IN_CH, H, W), jnp.float32)

    out = jax.block_until_ready(aspp_forward(params, x))
    assert out.shape == (N, OUT_CH, H, W), out.shape
    assert bool(jnp.all(jnp.isfinite(out)))

    # Validate against the pure-JAX reference (loose tol: bf16 MXU operands).
    ref = jax.block_until_ready(aspp_reference(params, x))
    err = float(jnp.max(jnp.abs(out - ref)) / (jnp.max(jnp.abs(ref)) + 1e-6))
    assert err < 5e-2, f"mismatch vs reference: normalized max err = {err}"

    print("KERNEL_OK")
</pallas_src>

<mosaic_0001>
module attributes {stable_mosaic.version = 11 : i64} {
  func.func @_aspp_kernel(%arg0: i32, %arg1: i32, %arg2: memref<1x52x52x4xbf16, #tpu.memory_space<vmem>>, %arg3: memref<4x32xbf16, #tpu.memory_space<vmem>>, %arg4: memref<1x32xf32, #tpu.memory_space<vmem>>, %arg5: memref<3x36x32xbf16, #tpu.memory_space<vmem>>, %arg6: memref<3x1x32xf32, #tpu.memory_space<vmem>>, %arg7: memref<128x32xbf16, #tpu.memory_space<vmem>>, %arg8: memref<1x1x32xf32, #tpu.memory_space<vmem>>, %arg9: memref<1x32x256xf32, #tpu.memory_space<vmem>>) attributes {dimension_semantics = [#tpu.dimension_semantics<parallel>, #tpu.dimension_semantics<parallel>], iteration_bounds = array<i64: 2, 1>, scalar_prefetch = 0 : i64, scratch_operands = 0 : i64, tpu.core_type = #tpu.core_type<tc>, window_params = [{transform_indices = @transform_0, window_bounds = array<i64: 1, 52, 52, 4>}, {pipeline_mode = #tpu.pipeline_mode<synchronous>, transform_indices = @transform_1, window_bounds = array<i64: 4, 32>}, {pipeline_mode = #tpu.pipeline_mode<synchronous>, transform_indices = @transform_2, window_bounds = array<i64: 1, 32>}, {pipeline_mode = #tpu.pipeline_mode<synchronous>, transform_indices = @transform_3, window_bounds = array<i64: 3, 36, 32>}, {pipeline_mode = #tpu.pipeline_mode<synchronous>, transform_indices = @transform_4, window_bounds = array<i64: 3, 1, 32>}, {pipeline_mode = #tpu.pipeline_mode<synchronous>, transform_indices = @transform_5, window_bounds = array<i64: 128, 32>}, {transform_indices = @transform_6, window_bounds = array<i64: 1, 1, 32>}, {transform_indices = @transform_7, window_bounds = array<i64: 1, 32, 256>}]} {
    %c16_i32 = arith.constant 16 : i32
    %0 = arith.muli %arg1, %c16_i32 : i32
    %1 = tpu.assume_multiple %0, 16 : i32
    %c18_i32 = arith.constant 18 : i32
    %2 = arith.addi %1, %c18_i32 : i32
    %c0 = arith.constant 0 : index
    %3 = arith.index_cast %2 : i32 to index
    %c18 = arith.constant 18 : index
    %c0_0 = arith.constant 0 : index
    %4 = vector.load %arg2[%c0, %3, %c18, %c0_0] : memref<1x52x52x4xbf16, #tpu.memory_space<vmem>>, vector<1x16x16x4xbf16>
    %5 = vector.shape_cast %4 : vector<1x16x16x4xbf16> to vector<16x16x4xbf16>
    %6 = vector.shape_cast %5 : vector<16x16x4xbf16> to vector<256x4xbf16>
    %c0_1 = arith.constant 0 : index
    %c0_2 = arith.constant 0 : index
    %7 = vector.load %arg3[%c0_1, %c0_2] : memref<4x32xbf16, #tpu.memory_space<vmem>>, vector<4x32xbf16>
    %cst = arith.constant dense<0.000000e+00> : vector<256x32xf32>
    %8 = tpu.matmul %6, %7, %cst {dimension_numbers = #tpu.dot_dimension_numbers<[1], [0], [0], [1], [0, 0, 1, 1], [], []>} : vector<256x4xbf16>, vector<4x32xbf16>, vector<256x32xf32> -> vector<256x32xf32>
    %c0_3 = arith.constant 0 : index
    %c0_4 = arith.constant 0 : index
    %9 = vector.load %arg4[%c0_3, %c0_4] : memref<1x32xf32, #tpu.memory_space<vmem>>, vector<1x32xf32>
    %10 = vector.broadcast %9 : vector<1x32xf32> to vector<256x32xf32>
    %11 = arith.addf %8, %10 : vector<256x32xf32>
    %cst_5 = arith.constant 0.000000e+00 : f32
    %12 = vector.broadcast %cst_5 : f32 to vector<256x32xf32>
    %13 = arith.maximumf %11, %12 : vector<256x32xf32>
    %14 = arith.truncf %13 : vector<256x32xf32> to vector<256x32xbf16>
    %c6_i32 = arith.constant 6 : i32
    %15 = arith.addi %1, %c6_i32 : i32
    %c0_6 = arith.constant 0 : index
    %16 = arith.index_cast %15 : i32 to index
    %c6 = arith.constant 6 : index
    %c0_7 = arith.constant 0 : index
    %17 = vector.load %arg2[%c0_6, %16, %c6, %c0_7] : memref<1x52x52x4xbf16, #tpu.memory_space<vmem>>, vector<1x16x16x4xbf16>
    %18 = vector.shape_cast %17 : vector<1x16x16x4xbf16> to vector<16x16x4xbf16>
    %c6_i32_8 = arith.constant 6 : i32
    %19 = arith.addi %1, %c6_i32_8 : i32
    %c0_9 = arith.constant 0 : index
    %20 = arith.index_cast %19 : i32 to index
    %c18_10 = arith.constant 18 : index
    %c0_11 = arith.constant 0 : index
    %21 = vector.load %arg2[%c0_9, %20, %c18_10, %c0_11] : memref<1x52x52x4xbf16, #tpu.memory_space<vmem>>, vector<1x16x16x4xbf16>
    %22 = vector.shape_cast %21 : vector<1x16x16x4xbf16> to vector<16x16x4xbf16>
    %c6_i32_12 = arith.constant 6 : i32
    %23 = arith.addi %1, %c6_i32_12 : i32
    %c0_13 = arith.constant 0 : index
    %24 = arith.index_cast %23 : i32 to index
    %c30 = arith.constant 30 : index
    %c0_14 = arith.constant 0 : index
    %25 = vector.load %arg2[%c0_13, %24, %c30, %c0_14] : memref<1x52x52x4xbf16, #tpu.memory_space<vmem>>, vector<1x16x16x4xbf16>
    %26 = vector.shape_cast %25 : vector<1x16x16x4xbf16> to vector<16x16x4xbf16>
    %c18_i32_15 = arith.constant 18 : i32
    %27 = arith.addi %1, %c18_i32_15 : i32
    %c0_16 = arith.constant 0 : index
    %28 = arith.index_cast %27 : i32 to index
    %c6_17 = arith.constant 6 : index
    %c0_18 = arith.constant 0 : index
    %29 = vector.load %arg2[%c0_16, %28, %c6_17, %c0_18] : memref<1x52x52x4xbf16, #tpu.memory_space<vmem>>, vector<1x16x16x4xbf16>
    %30 = vector.shape_cast %29 : vector<1x16x16x4xbf16> to vector<16x16x4xbf16>
    %c18_i32_19 = arith.constant 18 : i32
    %31 = arith.addi %1, %c18_i32_19 : i32
    %c0_20 = arith.constant 0 : index
    %32 = arith.index_cast %31 : i32 to index
    %c18_21 = arith.constant 18 : index
    %c0_22 = arith.constant 0 : index
    %33 = vector.load %arg2[%c0_20, %32, %c18_21, %c0_22] : memref<1x52x52x4xbf16, #tpu.memory_space<vmem>>, vector<1x16x16x4xbf16>
    %34 = vector.shape_cast %33 : vector<1x16x16x4xbf16> to vector<16x16x4xbf16>
    %c18_i32_23 = arith.constant 18 : i32
    %35 = arith.addi %1, %c18_i32_23 : i32
    %c0_24 = arith.constant 0 : index
    %36 = arith.index_cast %35 : i32 to index
    %c30_25 = arith.constant 30 : index
    %c0_26 = arith.constant 0 : index
    %37 = vector.load %arg2[%c0_24, %36, %c30_25, %c0_26] : memref<1x52x52x4xbf16, #tpu.memory_space<vmem>>, vector<1x16x16x4xbf16>
    %38 = vector.shape_cast %37 : vector<1x16x16x4xbf16> to vector<16x16x4xbf16>
    %c30_i32 = arith.constant 30 : i32
    %39 = arith.addi %1, %c30_i32 : i32
    %c0_27 = arith.constant 0 : index
    %40 = arith.index_cast %39 : i32 to index
    %c6_28 = arith.constant 6 : index
    %c0_29 = arith.constant 0 : index
    %41 = vector.load %arg2[%c0_27, %40, %c6_28, %c0_29] : memref<1x52x52x4xbf16, #tpu.memory_space<vmem>>, vector<1x16x16x4xbf16>
    %42 = vector.shape_cast %41 : vector<1x16x16x4xbf16> to vector<16x16x4xbf16>
    %c30_i32_30 = arith.constant 30 : i32
    %43 = arith.addi %1, %c30_i32_30 : i32
    %c0_31 = arith.constant 0 : index
    %44 = arith.index_cast %43 : i32 to index
    %c18_32 = arith.constant 18 : index
    %c0_33 = arith.constant 0 : index
    %45 = vector.load %arg2[%c0_31, %44, %c18_32, %c0_33] : memref<1x52x52x4xbf16, #tpu.memory_space<vmem>>, vector<1x16x16x4xbf16>
    %46 = vector.shape_cast %45 : vector<1x16x16x4xbf16> to vector<16x16x4xbf16>
    %c30_i32_34 = arith.constant 30 : i32
    %47 = arith.addi %1, %c30_i32_34 : i32
    %c0_35 = arith.constant 0 : index
    %48 = arith.index_cast %47 : i32 to index
    %c30_36 = arith.constant 30 : index
    %c0_37 = arith.constant 0 : index
    %49 = vector.load %arg2[%c0_35, %48, %c30_36, %c0_37] : memref<1x52x52x4xbf16, #tpu.memory_space<vmem>>, vector<1x16x16x4xbf16>
    %50 = vector.shape_cast %49 : vector<1x16x16x4xbf16> to vector<16x16x4xbf16>
    %51 = tpu.concatenate %18, %22, %26, %30, %34, %38, %42, %46, %50 in 2 : vector<16x16x4xbf16>, vector<16x16x4xbf16>, vector<16x16x4xbf16>, vector<16x16x4xbf16>, vector<16x16x4xbf16>, vector<16x16x4xbf16>, vector<16x16x4xbf16>, vector<16x16x4xbf16>, vector<16x16x4xbf16> -> vector<16x16x36xbf16>
    %52 = vector.shape_cast %51 : vector<16x16x36xbf16> to vector<256x36xbf16>
    %c0_38 = arith.constant 0 : index
    %c0_39 = arith.constant 0 : index
    %c0_40 = arith.constant 0 : index
    %53 = vector.load %arg5[%c0_38, %c0_39, %c0_40] : memref<3x36x32xbf16, #tpu.memory_space<vmem>>, vector<1x36x32xbf16>
    %54 = vector.shape_cast %53 : vector<1x36x32xbf16> to vector<36x32xbf16>
    %cst_41 = arith.constant dense<0.000000e+00> : vector<256x32xf32>
    %55 = tpu.matmul %52, %54, %cst_41 {dimension_numbers = #tpu.dot_dimension_numbers<[1], [0], [0], [1], [0, 0, 1, 1], [], []>} : vector<256x36xbf16>, vector<36x32xbf16>, vector<256x32xf32> -> vector<256x32xf32>
    %c0_42 = arith.constant 0 : index
    %c0_43 = arith.constant 0 : index
    %c0_44 = arith.constant 0 : index
    %56 = vector.load %arg6[%c0_42, %c0_43, %c0_44] : memref<3x1x32xf32, #tpu.memory_space<vmem>>, vector<1x1x32xf32>
    %57 = vector.shape_cast %56 : vector<1x1x32xf32> to vector<1x32xf32>
    %58 = vector.broadcast %57 : vector<1x32xf32> to vector<256x32xf32>
    %59 = arith.addf %55, %58 : vector<256x32xf32>
    %cst_45 = arith.constant 0.000000e+00 : f32
    %60 = vector.broadcast %cst_45 : f32 to vector<256x32xf32>
    %61 = arith.maximumf %59, %60 : vector<256x32xf32>
    %62 = arith.truncf %61 : vector<256x32xf32> to vector<256x32xbf16>
    %c12_i32 = arith.constant 12 : i32
    %63 = arith.addi %1, %c12_i32 : i32
    %c0_46 = arith.constant 0 : index
    %64 = arith.index_cast %63 : i32 to index
    %c12 = arith.constant 12 : index
    %c0_47 = arith.constant 0 : index
    %65 = vector.load %arg2[%c0_46, %64, %c12, %c0_47] : memref<1x52x52x4xbf16, #tpu.memory_space<vmem>>, vector<1x16x16x4xbf16>
    %66 = vector.shape_cast %65 : vector<1x16x16x4xbf16> to vector<16x16x4xbf16>
    %c12_i32_48 = arith.constant 12 : i32
    %67 = arith.addi %1, %c12_i32_48 : i32
    %c0_49 = arith.constant 0 : index
    %68 = arith.index_cast %67 : i32 to index
    %c18_50 = arith.constant 18 : index
    %c0_51 = arith.constant 0 : index
    %69 = vector.load %arg2[%c0_49, %68, %c18_50, %c0_51] : memref<1x52x52x4xbf16, #tpu.memory_space<vmem>>, vector<1x16x16x4xbf16>
    %70 = vector.shape_cast %69 : vector<1x16x16x4xbf16> to vector<16x16x4xbf16>
    %c12_i32_52 = arith.constant 12 : i32
    %71 = arith.addi %1, %c12_i32_52 : i32
    %c0_53 = arith.constant 0 : index
    %72 = arith.index_cast %71 : i32 to index
    %c24 = arith.constant 24 : index
    %c0_54 = arith.constant 0 : index
    %73 = vector.load %arg2[%c0_53, %72, %c24, %c0_54] : memref<1x52x52x4xbf16, #tpu.memory_space<vmem>>, vector<1x16x16x4xbf16>
    %74 = vector.shape_cast %73 : vector<1x16x16x4xbf16> to vector<16x16x4xbf16>
    %c18_i32_55 = arith.constant 18 : i32
    %75 = arith.addi %1, %c18_i32_55 : i32
    %c0_56 = arith.constant 0 : index
    %76 = arith.index_cast %75 : i32 to index
    %c12_57 = arith.constant 12 : index
    %c0_58 = arith.constant 0 : index
    %77 = vector.load %arg2[%c0_56, %76, %c12_57, %c0_58] : memref<1x52x52x4xbf16, #tpu.memory_space<vmem>>, vector<1x16x16x4xbf16>
    %78 = vector.shape_cast %77 : vector<1x16x16x4xbf16> to vector<16x16x4xbf16>
    %c18_i32_59 = arith.constant 18 : i32
    %79 = arith.addi %1, %c18_i32_59 : i32
    %c0_60 = arith.constant 0 : index
    %80 = arith.index_cast %79 : i32 to index
    %c18_61 = arith.constant 18 : index
    %c0_62 = arith.constant 0 : index
    %81 = vector.load %arg2[%c0_60, %80, %c18_61, %c0_62] : memref<1x52x52x4xbf16, #tpu.memory_space<vmem>>, vector<1x16x16x4xbf16>
    %82 = vector.shape_cast %81 : vector<1x16x16x4xbf16> to vector<16x16x4xbf16>
    %c18_i32_63 = arith.constant 18 : i32
    %83 = arith.addi %1, %c18_i32_63 : i32
    %c0_64 = arith.constant 0 : index
    %84 = arith.index_cast %83 : i32 to index
    %c24_65 = arith.constant 24 : index
    %c0_66 = arith.constant 0 : index
    %85 = vector.load %arg2[%c0_64, %84, %c24_65, %c0_66] : memref<1x52x52x4xbf16, #tpu.memory_space<vmem>>, vector<1x16x16x4xbf16>
    %86 = vector.shape_cast %85 : vector<1x16x16x4xbf16> to vector<16x16x4xbf16>
    %c24_i32 = arith.constant 24 : i32
    %87 = arith.addi %1, %c24_i32 : i32
    %c0_67 = arith.constant 0 : index
    %88 = arith.index_cast %87 : i32 to index
    %c12_68 = arith.constant 12 : index
    %c0_69 = arith.constant 0 : index
    %89 = vector.load %arg2[%c0_67, %88, %c12_68, %c0_69] : memref<1x52x52x4xbf16, #tpu.memory_space<vmem>>, vector<1x16x16x4xbf16>
    %90 = vector.shape_cast %89 : vector<1x16x16x4xbf16> to vector<16x16x4xbf16>
    %c24_i32_70 = arith.constant 24 : i32
    %91 = arith.addi %1, %c24_i32_70 : i32
    %c0_71 = arith.constant 0 : index
    %92 = arith.index_cast %91 : i32 to index
    %c18_72 = arith.constant 18 : index
    %c0_73 = arith.constant 0 : index
    %93 = vector.load %arg2[%c0_71, %92, %c18_72, %c0_73] : memref<1x52x52x4xbf16, #tpu.memory_space<vmem>>, vector<1x16x16x4xbf16>
    %94 = vector.shape_cast %93 : vector<1x16x16x4xbf16> to vector<16x16x4xbf16>
    %c24_i32_74 = arith.constant 24 : i32
    %95 = arith.addi %1, %c24_i32_74 : i32
    %c0_75 = arith.constant 0 : index
    %96 = arith.index_cast %95 : i32 to index
    %c24_76 = arith.constant 24 : index
    %c0_77 = arith.constant 0 : index
    %97 = vector.load %arg2[%c0_75, %96, %c24_76, %c0_77] : memref<1x52x52x4xbf16, #tpu.memory_space<vmem>>, vector<1x16x16x4xbf16>
    %98 = vector.shape_cast %97 : vector<1x16x16x4xbf16> to vector<16x16x4xbf16>
    %99 = tpu.concatenate %66, %70, %74, %78, %82, %86, %90, %94, %98 in 2 : vector<16x16x4xbf16>, vector<16x16x4xbf16>, vector<16x16x4xbf16>, vector<16x16x4xbf16>, vector<16x16x4xbf16>, vector<16x16x4xbf16>, vector<16x16x4xbf16>, vector<16x16x4xbf16>, vector<16x16x4xbf16> -> vector<16x16x36xbf16>
    %100 = vector.shape_cast %99 : vector<16x16x36xbf16> to vector<256x36xbf16>
    %c1 = arith.constant 1 : index
    %c0_78 = arith.constant 0 : index
    %c0_79 = arith.constant 0 : index
    %101 = vector.load %arg5[%c1, %c0_78, %c0_79] : memref<3x36x32xbf16, #tpu.memory_space<vmem>>, vector<1x36x32xbf16>
    %102 = vector.shape_cast %101 : vector<1x36x32xbf16> to vector<36x32xbf16>
    %cst_80 = arith.constant dense<0.000000e+00> : vector<256x32xf32>
    %103 = tpu.matmul %100, %102, %cst_80 {dimension_numbers = #tpu.dot_dimension_numbers<[1], [0], [0], [1], [0, 0, 1, 1], [], []>} : vector<256x36xbf16>, vector<36x32xbf16>, vector<256x32xf32> -> vector<256x32xf32>
    %c1_81 = arith.constant 1 : index
    %c0_82 = arith.constant 0 : index
    %c0_83 = arith.constant 0 : index
    %104 = vector.load %arg6[%c1_81, %c0_82, %c0_83] : memref<3x1x32xf32, #tpu.memory_space<vmem>>, vector<1x1x32xf32>
    %105 = vector.shape_cast %104 : vector<1x1x32xf32> to vector<1x32xf32>
    %106 = vector.broadcast %105 : vector<1x32xf32> to vector<256x32xf32>
    %107 = arith.addf %103, %106 : vector<256x32xf32>
    %cst_84 = arith.constant 0.000000e+00 : f32
    %108 = vector.broadcast %cst_84 : f32 to vector<256x32xf32>
    %109 = arith.maximumf %107, %108 : vector<256x32xf32>
    %110 = arith.truncf %109 : vector<256x32xf32> to vector<256x32xbf16>
    %c0_i32 = arith.constant 0 : i32
    %111 = arith.addi %1, %c0_i32 : i32
    %c0_85 = arith.constant 0 : index
    %112 = arith.index_cast %111 : i32 to index
    %c0_86 = arith.constant 0 : index
    %c0_87 = arith.constant 0 : index
    %113 = vector.load %arg2[%c0_85, %112, %c0_86, %c0_87] : memref<1x52x52x4xbf16, #tpu.memory_space<vmem>>, vector<1x16x16x4xbf16>
    %114 = vector.shape_cast %113 : vector<1x16x16x4xbf16> to vector<16x16x4xbf16>
    %c0_i32_88 = arith.constant 0 : i32
    %115 = arith.addi %1, %c0_i32_88 : i32
    %c0_89 = arith.constant 0 : index
    %116 = arith.index_cast %115 : i32 to index
    %c18_90 = arith.constant 18 : index
    %c0_91 = arith.constant 0 : index
    %117 = vector.load %arg2[%c0_89, %116, %c18_90, %c0_91] : memref<1x52x52x4xbf16, #tpu.memory_space<vmem>>, vector<1x16x16x4xbf16>
    %118 = vector.shape_cast %117 : vector<1x16x16x4xbf16> to vector<16x16x4xbf16>
    %c0_i32_92 = arith.constant 0 : i32
    %119 = arith.addi %1, %c0_i32_92 : i32
    %c0_93 = arith.constant 0 : index
    %120 = arith.index_cast %119 : i32 to index
    %c36 = arith.constant 36 : index
    %c0_94 = arith.constant 0 : index
    %121 = vector.load %arg2[%c0_93, %120, %c36, %c0_94] : memref<1x52x52x4xbf16, #tpu.memory_space<vmem>>, vector<1x16x16x4xbf16>
    %122 = vector.shape_cast %121 : vector<1x16x16x4xbf16> to vector<16x16x4xbf16>
    %c18_i32_95 = arith.constant 18 : i32
    %123 = arith.addi %1, %c18_i32_95 : i32
    %c0_96 = arith.constant 0 : index
    %124 = arith.index_cast %123 : i32 to index
    %c0_97 = arith.constant 0 : index
    %c0_98 = arith.constant 0 : index
    %125 = vector.load %arg2[%c0_96, %124, %c0_97, %c0_98] : memref<1x52x52x4xbf16, #tpu.memory_space<vmem>>, vector<1x16x16x4xbf16>
    %126 = vector.shape_cast %125 : vector<1x16x16x4xbf16> to vector<16x16x4xbf16>
    %c18_i32_99 = arith.constant 18 : i32
    %127 = arith.addi %1, %c18_i32_99 : i32
    %c0_100 = arith.constant 0 : index
    %128 = arith.index_cast %127 : i32 to index
    %c18_101 = arith.constant 18 : index
    %c0_102 = arith.constant 0 : index
    %129 = vector.load %arg2[%c0_100, %128, %c18_101, %c0_102] : memref<1x52x52x4xbf16, #tpu.memory_space<vmem>>, vector<1x16x16x4xbf16>
    %130 = vector.shape_cast %129 : vector<1x16x16x4xbf16> to vector<16x16x4xbf16>
    %c18_i32_103 = arith.constant 18 : i32
    %131 = arith.addi %1, %c18_i32_103 : i32
    %c0_104 = arith.constant 0 : index
    %132 = arith.index_cast %131 : i32 to index
    %c36_105 = arith.constant 36 : index
    %c0_106 = arith.constant 0 : index
    %133 = vector.load %arg2[%c0_104, %132, %c36_105, %c0_106] : memref<1x52x52x4xbf16, #tpu.memory_space<vmem>>, vector<1x16x16x4xbf16>
    %134 = vector.shape_cast %133 : vector<1x16x16x4xbf16> to vector<16x16x4xbf16>
    %c36_i32 = arith.constant 36 : i32
    %135 = arith.addi %1, %c36_i32 : i32
    %c0_107 = arith.constant 0 : index
    %136 = arith.index_cast %135 : i32 to index
    %c0_108 = arith.constant 0 : index
    %c0_109 = arith.constant 0 : index
    %137 = vector.load %arg2[%c0_107, %136, %c0_108, %c0_109] : memref<1x52x52x4xbf16, #tpu.memory_space<vmem>>, vector<1x16x16x4xbf16>
    %138 = vector.shape_cast %137 : vector<1x16x16x4xbf16> to vector<16x16x4xbf16>
    %c36_i32_110 = arith.constant 36 : i32
    %139 = arith.addi %1, %c36_i32_110 : i32
    %c0_111 = arith.constant 0 : index
    %140 = arith.index_cast %139 : i32 to index
    %c18_112 = arith.constant 18 : index
    %c0_113 = arith.constant 0 : index
    %141 = vector.load %arg2[%c0_111, %140, %c18_112, %c0_113] : memref<1x52x52x4xbf16, #tpu.memory_space<vmem>>, vector<1x16x16x4xbf16>
    %142 = vector.shape_cast %141 : vector<1x16x16x4xbf16> to vector<16x16x4xbf16>
    %c36_i32_114 = arith.constant 36 : i32
    %143 = arith.addi %1, %c36_i32_114 : i32
    %c0_115 = arith.constant 0 : index
    %144 = arith.index_cast %143 : i32 to index
    %c36_116 = arith.constant 36 : index
    %c0_117 = arith.constant 0 : index
    %145 = vector.load %arg2[%c0_115, %144, %c36_116, %c0_117] : memref<1x52x52x4xbf16, #tpu.memory_space<vmem>>, vector<1x16x16x4xbf16>
    %146 = vector.shape_cast %145 : vector<1x16x16x4xbf16> to vector<16x16x4xbf16>
    %147 = tpu.concatenate %114, %118, %122, %126, %130, %134, %138, %142, %146 in 2 : vector<16x16x4xbf16>, vector<16x16x4xbf16>, vector<16x16x4xbf16>, vector<16x16x4xbf16>, vector<16x16x4xbf16>, vector<16x16x4xbf16>, vector<16x16x4xbf16>, vector<16x16x4xbf16>, vector<16x16x4xbf16> -> vector<16x16x36xbf16>
    %148 = vector.shape_cast %147 : vector<16x16x36xbf16> to vector<256x36xbf16>
    %c2 = arith.constant 2 : index
    %c0_118 = arith.constant 0 : index
    %c0_119 = arith.constant 0 : index
    %149 = vector.load %arg5[%c2, %c0_118, %c0_119] : memref<3x36x32xbf16, #tpu.memory_space<vmem>>, vector<1x36x32xbf16>
    %150 = vector.shape_cast %149 : vector<1x36x32xbf16> to vector<36x32xbf16>
    %cst_120 = arith.constant dense<0.000000e+00> : vector<256x32xf32>
    %151 = tpu.matmul %148, %150, %cst_120 {dimension_numbers = #tpu.dot_dimension_numbers<[1], [0], [0], [1], [0, 0, 1, 1], [], []>} : vector<256x36xbf16>, vector<36x32xbf16>, vector<256x32xf32> -> vector<256x32xf32>
    %c2_121 = arith.constant 2 : index
    %c0_122 = arith.constant 0 : index
    %c0_123 = arith.constant 0 : index
    %152 = vector.load %arg6[%c2_121, %c0_122, %c0_123] : memref<3x1x32xf32, #tpu.memory_space<vmem>>, vector<1x1x32xf32>
    %153 = vector.shape_cast %152 : vector<1x1x32xf32> to vector<1x32xf32>
    %154 = vector.broadcast %153 : vector<1x32xf32> to vector<256x32xf32>
    %155 = arith.addf %151, %154 : vector<256x32xf32>
    %cst_124 = arith.constant 0.000000e+00 : f32
    %156 = vector.broadcast %cst_124 : f32 to vector<256x32xf32>
    %157 = arith.maximumf %155, %156 : vector<256x32xf32>
    %158 = arith.truncf %157 : vector<256x32xf32> to vector<256x32xbf16>
    %159 = tpu.concatenate %14, %62, %110, %158 in 1 : vector<256x32xbf16>, vector<256x32xbf16>, vector<256x32xbf16>, vector<256x32xbf16> -> vector<256x128xbf16>
    %c0_125 = arith.constant 0 : index
    %c0_126 = arith.constant 0 : index
    %160 = vector.load %arg7[%c0_125, %c0_126] : memref<128x32xbf16, #tpu.memory_space<vmem>>, vector<128x32xbf16>
    %cst_127 = arith.constant dense<0.000000e+00> : vector<256x32xf32>
    %161 = tpu.matmul %159, %160, %cst_127 {dimension_numbers = #tpu.dot_dimension_numbers<[1], [0], [0], [1], [0, 0, 1, 1], [], []>} : vector<256x128xbf16>, vector<128x32xbf16>, vector<256x32xf32> -> vector<256x32xf32>
    %c0_128 = arith.constant 0 : index
    %c0_129 = arith.constant 0 : index
    %c0_130 = arith.constant 0 : index
    %162 = vector.load %arg8[%c0_128, %c0_129, %c0_130] : memref<1x1x32xf32, #tpu.memory_space<vmem>>, vector<1x1x32xf32>
    %163 = vector.shape_cast %162 : vector<1x1x32xf32> to vector<1x32xf32>
    %164 = vector.broadcast %163 : vector<1x32xf32> to vector<256x32xf32>
    %165 = arith.addf %161, %164 : vector<256x32xf32>
    %166 = tpu.transpose %165, [1, 0] : vector<256x32xf32> -> vector<32x256xf32>
    %c0_131 = arith.constant 0 : index
    %c0_132 = arith.constant 0 : index
    %c0_133 = arith.constant 0 : index
    %167 = vector.load %arg9[%c0_131, %c0_132, %c0_133] : memref<1x32x256xf32, #tpu.memory_space<vmem>>, vector<1x32x256xf32>
    %168 = vector.shape_cast %167 : vector<1x32x256xf32> to vector<32x256xf32>
    %169 = vector.shape_cast %166 : vector<32x256xf32> to vector<1x32x256xf32>
    tpu.vector_store %arg9[%c0_131, %c0_132, %c0_133], %169 {strides = array<i32>} : memref<1x32x256xf32, #tpu.memory_space<vmem>>, vector<1x32x256xf32>,
    return
  }
  func.func @transform_0(%arg0: i32, %arg1: i32) -> (i32, i32, i32, i32) {
    %c0_i32 = arith.constant 0 : i32
    %c0_i32_0 = arith.constant 0 : i32
    %c0_i32_1 = arith.constant 0 : i32
    %c0_i32_2 = arith.constant 0 : i32
    return %arg0, %c0_i32, %c0_i32_0, %c0_i32_1 : i32, i32, i32, i32
  }
  func.func @transform_1(%arg0: i32, %arg1: i32) -> (i32, i32) {
    %c0_i32 = arith.constant 0 : i32
    %c0_i32_0 = arith.constant 0 : i32
    %c0_i32_1 = arith.constant 0 : i32
    return %c0_i32, %c0_i32_0 : i32, i32
  }
  func.func @transform_2(%arg0: i32, %arg1: i32) -> (i32, i32) {
    %c0_i32 = arith.constant 0 : i32
    %c0_i32_0 = arith.constant 0 : i32
    %c0_i32_1 = arith.constant 0 : i32
    return %c0_i32, %c0_i32_0 : i32, i32
  }
  func.func @transform_3(%arg0: i32, %arg1: i32) -> (i32, i32, i32) {
    %c0_i32 = arith.constant 0 : i32
    %c0_i32_0 = arith.constant 0 : i32
    %c0_i32_1 = arith.constant 0 : i32
    %c0_i32_2 = arith.constant 0 : i32
    return %c0_i32, %c0_i32_0, %c0_i32_1 : i32, i32, i32
  }
  func.func @transform_4(%arg0: i32, %arg1: i32) -> (i32, i32, i32) {
    %c0_i32 = arith.constant 0 : i32
    %c0_i32_0 = arith.constant 0 : i32
    %c0_i32_1 = arith.constant 0 : i32
    %c0_i32_2 = arith.constant 0 : i32
    return %c0_i32, %c0_i32_0, %c0_i32_1 : i32, i32, i32
  }
  func.func @transform_5(%arg0: i32, %arg1: i32) -> (i32, i32) {
    %c0_i32 = arith.constant 0 : i32
    %c0_i32_0 = arith.constant 0 : i32
    %c0_i32_1 = arith.constant 0 : i32
    return %c0_i32, %c0_i32_0 : i32, i32
  }
  func.func @transform_6(%arg0: i32, %arg1: i32) -> (i32, i32, i32) {
    %c0_i32 = arith.constant 0 : i32
    %c0_i32_0 = arith.constant 0 : i32
    %c0_i32_1 = arith.constant 0 : i32
    return %arg0, %c0_i32, %c0_i32_0 : i32, i32, i32
  }
  func.func @transform_7(%arg0: i32, %arg1: i32) -> (i32, i32, i32) {
    %c0_i32 = arith.constant 0 : i32
    %c0_i32_0 = arith.constant 0 : i32
    return %arg0, %c0_i32, %arg1 : i32, i32, i32
  }
}

</mosaic_0001>

<llo_original>
// kernel: aspp_forward.1
$region0: #{aspp_forward.1}
  #allocation0 [shape = 'u32[]', space=smem, size = 0x4, offset = 0x4, fixed_abs, tag = 'smem constant byte address 0x4 - core index']
  #allocation1 [shape = 'u32[144,128]{1,0:T(1,128)}', space=vmem, size = 0x12000, scoped, tag = 'internal scratch']
  %s0 = inlined_call_operand.vmem [shape: bf16[2,52,52,4], index: 0, kind: input, shape index: {}]
  %s1 = inlined_call_operand.vmem [shape: bf16[4,32], index: 1, kind: input, shape index: {}]
  %s2 = inlined_call_operand.vmem [shape: f32[1,32], index: 2, kind: input, shape index: {}]
  %s3 = inlined_call_operand.vmem [shape: bf16[3,36,32], index: 3, kind: input, shape index: {}]
  %s4 = inlined_call_operand.vmem [shape: f32[3,1,32], index: 4, kind: input, shape index: {}]
  %s5 = inlined_call_operand.vmem [shape: bf16[128,32], index: 5, kind: input, shape index: {}]
  %s6 = inlined_call_operand.vmem [shape: f32[2,1,32], index: 6, kind: input, shape index: {}]
  %s7 = inlined_call_operand.vmem [shape: f32[2,32,256], index: 7, kind: output, shape index: {}]
  %s8 = sld [smem:[#allocation0]]
  $region61: #{aspp_forward.1} parent=0
    _
  %s10 = ssub.s32 1, %s8
  %s11 = scalar_select 0, %s10, %s8
  loop: start=0, step=1, limit=4
  $region2: #{aspp_forward.1} parent=0 // loop_pre_header
    _
  $region3: #{aspp_forward.1} parent=0 // loop_header
    %s13 = sphi 0, %s17
    %p14 = scmp.ge.s32.totalorder %s13, 4
    %s20 = sphi 0, %s32
    %s21 = sphi 0, %s28
    %s22 = sphi 0, %s20
    %s23 = sphi 0, %s21
    %s24 = sphi 0, %s22
    %s25 = sphi 0, %s23
    %s35 = sphi 0, %s37
    %s38 = sphi 0, %s35
    %s39 = sphi 0, %s38
    %s55 = sphi 0, %s39
    %s59 = sphi 0, %s59
    %s61 = sphi 0, %s59
    %s62 = sphi 0, %s61
    %s76 = sphi 0, %s62
    %s80 = sphi 0, %s80
    %s82 = sphi 0, %s80
    %s83 = sphi 0, %s82
    %s97 = sphi 0, %s83
    %s101 = sphi 0, %s101
    %s103 = sphi 0, %s101
    %s104 = sphi 0, %s103
    %s118 = sphi 0, %s104
    %s122 = sphi 0, %s122
    %s124 = sphi 0, %s122
    %s125 = sphi 0, %s124
    %s139 = sphi 0, %s125
    %s143 = sphi 0, %s143
    %s145 = sphi 0, %s143
    %s146 = sphi 0, %s145
    %s160 = sphi 0, %s146
    %s166 = sphi 0, %s168
    %s169 = sphi 0, %s166
    %s170 = sphi 0, %s169
    %s186 = sphi 0, %s170
    %s194 = sphi 0, %s196
    %s197 = sphi 0, %s194
    %s198 = sphi 0, %s197
    %s214 = sphi 0, %s198
  $region4: #{aspp_forward.1} parent=0 // loop_header_branch
    %16 = sbr.rel (%p14) target = $region8
  $region5: #{aspp_forward.1} parent=0 // loop_body
    %s18 = ssub.s32 %s13, 1
    %s19 = ssub.s32 %s13, 2
    %s26 = sadd.s32 1, %s21
    %p27 = scmp.ge.s32.totalorder %s26, 1
    %s28 = scalar_select %p27, 0, %s26
    %s29 = sadd.s32 1, %s20
    %s30 = scalar_select %p27, %s29, %s20
    %p31 = scmp.ge.s32.totalorder %s30, 2
    %s32 = scalar_select %p31, 0, %s30
    %s33 = ssub.s32 %s20, %s32
    %p34 = scmp.eq.s32.totalorder %s33, 0
    %s36 = sadd.s32 %s35, 1
    %s37 = scalar_select %p34, %s35, %s36
    %p40 = pneg %p34
    %p41 = scmp.eq.s32.totalorder %s13, 1
    %p42 = por %p40, %p41
    %p43 = scmp.ne.s32.totalorder %s35, %s38
    %p44 = scmp.eq.s32.totalorder %s13, 0
    %p45 = por %p43, %p44
    %p46 = scmp.ne.s32.totalorder %s35, %s38
    %p47 = scmp.eq.s32.totalorder %s18, 1
    %p48 = por %p46, %p47
    %p49 = scmp.ne.s32.totalorder %s38, %s39
    %p50 = scmp.eq.s32.totalorder %s18, 0
    %p51 = por %p49, %p50
    %p52 = scmp.ne.s32.totalorder %s38, %s39
    %p53 = scmp.eq.s32.totalorder %s19, 1
    %p54 = por %p52, %p53
    %p56 = scmp.ne.s32.totalorder %s39, %s55
    %p57 = scmp.eq.s32.totalorder %s19, 0
    %p58 = por %p56, %p57
    %s60 = sadd.s32 %s59, 1
    %p63 = scmp.eq.s32.totalorder %s13, 1
    %p64 = scmp.ne.s32.totalorder %s59, %s61
    %p65 = scmp.eq.s32.totalorder %s13, 0
    %p66 = por %p64, %p65
    %p67 = scmp.ne.s32.totalorder %s59, %s61
    %p68 = scmp.eq.s32.totalorder %s18, 1
    %p69 = por %p67, %p68
    %p70 = scmp.ne.s32.totalorder %s61, %s62
    %p71 = scmp.eq.s32.totalorder %s18, 0
    %p72 = por %p70, %p71
    %p73 = scmp.ne.s32.totalorder %s61, %s62
    %p74 = scmp.eq.s32.totalorder %s19, 1
    %p75 = por %p73, %p74
    %p77 = scmp.ne.s32.totalorder %s62, %s76
    %p78 = scmp.eq.s32.totalorder %s19, 0
    %p79 = por %p77, %p78
    %s81 = sadd.s32 %s80, 1
    %p84 = scmp.eq.s32.totalorder %s13, 1
    %p85 = scmp.ne.s32.totalorder %s80, %s82
    %p86 = scmp.eq.s32.totalorder %s13, 0
    %p87 = por %p85, %p86
    %p88 = scmp.ne.s32.totalorder %s80, %s82
    %p89 = scmp.eq.s32.totalorder %s18, 1
    %p90 = por %p88, %p89
    %p91 = scmp.ne.s32.totalorder %s82, %s83
    %p92 = scmp.eq.s32.totalorder %s18, 0
    %p93 = por %p91, %p92
    %p94 = scmp.ne.s32.totalorder %s82, %s83
    %p95 = scmp.eq.s32.totalorder %s19, 1
    %p96 = por %p94, %p95
    %p98 = scmp.ne.s32.totalorder %s83, %s97
    %p99 = scmp.eq.s32.totalorder %s19, 0
    %p100 = por %p98, %p99
    %s102 = sadd.s32 %s101, 1
    %p105 = scmp.eq.s32.totalorder %s13, 1
    %p106 = scmp.ne.s32.totalorder %s101, %s103
    %p107 = scmp.eq.s32.totalorder %s13, 0
    %p108 = por %p106, %p107
    %p109 = scmp.ne.s32.totalorder %s101, %s103
    %p110 = scmp.eq.s32.totalorder %s18, 1
    %p111 = por %p109, %p110
    %p112 = scmp.ne.s32.totalorder %s103, %s104
    %p113 = scmp.eq.s32.totalorder %s18, 0
    %p114 = por %p112, %p113
    %p115 = scmp.ne.s32.totalorder %s103, %s104
    %p116 = scmp.eq.s32.totalorder %s19, 1
    %p117 = por %p115, %p116
    %p119 = scmp.ne.s32.totalorder %s104, %s118
    %p120 = scmp.eq.s32.totalorder %s19, 0
    %p121 = por %p119, %p120
    %s123 = sadd.s32 %s122, 1
    %p126 = scmp.eq.s32.totalorder %s13, 1
    %p127 = scmp.ne.s32.totalorder %s122, %s124
    %p128 = scmp.eq.s32.totalorder %s13, 0
    %p129 = por %p127, %p128
    %p130 = scmp.ne.s32.totalorder %s122, %s124
    %p131 = scmp.eq.s32.totalorder %s18, 1
    %p132 = por %p130, %p131
    %p133 = scmp.ne.s32.totalorder %s124, %s125
    %p134 = scmp.eq.s32.totalorder %s18, 0
    %p135 = por %p133, %p134
    %p136 = scmp.ne.s32.totalorder %s124, %s125
    %p137 = scmp.eq.s32.totalorder %s19, 1
    %p138 = por %p136, %p137
    %p140 = scmp.ne.s32.totalorder %s125, %s139
    %p141 = scmp.eq.s32.totalorder %s19, 0
    %p142 = por %p140, %p141
    %s144 = sadd.s32 %s143, 1
    %p147 = scmp.eq.s32.totalorder %s13, 1
    %p148 = scmp.ne.s32.totalorder %s143, %s145
    %p149 = scmp.eq.s32.totalorder %s13, 0
    %p150 = por %p148, %p149
    %p151 = scmp.ne.s32.totalorder %s143, %s145
    %p152 = scmp.eq.s32.totalorder %s18, 1
    %p153 = por %p151, %p152
    %p154 = scmp.ne.s32.totalorder %s145, %s146
    %p155 = scmp.eq.s32.totalorder %s18, 0
    %p156 = por %p154, %p155
    %p157 = scmp.ne.s32.totalorder %s145, %s146
    %p158 = scmp.eq.s32.totalorder %s19, 1
    %p159 = por %p157, %p158
    %p161 = scmp.ne.s32.totalorder %s146, %s160
    %p162 = scmp.eq.s32.totalorder %s19, 0
    %p163 = por %p161, %p162
    %s164 = ssub.s32 %s20, %s32
    %p165 = scmp.eq.s32.totalorder %s164, 0
    %s167 = sadd.s32 %s166, 1
    %s168 = scalar_select %p165, %s166, %s167
    %p171 = pneg %p165
    %p172 = scmp.eq.s32.totalorder %s13, 1
    %p173 = por %p171, %p172
    %p174 = scmp.ne.s32.totalorder %s166, %s169
    %p175 = scmp.eq.s32.totalorder %s13, 0
    %p176 = por %p174, %p175
    %p177 = scmp.ne.s32.totalorder %s166, %s169
    %p178 = scmp.eq.s32.totalorder %s18, 1
    %p179 = por %p177, %p178
    %p180 = scmp.ne.s32.totalorder %s169, %s170
    %p181 = scmp.eq.s32.totalorder %s18, 0
    %p182 = por %p180, %p181
    %p183 = scmp.ne.s32.totalorder %s169, %s170
    %p184 = scmp.eq.s32.totalorder %s19, 1
    %p185 = por %p183, %p184
    %p187 = scmp.ne.s32.totalorder %s170, %s186
    %p188 = scmp.eq.s32.totalorder %s19, 0
    %p189 = por %p187, %p188
    %s190 = ssub.s32 %s20, %s32
    %s191 = ssub.s32 %s21, %s28
    %s192 = sor.u32 %s190, %s191
    %p193 = scmp.eq.s32.totalorder %s192, 0
    %s195 = sadd.s32 %s194, 1
    %s196 = scalar_select %p193, %s194, %s195
    %p199 = pneg %p193
    %p200 = scmp.eq.s32.totalorder %s13, 1
    %p201 = por %p199, %p200
    %p202 = scmp.ne.s32.totalorder %s194, %s197
    %p203 = scmp.eq.s32.totalorder %s13, 0
    %p204 = por %p202, %p203
    %p205 = scmp.ne.s32.totalorder %s194, %s197
    %p206 = scmp.eq.s32.totalorder %s18, 1
    %p207 = por %p205, %p206
    %p208 = scmp.ne.s32.totalorder %s197, %s198
    %p209 = scmp.eq.s32.totalorder %s18, 0
    %p210 = por %p208, %p209
    %p211 = scmp.ne.s32.totalorder %s197, %s198
    %p212 = scmp.eq.s32.totalorder %s19, 1
    %p213 = por %p211, %p212
    %p215 = scmp.ne.s32.totalorder %s198, %s214
    %p216 = scmp.eq.s32.totalorder %s19, 0
    %p217 = por %p215, %p216
    %p218 = scmp.le.s32.totalorder 1, %s13
    %p219 = scmp.lt.s32.totalorder %s13, 3
    %p220 = pnand %p218, %p219
    %p221 = pneg %p220
    // Predicated region
    $region9: #{aspp_forward.1} parent=5 // pred_check
      _
    $region10: #{aspp_forward.1} parent=5 // pred_check_branch
      %223 = sbr.rel (%p220) target = $region12
    $region11: #{aspp_forward.1} parent=5 // pred_region
      %s224 = ssub.s32 %s13, 1
      // Predicated region
      $region13: #{aspp_forward.1} parent=11 // pred_check
        %p225 = pneg %p72
      $region14: #{aspp_forward.1} parent=11 // pred_check_branch
        %227 = sbr.rel (%p225) target = $region16
      $region15: #{aspp_forward.1} parent=11 // pred_region
        _
      $region16: #{aspp_forward.1} parent=11 // pred_fallthru
        _
      // Predicated region
      $region17: #{aspp_forward.1} parent=11 // pred_check
        %p228 = pneg %p93
      $region18: #{aspp_forward.1} parent=11 // pred_check_branch
        %230 = sbr.rel (%p228) target = $region20
      $region19: #{aspp_forward.1} parent=11 // pred_region
        _
      $region20: #{aspp_forward.1} parent=11 // pred_fallthru
        _
      // Predicated region
      $region21: #{aspp_forward.1} parent=11 // pred_check
        %p231 = pneg %p114
      $region22: #{aspp_forward.1} parent=11 // pred_check_branch
        %233 = sbr.rel (%p231) target = $region24
      $region23: #{aspp_forward.1} parent=11 // pred_region
        _
      $region24: #{aspp_forward.1} parent=11 // pred_fallthru
        _
      // Predicated region
      $region25: #{aspp_forward.1} parent=11 // pred_check
        %p234 = pneg %p135
      $region26: #{aspp_forward.1} parent=11 // pred_check_branch
        %236 = sbr.rel (%p234) target = $region28
      $region27: #{aspp_forward.1} parent=11 // pred_region
        _
      $region28: #{aspp_forward.1} parent=11 // pred_fallthru
        _
      // Predicated region
      $region29: #{aspp_forward.1} parent=11 // pred_check
        %p237 = pneg %p156
      $region30: #{aspp_forward.1} parent=11 // pred_check_branch
        %239 = sbr.rel (%p237) target = $region32
      $region31: #{aspp_forward.1} parent=11 // pred_region
        _
      $region32: #{aspp_forward.1} parent=11 // pred_fallthru
        _
    $region12: #{aspp_forward.1} parent=5 // pred_fallthru
      _
    %p240 = scmp.lt.s32.totalorder %s13, 2
    // Predicated region
    $region33: #{aspp_forward.1} parent=5 // pred_check
      %p241 = pneg %p240
    $region34: #{aspp_forward.1} parent=5 // pred_check_branch
      %243 = sbr.rel (%p241) target = $region36
    $region35: #{aspp_forward.1} parent=5 // pred_region
      // Predicated region
      $region37: #{aspp_forward.1} parent=35 // pred_check
        %p244 = pneg %p45
      $region38: #{aspp_forward.1} parent=35 // pred_check_branch
        %246 = sbr.rel (%p244) target = $region40
      $region39: #{aspp_forward.1} parent=35 // pred_region
        %p247 = scmp.lt.s32.totalorder %s20, 1
        %s248 = scalar_select %p247, %s20, 1
        %s249 = smul.addr %s248, 364
        %s250 = smul.addr %s249, 4
        %s251 = scalar_lea.vmem %s0, %s250
      $region40: #{aspp_forward.1} parent=35 // pred_fallthru
        _
      // Predicated region
      $region41: #{aspp_forward.1} parent=35 // pred_check
        %p252 = pneg %p176
      $region42: #{aspp_forward.1} parent=35 // pred_check_branch
        %254 = sbr.rel (%p252) target = $region44
      $region43: #{aspp_forward.1} parent=35 // pred_region
        %p255 = scmp.lt.s32.totalorder %s20, 1
        %s256 = scalar_select %p255, %s20, 1
        %s257 = scalar_lea.vmem %s6, %s256
      $region44: #{aspp_forward.1} parent=35 // pred_fallthru
        _
    $region36: #{aspp_forward.1} parent=5 // pred_fallthru
      _
    %p258 = scmp.le.s32.totalorder 1, %s13
    %p259 = scmp.lt.s32.totalorder %s13, 3
    %p260 = pnand %p258, %p259
    %p261 = pneg %p260
    // Predicated region
    $region45: #{aspp_forward.1} parent=5 // pred_check
      _
    $region46: #{aspp_forward.1} parent=5 // pred_check_branch
      %263 = sbr.rel (%p260) target = $region48
    $region47: #{aspp_forward.1} parent=5 // pred_region
      %s264 = ssub.s32 %s13, 1
      %p265 = scmp.lt.s32.totalorder %s22, 1
      %s266 = scalar_select %p265, %s22, 1
      %s267 = smul.addr %s266, 364
      %s268 = smul.addr %s267, 4
      %s269 = scalar_lea.vmem %s0, %s268
      %p270 = pneg %p51
      %p271 = pneg %p48
      %p272 = pneg %p72
      %p273 = pneg %p69
      %p274 = pneg %p93
      %p275 = pneg %p90
      %p276 = pneg %p114
      %p277 = pneg %p111
      %p278 = pneg %p135
      %p279 = pneg %p132
      %p280 = pneg %p156
      %p281 = pneg %p153
      %p282 = scmp.lt.s32.totalorder %s22, 1
      %s283 = scalar_select %p282, %s22, 1
      %s284 = scalar_lea.vmem %s6, %s283
      %p285 = pneg %p182
      %p286 = pneg %p179
      %p287 = pneg %p210
      %p288 = pneg %p207
      %s289 = smul.u32 2, %s23
      %p290 = scmp.lt.s32.totalorder %s22, 1
      %s291 = scalar_select %p290, %s22, 1
      %p292 = scmp.lt.s32.totalorder %s289, 1
      %s293 = scalar_select %p292, %s289, 1
      %s294 = smul.addr %s291, 8
      %s295 = sadd.s32 %s293, %s294
      %s296 = smul.addr %s295, 8
      %s297 = scalar_lea.vmem %s7, %s296
      %p298 = scmp.lt.s32.totalorder %s22, 1
      %s299 = scalar_select %p298, %s22, 1
      %s300 = smul.addr %s299, 364
      %s301 = smul.addr %s300, 4
      %s302 = scalar_lea.vmem %s0, %s301
      %p303 = scmp.lt.s32.totalorder %s22, 1
      %s304 = scalar_select %p303, %s22, 1
      %s305 = scalar_lea.vmem %s6, %s304
      %s306 = smul.u32 2, %s23
      %p307 = scmp.lt.s32.totalorder %s22, 1
      %s308 = scalar_select %p307, %s22, 1
      %p309 = scmp.lt.s32.totalorder %s306, 1
      %s310 = scalar_select %p309, %s306, 1
      %s311 = smul.addr %s308, 8
      %s312 = sadd.s32 %s310, %s311
      %s313 = smul.addr %s312, 8
      %s314 = scalar_lea.vmem %s7, %s313
      %s315 = smul.u32 2, %s23
      %s317 = smul.u32 %s23, 16
      %s318 = sadd.s32 %s317, 18
      %s319 = smul.u32 %s318, 7
      %s320 = smul.addr %s319, 4
      %s321 = scalar_lea.vmem %s302, %s320
      %v322 = vld [vmem:[%s321 + $0x8] sm:$0xe]
      %v323 = vld [vmem:[%s321 + $0xc] sm:$0xf]
      %v324 = vld [vmem:[%s321 + $0x10] sm:$0x1]
      %v325 = vld [vmem:[%s321 + $0x24] sm:$0xe]
      %v326 = vld [vmem:[%s321 + $0x28] sm:$0xf]
      %v327 = vld [vmem:[%s321 + $0x2c] sm:$0x1]
      %v328 = vld [vmem:[%s321 + $0x40] sm:$0xe]
      %v329 = vld [vmem:[%s321 + $0x44] sm:$0xf]
      %v330 = vld [vmem:[%s321 + $0x48] sm:$0x1]
      %v331 = vld [vmem:[%s321 + $0x5c] sm:$0xe]
      %v332 = vld [vmem:[%s321 + $0x60] sm:$0xf]
      %v333 = vld [vmem:[%s321 + $0x64] sm:$0x1]
      %v334 = vld [vmem:[%s321 + $0x78] sm:$0xe]
      %v335 = vld [vmem:[%s321 + $0x7c] sm:$0xf]
      %v336 = vld [vmem:[%s321 + $0x80] sm:$0x1]
      %v337 = vld [vmem:[%s321 + $0x94] sm:$0xe]
      %v338 = vld [vmem:[%s321 + $0x98] sm:$0xf]
      %v339 = vld [vmem:[%s321 + $0x9c] sm:$0x1]
      %v340 = vld [vmem:[%s321 + $0xb0] sm:$0xe]
      %v341 = vld [vmem:[%s321 + $0xb4] sm:$0xf]
      %v342 = vld [vmem:[%s321 + $0xb8] sm:$0x1]
      %v343 = vld [vmem:[%s321 + $0xcc] sm:$0xe]
      %v344 = vld [vmem:[%s321 + $0xd0] sm:$0xf]
      %v345 = vld [vmem:[%s321 + $0xd4] sm:$0x1]
      %v346 = vld [vmem:[%s321 + $0xe8] sm:$0xe]
      %v347 = vld [vmem:[%s321 + $0xec] sm:$0xf]
      %v348 = vld [vmem:[%s321 + $0xf0] sm:$0x1]
      %v349 = vld [vmem:[%s321 + $0x104] sm:$0xe]
      %v350 = vld [vmem:[%s321 + $0x108] sm:$0xf]
      %v351 = vld [vmem:[%s321 + $0x10c] sm:$0x1]
      %v352 = vld [vmem:[%s321 + $0x120] sm:$0xe]
      %v353 = vld [vmem:[%s321 + $0x124] sm:$0xf]
      %v354 = vld [vmem:[%s321 + $0x128] sm:$0x1]
      %v355 = vld [vmem:[%s321 + $0x13c] sm:$0xe]
      %v356 = vld [vmem:[%s321 + $0x140] sm:$0xf]
      %v357 = vld [vmem:[%s321 + $0x144] sm:$0x1]
      %v358 = vld [vmem:[%s321 + $0x158] sm:$0xe]
      %v359 = vld [vmem:[%s321 + $0x15c] sm:$0xf]
      %v360 = vld [vmem:[%s321 + $0x160] sm:$0x1]
      %v361 = vld [vmem:[%s321 + $0x174] sm:$0xe]
      %v362 = vld [vmem:[%s321 + $0x178] sm:$0xf]
      %v363 = vld [vmem:[%s321 + $0x17c] sm:$0x1]
      %v364 = vld [vmem:[%s321 + $0x190] sm:$0xe]
      %v365 = vld [vmem:[%s321 + $0x194] sm:$0xf]
      %v366 = vld [vmem:[%s321 + $0x198] sm:$0x1]
      %v367 = vld [vmem:[%s321 + $0x1ac] sm:$0xe]
      %v368 = vld [vmem:[%s321 + $0x1b0] sm:$0xf]
      %v369 = vld [vmem:[%s321 + $0x1b4] sm:$0x1]
      %vm418 = vcmask 1042432
      %vm419 = vcmask 1046532
      %vm420 = vmor %vm418, %vm419
      %v421 = vrot.slane %v322, 5
      %v422 = vrot.slane %v421, 4
      %v423 = vrot.slane %v323, 5
      %v424 = vsel %vm420, %v422, %v423
      %v425 = vrot.slane %v423, 4
      %v426 = vrot.slane %v324, 5
      %v427 = vsel %vm420, %v425, %v426
      %v428 = vrot.slane %v325, 5
      %v429 = vrot.slane %v428, 4
      %v430 = vrot.slane %v326, 5
      %v431 = vsel %vm420, %v429, %v430
      %v432 = vrot.slane %v430, 4
      %v433 = vrot.slane %v327, 5
      %v434 = vsel %vm420, %v432, %v433
      %v435 = vrot.slane %v328, 5
      %v436 = vrot.slane %v435, 4
      %v437 = vrot.slane %v329, 5
      %v438 = vsel %vm420, %v436, %v437
      %v439 = vrot.slane %v437, 4
      %v440 = vrot.slane %v330, 5
      %v441 = vsel %vm420, %v439, %v440
      %v442 = vrot.slane %v331, 5
      %v443 = vrot.slane %v442, 4
      %v444 = vrot.slane %v332, 5
      %v445 = vsel %vm420, %v443, %v444
      %v446 = vrot.slane %v444, 4
      %v447 = vrot.slane %v333, 5
      %v448 = vsel %vm420, %v446, %v447
      %v449 = vrot.slane %v334, 5
      %v450 = vrot.slane %v449, 4
      %v451 = vrot.slane %v335, 5
      %v452 = vsel %vm420, %v450, %v451
      %v453 = vrot.slane %v451, 4
      %v454 = vrot.slane %v336, 5
      %v455 = vsel %vm420, %v453, %v454
      %v456 = vrot.slane %v337, 5
      %v457 = vrot.slane %v456, 4
      %v458 = vrot.slane %v338, 5
      %v459 = vsel %vm420, %v457, %v458
      %v460 = vrot.slane %v458, 4
      %v461 = vrot.slane %v339, 5
      %v462 = vsel %vm420, %v460, %v461
      %v463 = vrot.slane %v340, 5
      %v464 = vrot.slane %v463, 4
      %v465 = vrot.slane %v341, 5
      %v466 = vsel %vm420, %v464, %v465
      %v467 = vrot.slane %v465, 4
      %v468 = vrot.slane %v342, 5
      %v469 = vsel %vm420, %v467, %v468
      %v470 = vrot.slane %v343, 5
      %v471 = vrot.slane %v470, 4
      %v472 = vrot.slane %v344, 5
      %v473 = vsel %vm420, %v471, %v472
      %v474 = vrot.slane %v472, 4
      %v475 = vrot.slane %v345, 5
      %v476 = vsel %vm420, %v474, %v475
      %v477 = vrot.slane %v346, 5
      %v478 = vrot.slane %v477, 4
      %v479 = vrot.slane %v347, 5
      %v480 = vsel %vm420, %v478, %v479
      %v481 = vrot.slane %v479, 4
      %v482 = vrot.slane %v348, 5
      %v483 = vsel %vm420, %v481, %v482
      %v484 = vrot.slane %v349, 5
      %v485 = vrot.slane %v484, 4
      %v486 = vrot.slane %v350, 5
      %v487 = vsel %vm420, %v485, %v486
      %v488 = vrot.slane %v486, 4
      %v489 = vrot.slane %v351, 5
      %v490 = vsel %vm420, %v488, %v489
      %v491 = vrot.slane %v352, 5
      %v492 = vrot.slane %v491, 4
      %v493 = vrot.slane %v353, 5
      %v494 = vsel %vm420, %v492, %v493
      %v495 = vrot.slane %v493, 4
      %v496 = vrot.slane %v354, 5
      %v497 = vsel %vm420, %v495, %v496
      %v498 = vrot.slane %v355, 5
      %v499 = vrot.slane %v498, 4
      %v500 = vrot.slane %v356, 5
      %v501 = vsel %vm420, %v499, %v500
      %v502 = vrot.slane %v500, 4
      %v503 = vrot.slane %v357, 5
      %v504 = vsel %vm420, %v502, %v503
      %v505 = vrot.slane %v358, 5
      %v506 = vrot.slane %v505, 4
      %v507 = vrot.slane %v359, 5
      %v508 = vsel %vm420, %v506, %v507
      %v509 = vrot.slane %v507, 4
      %v510 = vrot.slane %v360, 5
      %v511 = vsel %vm420, %v509, %v510
      %v512 = vrot.slane %v361, 5
      %v513 = vrot.slane %v512, 4
      %v514 = vrot.slane %v362, 5
      %v515 = vsel %vm420, %v513, %v514
      %v516 = vrot.slane %v514, 4
      %v517 = vrot.slane %v363, 5
      %v518 = vsel %vm420, %v516, %v517
      %v519 = vrot.slane %v364, 5
      %v520 = vrot.slane %v519, 4
      %v521 = vrot.slane %v365, 5
      %v522 = vsel %vm420, %v520, %v521
      %v523 = vrot.slane %v521, 4
      %v524 = vrot.slane %v366, 5
      %v525 = vsel %vm420, %v523, %v524
      %v526 = vrot.slane %v367, 5
      %v527 = vrot.slane %v526, 4
      %v528 = vrot.slane %v368, 5
      %v529 = vsel %vm420, %v527, %v528
      %v530 = vrot.slane %v528, 4
      %v531 = vrot.slane %v369, 5
      %v532 = vsel %vm420, %v530, %v531
      %v533 = vld [vmem:[%s1] sm:$0x3]
      %v534 = vld [vmem:[%s2] sm:$0x1]
      %v536 = vlaneseq
      %v537 = vshrl.u32 %v536, 7
      %v538 = vsub.s32 0, %v537
      %v539 = vrot.slane %v534, %v538
      %v541 = vunpack.c.l.b16 %v424
      %v542 = vunpack.c.l.b16 %v427
      %v543 = vunpack.c.l.b16 %v431
      %v544 = vunpack.c.l.b16 %v434
      %v545 = vunpack.c.l.b16 %v438
      %v546 = vunpack.c.l.b16 %v441
      %v547 = vunpack.c.l.b16 %v445
      %v548 = vunpack.c.l.b16 %v448
      %v549 = vunpack.c.l.b16 %v452
      %v550 = vunpack.c.l.b16 %v455
      %v551 = vunpack.c.l.b16 %v459
      %v552 = vunpack.c.l.b16 %v462
      %v553 = vunpack.c.l.b16 %v466
      %v554 = vunpack.c.l.b16 %v469
      %v555 = vunpack.c.l.b16 %v473
      %v556 = vunpack.c.l.b16 %v476
      %v557 = vunpack.c.l.b16 %v480
      %v558 = vunpack.c.l.b16 %v483
      %v559 = vunpack.c.l.b16 %v487
      %v560 = vunpack.c.l.b16 %v490
      %v561 = vunpack.c.l.b16 %v494
      %v562 = vunpack.c.l.b16 %v497
      %v563 = vunpack.c.l.b16 %v501
      %v564 = vunpack.c.l.b16 %v504
      %v565 = vunpack.c.l.b16 %v508
      %v566 = vunpack.c.l.b16 %v511
      %v567 = vunpack.c.l.b16 %v515
      %v568 = vunpack.c.l.b16 %v518
      %v569 = vunpack.c.l.b16 %v522
      %v570 = vunpack.c.l.b16 %v525
      %v571 = vunpack.c.l.b16 %v529
      %v572 = vunpack.c.l.b16 %v532
      %v573 = vpack.c.b16 %v542, %v541
      %v574 = vpack.c.b16 %v544, %v543
      %v575 = vpack.c.b16 %v546, %v545
      %v576 = vpack.c.b16 %v548, %v547
      %v577 = vpack.c.b16 %v550, %v549
      %v578 = vpack.c.b16 %v552, %v551
      %v579 = vpack.c.b16 %v554, %v553
      %v580 = vpack.c.b16 %v556, %v555
      %v581 = vpack.c.b16 %v558, %v557
      %v582 = vpack.c.b16 %v560, %v559
      %v583 = vpack.c.b16 %v562, %v561
      %v584 = vpack.c.b16 %v564, %v563
      %v585 = vpack.c.b16 %v566, %v565
      %v586 = vpack.c.b16 %v568, %v567
      %v587 = vpack.c.b16 %v570, %v569
      %v588 = vpack.c.b16 %v572, %v571
      %vm589 = vcmask 31744
      %v591 = vsel %vm589, %v573, 0
      %v594 = vsel %vm589, %v574, 0
      %v597 = vsel %vm589, %v575, 0
      %v600 = vsel %vm589, %v576, 0
      %v603 = vsel %vm589, %v577, 0
      %v606 = vsel %vm589, %v578, 0
      %v609 = vsel %vm589, %v579, 0
      %v612 = vsel %vm589, %v580, 0
      %v615 = vsel %vm589, %v581, 0
      %v618 = vsel %vm589, %v582, 0
      %v621 = vsel %vm589, %v583, 0
      %v624 = vsel %vm589, %v584, 0
      %v627 = vsel %vm589, %v585, 0
      %v630 = vsel %vm589, %v586, 0
      %v633 = vsel %vm589, %v587, 0
      %v636 = vsel %vm589, %v588, 0
      %vm638 = vcmask 1041408
      %v640 = vsel %vm638, %v533, 0
      %642 = vmatprep.subr.bf16.mxu0 0
      %643 = vmatpush1.bf16.msra.mxu0 %v640
      %644 = vmatprep.subr.bf16.mxu0 0
      %645 = vmatpush1.bf16.msra.mxu0 0
      %646 = vmatprep.subr.bf16.mxu0 0
      %647 = vmatpush1.bf16.msra.mxu0 0
      %648 = vmatprep.subr.bf16.mxu0 0
      %649 = vmatpush1.bf16.msra.mxu0 0
      %650 = vmatprep.subr.bf16.mxu0 0
      %651 = vmatpush1.bf16.msra.mxu0 0
      %652 = vmatprep.subr.bf16.mxu0 0
      %653 = vmatpush1.bf16.msra.mxu0 0
      %654 = vmatprep.subr.bf16.mxu0 0
      %655 = vmatpush1.bf16.msra.mxu0 0
      %656 = vmatprep.subr.bf16.mxu0 0
      %657 = vmatpush1.bf16.msra.mxu0 0
      %658 = vmatprep.subr.bf16.mxu0 0
      %659 = vmatpush1.bf16.msra.mxu0 0
      %660 = vmatprep.subr.bf16.mxu0 0
      %661 = vmatpush1.bf16.msra.mxu0 0
      %662 = vmatprep.subr.bf16.mxu0 0
      %663 = vmatpush1.bf16.msra.mxu0 0
      %664 = vmatprep.subr.bf16.mxu0 0
      %665 = vmatpush1.bf16.msra.mxu0 0
      %666 = vmatprep.subr.bf16.mxu0 0
      %667 = vmatpush1.bf16.msra.mxu0 0
      %668 = vmatprep.subr.bf16.mxu0 0
      %669 = vmatpush1.bf16.msra.mxu0 0
      %670 = vmatprep.subr.bf16.mxu0 0
      %671 = vmatpush1.bf16.msra.mxu0 0
      %672 = vmatprep.subr.bf16.mxu0 0
      %673 = vmatpush1.bf16.msra.mxu0 0
      %674 = vmatprep.mubr.bf16.mxu0 0
      %675 = vmatmul.mubr.bf16.gmra.mrb[0].mxu0 %v591
      %v676 = vpop.f32.mrb[0].mxu0
      %v677 = vadd.f32 %v539, %v676
      %v678 = vpop.f32.mrb[0].mxu0
      %v679 = vpop.f32.mrb[0].mxu0
      %v680 = vadd.f32 %v539, %v679
      %v681 = vpop.f32.mrb[0].mxu0
      %682 = vmatprep.mubr.bf16.mxu0 0
      %683 = vmatmul.mubr.bf16.gmra.mrb[0].mxu0 %v594
      %v684 = vpop.f32.mrb[0].mxu0
      %v685 = vadd.f32 %v539, %v684
      %v686 = vpop.f32.mrb[0].mxu0
      %v687 = vpop.f32.mrb[0].mxu0
      %v688 = vadd.f32 %v539, %v687
      %v689 = vpop.f32.mrb[0].mxu0
      %690 = vmatprep.mubr.bf16.mxu0 0
      %691 = vmatmul.mubr.bf16.gmra.mrb[0].mxu0 %v597
      %v692 = vpop.f32.mrb[0].mxu0
      %v693 = vadd.f32 %v539, %v692
      %v694 = vpop.f32.mrb[0].mxu0
      %v695 = vpop.f32.mrb[0].mxu0
      %v696 = vadd.f32 %v539, %v695
      %v697 = vpop.f32.mrb[0].mxu0
      %698 = vmatprep.mubr.bf16.mxu0 0
      %699 = vmatmul.mubr.bf16.gmra.mrb[0].mxu0 %v600
      %v700 = vpop.f32.mrb[0].mxu0
      %v701 = vadd.f32 %v539, %v700
      %v702 = vpop.f32.mrb[0].mxu0
      %v703 = vpop.f32.mrb[0].mxu0
      %v704 = vadd.f32 %v539, %v703
      %v705 = vpop.f32.mrb[0].mxu0
      %706 = vmatprep.mubr.bf16.mxu0 0
      %707 = vmatmul.mubr.bf16.gmra.mrb[0].mxu0 %v603
      %v708 = vpop.f32.mrb[0].mxu0
      %v709 = vadd.f32 %v539, %v708
      %v710 = vpop.f32.mrb[0].mxu0
      %v711 = vpop.f32.mrb[0].mxu0
      %v712 = vadd.f32 %v539, %v711
      %v713 = vpop.f32.mrb[0].mxu0
      %714 = vmatprep.mubr.bf16.mxu0 0
      %715 = vmatmul.mubr.bf16.gmra.mrb[0].mxu0 %v606
      %v716 = vpop.f32.mrb[0].mxu0
      %v717 = vadd.f32 %v539, %v716
      %v718 = vpop.f32.mrb[0].mxu0
      %v719 = vpop.f32.mrb[0].mxu0
      %v720 = vadd.f32 %v539, %v719
      %v721 = vpop.f32.mrb[0].mxu0
      %722 = vmatprep.mubr.bf16.mxu0 0
      %723 = vmatmul.mubr.bf16.gmra.mrb[0].mxu0 %v609
      %v724 = vpop.f32.mrb[0].mxu0
      %v725 = vadd.f32 %v539, %v724
      %v726 = vpop.f32.mrb[0].mxu0
      %v727 = vpop.f32.mrb[0].mxu0
      %v728 = vadd.f32 %v539, %v727
      %v729 = vpop.f32.mrb[0].mxu0
      %730 = vmatprep.mubr.bf16.mxu0 0
      %731 = vmatmul.mubr.bf16.gmra.mrb[0].mxu0 %v612
      %v732 = vpop.f32.mrb[0].mxu0
      %v733 = vadd.f32 %v539, %v732
      %v734 = vpop.f32.mrb[0].mxu0
      %v735 = vpop.f32.mrb[0].mxu0
      %v736 = vadd.f32 %v539, %v735
      %v737 = vpop.f32.mrb[0].mxu0
      %738 = vmatprep.mubr.bf16.mxu0 0
      %739 = vmatmul.mubr.bf16.gmra.mrb[0].mxu0 %v615
      %v740 = vpop.f32.mrb[0].mxu0
      %v741 = vadd.f32 %v539, %v740
      %v742 = vpop.f32.mrb[0].mxu0
      %v743 = vpop.f32.mrb[0].mxu0
      %v744 = vadd.f32 %v539, %v743
      %v745 = vpop.f32.mrb[0].mxu0
      %746 = vmatprep.mubr.bf16.mxu0 0
      %747 = vmatmul.mubr.bf16.gmra.mrb[0].mxu0 %v618
      %v748 = vpop.f32.mrb[0].mxu0
      %v749 = vadd.f32 %v539, %v748
      %v750 = vpop.f32.mrb[0].mxu0
      %v751 = vpop.f32.mrb[0].mxu0
      %v752 = vadd.f32 %v539, %v751
      %v753 = vpop.f32.mrb[0].mxu0
      %754 = vmatprep.mubr.bf16.mxu0 0
      %755 = vmatmul.mubr.bf16.gmra.mrb[0].mxu0 %v621
      %v756 = vpop.f32.mrb[0].mxu0
      %v757 = vadd.f32 %v539, %v756
      %v758 = vpop.f32.mrb[0].mxu0
      %v759 = vpop.f32.mrb[0].mxu0
      %v760 = vadd.f32 %v539, %v759
      %v761 = vpop.f32.mrb[0].mxu0
      %762 = vmatprep.mubr.bf16.mxu0 0
      %763 = vmatmul.mubr.bf16.gmra.mrb[0].mxu0 %v624
      %v764 = vpop.f32.mrb[0].mxu0
      %v765 = vadd.f32 %v539, %v764
      %v766 = vpop.f32.mrb[0].mxu0
      %v767 = vpop.f32.mrb[0].mxu0
      %v768 = vadd.f32 %v539, %v767
      %v769 = vpop.f32.mrb[0].mxu0
      %770 = vmatprep.mubr.bf16.mxu0 0
      %771 = vmatmul.mubr.bf16.gmra.mrb[0].mxu0 %v627
      %v772 = vpop.f32.mrb[0].mxu0
      %v773 = vadd.f32 %v539, %v772
      %v774 = vpop.f32.mrb[0].mxu0
      %v775 = vpop.f32.mrb[0].mxu0
      %v776 = vadd.f32 %v539, %v775
      %v777 = vpop.f32.mrb[0].mxu0
      %778 = vmatprep.mubr.bf16.mxu0 0
      %779 = vmatmul.mubr.bf16.gmra.mrb[0].mxu0 %v630
      %v780 = vpop.f32.mrb[0].mxu0
      %v781 = vadd.f32 %v539, %v780
      %v782 = vpop.f32.mrb[0].mxu0
      %v783 = vpop.f32.mrb[0].mxu0
      %v784 = vadd.f32 %v539, %v783
      %v785 = vpop.f32.mrb[0].mxu0
      %786 = vmatprep.mubr.bf16.mxu0 0
      %787 = vmatmul.mubr.bf16.gmra.mrb[0].mxu0 %v633
      %v788 = vpop.f32.mrb[0].mxu0
      %v789 = vadd.f32 %v539, %v788
      %v790 = vpop.f32.mrb[0].mxu0
      %v791 = vpop.f32.mrb[0].mxu0
      %v792 = vadd.f32 %v539, %v791
      %v793 = vpop.f32.mrb[0].mxu0
      %794 = vmatprep.mubr.bf16.mxu0 0
      %795 = vmatmul.mubr.bf16.gmra.mrb[0].mxu0 %v636
      %v796 = vpop.f32.mrb[0].mxu0
      %v797 = vadd.f32 %v539, %v796
      %v798 = vpop.f32.mrb[0].mxu0
      %v799 = vpop.f32.mrb[0].mxu0
      %v800 = vadd.f32 %v539, %v799
      %v801 = vpop.f32.mrb[0].mxu0
      %802 = vdwg.mxu0
      %v803 = vmax.f32 %v677, 0.0
      %v804 = vmax.f32 %v680, 0.0
      %v805 = vmax.f32 %v685, 0.0
      %v806 = vmax.f32 %v688, 0.0
      %v807 = vmax.f32 %v693, 0.0
      %v808 = vmax.f32 %v696, 0.0
      %v809 = vmax.f32 %v701, 0.0
      %v810 = vmax.f32 %v704, 0.0
      %v811 = vmax.f32 %v709, 0.0
      %v812 = vmax.f32 %v712, 0.0
      %v813 = vmax.f32 %v717, 0.0
      %v814 = vmax.f32 %v720, 0.0
      %v815 = vmax.f32 %v725, 0.0
      %v816 = vmax.f32 %v728, 0.0
      %v817 = vmax.f32 %v733, 0.0
      %v818 = vmax.f32 %v736, 0.0
      %v819 = vmax.f32 %v741, 0.0
      %v820 = vmax.f32 %v744, 0.0
      %v821 = vmax.f32 %v749, 0.0
      %v822 = vmax.f32 %v752, 0.0
      %v823 = vmax.f32 %v757, 0.0
      %v824 = vmax.f32 %v760, 0.0
      %v825 = vmax.f32 %v765, 0.0
      %v826 = vmax.f32 %v768, 0.0
      %v827 = vmax.f32 %v773, 0.0
      %v828 = vmax.f32 %v776, 0.0
      %v829 = vmax.f32 %v781, 0.0
      %v830 = vmax.f32 %v784, 0.0
      %v831 = vmax.f32 %v789, 0.0
      %v832 = vmax.f32 %v792, 0.0
      %v833 = vmax.f32 %v797, 0.0
      %v834 = vmax.f32 %v800, 0.0
      %v835 = vpack.c.bf16 %v804, %v803
      %v836 = vpack.c.bf16 %v806, %v805
      %v837 = vpack.c.bf16 %v808, %v807
      %v838 = vpack.c.bf16 %v810, %v809
      %v839 = vpack.c.bf16 %v812, %v811
      %v840 = vpack.c.bf16 %v814, %v813
      %v841 = vpack.c.bf16 %v816, %v815
      %v842 = vpack.c.bf16 %v818, %v817
      %v843 = vpack.c.bf16 %v820, %v819
      %v844 = vpack.c.bf16 %v822, %v821
      %v845 = vpack.c.bf16 %v824, %v823
      %v846 = vpack.c.bf16 %v826, %v825
      %v847 = vpack.c.bf16 %v828, %v827
      %v848 = vpack.c.bf16 %v830, %v829
      %v849 = vpack.c.bf16 %v832, %v831
      %v850 = vpack.c.bf16 %v834, %v833
      %s851 = sadd.s32 %s317, 6
      %s852 = smul.u32 %s851, 7
      %s853 = smul.addr %s852, 4
      %s854 = scalar_lea.vmem %s302, %s853
      %v855 = vld [vmem:[%s854] sm:$0x8]
      %v856 = vld [vmem:[%s854 + $0x4] sm:$0xf]
      %v857 = vld [vmem:[%s854 + $0x8] sm:$0x7]
      %v858 = vld [vmem:[%s854 + $0x1c] sm:$0x8]
      %v859 = vld [vmem:[%s854 + $0x20] sm:$0xf]
      %v860 = vld [vmem:[%s854 + $0x24] sm:$0x7]
      %v861 = vld [vmem:[%s854 + $0x38] sm:$0x8]
      %v862 = vld [vmem:[%s854 + $0x3c] sm:$0xf]
      %v863 = vld [vmem:[%s854 + $0x40] sm:$0x7]
      %v864 = vld [vmem:[%s854 + $0x54] sm:$0x8]
      %v865 = vld [vmem:[%s854 + $0x58] sm:$0xf]
      %v866 = vld [vmem:[%s854 + $0x5c] sm:$0x7]
      %v867 = vld [vmem:[%s854 + $0x70] sm:$0x8]
      %v868 = vld [vmem:[%s854 + $0x74] sm:$0xf]
      %v869 = vld [vmem:[%s854 + $0x78] sm:$0x7]
      %v870 = vld [vmem:[%s854 + $0x8c] sm:$0x8]
      %v871 = vld [vmem:[%s854 + $0x90] sm:$0xf]
      %v872 = vld [vmem:[%s854 + $0x94] sm:$0x7]
      %v873 = vld [vmem:[%s854 + $0xa8] sm:$0x8]
      %v874 = vld [vmem:[%s854 + $0xac] sm:$0xf]
      %v875 = vld [vmem:[%s854 + $0xb0] sm:$0x7]
      %v876 = vld [vmem:[%s854 + $0xc4] sm:$0x8]
      %v877 = vld [vmem:[%s854 + $0xc8] sm:$0xf]
      %v878 = vld [vmem:[%s854 + $0xcc] sm:$0x7]
      %v879 = vld [vmem:[%s854 + $0xe0] sm:$0x8]
      %v880 = vld [vmem:[%s854 + $0xe4] sm:$0xf]
      %v881 = vld [vmem:[%s854 + $0xe8] sm:$0x7]
      %v882 = vld [vmem:[%s854 + $0xfc] sm:$0x8]
      %v883 = vld [vmem:[%s854 + $0x100] sm:$0xf]
      %v884 = vld [vmem:[%s854 + $0x104] sm:$0x7]
      %v885 = vld [vmem:[%s854 + $0x118] sm:$0x8]
      %v886 = vld [vmem:[%s854 + $0x11c] sm:$0xf]
      %v887 = vld [vmem:[%s854 + $0x120] sm:$0x7]
      %v888 = vld [vmem:[%s854 + $0x134] sm:$0x8]
      %v889 = vld [vmem:[%s854 + $0x138] sm:$0xf]
      %v890 = vld [vmem:[%s854 + $0x13c] sm:$0x7]
      %v891 = vld [vmem:[%s854 + $0x150] sm:$0x8]
      %v892 = vld [vmem:[%s854 + $0x154] sm:$0xf]
      %v893 = vld [vmem:[%s854 + $0x158] sm:$0x7]
      %v894 = vld [vmem:[%s854 + $0x16c] sm:$0x8]
      %v895 = vld [vmem:[%s854 + $0x170] sm:$0xf]
      %v896 = vld [vmem:[%s854 + $0x174] sm:$0x7]
      %v897 = vld [vmem:[%s854 + $0x188] sm:$0x8]
      %v898 = vld [vmem:[%s854 + $0x18c] sm:$0xf]
      %v899 = vld [vmem:[%s854 + $0x190] sm:$0x7]
      %v900 = vld [vmem:[%s854 + $0x1a4] sm:$0x8]
      %v901 = vld [vmem:[%s854 + $0x1a8] sm:$0xf]
      %v902 = vld [vmem:[%s854 + $0x1ac] sm:$0x7]
      %v903 = vld [vmem:[%s854 + $0x8] sm:$0xe]
      %v904 = vld [vmem:[%s854 + $0xc] sm:$0xf]
      %v905 = vld [vmem:[%s854 + $0x10] sm:$0x1]
      %v906 = vld [vmem:[%s854 + $0x24] sm:$0xe]
      %v907 = vld [vmem:[%s854 + $0x28] sm:$0xf]
      %v908 = vld [vmem:[%s854 + $0x2c] sm:$0x1]
      %v909 = vld [vmem:[%s854 + $0x40] sm:$0xe]
      %v910 = vld [vmem:[%s854 + $0x44] sm:$0xf]
      %v911 = vld [vmem:[%s854 + $0x48] sm:$0x1]
      %v912 = vld [vmem:[%s854 + $0x5c] sm:$0xe]
      %v913 = vld [vmem:[%s854 + $0x60] sm:$0xf]
      %v914 = vld [vmem:[%s854 + $0x64] sm:$0x1]
      %v915 = vld [vmem:[%s854 + $0x78] sm:$0xe]
      %v916 = vld [vmem:[%s854 + $0x7c] sm:$0xf]
      %v917 = vld [vmem:[%s854 + $0x80] sm:$0x1]
      %v918 = vld [vmem:[%s854 + $0x94] sm:$0xe]
      %v919 = vld [vmem:[%s854 + $0x98] sm:$0xf]
      %v920 = vld [vmem:[%s854 + $0x9c] sm:$0x1]
      %v921 = vld [vmem:[%s854 + $0xb0] sm:$0xe]
      %v922 = vld [vmem:[%s854 + $0xb4] sm:$0xf]
      %v923 = vld [vmem:[%s854 + $0xb8] sm:$0x1]
      %v924 = vld [vmem:[%s854 + $0xcc] sm:$0xe]
      %v925 = vld [vmem:[%s854 + $0xd0] sm:$0xf]
      %v926 = vld [vmem:[%s854 + $0xd4] sm:$0x1]
      %v927 = vld [vmem:[%s854 + $0xe8] sm:$0xe]
      %v928 = vld [vmem:[%s854 + $0xec] sm:$0xf]
      %v929 = vld [vmem:[%s854 + $0xf0] sm:$0x1]
      %v930 = vld [vmem:[%s854 + $0x104] sm:$0xe]
      %v931 = vld [vmem:[%s854 + $0x108] sm:$0xf]
      %v932 = vld [vmem:[%s854 + $0x10c] sm:$0x1]
      %v933 = vld [vmem:[%s854 + $0x120] sm:$0xe]
      %v934 = vld [vmem:[%s854 + $0x124] sm:$0xf]
      %v935 = vld [vmem:[%s854 + $0x128] sm:$0x1]
      %v936 = vld [vmem:[%s854 + $0x13c] sm:$0xe]
      %v937 = vld [vmem:[%s854 + $0x140] sm:$0xf]
      %v938 = vld [vmem:[%s854 + $0x144] sm:$0x1]
      %v939 = vld [vmem:[%s854 + $0x158] sm:$0xe]
      %v940 = vld [vmem:[%s854 + $0x15c] sm:$0xf]
      %v941 = vld [vmem:[%s854 + $0x160] sm:$0x1]
      %v942 = vld [vmem:[%s854 + $0x174] sm:$0xe]
      %v943 = vld [vmem:[%s854 + $0x178] sm:$0xf]
      %v944 = vld [vmem:[%s854 + $0x17c] sm:$0x1]
      %v945 = vld [vmem:[%s854 + $0x190] sm:$0xe]
      %v946 = vld [vmem:[%s854 + $0x194] sm:$0xf]
      %v947 = vld [vmem:[%s854 + $0x198] sm:$0x1]
      %v948 = vld [vmem:[%s854 + $0x1ac] sm:$0xe]
      %v949 = vld [vmem:[%s854 + $0x1b0] sm:$0xf]
      %v950 = vld [vmem:[%s854 + $0x1b4] sm:$0x1]
      %v951 = vld [vmem:[%s854 + $0xc] sm:$0x8]
      %v952 = vld [vmem:[%s854 + $0x10] sm:$0xf]
      %v953 = vld [vmem:[%s854 + $0x14] sm:$0x7]
      %v954 = vld [vmem:[%s854 + $0x28] sm:$0x8]
      %v955 = vld [vmem:[%s854 + $0x2c] sm:$0xf]
      %v956 = vld [vmem:[%s854 + $0x30] sm:$0x7]
      %v957 = vld [vmem:[%s854 + $0x44] sm:$0x8]
      %v958 = vld [vmem:[%s854 + $0x48] sm:$0xf]
      %v959 = vld [vmem:[%s854 + $0x4c] sm:$0x7]
      %v960 = vld [vmem:[%s854 + $0x60] sm:$0x8]
      %v961 = vld [vmem:[%s854 + $0x64] sm:$0xf]
      %v962 = vld [vmem:[%s854 + $0x68] sm:$0x7]
      %v963 = vld [vmem:[%s854 + $0x7c] sm:$0x8]
      %v964 = vld [vmem:[%s854 + $0x80] sm:$0xf]
      %v965 = vld [vmem:[%s854 + $0x84] sm:$0x7]
      %v966 = vld [vmem:[%s854 + $0x98] sm:$0x8]
      %v967 = vld [vmem:[%s854 + $0x9c] sm:$0xf]
      %v968 = vld [vmem:[%s854 + $0xa0] sm:$0x7]
      %v969 = vld [vmem:[%s854 + $0xb4] sm:$0x8]
      %v970 = vld [vmem:[%s854 + $0xb8] sm:$0xf]
      %v971 = vld [vmem:[%s854 + $0xbc] sm:$0x7]
      %v972 = vld [vmem:[%s854 + $0xd0] sm:$0x8]
      %v973 = vld [vmem:[%s854 + $0xd4] sm:$0xf]
      %v974 = vld [vmem:[%s854 + $0xd8] sm:$0x7]
      %v975 = vld [vmem:[%s854 + $0xec] sm:$0x8]
      %v976 = vld [vmem:[%s854 + $0xf0] sm:$0xf]
      %v977 = vld [vmem:[%s854 + $0xf4] sm:$0x7]
      %v978 = vld [vmem:[%s854 + $0x108] sm:$0x8]
      %v979 = vld [vmem:[%s854 + $0x10c] sm:$0xf]
      %v980 = vld [vmem:[%s854 + $0x110] sm:$0x7]
      %v981 = vld [vmem:[%s854 + $0x124] sm:$0x8]
      %v982 = vld [vmem:[%s854 + $0x128] sm:$0xf]
      %v983 = vld [vmem:[%s854 + $0x12c] sm:$0x7]
      %v984 = vld [vmem:[%s854 + $0x140] sm:$0x8]
      %v985 = vld [vmem:[%s854 + $0x144] sm:$0xf]
      %v986 = vld [vmem:[%s854 + $0x148] sm:$0x7]
      %v987 = vld [vmem:[%s854 + $0x15c] sm:$0x8]
      %v988 = vld [vmem:[%s854 + $0x160] sm:$0xf]
      %v989 = vld [vmem:[%s854 + $0x164] sm:$0x7]
      %v990 = vld [vmem:[%s854 + $0x178] sm:$0x8]
      %v991 = vld [vmem:[%s854 + $0x17c] sm:$0xf]
      %v992 = vld [vmem:[%s854 + $0x180] sm:$0x7]
      %v993 = vld [vmem:[%s854 + $0x194] sm:$0x8]
      %v994 = vld [vmem:[%s854 + $0x198] sm:$0xf]
      %v995 = vld [vmem:[%s854 + $0x19c] sm:$0x7]
      %v996 = vld [vmem:[%s854 + $0x1b0] sm:$0x8]
      %v997 = vld [vmem:[%s854 + $0x1b4] sm:$0xf]
      %v998 = vld [vmem:[%s854 + $0x1b8] sm:$0x7]
      %v999 = vld [vmem:[%s321] sm:$0x8]
      %v1000 = vld [vmem:[%s321 + $0x4] sm:$0xf]
      %v1001 = vld [vmem:[%s321 + $0x8] sm:$0x7]
      %v1002 = vld [vmem:[%s321 + $0x1c] sm:$0x8]
      %v1003 = vld [vmem:[%s321 + $0x20] sm:$0xf]
      %v1004 = vld [vmem:[%s321 + $0x24] sm:$0x7]
      %v1005 = vld [vmem:[%s321 + $0x38] sm:$0x8]
      %v1006 = vld [vmem:[%s321 + $0x3c] sm:$0xf]
      %v1007 = vld [vmem:[%s321 + $0x40] sm:$0x7]
      %v1008 = vld [vmem:[%s321 + $0x54] sm:$0x8]
      %v1009 = vld [vmem:[%s321 + $0x58] sm:$0xf]
      %v1010 = vld [vmem:[%s321 + $0x5c] sm:$0x7]
      %v1011 = vld [vmem:[%s321 + $0x70] sm:$0x8]
      %v1012 = vld [vmem:[%s321 + $0x74] sm:$0xf]
      %v1013 = vld [vmem:[%s321 + $0x78] sm:$0x7]
      %v1014 = vld [vmem:[%s321 + $0x8c] sm:$0x8]
      %v1015 = vld [vmem:[%s321 + $0x90] sm:$0xf]
      %v1016 = vld [vmem:[%s321 + $0x94] sm:$0x7]
      %v1017 = vld [vmem:[%s321 + $0xa8] sm:$0x8]
      %v1018 = vld [vmem:[%s321 + $0xac] sm:$0xf]
      %v1019 = vld [vmem:[%s321 + $0xb0] sm:$0x7]
      %v1020 = vld [vmem:[%s321 + $0xc4] sm:$0x8]
      %v1021 = vld [vmem:[%s321 + $0xc8] sm:$0xf]
      %v1022 = vld [vmem:[%s321 + $0xcc] sm:$0x7]
      %v1023 = vld [vmem:[%s321 + $0xe0] sm:$0x8]
      %v1024 = vld [vmem:[%s321 + $0xe4] sm:$0xf]
      %v1025 = vld [vmem:[%s321 + $0xe8] sm:$0x7]
      %v1026 = vld [vmem:[%s321 + $0xfc] sm:$0x8]
      %v1027 = vld [vmem:[%s321 + $0x100] sm:$0xf]
      %v1028 = vld [vmem:[%s321 + $0x104] sm:$0x7]
      %v1029 = vld [vmem:[%s321 + $0x118] sm:$0x8]
      %v1030 = vld [vmem:[%s321 + $0x11c] sm:$0xf]
      %v1031 = vld [vmem:[%s321 + $0x120] sm:$0x7]
      %v1032 = vld [vmem:[%s321 + $0x134] sm:$0x8]
      %v1033 = vld [vmem:[%s321 + $0x138] sm:$0xf]
      %v1034 = vld [vmem:[%s321 + $0x13c] sm:$0x7]
      %v1035 = vld [vmem:[%s321 + $0x150] sm:$0x8]
      %v1036 = vld [vmem:[%s321 + $0x154] sm:$0xf]
      %v1037 = vld [vmem:[%s321 + $0x158] sm:$0x7]
      %v1038 = vld [vmem:[%s321 + $0x16c] sm:$0x8]
      %v1039 = vld [vmem:[%s321 + $0x170] sm:$0xf]
      %v1040 = vld [vmem:[%s321 + $0x174] sm:$0x7]
      %v1041 = vld [vmem:[%s321 + $0x188] sm:$0x8]
      %v1042 = vld [vmem:[%s321 + $0x18c] sm:$0xf]
      %v1043 = vld [vmem:[%s321 + $0x190] sm:$0x7]
      %v1044 = vld [vmem:[%s321 + $0x1a4] sm:$0x8]
      %v1045 = vld [vmem:[%s321 + $0x1a8] sm:$0xf]
      %v1046 = vld [vmem:[%s321 + $0x1ac] sm:$0x7]
      %v1047 = vld [vmem:[%s321 + $0xc] sm:$0x8]
      %v1048 = vld [vmem:[%s321 + $0x10] sm:$0xf]
      %v1049 = vld [vmem:[%s321 + $0x14] sm:$0x7]
      %v1050 = vld [vmem:[%s321 + $0x28] sm:$0x8]
      %v1051 = vld [vmem:[%s321 + $0x2c] sm:$0xf]
      %v1052 = vld [vmem:[%s321 + $0x30] sm:$0x7]
      %v1053 = vld [vmem:[%s321 + $0x44] sm:$0x8]
      %v1054 = vld [vmem:[%s321 + $0x48] sm:$0xf]
      %v1055 = vld [vmem:[%s321 + $0x4c] sm:$0x7]
      %v1056 = vld [vmem:[%s321 + $0x60] sm:$0x8]
      %v1057 = vld [vmem:[%s321 + $0x64] sm:$0xf]
      %v1058 = vld [vmem:[%s321 + $0x68] sm:$0x7]
      %v1059 = vld [vmem:[%s321 + $0x7c] sm:$0x8]
      %v1060 = vld [vmem:[%s321 + $0x80] sm:$0xf]
      %v1061 = vld [vmem:[%s321 + $0x84] sm:$0x7]
      %v1062 = vld [vmem:[%s321 + $0x98] sm:$0x8]
      %v1063 = vld [vmem:[%s321 + $0x9c] sm:$0xf]
      %v1064 = vld [vmem:[%s321 + $0xa0] sm:$0x7]
      %v1065 = vld [vmem:[%s321 + $0xb4] sm:$0x8]
      %v1066 = vld [vmem:[%s321 + $0xb8] sm:$0xf]
      %v1067 = vld [vmem:[%s321 + $0xbc] sm:$0x7]
      %v1068 = vld [vmem:[%s321 + $0xd0] sm:$0x8]
      %v1069 = vld [vmem:[%s321 + $0xd4] sm:$0xf]
      %v1070 = vld [vmem:[%s321 + $0xd8] sm:$0x7]
      %v1071 = vld [vmem:[%s321 + $0xec] sm:$0x8]
      %v1072 = vld [vmem:[%s321 + $0xf0] sm:$0xf]
      %v1073 = vld [vmem:[%s321 + $0xf4] sm:$0x7]
      %v1074 = vld [vmem:[%s321 + $0x108] sm:$0x8]
      %v1075 = vld [vmem:[%s321 + $0x10c] sm:$0xf]
      %v1076 = vld [vmem:[%s321 + $0x110] sm:$0x7]
      %v1077 = vld [vmem:[%s321 + $0x124] sm:$0x8]
      %v1078 = vld [vmem:[%s321 + $0x128] sm:$0xf]
      %v1079 = vld [vmem:[%s321 + $0x12c] sm:$0x7]
      %v1080 = vld [vmem:[%s321 + $0x140] sm:$0x8]
      %v1081 = vld [vmem:[%s321 + $0x144] sm:$0xf]
      %v1082 = vld [vmem:[%s321 + $0x148] sm:$0x7]
      %v1083 = vld [vmem:[%s321 + $0x15c] sm:$0x8]
      %v1084 = vld [vmem:[%s321 + $0x160] sm:$0xf]
      %v1085 = vld [vmem:[%s321 + $0x164] sm:$0x7]
      %v1086 = vld [vmem:[%s321 + $0x178] sm:$0x8]
      %v1087 = vld [vmem:[%s321 + $0x17c] sm:$0xf]
      %v1088 = vld [vmem:[%s321 + $0x180] sm:$0x7]
      %v1089 = vld [vmem:[%s321 + $0x194] sm:$0x8]
      %v1090 = vld [vmem:[%s321 + $0x198] sm:$0xf]
      %v1091 = vld [vmem:[%s321 + $0x19c] sm:$0x7]
      %v1092 = vld [vmem:[%s321 + $0x1b0] sm:$0x8]
      %v1093 = vld [vmem:[%s321 + $0x1b4] sm:$0xf]
      %v1094 = vld [vmem:[%s321 + $0x1b8] sm:$0x7]
      %s1095 = sadd.s32 %s317, 30
      %s1096 = smul.u32 %s1095, 7
      %s1097 = smul.addr %s1096, 4
      %s1098 = scalar_lea.vmem %s302, %s1097
      %v1099 = vld [vmem:[%s1098] sm:$0x8]
      %v1100 = vld [vmem:[%s1098 + $0x4] sm:$0xf]
      %v1101 = vld [vmem:[%s1098 + $0x8] sm:$0x7]
      %v1102 = vld [vmem:[%s1098 + $0x1c] sm:$0x8]
      %v1103 = vld [vmem:[%s1098 + $0x20] sm:$0xf]
      %v1104 = vld [vmem:[%s1098 + $0x24] sm:$0x7]
      %v1105 = vld [vmem:[%s1098 + $0x38] sm:$0x8]
      %v1106 = vld [vmem:[%s1098 + $0x3c] sm:$0xf]
      %v1107 = vld [vmem:[%s1098 + $0x40] sm:$0x7]
      %v1108 = vld [vmem:[%s1098 + $0x54] sm:$0x8]
      %v1109 = vld [vmem:[%s1098 + $0x58] sm:$0xf]
      %v1110 = vld [vmem:[%s1098 + $0x5c] sm:$0x7]
      %v1111 = vld [vmem:[%s1098 + $0x70] sm:$0x8]
      %v1112 = vld [vmem:[%s1098 + $0x74] sm:$0xf]
      %v1113 = vld [vmem:[%s1098 + $0x78] sm:$0x7]
      %v1114 = vld [vmem:[%s1098 + $0x8c] sm:$0x8]
      %v1115 = vld [vmem:[%s1098 + $0x90] sm:$0xf]
      %v1116 = vld [vmem:[%s1098 + $0x94] sm:$0x7]
      %v1117 = vld [vmem:[%s1098 + $0xa8] sm:$0x8]
      %v1118 = vld [vmem:[%s1098 + $0xac] sm:$0xf]
      %v1119 = vld [vmem:[%s1098 + $0xb0] sm:$0x7]
      %v1120 = vld [vmem:[%s1098 + $0xc4] sm:$0x8]
      %v1121 = vld [vmem:[%s1098 + $0xc8] sm:$0xf]
      %v1122 = vld [vmem:[%s1098 + $0xcc] sm:$0x7]
      %v1123 = vld [vmem:[%s1098 + $0xe0] sm:$0x8]
      %v1124 = vld [vmem:[%s1098 + $0xe4] sm:$0xf]
      %v1125 = vld [vmem:[%s1098 + $0xe8] sm:$0x7]
      %v1126 = vld [vmem:[%s1098 + $0xfc] sm:$0x8]
      %v1127 = vld [vmem:[%s1098 + $0x100] sm:$0xf]
      %v1128 = vld [vmem:[%s1098 + $0x104] sm:$0x7]
      %v1129 = vld [vmem:[%s1098 + $0x118] sm:$0x8]
      %v1130 = vld [vmem:[%s1098 + $0x11c] sm:$0xf]
      %v1131 = vld [vmem:[%s1098 + $0x120] sm:$0x7]
      %v1132 = vld [vmem:[%s1098 + $0x134] sm:$0x8]
      %v1133 = vld [vmem:[%s1098 + $0x138] sm:$0xf]
      %v1134 = vld [vmem:[%s1098 + $0x13c] sm:$0x7]
      %v1135 = vld [vmem:[%s1098 + $0x150] sm:$0x8]
      %v1136 = vld [vmem:[%s1098 + $0x154] sm:$0xf]
      %v1137 = vld [vmem:[%s1098 + $0x158] sm:$0x7]
      %v1138 = vld [vmem:[%s1098 + $0x16c] sm:$0x8]
      %v1139 = vld [vmem:[%s1098 + $0x170] sm:$0xf]
      %v1140 = vld [vmem:[%s1098 + $0x174] sm:$0x7]
      %v1141 = vld [vmem:[%s1098 + $0x188] sm:$0x8]
      %v1142 = vld [vmem:[%s1098 + $0x18c] sm:$0xf]
      %v1143 = vld [vmem:[%s1098 + $0x190] sm:$0x7]
      %v1144 = vld [vmem:[%s1098 + $0x1a4] sm:$0x8]
      %v1145 = vld [vmem:[%s1098 + $0x1a8] sm:$0xf]
      %v1146 = vld [vmem:[%s1098 + $0x1ac] sm:$0x7]
      %v1147 = vld [vmem:[%s1098 + $0x8] sm:$0xe]
      %v1148 = vld [vmem:[%s1098 + $0xc] sm:$0xf]
      %v1149 = vld [vmem:[%s1098 + $0x10] sm:$0x1]
      %v1150 = vld [vmem:[%s1098 + $0x24] sm:$0xe]
      %v1151 = vld [vmem:[%s1098 + $0x28] sm:$0xf]
      %v1152 = vld [vmem:[%s1098 + $0x2c] sm:$0x1]
      %v1153 = vld [vmem:[%s1098 + $0x40] sm:$0xe]
      %v1154 = vld [vmem:[%s1098 + $0x44] sm:$0xf]
      %v1155 = vld [vmem:[%s1098 + $0x48] sm:$0x1]
      %v1156 = vld [vmem:[%s1098 + $0x5c] sm:$0xe]
      %v1157 = vld [vmem:[%s1098 + $0x60] sm:$0xf]
      %v1158 = vld [vmem:[%s1098 + $0x64] sm:$0x1]
      %v1159 = vld [vmem:[%s1098 + $0x78] sm:$0xe]
      %v1160 = vld [vmem:[%s1098 + $0x7c] sm:$0xf]
      %v1161 = vld [vmem:[%s1098 + $0x80] sm:$0x1]
      %v1162 = vld [vmem:[%s1098 + $0x94] sm:$0xe]
      %v1163 = vld [vmem:[%s1098 + $0x98] sm:$0xf]
      %v1164 = vld [vmem:[%s1098 + $0x9c] sm:$0x1]
      %v1165 = vld [vmem:[%s1098 + $0xb0] sm:$0xe]
      %v1166 = vld [vmem:[%s1098 + $0xb4] sm:$0xf]
      %v1167 = vld [vmem:[%s1098 + $0xb8] sm:$0x1]
      %v1168 = vld [vmem:[%s1098 + $0xcc] sm:$0xe]
      %v1169 = vld [vmem:[%s1098 + $0xd0] sm:$0xf]
      %v1170 = vld [vmem:[%s1098 + $0xd4] sm:$0x1]
      %v1171 = vld [vmem:[%s1098 + $0xe8] sm:$0xe]
      %v1172 = vld [vmem:[%s1098 + $0xec] sm:$0xf]
      %v1173 = vld [vmem:[%s1098 + $0xf0] sm:$0x1]
      %v1174 = vld [vmem:[%s1098 + $0x104] sm:$0xe]
      %v1175 = vld [vmem:[%s1098 + $0x108] sm:$0xf]
      %v1176 = vld [vmem:[%s1098 + $0x10c] sm:$0x1]
      %v1177 = vld [vmem:[%s1098 + $0x120] sm:$0xe]
      %v1178 = vld [vmem:[%s1098 + $0x124] sm:$0xf]
      %v1179 = vld [vmem:[%s1098 + $0x128] sm:$0x1]
      %v1180 = vld [vmem:[%s1098 + $0x13c] sm:$0xe]
      %v1181 = vld [vmem:[%s1098 + $0x140] sm:$0xf]
      %v1182 = vld [vmem:[%s1098 + $0x144] sm:$0x1]
      %v1183 = vld [vmem:[%s1098 + $0x158] sm:$0xe]
      %v1184 = vld [vmem:[%s1098 + $0x15c] sm:$0xf]
      %v1185 = vld [vmem:[%s1098 + $0x160] sm:$0x1]
      %v1186 = vld [vmem:[%s1098 + $0x174] sm:$0xe]
      %v1187 = vld [vmem:[%s1098 + $0x178] sm:$0xf]
      %v1188 = vld [vmem:[%s1098 + $0x17c] sm:$0x1]
      %v1189 = vld [vmem:[%s1098 + $0x190] sm:$0xe]
      %v1190 = vld [vmem:[%s1098 + $0x194] sm:$0xf]
      %v1191 = vld [vmem:[%s1098 + $0x198] sm:$0x1]
      %v1192 = vld [vmem:[%s1098 + $0x1ac] sm:$0xe]
      %v1193 = vld [vmem:[%s1098 + $0x1b0] sm:$0xf]
      %v1194 = vld [vmem:[%s1098 + $0x1b4] sm:$0x1]
      %v1195 = vld [vmem:[%s1098 + $0xc] sm:$0x8]
      %v1196 = vld [vmem:[%s1098 + $0x10] sm:$0xf]
      %v1197 = vld [vmem:[%s1098 + $0x14] sm:$0x7]
      %v1198 = vld [vmem:[%s1098 + $0x28] sm:$0x8]
      %v1199 = vld [vmem:[%s1098 + $0x2c] sm:$0xf]
      %v1200 = vld [vmem:[%s1098 + $0x30] sm:$0x7]
      %v1201 = vld [vmem:[%s1098 + $0x44] sm:$0x8]
      %v1202 = vld [vmem:[%s1098 + $0x48] sm:$0xf]
      %v1203 = vld [vmem:[%s1098 + $0x4c] sm:$0x7]
      %v1204 = vld [vmem:[%s1098 + $0x60] sm:$0x8]
      %v1205 = vld [vmem:[%s1098 + $0x64] sm:$0xf]
      %v1206 = vld [vmem:[%s1098 + $0x68] sm:$0x7]
      %v1207 = vld [vmem:[%s1098 + $0x7c] sm:$0x8]
      %v1208 = vld [vmem:[%s1098 + $0x80] sm:$0xf]
      %v1209 = vld [vmem:[%s1098 + $0x84] sm:$0x7]
      %v1210 = vld [vmem:[%s1098 + $0x98] sm:$0x8]
      %v1211 = vld [vmem:[%s1098 + $0x9c] sm:$0xf]
      %v1212 = vld [vmem:[%s1098 + $0xa0] sm:$0x7]
      %v1213 = vld [vmem:[%s1098 + $0xb4] sm:$0x8]
      %v1214 = vld [vmem:[%s1098 + $0xb8] sm:$0xf]
      %v1215 = vld [vmem:[%s1098 + $0xbc] sm:$0x7]
      %v1216 = vld [vmem:[%s1098 + $0xd0] sm:$0x8]
      %v1217 = vld [vmem:[%s1098 + $0xd4] sm:$0xf]
      %v1218 = vld [vmem:[%s1098 + $0xd8] sm:$0x7]
      %v1219 = vld [vmem:[%s1098 + $0xec] sm:$0x8]
      %v1220 = vld [vmem:[%s1098 + $0xf0] sm:$0xf]
      %v1221 = vld [vmem:[%s1098 + $0xf4] sm:$0x7]
      %v1222 = vld [vmem:[%s1098 + $0x108] sm:$0x8]
      %v1223 = vld [vmem:[%s1098 + $0x10c] sm:$0xf]
      %v1224 = vld [vmem:[%s1098 + $0x110] sm:$0x7]
      %v1225 = vld [vmem:[%s1098 + $0x124] sm:$0x8]
      %v1226 = vld [vmem:[%s1098 + $0x128] sm:$0xf]
      %v1227 = vld [vmem:[%s1098 + $0x12c] sm:$0x7]
      %v1228 = vld [vmem:[%s1098 + $0x140] sm:$0x8]
      %v1229 = vld [vmem:[%s1098 + $0x144] sm:$0xf]
      %v1230 = vld [vmem:[%s1098 + $0x148] sm:$0x7]
      %v1231 = vld [vmem:[%s1098 + $0x15c] sm:$0x8]
      %v1232 = vld [vmem:[%s1098 + $0x160] sm:$0xf]
      %v1233 = vld [vmem:[%s1098 + $0x164] sm:$0x7]
      %v1234 = vld [vmem:[%s1098 + $0x178] sm:$0x8]
      %v1235 = vld [vmem:[%s1098 + $0x17c] sm:$0xf]
      %v1236 = vld [vmem:[%s1098 + $0x180] sm:$0x7]
      %v1237 = vld [vmem:[%s1098 + $0x194] sm:$0x8]
      %v1238 = vld [vmem:[%s1098 + $0x198] sm:$0xf]
      %v1239 = vld [vmem:[%s1098 + $0x19c] sm:$0x7]
      %v1240 = vld [vmem:[%s1098 + $0x1b0] sm:$0x8]
      %v1241 = vld [vmem:[%s1098 + $0x1b4] sm:$0xf]
      %v1242 = vld [vmem:[%s1098 + $0x1b8] sm:$0x7]
      %v1291 = vunpack.c.l.b16 %v855
      %v1292 = vunpack.c.l.b16 %v856
      %v1293 = vunpack.c.l.b16 %v857
      %v1294 = vunpack.c.l.b16 %v858
      %v1295 = vunpack.c.l.b16 %v859
      %v1296 = vunpack.c.l.b16 %v860
      %v1297 = vunpack.c.l.b16 %v861
      %v1298 = vunpack.c.l.b16 %v862
      %v1299 = vunpack.c.l.b16 %v863
      %v1300 = vunpack.c.l.b16 %v864
      %v1301 = vunpack.c.l.b16 %v865
      %v1302 = vunpack.c.l.b16 %v866
      %v1303 = vunpack.c.l.b16 %v867
      %v1304 = vunpack.c.l.b16 %v868
      %v1305 = vunpack.c.l.b16 %v869
      %v1306 = vunpack.c.l.b16 %v870
      %v1307 = vunpack.c.l.b16 %v871
      %v1308 = vunpack.c.l.b16 %v872
      %v1309 = vunpack.c.l.b16 %v873
      %v1310 = vunpack.c.l.b16 %v874
      %v1311 = vunpack.c.l.b16 %v875
      %v1312 = vunpack.c.l.b16 %v876
      %v1313 = vunpack.c.l.b16 %v877
      %v1314 = vunpack.c.l.b16 %v878
      %v1315 = vunpack.c.l.b16 %v879
      %v1316 = vunpack.c.l.b16 %v880
      %v1317 = vunpack.c.l.b16 %v881
      %v1318 = vunpack.c.l.b16 %v882
      %v1319 = vunpack.c.l.b16 %v883
      %v1320 = vunpack.c.l.b16 %v884
      %v1321 = vunpack.c.l.b16 %v885
      %v1322 = vunpack.c.l.b16 %v886
      %v1323 = vunpack.c.l.b16 %v887
      %v1324 = vunpack.c.l.b16 %v888
      %v1325 = vunpack.c.l.b16 %v889
      %v1326 = vunpack.c.l.b16 %v890
      %v1327 = vunpack.c.l.b16 %v891
      %v1328 = vunpack.c.l.b16 %v892
      %v1329 = vunpack.c.l.b16 %v893
      %v1330 = vunpack.c.l.b16 %v894
      %v1331 = vunpack.c.l.b16 %v895
      %v1332 = vunpack.c.l.b16 %v896
      %v1333 = vunpack.c.l.b16 %v897
      %v1334 = vunpack.c.l.b16 %v898
      %v1335 = vunpack.c.l.b16 %v899
      %v1336 = vunpack.c.l.b16 %v900
      %v1337 = vunpack.c.l.b16 %v901
      %v1338 = vunpack.c.l.b16 %v902
      %v1339 = vpack.c.b16 %v1292, %v1291
      %v1340 = vpack.c.b16 %v1293, %v1293
      %v1341 = vpack.c.b16 %v1295, %v1294
      %v1342 = vpack.c.b16 %v1296, %v1296
      %v1343 = vpack.c.b16 %v1298, %v1297
      %v1344 = vpack.c.b16 %v1299, %v1299
      %v1345 = vpack.c.b16 %v1301, %v1300
      %v1346 = vpack.c.b16 %v1302, %v1302
      %v1347 = vpack.c.b16 %v1304, %v1303
      %v1348 = vpack.c.b16 %v1305, %v1305
      %v1349 = vpack.c.b16 %v1307, %v1306
      %v1350 = vpack.c.b16 %v1308, %v1308
      %v1351 = vpack.c.b16 %v1310, %v1309
      %v1352 = vpack.c.b16 %v1311, %v1311
      %v1353 = vpack.c.b16 %v1313, %v1312
      %v1354 = vpack.c.b16 %v1314, %v1314
      %v1355 = vpack.c.b16 %v1316, %v1315
      %v1356 = vpack.c.b16 %v1317, %v1317
      %v1357 = vpack.c.b16 %v1319, %v1318
      %v1358 = vpack.c.b16 %v1320, %v1320
      %v1359 = vpack.c.b16 %v1322, %v1321
      %v1360 = vpack.c.b16 %v1323, %v1323
      %v1361 = vpack.c.b16 %v1325, %v1324
      %v1362 = vpack.c.b16 %v1326, %v1326
      %v1363 = vpack.c.b16 %v1328, %v1327
      %v1364 = vpack.c.b16 %v1329, %v1329
      %v1365 = vpack.c.b16 %v1331, %v1330
      %v1366 = vpack.c.b16 %v1332, %v1332
      %v1367 = vpack.c.b16 %v1334, %v1333
      %v1368 = vpack.c.b16 %v1335, %v1335
      %v1369 = vpack.c.b16 %v1337, %v1336
      %v1370 = vpack.c.b16 %v1338, %v1338
      %v1419 = vunpack.c.l.b16 %v903
      %v1420 = vunpack.c.l.b16 %v904
      %v1421 = vunpack.c.l.b16 %v905
      %v1422 = vunpack.c.l.b16 %v906
      %v1423 = vunpack.c.l.b16 %v907
      %v1424 = vunpack.c.l.b16 %v908
      %v1425 = vunpack.c.l.b16 %v909
      %v1426 = vunpack.c.l.b16 %v910
      %v1427 = vunpack.c.l.b16 %v911
      %v1428 = vunpack.c.l.b16 %v912
      %v1429 = vunpack.c.l.b16 %v913
      %v1430 = vunpack.c.l.b16 %v914
      %v1431 = vunpack.c.l.b16 %v915
      %v1432 = vunpack.c.l.b16 %v916
      %v1433 = vunpack.c.l.b16 %v917
      %v1434 = vunpack.c.l.b16 %v918
      %v1435 = vunpack.c.l.b16 %v919
      %v1436 = vunpack.c.l.b16 %v920
      %v1437 = vunpack.c.l.b16 %v921
      %v1438 = vunpack.c.l.b16 %v922
      %v1439 = vunpack.c.l.b16 %v923
      %v1440 = vunpack.c.l.b16 %v924
      %v1441 = vunpack.c.l.b16 %v925
      %v1442 = vunpack.c.l.b16 %v926
      %v1443 = vunpack.c.l.b16 %v927
      %v1444 = vunpack.c.l.b16 %v928
      %v1445 = vunpack.c.l.b16 %v929
      %v1446 = vunpack.c.l.b16 %v930
      %v1447 = vunpack.c.l.b16 %v931
      %v1448 = vunpack.c.l.b16 %v932
      %v1449 = vunpack.c.l.b16 %v933
      %v1450 = vunpack.c.l.b16 %v934
      %v1451 = vunpack.c.l.b16 %v935
      %v1452 = vunpack.c.l.b16 %v936
      %v1453 = vunpack.c.l.b16 %v937
      %v1454 = vunpack.c.l.b16 %v938
      %v1455 = vunpack.c.l.b16 %v939
      %v1456 = vunpack.c.l.b16 %v940
      %v1457 = vunpack.c.l.b16 %v941
      %v1458 = vunpack.c.l.b16 %v942
      %v1459 = vunpack.c.l.b16 %v943
      %v1460 = vunpack.c.l.b16 %v944
      %v1461 = vunpack.c.l.b16 %v945
      %v1462 = vunpack.c.l.b16 %v946
      %v1463 = vunpack.c.l.b16 %v947
      %v1464 = vunpack.c.l.b16 %v948
      %v1465 = vunpack.c.l.b16 %v949
      %v1466 = vunpack.c.l.b16 %v950
      %v1467 = vpack.c.b16 %v1420, %v1419
      %v1468 = vpack.c.b16 %v1421, %v1421
      %v1469 = vpack.c.b16 %v1423, %v1422
      %v1470 = vpack.c.b16 %v1424, %v1424
      %v1471 = vpack.c.b16 %v1426, %v1425
      %v1472 = vpack.c.b16 %v1427, %v1427
      %v1473 = vpack.c.b16 %v1429, %v1428
      %v1474 = vpack.c.b16 %v1430, %v1430
      %v1475 = vpack.c.b16 %v1432, %v1431
      %v1476 = vpack.c.b16 %v1433, %v1433
      %v1477 = vpack.c.b16 %v1435, %v1434
      %v1478 = vpack.c.b16 %v1436, %v1436
      %v1479 = vpack.c.b16 %v1438, %v1437
      %v1480 = vpack.c.b16 %v1439, %v1439
      %v1481 = vpack.c.b16 %v1441, %v1440
      %v1482 = vpack.c.b16 %v1442, %v1442
      %v1483 = vpack.c.b16 %v1444, %v1443
      %v1484 = vpack.c.b16 %v1445, %v1445
      %v1485 = vpack.c.b16 %v1447, %v1446
      %v1486 = vpack.c.b16 %v1448, %v1448
      %v1487 = vpack.c.b16 %v1450, %v1449
      %v1488 = vpack.c.b16 %v1451, %v1451
      %v1489 = vpack.c.b16 %v1453, %v1452
      %v1490 = vpack.c.b16 %v1454, %v1454
      %v1491 = vpack.c.b16 %v1456, %v1455
      %v1492 = vpack.c.b16 %v1457, %v1457
      %v1493 = vpack.c.b16 %v1459, %v1458
      %v1494 = vpack.c.b16 %v1460, %v1460
      %v1495 = vpack.c.b16 %v1462, %v1461
      %v1496 = vpack.c.b16 %v1463, %v1463
      %v1497 = vpack.c.b16 %v1465, %v1464
      %v1498 = vpack.c.b16 %v1466, %v1466
      %vm1499 = vcmask 1041408
      %v1500 = vrot.slane %v1467, 6
      %v1501 = vrot.slane %v1468, 6
      %v1502 = vsel %vm1499, %v1500, %v1501
      %v1503 = vrot.slane %v1469, 6
      %v1504 = vrot.slane %v1470, 6
      %v1505 = vsel %vm1499, %v1503, %v1504
      %v1506 = vrot.slane %v1471, 6
      %v1507 = vrot.slane %v1472, 6
      %v1508 = vsel %vm1499, %v1506, %v1507
      %v1509 = vrot.slane %v1473, 6
      %v1510 = vrot.slane %v1474, 6
      %v1511 = vsel %vm1499, %v1509, %v1510
      %v1512 = vrot.slane %v1475, 6
      %v1513 = vrot.slane %v1476, 6
      %v1514 = vsel %vm1499, %v1512, %v1513
      %v1515 = vrot.slane %v1477, 6
      %v1516 = vrot.slane %v1478, 6
      %v1517 = vsel %vm1499, %v1515, %v1516
      %v1518 = vrot.slane %v1479, 6
      %v1519 = vrot.slane %v1480, 6
      %v1520 = vsel %vm1499, %v1518, %v1519
      %v1521 = vrot.slane %v1481, 6
      %v1522 = vrot.slane %v1482, 6
      %v1523 = vsel %vm1499, %v1521, %v1522
      %v1524 = vrot.slane %v1483, 6
      %v1525 = vrot.slane %v1484, 6
      %v1526 = vsel %vm1499, %v1524, %v1525
      %v1527 = vrot.slane %v1485, 6
      %v1528 = vrot.slane %v1486, 6
      %v1529 = vsel %vm1499, %v1527, %v1528
      %v1530 = vrot.slane %v1487, 6
      %v1531 = vrot.slane %v1488, 6
      %v1532 = vsel %vm1499, %v1530, %v1531
      %v1533 = vrot.slane %v1489, 6
      %v1534 = vrot.slane %v1490, 6
      %v1535 = vsel %vm1499, %v1533, %v1534
      %v1536 = vrot.slane %v1491, 6
      %v1537 = vrot.slane %v1492, 6
      %v1538 = vsel %vm1499, %v1536, %v1537
      %v1539 = vrot.slane %v1493, 6
      %v1540 = vrot.slane %v1494, 6
      %v1541 = vsel %vm1499, %v1539, %v1540
      %v1542 = vrot.slane %v1495, 6
      %v1543 = vrot.slane %v1496, 6
      %v1544 = vsel %vm1499, %v1542, %v1543
      %v1545 = vrot.slane %v1497, 6
      %v1546 = vrot.slane %v1498, 6
      %v1547 = vsel %vm1499, %v1545, %v1546
      %1548 = vrot.lane.b32.xlu0 %v1500, 4
      %v1549 = vpop.permute.xlu0 %1548
      %1550 = vrot.lane.b32.xlu0 %v1502, 4
      %v1551 = vpop.permute.xlu0 %1550
      %1552 = vrot.lane.b32.xlu0 %v1503, 4
      %v1553 = vpop.permute.xlu0 %1552
      %1554 = vrot.lane.b32.xlu0 %v1505, 4
      %v1555 = vpop.permute.xlu0 %1554
      %1556 = vrot.lane.b32.xlu0 %v1506, 4
      %v1557 = vpop.permute.xlu0 %1556
      %1558 = vrot.lane.b32.xlu0 %v1508, 4
      %v1559 = vpop.permute.xlu0 %1558
      %1560 = vrot.lane.b32.xlu0 %v1509, 4
      %v1561 = vpop.permute.xlu0 %1560
      %1562 = vrot.lane.b32.xlu0 %v1511, 4
      %v1563 = vpop.permute.xlu0 %1562
      %1564 = vrot.lane.b32.xlu0 %v1512, 4
      %v1565 = vpop.permute.xlu0 %1564
      %1566 = vrot.lane.b32.xlu0 %v1514, 4
      %v1567 = vpop.permute.xlu0 %1566
      %1568 = vrot.lane.b32.xlu0 %v1515, 4
      %v1569 = vpop.permute.xlu0 %1568
      %1570 = vrot.lane.b32.xlu0 %v1517, 4
      %v1571 = vpop.permute.xlu0 %1570
      %1572 = vrot.lane.b32.xlu0 %v1518, 4
      %v1573 = vpop.permute.xlu0 %1572
      %1574 = vrot.lane.b32.xlu0 %v1520, 4
      %v1575 = vpop.permute.xlu0 %1574
      %1576 = vrot.lane.b32.xlu0 %v1521, 4
      %v1577 = vpop.permute.xlu0 %1576
      %1578 = vrot.lane.b32.xlu0 %v1523, 4
      %v1579 = vpop.permute.xlu0 %1578
      %1580 = vrot.lane.b32.xlu0 %v1524, 4
      %v1581 = vpop.permute.xlu0 %1580
      %1582 = vrot.lane.b32.xlu0 %v1526, 4
      %v1583 = vpop.permute.xlu0 %1582
      %1584 = vrot.lane.b32.xlu0 %v1527, 4
      %v1585 = vpop.permute.xlu0 %1584
      %1586 = vrot.lane.b32.xlu0 %v1529, 4
      %v1587 = vpop.permute.xlu0 %1586
      %1588 = vrot.lane.b32.xlu0 %v1530, 4
      %v1589 = vpop.permute.xlu0 %1588
      %1590 = vrot.lane.b32.xlu0 %v1532, 4
      %v1591 = vpop.permute.xlu0 %1590
      %1592 = vrot.lane.b32.xlu0 %v1533, 4
      %v1593 = vpop.permute.xlu0 %1592
      %1594 = vrot.lane.b32.xlu0 %v1535, 4
      %v1595 = vpop.permute.xlu0 %1594
      %1596 = vrot.lane.b32.xlu0 %v1536, 4
      %v1597 = vpop.permute.xlu0 %1596
      %1598 = vrot.lane.b32.xlu0 %v1538, 4
      %v1599 = vpop.permute.xlu0 %1598
      %1600 = vrot.lane.b32.xlu0 %v1539, 4
      %v1601 = vpop.permute.xlu0 %1600
      %1602 = vrot.lane.b32.xlu0 %v1541, 4
      %v1603 = vpop.permute.xlu0 %1602
      %1604 = vrot.lane.b32.xlu0 %v1542, 4
      %v1605 = vpop.permute.xlu0 %1604
      %1606 = vrot.lane.b32.xlu0 %v1544, 4
      %v1607 = vpop.permute.xlu0 %1606
      %1608 = vrot.lane.b32.xlu0 %v1545, 4
      %v1609 = vpop.permute.xlu0 %1608
      %1610 = vrot.lane.b32.xlu0 %v1547, 4
      %v1611 = vpop.permute.xlu0 %1610
      %v1660 = vunpack.c.l.b16 %v951
      %v1661 = vunpack.c.l.b16 %v952
      %v1662 = vunpack.c.l.b16 %v953
      %v1663 = vunpack.c.l.b16 %v954
      %v1664 = vunpack.c.l.b16 %v955
      %v1665 = vunpack.c.l.b16 %v956
      %v1666 = vunpack.c.l.b16 %v957
      %v1667 = vunpack.c.l.b16 %v958
      %v1668 = vunpack.c.l.b16 %v959
      %v1669 = vunpack.c.l.b16 %v960
      %v1670 = vunpack.c.l.b16 %v961
      %v1671 = vunpack.c.l.b16 %v962
      %v1672 = vunpack.c.l.b16 %v963
      %v1673 = vunpack.c.l.b16 %v964
      %v1674 = vunpack.c.l.b16 %v965
      %v1675 = vunpack.c.l.b16 %v966
      %v1676 = vunpack.c.l.b16 %v967
      %v1677 = vunpack.c.l.b16 %v968
      %v1678 = vunpack.c.l.b16 %v969
      %v1679 = vunpack.c.l.b16 %v970
      %v1680 = vunpack.c.l.b16 %v971
      %v1681 = vunpack.c.l.b16 %v972
      %v1682 = vunpack.c.l.b16 %v973
      %v1683 = vunpack.c.l.b16 %v974
      %v1684 = vunpack.c.l.b16 %v975
      %v1685 = vunpack.c.l.b16 %v976
      %v1686 = vunpack.c.l.b16 %v977
      %v1687 = vunpack.c.l.b16 %v978
      %v1688 = vunpack.c.l.b16 %v979
      %v1689 = vunpack.c.l.b16 %v980
      %v1690 = vunpack.c.l.b16 %v981
      %v1691 = vunpack.c.l.b16 %v982
      %v1692 = vunpack.c.l.b16 %v983
      %v1693 = vunpack.c.l.b16 %v984
      %v1694 = vunpack.c.l.b16 %v985
      %v1695 = vunpack.c.l.b16 %v986
      %v1696 = vunpack.c.l.b16 %v987
      %v1697 = vunpack.c.l.b16 %v988
      %v1698 = vunpack.c.l.b16 %v989
      %v1699 = vunpack.c.l.b16 %v990
      %v1700 = vunpack.c.l.b16 %v991
      %v1701 = vunpack.c.l.b16 %v992
      %v1702 = vunpack.c.l.b16 %v993
      %v1703 = vunpack.c.l.b16 %v994
      %v1704 = vunpack.c.l.b16 %v995
      %v1705 = vunpack.c.l.b16 %v996
      %v1706 = vunpack.c.l.b16 %v997
      %v1707 = vunpack.c.l.b16 %v998
      %v1708 = vpack.c.b16 %v1661, %v1660
      %v1709 = vpack.c.b16 %v1662, %v1662
      %v1710 = vpack.c.b16 %v1664, %v1663
      %v1711 = vpack.c.b16 %v1665, %v1665
      %v1712 = vpack.c.b16 %v1667, %v1666
      %v1713 = vpack.c.b16 %v1668, %v1668
      %v1714 = vpack.c.b16 %v1670, %v1669
      %v1715 = vpack.c.b16 %v1671, %v1671
      %v1716 = vpack.c.b16 %v1673, %v1672
      %v1717 = vpack.c.b16 %v1674, %v1674
      %v1718 = vpack.c.b16 %v1676, %v1675
      %v1719 = vpack.c.b16 %v1677, %v1677
      %v1720 = vpack.c.b16 %v1679, %v1678
      %v1721 = vpack.c.b16 %v1680, %v1680
      %v1722 = vpack.c.b16 %v1682, %v1681
      %v1723 = vpack.c.b16 %v1683, %v1683
      %v1724 = vpack.c.b16 %v1685, %v1684
      %v1725 = vpack.c.b16 %v1686, %v1686
      %v1726 = vpack.c.b16 %v1688, %v1687
      %v1727 = vpack.c.b16 %v1689, %v1689
      %v1728 = vpack.c.b16 %v1691, %v1690
      %v1729 = vpack.c.b16 %v1692, %v1692
      %v1730 = vpack.c.b16 %v1694, %v1693
      %v1731 = vpack.c.b16 %v1695, %v1695
      %v1732 = vpack.c.b16 %v1697, %v1696
      %v1733 = vpack.c.b16 %v1698, %v1698
      %v1734 = vpack.c.b16 %v1700, %v1699
      %v1735 = vpack.c.b16 %v1701, %v1701
      %v1736 = vpack.c.b16 %v1703, %v1702
      %v1737 = vpack.c.b16 %v1704, %v1704
      %v1738 = vpack.c.b16 %v1706, %v1705
      %v1739 = vpack.c.b16 %v1707, %v1707
      %1740 = vrot.lane.b32.xlu0 %v1708, 8
      %v1741 = vpop.permute.xlu0 %1740
      %1742 = vrot.lane.b32.xlu0 %v1709, 8
      %v1743 = vpop.permute.xlu0 %1742
      %1744 = vrot.lane.b32.xlu0 %v1710, 8
      %v1745 = vpop.permute.xlu0 %1744
      %1746 = vrot.lane.b32.xlu0 %v1711, 8
      %v1747 = vpop.permute.xlu0 %1746
      %1748 = vrot.lane.b32.xlu0 %v1712, 8
      %v1749 = vpop.permute.xlu0 %1748
      %1750 = vrot.lane.b32.xlu0 %v1713, 8
      %v1751 = vpop.permute.xlu0 %1750
      %1752 = vrot.lane.b32.xlu0 %v1714, 8
      %v1753 = vpop.permute.xlu0 %1752
      %1754 = vrot.lane.b32.xlu0 %v1715, 8
      %v1755 = vpop.permute.xlu0 %1754
      %1756 = vrot.lane.b32.xlu0 %v1716, 8
      %v1757 = vpop.permute.xlu0 %1756
      %1758 = vrot.lane.b32.xlu0 %v1717, 8
      %v1759 = vpop.permute.xlu0 %1758
      %1760 = vrot.lane.b32.xlu0 %v1718, 8
      %v1761 = vpop.permute.xlu0 %1760
      %1762 = vrot.lane.b32.xlu0 %v1719, 8
      %v1763 = vpop.permute.xlu0 %1762
      %1764 = vrot.lane.b32.xlu0 %v1720, 8
      %v1765 = vpop.permute.xlu0 %1764
      %1766 = vrot.lane.b32.xlu0 %v1721, 8
      %v1767 = vpop.permute.xlu0 %1766
      %1768 = vrot.lane.b32.xlu0 %v1722, 8
      %v1769 = vpop.permute.xlu0 %1768
      %1770 = vrot.lane.b32.xlu0 %v1723, 8
      %v1771 = vpop.permute.xlu0 %1770
      %1772 = vrot.lane.b32.xlu0 %v1724, 8
      %v1773 = vpop.permute.xlu0 %1772
      %1774 = vrot.lane.b32.xlu0 %v1725, 8
      %v1775 = vpop.permute.xlu0 %1774
      %1776 = vrot.lane.b32.xlu0 %v1726, 8
      %v1777 = vpop.permute.xlu0 %1776
      %1778 = vrot.lane.b32.xlu0 %v1727, 8
      %v1779 = vpop.permute.xlu0 %1778
      %1780 = vrot.lane.b32.xlu0 %v1728, 8
      %v1781 = vpop.permute.xlu0 %1780
      %1782 = vrot.lane.b32.xlu0 %v1729, 8
      %v1783 = vpop.permute.xlu0 %1782
      %1784 = vrot.lane.b32.xlu0 %v1730, 8
      %v1785 = vpop.permute.xlu0 %1784
      %1786 = vrot.lane.b32.xlu0 %v1731, 8
      %v1787 = vpop.permute.xlu0 %1786
      %1788 = vrot.lane.b32.xlu0 %v1732, 8
      %v1789 = vpop.permute.xlu0 %1788
      %1790 = vrot.lane.b32.xlu0 %v1733, 8
      %v1791 = vpop.permute.xlu0 %1790
      %1792 = vrot.lane.b32.xlu0 %v1734, 8
      %v1793 = vpop.permute.xlu0 %1792
      %1794 = vrot.lane.b32.xlu0 %v1735, 8
      %v1795 = vpop.permute.xlu0 %1794
      %1796 = vrot.lane.b32.xlu0 %v1736, 8
      %v1797 = vpop.permute.xlu0 %1796
      %1798 = vrot.lane.b32.xlu0 %v1737, 8
      %v1799 = vpop.permute.xlu0 %1798
      %1800 = vrot.lane.b32.xlu0 %v1738, 8
      %v1801 = vpop.permute.xlu0 %1800
      %1802 = vrot.lane.b32.xlu0 %v1739, 8
      %v1803 = vpop.permute.xlu0 %1802
      %v1852 = vunpack.c.l.b16 %v999
      %v1853 = vunpack.c.l.b16 %v1000
      %v1854 = vunpack.c.l.b16 %v1001
      %v1855 = vunpack.c.l.b16 %v1002
      %v1856 = vunpack.c.l.b16 %v1003
      %v1857 = vunpack.c.l.b16 %v1004
      %v1858 = vunpack.c.l.b16 %v1005
      %v1859 = vunpack.c.l.b16 %v1006
      %v1860 = vunpack.c.l.b16 %v1007
      %v1861 = vunpack.c.l.b16 %v1008
      %v1862 = vunpack.c.l.b16 %v1009
      %v1863 = vunpack.c.l.b16 %v1010
      %v1864 = vunpack.c.l.b16 %v1011
      %v1865 = vunpack.c.l.b16 %v1012
      %v1866 = vunpack.c.l.b16 %v1013
      %v1867 = vunpack.c.l.b16 %v1014
      %v1868 = vunpack.c.l.b16 %v1015
      %v1869 = vunpack.c.l.b16 %v1016
      %v1870 = vunpack.c.l.b16 %v1017
      %v1871 = vunpack.c.l.b16 %v1018
      %v1872 = vunpack.c.l.b16 %v1019
      %v1873 = vunpack.c.l.b16 %v1020
      %v1874 = vunpack.c.l.b16 %v1021
      %v1875 = vunpack.c.l.b16 %v1022
      %v1876 = vunpack.c.l.b16 %v1023
      %v1877 = vunpack.c.l.b16 %v1024
      %v1878 = vunpack.c.l.b16 %v1025
      %v1879 = vunpack.c.l.b16 %v1026
      %v1880 = vunpack.c.l.b16 %v1027
      %v1881 = vunpack.c.l.b16 %v1028
      %v1882 = vunpack.c.l.b16 %v1029
      %v1883 = vunpack.c.l.b16 %v1030
      %v1884 = vunpack.c.l.b16 %v1031
      %v1885 = vunpack.c.l.b16 %v1032
      %v1886 = vunpack.c.l.b16 %v1033
      %v1887 = vunpack.c.l.b16 %v1034
      %v1888 = vunpack.c.l.b16 %v1035
      %v1889 = vunpack.c.l.b16 %v1036
      %v1890 = vunpack.c.l.b16 %v1037
      %v1891 = vunpack.c.l.b16 %v1038
      %v1892 = vunpack.c.l.b16 %v1039
      %v1893 = vunpack.c.l.b16 %v1040
      %v1894 = vunpack.c.l.b16 %v1041
      %v1895 = vunpack.c.l.b16 %v1042
      %v1896 = vunpack.c.l.b16 %v1043
      %v1897 = vunpack.c.l.b16 %v1044
      %v1898 = vunpack.c.l.b16 %v1045
      %v1899 = vunpack.c.l.b16 %v1046
      %v1900 = vpack.c.b16 %v1853, %v1852
      %v1901 = vpack.c.b16 %v1854, %v1854
      %v1902 = vpack.c.b16 %v1856, %v1855
      %v1903 = vpack.c.b16 %v1857, %v1857
      %v1904 = vpack.c.b16 %v1859, %v1858
      %v1905 = vpack.c.b16 %v1860, %v1860
      %v1906 = vpack.c.b16 %v1862, %v1861
      %v1907 = vpack.c.b16 %v1863, %v1863
      %v1908 = vpack.c.b16 %v1865, %v1864
      %v1909 = vpack.c.b16 %v1866, %v1866
      %v1910 = vpack.c.b16 %v1868, %v1867
      %v1911 = vpack.c.b16 %v1869, %v1869
      %v1912 = vpack.c.b16 %v1871, %v1870
      %v1913 = vpack.c.b16 %v1872, %v1872
      %v1914 = vpack.c.b16 %v1874, %v1873
      %v1915 = vpack.c.b16 %v1875, %v1875
      %v1916 = vpack.c.b16 %v1877, %v1876
      %v1917 = vpack.c.b16 %v1878, %v1878
      %v1918 = vpack.c.b16 %v1880, %v1879
      %v1919 = vpack.c.b16 %v1881, %v1881
      %v1920 = vpack.c.b16 %v1883, %v1882
      %v1921 = vpack.c.b16 %v1884, %v1884
      %v1922 = vpack.c.b16 %v1886, %v1885
      %v1923 = vpack.c.b16 %v1887, %v1887
      %v1924 = vpack.c.b16 %v1889, %v1888
      %v1925 = vpack.c.b16 %v1890, %v1890
      %v1926 = vpack.c.b16 %v1892, %v1891
      %v1927 = vpack.c.b16 %v1893, %v1893
      %v1928 = vpack.c.b16 %v1895, %v1894
      %v1929 = vpack.c.b16 %v1896, %v1896
      %v1930 = vpack.c.b16 %v1898, %v1897
      %v1931 = vpack.c.b16 %v1899, %v1899
      %1932 = vrot.lane.b32.xlu0 %v1900, 12
      %v1933 = vpop.permute.xlu0 %1932
      %1934 = vrot.lane.b32.xlu0 %v1901, 12
      %v1935 = vpop.permute.xlu0 %1934
      %1936 = vrot.lane.b32.xlu0 %v1902, 12
      %v1937 = vpop.permute.xlu0 %1936
      %1938 = vrot.lane.b32.xlu0 %v1903, 12
      %v1939 = vpop.permute.xlu0 %1938
      %1940 = vrot.lane.b32.xlu0 %v1904, 12
      %v1941 = vpop.permute.xlu0 %1940
      %1942 = vrot.lane.b32.xlu0 %v1905, 12
      %v1943 = vpop.permute.xlu0 %1942
      %1944 = vrot.lane.b32.xlu0 %v1906, 12
      %v1945 = vpop.permute.xlu0 %1944
      %1946 = vrot.lane.b32.xlu0 %v1907, 12
      %v1947 = vpop.permute.xlu0 %1946
      %1948 = vrot.lane.b32.xlu0 %v1908, 12
      %v1949 = vpop.permute.xlu0 %1948
      %1950 = vrot.lane.b32.xlu0 %v1909, 12
      %v1951 = vpop.permute.xlu0 %1950
      %1952 = vrot.lane.b32.xlu0 %v1910, 12
      %v1953 = vpop.permute.xlu0 %1952
      %1954 = vrot.lane.b32.xlu0 %v1911, 12
      %v1955 = vpop.permute.xlu0 %1954
      %1956 = vrot.lane.b32.xlu0 %v1912, 12
      %v1957 = vpop.permute.xlu0 %1956
      %1958 = vrot.lane.b32.xlu0 %v1913, 12
      %v1959 = vpop.permute.xlu0 %1958
      %1960 = vrot.lane.b32.xlu0 %v1914, 12
      %v1961 = vpop.permute.xlu0 %1960
      %1962 = vrot.lane.b32.xlu0 %v1915, 12
      %v1963 = vpop.permute.xlu0 %1962
      %1964 = vrot.lane.b32.xlu0 %v1916, 12
      %v1965 = vpop.permute.xlu0 %1964
      %1966 = vrot.lane.b32.xlu0 %v1917, 12
      %v1967 = vpop.permute.xlu0 %1966
      %1968 = vrot.lane.b32.xlu0 %v1918, 12
      %v1969 = vpop.permute.xlu0 %1968
      %1970 = vrot.lane.b32.xlu0 %v1919, 12
      %v1971 = vpop.permute.xlu0 %1970
      %1972 = vrot.lane.b32.xlu0 %v1920, 12
      %v1973 = vpop.permute.xlu0 %1972
      %1974 = vrot.lane.b32.xlu0 %v1921, 12
      %v1975 = vpop.permute.xlu0 %1974
      %1976 = vrot.lane.b32.xlu0 %v1922, 12
      %v1977 = vpop.permute.xlu0 %1976
      %1978 = vrot.lane.b32.xlu0 %v1923, 12
      %v1979 = vpop.permute.xlu0 %1978
      %1980 = vrot.lane.b32.xlu0 %v1924, 12
      %v1981 = vpop.permute.xlu0 %1980
      %1982 = vrot.lane.b32.xlu0 %v1925, 12
      %v1983 = vpop.permute.xlu0 %1982
      %1984 = vrot.lane.b32.xlu0 %v1926, 12
      %v1985 = vpop.permute.xlu0 %1984
      %1986 = vrot.lane.b32.xlu0 %v1927, 12
      %v1987 = vpop.permute.xlu0 %1986
      %1988 = vrot.lane.b32.xlu0 %v1928, 12
      %v1989 = vpop.permute.xlu0 %1988
      %1990 = vrot.lane.b32.xlu0 %v1929, 12
      %v1991 = vpop.permute.xlu0 %1990
      %1992 = vrot.lane.b32.xlu0 %v1930, 12
      %v1993 = vpop.permute.xlu0 %1992
      %1994 = vrot.lane.b32.xlu0 %v1931, 12
      %v1995 = vpop.permute.xlu0 %1994
      %v1996 = vunpack.c.l.b16 %v322
      %v1997 = vunpack.c.l.b16 %v323
      %v1998 = vunpack.c.l.b16 %v324
      %v1999 = vunpack.c.l.b16 %v325
      %v2000 = vunpack.c.l.b16 %v326
      %v2001 = vunpack.c.l.b16 %v327
      %v2002 = vunpack.c.l.b16 %v328
      %v2003 = vunpack.c.l.b16 %v329
      %v2004 = vunpack.c.l.b16 %v330
      %v2005 = vunpack.c.l.b16 %v331
      %v2006 = vunpack.c.l.b16 %v332
      %v2007 = vunpack.c.l.b16 %v333
      %v2008 = vunpack.c.l.b16 %v334
      %v2009 = vunpack.c.l.b16 %v335
      %v2010 = vunpack.c.l.b16 %v336
      %v2011 = vunpack.c.l.b16 %v337
      %v2012 = vunpack.c.l.b16 %v338
      %v2013 = vunpack.c.l.b16 %v339
      %v2014 = vunpack.c.l.b16 %v340
      %v2015 = vunpack.c.l.b16 %v341
      %v2016 = vunpack.c.l.b16 %v342
      %v2017 = vunpack.c.l.b16 %v343
      %v2018 = vunpack.c.l.b16 %v344
      %v2019 = vunpack.c.l.b16 %v345
      %v2020 = vunpack.c.l.b16 %v346
      %v2021 = vunpack.c.l.b16 %v347
      %v2022 = vunpack.c.l.b16 %v348
      %v2023 = vunpack.c.l.b16 %v349
      %v2024 = vunpack.c.l.b16 %v350
      %v2025 = vunpack.c.l.b16 %v351
      %v2026 = vunpack.c.l.b16 %v352
      %v2027 = vunpack.c.l.b16 %v353
      %v2028 = vunpack.c.l.b16 %v354
      %v2029 = vunpack.c.l.b16 %v355
      %v2030 = vunpack.c.l.b16 %v356
      %v2031 = vunpack.c.l.b16 %v357
      %v2032 = vunpack.c.l.b16 %v358
      %v2033 = vunpack.c.l.b16 %v359
      %v2034 = vunpack.c.l.b16 %v360
      %v2035 = vunpack.c.l.b16 %v361
      %v2036 = vunpack.c.l.b16 %v362
      %v2037 = vunpack.c.l.b16 %v363
      %v2038 = vunpack.c.l.b16 %v364
      %v2039 = vunpack.c.l.b16 %v365
      %v2040 = vunpack.c.l.b16 %v366
      %v2041 = vunpack.c.l.b16 %v367
      %v2042 = vunpack.c.l.b16 %v368
      %v2043 = vunpack.c.l.b16 %v369
      %v2044 = vpack.c.b16 %v1997, %v1996
      %v2045 = vpack.c.b16 %v1998, %v1998
      %v2046 = vpack.c.b16 %v2000, %v1999
      %v2047 = vpack.c.b16 %v2001, %v2001
      %v2048 = vpack.c.b16 %v2003, %v2002
      %v2049 = vpack.c.b16 %v2004, %v2004
      %v2050 = vpack.c.b16 %v2006, %v2005
      %v2051 = vpack.c.b16 %v2007, %v2007
      %v2052 = vpack.c.b16 %v2009, %v2008
      %v2053 = vpack.c.b16 %v2010, %v2010
      %v2054 = vpack.c.b16 %v2012, %v2011
      %v2055 = vpack.c.b16 %v2013, %v2013
      %v2056 = vpack.c.b16 %v2015, %v2014
      %v2057 = vpack.c.b16 %v2016, %v2016
      %v2058 = vpack.c.b16 %v2018, %v2017
      %v2059 = vpack.c.b16 %v2019, %v2019
      %v2060 = vpack.c.b16 %v2021, %v2020
      %v2061 = vpack.c.b16 %v2022, %v2022
      %v2062 = vpack.c.b16 %v2024, %v2023
      %v2063 = vpack.c.b16 %v2025, %v2025
      %v2064 = vpack.c.b16 %v2027, %v2026
      %v2065 = vpack.c.b16 %v2028, %v2028
      %v2066 = vpack.c.b16 %v2030, %v2029
      %v2067 = vpack.c.b16 %v2031, %v2031
      %v2068 = vpack.c.b16 %v2033, %v2032
      %v2069 = vpack.c.b16 %v2034, %v2034
      %v2070 = vpack.c.b16 %v2036, %v2035
      %v2071 = vpack.c.b16 %v2037, %v2037
      %v2072 = vpack.c.b16 %v2039, %v2038
      %v2073 = vpack.c.b16 %v2040, %v2040
      %v2074 = vpack.c.b16 %v2042, %v2041
      %v2075 = vpack.c.b16 %v2043, %v2043
      %v2076 = vrot.slane %v2044, 6
      %v2077 = vrot.slane %v2045, 6
      %v2078 = vsel %vm1499, %v2076, %v2077
      %v2079 = vrot.slane %v2046, 6
      %v2080 = vrot.slane %v2047, 6
      %v2081 = vsel %vm1499, %v2079, %v2080
      %v2082 = vrot.slane %v2048, 6
      %v2083 = vrot.slane %v2049, 6
      %v2084 = vsel %vm1499, %v2082, %v2083
      %v2085 = vrot.slane %v2050, 6
      %v2086 = vrot.slane %v2051, 6
      %v2087 = vsel %vm1499, %v2085, %v2086
      %v2088 = vrot.slane %v2052, 6
      %v2089 = vrot.slane %v2053, 6
      %v2090 = vsel %vm1499, %v2088, %v2089
      %v2091 = vrot.slane %v2054, 6
      %v2092 = vrot.slane %v2055, 6
      %v2093 = vsel %vm1499, %v2091, %v2092
      %v2094 = vrot.slane %v2056, 6
      %v2095 = vrot.slane %v2057, 6
      %v2096 = vsel %vm1499, %v2094, %v2095
      %v2097 = vrot.slane %v2058, 6
      %v2098 = vrot.slane %v2059, 6
      %v2099 = vsel %vm1499, %v2097, %v2098
      %v2100 = vrot.slane %v2060, 6
      %v2101 = vrot.slane %v2061, 6
      %v2102 = vsel %vm1499, %v2100, %v2101
      %v2103 = vrot.slane %v2062, 6
      %v2104 = vrot.slane %v2063, 6
      %v2105 = vsel %vm1499, %v2103, %v2104
      %v2106 = vrot.slane %v2064, 6
      %v2107 = vrot.slane %v2065, 6
      %v2108 = vsel %vm1499, %v2106, %v2107
      %v2109 = vrot.slane %v2066, 6
      %v2110 = vrot.slane %v2067, 6
      %v2111 = vsel %vm1499, %v2109, %v2110
      %v2112 = vrot.slane %v2068, 6
      %v2113 = vrot.slane %v2069, 6
      %v2114 = vsel %vm1499, %v2112, %v2113
      %v2115 = vrot.slane %v2070, 6
      %v2116 = vrot.slane %v2071, 6
      %v2117 = vsel %vm1499, %v2115, %v2116
      %v2118 = vrot.slane %v2072, 6
      %v2119 = vrot.slane %v2073, 6
      %v2120 = vsel %vm1499, %v2118, %v2119
      %v2121 = vrot.slane %v2074, 6
      %v2122 = vrot.slane %v2075, 6
      %v2123 = vsel %vm1499, %v2121, %v2122
      %2124 = vrot.lane.b32.xlu0 %v2076, 16
      %v2125 = vpop.permute.xlu0 %2124
      %2126 = vrot.lane.b32.xlu0 %v2078, 16
      %v2127 = vpop.permute.xlu0 %2126
      %2128 = vrot.lane.b32.xlu0 %v2079, 16
      %v2129 = vpop.permute.xlu0 %2128
      %2130 = vrot.lane.b32.xlu0 %v2081, 16
      %v2131 = vpop.permute.xlu0 %2130
      %2132 = vrot.lane.b32.xlu0 %v2082, 16
      %v2133 = vpop.permute.xlu0 %2132
      %2134 = vrot.lane.b32.xlu0 %v2084, 16
      %v2135 = vpop.permute.xlu0 %2134
      %2136 = vrot.lane.b32.xlu0 %v2085, 16
      %v2137 = vpop.permute.xlu0 %2136
      %2138 = vrot.lane.b32.xlu0 %v2087, 16
      %v2139 = vpop.permute.xlu0 %2138
      %2140 = vrot.lane.b32.xlu0 %v2088, 16
      %v2141 = vpop.permute.xlu0 %2140
      %2142 = vrot.lane.b32.xlu0 %v2090, 16
      %v2143 = vpop.permute.xlu0 %2142
      %2144 = vrot.lane.b32.xlu0 %v2091, 16
      %v2145 = vpop.permute.xlu0 %2144
      %2146 = vrot.lane.b32.xlu0 %v2093, 16
      %v2147 = vpop.permute.xlu0 %2146
      %2148 = vrot.lane.b32.xlu0 %v2094, 16
      %v2149 = vpop.permute.xlu0 %2148
      %2150 = vrot.lane.b32.xlu0 %v2096, 16
      %v2151 = vpop.permute.xlu0 %2150
      %2152 = vrot.lane.b32.xlu0 %v2097, 16
      %v2153 = vpop.permute.xlu0 %2152
      %2154 = vrot.lane.b32.xlu0 %v2099, 16
      %v2155 = vpop.permute.xlu0 %2154
      %2156 = vrot.lane.b32.xlu0 %v2100, 16
      %v2157 = vpop.permute.xlu0 %2156
      %2158 = vrot.lane.b32.xlu0 %v2102, 16
      %v2159 = vpop.permute.xlu0 %2158
      %2160 = vrot.lane.b32.xlu0 %v2103, 16
      %v2161 = vpop.permute.xlu0 %2160
      %2162 = vrot.lane.b32.xlu0 %v2105, 16
      %v2163 = vpop.permute.xlu0 %2162
      %2164 = vrot.lane.b32.xlu0 %v2106, 16
      %v2165 = vpop.permute.xlu0 %2164
      %2166 = vrot.lane.b32.xlu0 %v2108, 16
      %v2167 = vpop.permute.xlu0 %2166
      %2168 = vrot.lane.b32.xlu0 %v2109, 16
      %v2169 = vpop.permute.xlu0 %2168
      %2170 = vrot.lane.b32.xlu0 %v2111, 16
      %v2171 = vpop.permute.xlu0 %2170
      %2172 = vrot.lane.b32.xlu0 %v2112, 16
      %v2173 = vpop.permute.xlu0 %2172
      %2174 = vrot.lane.b32.xlu0 %v2114, 16
      %v2175 = vpop.permute.xlu0 %2174
      %2176 = vrot.lane.b32.xlu0 %v2115, 16
      %v2177 = vpop.permute.xlu0 %2176
      %2178 = vrot.lane.b32.xlu0 %v2117, 16
      %v2179 = vpop.permute.xlu0 %2178
      %2180 = vrot.lane.b32.xlu0 %v2118, 16
      %v2181 = vpop.permute.xlu0 %2180
      %2182 = vrot.lane.b32.xlu0 %v2120, 16
      %v2183 = vpop.permute.xlu0 %2182
      %2184 = vrot.lane.b32.xlu0 %v2121, 16
      %v2185 = vpop.permute.xlu0 %2184
      %2186 = vrot.lane.b32.xlu0 %v2123, 16
      %v2187 = vpop.permute.xlu0 %2186
      %v2236 = vunpack.c.l.b16 %v1047
      %v2237 = vunpack.c.l.b16 %v1048
      %v2238 = vunpack.c.l.b16 %v1049
      %v2239 = vunpack.c.l.b16 %v1050
      %v2240 = vunpack.c.l.b16 %v1051
      %v2241 = vunpack.c.l.b16 %v1052
      %v2242 = vunpack.c.l.b16 %v1053
      %v2243 = vunpack.c.l.b16 %v1054
      %v2244 = vunpack.c.l.b16 %v1055
      %v2245 = vunpack.c.l.b16 %v1056
      %v2246 = vunpack.c.l.b16 %v1057
      %v2247 = vunpack.c.l.b16 %v1058
      %v2248 = vunpack.c.l.b16 %v1059
      %v2249 = vunpack.c.l.b16 %v1060
      %v2250 = vunpack.c.l.b16 %v1061
      %v2251 = vunpack.c.l.b16 %v1062
      %v2252 = vunpack.c.l.b16 %v1063
      %v2253 = vunpack.c.l.b16 %v1064
      %v2254 = vunpack.c.l.b16 %v1065
      %v2255 = vunpack.c.l.b16 %v1066
      %v2256 = vunpack.c.l.b16 %v1067
      %v2257 = vunpack.c.l.b16 %v1068
      %v2258 = vunpack.c.l.b16 %v1069
      %v2259 = vunpack.c.l.b16 %v1070
      %v2260 = vunpack.c.l.b16 %v1071
      %v2261 = vunpack.c.l.b16 %v1072
      %v2262 = vunpack.c.l.b16 %v1073
      %v2263 = vunpack.c.l.b16 %v1074
      %v2264 = vunpack.c.l.b16 %v1075
      %v2265 = vunpack.c.l.b16 %v1076
      %v2266 = vunpack.c.l.b16 %v1077
      %v2267 = vunpack.c.l.b16 %v1078
      %v2268 = vunpack.c.l.b16 %v1079
      %v2269 = vunpack.c.l.b16 %v1080
      %v2270 = vunpack.c.l.b16 %v1081
      %v2271 = vunpack.c.l.b16 %v1082
      %v2272 = vunpack.c.l.b16 %v1083
      %v2273 = vunpack.c.l.b16 %v1084
      %v2274 = vunpack.c.l.b16 %v1085
      %v2275 = vunpack.c.l.b16 %v1086
      %v2276 = vunpack.c.l.b16 %v1087
      %v2277 = vunpack.c.l.b16 %v1088
      %v2278 = vunpack.c.l.b16 %v1089
      %v2279 = vunpack.c.l.b16 %v1090
      %v2280 = vunpack.c.l.b16 %v1091
      %v2281 = vunpack.c.l.b16 %v1092
      %v2282 = vunpack.c.l.b16 %v1093
      %v2283 = vunpack.c.l.b16 %v1094
      %v2284 = vpack.c.b16 %v2237, %v2236
      %v2285 = vpack.c.b16 %v2238, %v2238
      %v2286 = vpack.c.b16 %v2240, %v2239
      %v2287 = vpack.c.b16 %v2241, %v2241
      %v2288 = vpack.c.b16 %v2243, %v2242
      %v2289 = vpack.c.b16 %v2244, %v2244
      %v2290 = vpack.c.b16 %v2246, %v2245
      %v2291 = vpack.c.b16 %v2247, %v2247
      %v2292 = vpack.c.b16 %v2249, %v2248
      %v2293 = vpack.c.b16 %v2250, %v2250
      %v2294 = vpack.c.b16 %v2252, %v2251
      %v2295 = vpack.c.b16 %v2253, %v2253
      %v2296 = vpack.c.b16 %v2255, %v2254
      %v2297 = vpack.c.b16 %v2256, %v2256
      %v2298 = vpack.c.b16 %v2258, %v2257
      %v2299 = vpack.c.b16 %v2259, %v2259
      %v2300 = vpack.c.b16 %v2261, %v2260
      %v2301 = vpack.c.b16 %v2262, %v2262
      %v2302 = vpack.c.b16 %v2264, %v2263
      %v2303 = vpack.c.b16 %v2265, %v2265
      %v2304 = vpack.c.b16 %v2267, %v2266
      %v2305 = vpack.c.b16 %v2268, %v2268
      %v2306 = vpack.c.b16 %v2270, %v2269
      %v2307 = vpack.c.b16 %v2271, %v2271
      %v2308 = vpack.c.b16 %v2273, %v2272
      %v2309 = vpack.c.b16 %v2274, %v2274
      %v2310 = vpack.c.b16 %v2276, %v2275
      %v2311 = vpack.c.b16 %v2277, %v2277
      %v2312 = vpack.c.b16 %v2279, %v2278
      %v2313 = vpack.c.b16 %v2280, %v2280
      %v2314 = vpack.c.b16 %v2282, %v2281
      %v2315 = vpack.c.b16 %v2283, %v2283
      %2316 = vrot.lane.b32.xlu0 %v2284, 20
      %v2317 = vpop.permute.xlu0 %2316
      %2318 = vrot.lane.b32.xlu0 %v2285, 20
      %v2319 = vpop.permute.xlu0 %2318
      %2320 = vrot.lane.b32.xlu0 %v2286, 20
      %v2321 = vpop.permute.xlu0 %2320
      %2322 = vrot.lane.b32.xlu0 %v2287, 20
      %v2323 = vpop.permute.xlu0 %2322
      %2324 = vrot.lane.b32.xlu0 %v2288, 20
      %v2325 = vpop.permute.xlu0 %2324
      %2326 = vrot.lane.b32.xlu0 %v2289, 20
      %v2327 = vpop.permute.xlu0 %2326
      %2328 = vrot.lane.b32.xlu0 %v2290, 20
      %v2329 = vpop.permute.xlu0 %2328
      %2330 = vrot.lane.b32.xlu0 %v2291, 20
      %v2331 = vpop.permute.xlu0 %2330
      %2332 = vrot.lane.b32.xlu0 %v2292, 20
      %v2333 = vpop.permute.xlu0 %2332
      %2334 = vrot.lane.b32.xlu0 %v2293, 20
      %v2335 = vpop.permute.xlu0 %2334
      %2336 = vrot.lane.b32.xlu0 %v2294, 20
      %v2337 = vpop.permute.xlu0 %2336
      %2338 = vrot.lane.b32.xlu0 %v2295, 20
      %v2339 = vpop.permute.xlu0 %2338
      %2340 = vrot.lane.b32.xlu0 %v2296, 20
      %v2341 = vpop.permute.xlu0 %2340
      %2342 = vrot.lane.b32.xlu0 %v2297, 20
      %v2343 = vpop.permute.xlu0 %2342
      %2344 = vrot.lane.b32.xlu0 %v2298, 20
      %v2345 = vpop.permute.xlu0 %2344
      %2346 = vrot.lane.b32.xlu0 %v2299, 20
      %v2347 = vpop.permute.xlu0 %2346
      %2348 = vrot.lane.b32.xlu0 %v2300, 20
      %v2349 = vpop.permute.xlu0 %2348
      %2350 = vrot.lane.b32.xlu0 %v2301, 20
      %v2351 = vpop.permute.xlu0 %2350
      %2352 = vrot.lane.b32.xlu0 %v2302, 20
      %v2353 = vpop.permute.xlu0 %2352
      %2354 = vrot.lane.b32.xlu0 %v2303, 20
      %v2355 = vpop.permute.xlu0 %2354
      %2356 = vrot.lane.b32.xlu0 %v2304, 20
      %v2357 = vpop.permute.xlu0 %2356
      %2358 = vrot.lane.b32.xlu0 %v2305, 20
      %v2359 = vpop.permute.xlu0 %2358
      %2360 = vrot.lane.b32.xlu0 %v2306, 20
      %v2361 = vpop.permute.xlu0 %2360
      %2362 = vrot.lane.b32.xlu0 %v2307, 20
      %v2363 = vpop.permute.xlu0 %2362
      %2364 = vrot.lane.b32.xlu0 %v2308, 20
      %v2365 = vpop.permute.xlu0 %2364
      %2366 = vrot.lane.b32.xlu0 %v2309, 20
      %v2367 = vpop.permute.xlu0 %2366
      %2368 = vrot.lane.b32.xlu0 %v2310, 20
      %v2369 = vpop.permute.xlu0 %2368
      %2370 = vrot.lane.b32.xlu0 %v2311, 20
      %v2371 = vpop.permute.xlu0 %2370
      %2372 = vrot.lane.b32.xlu0 %v2312, 20
      %v2373 = vpop.permute.xlu0 %2372
      %2374 = vrot.lane.b32.xlu0 %v2313, 20
      %v2375 = vpop.permute.xlu0 %2374
      %2376 = vrot.lane.b32.xlu0 %v2314, 20
      %v2377 = vpop.permute.xlu0 %2376
      %2378 = vrot.lane.b32.xlu0 %v2315, 20
      %v2379 = vpop.permute.xlu0 %2378
      %v2428 = vunpack.c.l.b16 %v1099
      %v2429 = vunpack.c.l.b16 %v1100
      %v2430 = vunpack.c.l.b16 %v1101
      %v2431 = vunpack.c.l.b16 %v1102
      %v2432 = vunpack.c.l.b16 %v1103
      %v2433 = vunpack.c.l.b16 %v1104
      %v2434 = vunpack.c.l.b16 %v1105
      %v2435 = vunpack.c.l.b16 %v1106
      %v2436 = vunpack.c.l.b16 %v1107
      %v2437 = vunpack.c.l.b16 %v1108
      %v2438 = vunpack.c.l.b16 %v1109
      %v2439 = vunpack.c.l.b16 %v1110
      %v2440 = vunpack.c.l.b16 %v1111
      %v2441 = vunpack.c.l.b16 %v1112
      %v2442 = vunpack.c.l.b16 %v1113
      %v2443 = vunpack.c.l.b16 %v1114
      %v2444 = vunpack.c.l.b16 %v1115
      %v2445 = vunpack.c.l.b16 %v1116
      %v2446 = vunpack.c.l.b16 %v1117
      %v2447 = vunpack.c.l.b16 %v1118
      %v2448 = vunpack.c.l.b16 %v1119
      %v2449 = vunpack.c.l.b16 %v1120
      %v2450 = vunpack.c.l.b16 %v1121
      %v2451 = vunpack.c.l.b16 %v1122
      %v2452 = vunpack.c.l.b16 %v1123
      %v2453 = vunpack.c.l.b16 %v1124
      %v2454 = vunpack.c.l.b16 %v1125
      %v2455 = vunpack.c.l.b16 %v1126
      %v2456 = vunpack.c.l.b16 %v1127
      %v2457 = vunpack.c.l.b16 %v1128
      %v2458 = vunpack.c.l.b16 %v1129
      %v2459 = vunpack.c.l.b16 %v1130
      %v2460 = vunpack.c.l.b16 %v1131
      %v2461 = vunpack.c.l.b16 %v1132
      %v2462 = vunpack.c.l.b16 %v1133
      %v2463 = vunpack.c.l.b16 %v1134
      %v2464 = vunpack.c.l.b16 %v1135
      %v2465 = vunpack.c.l.b16 %v1136
      %v2466 = vunpack.c.l.b16 %v1137
      %v2467 = vunpack.c.l.b16 %v1138
      %v2468 = vunpack.c.l.b16 %v1139
      %v2469 = vunpack.c.l.b16 %v1140
      %v2470 = vunpack.c.l.b16 %v1141
      %v2471 = vunpack.c.l.b16 %v1142
      %v2472 = vunpack.c.l.b16 %v1143
      %v2473 = vunpack.c.l.b16 %v1144
      %v2474 = vunpack.c.l.b16 %v1145
      %v2475 = vunpack.c.l.b16 %v1146
      %v2476 = vpack.c.b16 %v2429, %v2428
      %v2477 = vpack.c.b16 %v2430, %v2430
      %v2478 = vpack.c.b16 %v2432, %v2431
      %v2479 = vpack.c.b16 %v2433, %v2433
      %v2480 = vpack.c.b16 %v2435, %v2434
      %v2481 = vpack.c.b16 %v2436, %v2436
      %v2482 = vpack.c.b16 %v2438, %v2437
      %v2483 = vpack.c.b16 %v2439, %v2439
      %v2484 = vpack.c.b16 %v2441, %v2440
      %v2485 = vpack.c.b16 %v2442, %v2442
      %v2486 = vpack.c.b16 %v2444, %v2443
      %v2487 = vpack.c.b16 %v2445, %v2445
      %v2488 = vpack.c.b16 %v2447, %v2446
      %v2489 = vpack.c.b16 %v2448, %v2448
      %v2490 = vpack.c.b16 %v2450, %v2449
      %v2491 = vpack.c.b16 %v2451, %v2451
      %v2492 = vpack.c.b16 %v2453, %v2452
      %v2493 = vpack.c.b16 %v2454, %v2454
      %v2494 = vpack.c.b16 %v2456, %v2455
      %v2495 = vpack.c.b16 %v2457, %v2457
      %v2496 = vpack.c.b16 %v2459, %v2458
      %v2497 = vpack.c.b16 %v2460, %v2460
      %v2498 = vpack.c.b16 %v2462, %v2461
      %v2499 = vpack.c.b16 %v2463, %v2463
      %v2500 = vpack.c.b16 %v2465, %v2464
      %v2501 = vpack.c.b16 %v2466, %v2466
      %v2502 = vpack.c.b16 %v2468, %v2467
      %v2503 = vpack.c.b16 %v2469, %v2469
      %v2504 = vpack.c.b16 %v2471, %v2470
      %v2505 = vpack.c.b16 %v2472, %v2472
      %v2506 = vpack.c.b16 %v2474, %v2473
      %v2507 = vpack.c.b16 %v2475, %v2475
      %2508 = vrot.lane.b32.xlu0 %v2476, 24
      %v2509 = vpop.permute.xlu0 %2508
      %2510 = vrot.lane.b32.xlu0 %v2477, 24
      %v2511 = vpop.permute.xlu0 %2510
      %2512 = vrot.lane.b32.xlu0 %v2478, 24
      %v2513 = vpop.permute.xlu0 %2512
      %2514 = vrot.lane.b32.xlu0 %v2479, 24
      %v2515 = vpop.permute.xlu0 %2514
      %2516 = vrot.lane.b32.xlu0 %v2480, 24
      %v2517 = vpop.permute.xlu0 %2516
      %2518 = vrot.lane.b32.xlu0 %v2481, 24
      %v2519 = vpop.permute.xlu0 %2518
      %2520 = vrot.lane.b32.xlu0 %v2482, 24
      %v2521 = vpop.permute.xlu0 %2520
      %2522 = vrot.lane.b32.xlu0 %v2483, 24
      %v2523 = vpop.permute.xlu0 %2522
      %2524 = vrot.lane.b32.xlu0 %v2484, 24
      %v2525 = vpop.permute.xlu0 %2524
      %2526 = vrot.lane.b32.xlu0 %v2485, 24
      %v2527 = vpop.permute.xlu0 %2526
      %2528 = vrot.lane.b32.xlu0 %v2486, 24
      %v2529 = vpop.permute.xlu0 %2528
      %2530 = vrot.lane.b32.xlu0 %v2487, 24
      %v2531 = vpop.permute.xlu0 %2530
      %2532 = vrot.lane.b32.xlu0 %v2488, 24
      %v2533 = vpop.permute.xlu0 %2532
      %2534 = vrot.lane.b32.xlu0 %v2489, 24
      %v2535 = vpop.permute.xlu0 %2534
      %2536 = vrot.lane.b32.xlu0 %v2490, 24
      %v2537 = vpop.permute.xlu0 %2536
      %2538 = vrot.lane.b32.xlu0 %v2491, 24
      %v2539 = vpop.permute.xlu0 %2538
      %2540 = vrot.lane.b32.xlu0 %v2492, 24
      %v2541 = vpop.permute.xlu0 %2540
      %2542 = vrot.lane.b32.xlu0 %v2493, 24
      %v2543 = vpop.permute.xlu0 %2542
      %2544 = vrot.lane.b32.xlu0 %v2494, 24
      %v2545 = vpop.permute.xlu0 %2544
      %2546 = vrot.lane.b32.xlu0 %v2495, 24
      %v2547 = vpop.permute.xlu0 %2546
      %2548 = vrot.lane.b32.xlu0 %v2496, 24
      %v2549 = vpop.permute.xlu0 %2548
      %2550 = vrot.lane.b32.xlu0 %v2497, 24
      %v2551 = vpop.permute.xlu0 %2550
      %2552 = vrot.lane.b32.xlu0 %v2498, 24
      %v2553 = vpop.permute.xlu0 %2552
      %2554 = vrot.lane.b32.xlu0 %v2499, 24
      %v2555 = vpop.permute.xlu0 %2554
      %2556 = vrot.lane.b32.xlu0 %v2500, 24
      %v2557 = vpop.permute.xlu0 %2556
      %2558 = vrot.lane.b32.xlu0 %v2501, 24
      %v2559 = vpop.permute.xlu0 %2558
      %2560 = vrot.lane.b32.xlu0 %v2502, 24
      %v2561 = vpop.permute.xlu0 %2560
      %2562 = vrot.lane.b32.xlu0 %v2503, 24
      %v2563 = vpop.permute.xlu0 %2562
      %2564 = vrot.lane.b32.xlu0 %v2504, 24
      %v2565 = vpop.permute.xlu0 %2564
      %2566 = vrot.lane.b32.xlu0 %v2505, 24
      %v2567 = vpop.permute.xlu0 %2566
      %2568 = vrot.lane.b32.xlu0 %v2506, 24
      %v2569 = vpop.permute.xlu0 %2568
      %2570 = vrot.lane.b32.xlu0 %v2507, 24
      %v2571 = vpop.permute.xlu0 %2570
      %v2620 = vunpack.c.l.b16 %v1147
      %v2621 = vunpack.c.l.b16 %v1148
      %v2622 = vunpack.c.l.b16 %v1149
      %v2623 = vunpack.c.l.b16 %v1150
      %v2624 = vunpack.c.l.b16 %v1151
      %v2625 = vunpack.c.l.b16 %v1152
      %v2626 = vunpack.c.l.b16 %v1153
      %v2627 = vunpack.c.l.b16 %v1154
      %v2628 = vunpack.c.l.b16 %v1155
      %v2629 = vunpack.c.l.b16 %v1156
      %v2630 = vunpack.c.l.b16 %v1157
      %v2631 = vunpack.c.l.b16 %v1158
      %v2632 = vunpack.c.l.b16 %v1159
      %v2633 = vunpack.c.l.b16 %v1160
      %v2634 = vunpack.c.l.b16 %v1161
      %v2635 = vunpack.c.l.b16 %v1162
      %v2636 = vunpack.c.l.b16 %v1163
      %v2637 = vunpack.c.l.b16 %v1164
      %v2638 = vunpack.c.l.b16 %v1165
      %v2639 = vunpack.c.l.b16 %v1166
      %v2640 = vunpack.c.l.b16 %v1167
      %v2641 = vunpack.c.l.b16 %v1168
      %v2642 = vunpack.c.l.b16 %v1169
      %v2643 = vunpack.c.l.b16 %v1170
      %v2644 = vunpack.c.l.b16 %v1171
      %v2645 = vunpack.c.l.b16 %v1172
      %v2646 = vunpack.c.l.b16 %v1173
      %v2647 = vunpack.c.l.b16 %v1174
      %v2648 = vunpack.c.l.b16 %v1175
      %v2649 = vunpack.c.l.b16 %v1176
      %v2650 = vunpack.c.l.b16 %v1177
      %v2651 = vunpack.c.l.b16 %v1178
      %v2652 = vunpack.c.l.b16 %v1179
      %v2653 = vunpack.c.l.b16 %v1180
      %v2654 = vunpack.c.l.b16 %v1181
      %v2655 = vunpack.c.l.b16 %v1182
      %v2656 = vunpack.c.l.b16 %v1183
      %v2657 = vunpack.c.l.b16 %v1184
      %v2658 = vunpack.c.l.b16 %v1185
      %v2659 = vunpack.c.l.b16 %v1186
      %v2660 = vunpack.c.l.b16 %v1187
      %v2661 = vunpack.c.l.b16 %v1188
      %v2662 = vunpack.c.l.b16 %v1189
      %v2663 = vunpack.c.l.b16 %v1190
      %v2664 = vunpack.c.l.b16 %v1191
      %v2665 = vunpack.c.l.b16 %v1192
      %v2666 = vunpack.c.l.b16 %v1193
      %v2667 = vunpack.c.l.b16 %v1194
      %v2668 = vpack.c.b16 %v2621, %v2620
      %v2669 = vpack.c.b16 %v2622, %v2622
      %v2670 = vpack.c.b16 %v2624, %v2623
      %v2671 = vpack.c.b16 %v2625, %v2625
      %v2672 = vpack.c.b16 %v2627, %v2626
      %v2673 = vpack.c.b16 %v2628, %v2628
      %v2674 = vpack.c.b16 %v2630, %v2629
      %v2675 = vpack.c.b16 %v2631, %v2631
      %v2676 = vpack.c.b16 %v2633, %v2632
      %v2677 = vpack.c.b16 %v2634, %v2634
      %v2678 = vpack.c.b16 %v2636, %v2635
      %v2679 = vpack.c.b16 %v2637, %v2637
      %v2680 = vpack.c.b16 %v2639, %v2638
      %v2681 = vpack.c.b16 %v2640, %v2640
      %v2682 = vpack.c.b16 %v2642, %v2641
      %v2683 = vpack.c.b16 %v2643, %v2643
      %v2684 = vpack.c.b16 %v2645, %v2644
      %v2685 = vpack.c.b16 %v2646, %v2646
      %v2686 = vpack.c.b16 %v2648, %v2647
      %v2687 = vpack.c.b16 %v2649, %v2649
      %v2688 = vpack.c.b16 %v2651, %v2650
      %v2689 = vpack.c.b16 %v2652, %v2652
      %v2690 = vpack.c.b16 %v2654, %v2653
      %v2691 = vpack.c.b16 %v2655, %v2655
      %v2692 = vpack.c.b16 %v2657, %v2656
      %v2693 = vpack.c.b16 %v2658, %v2658
      %v2694 = vpack.c.b16 %v2660, %v2659
      %v2695 = vpack.c.b16 %v2661, %v2661
      %v2696 = vpack.c.b16 %v2663, %v2662
      %v2697 = vpack.c.b16 %v2664, %v2664
      %v2698 = vpack.c.b16 %v2666, %v2665
      %v2699 = vpack.c.b16 %v2667, %v2667
      %v2700 = vrot.slane %v2668, 6
      %v2701 = vrot.slane %v2669, 6
      %v2702 = vsel %vm1499, %v2700, %v2701
      %v2703 = vrot.slane %v2670, 6
      %v2704 = vrot.slane %v2671, 6
      %v2705 = vsel %vm1499, %v2703, %v2704
      %v2706 = vrot.slane %v2672, 6
      %v2707 = vrot.slane %v2673, 6
      %v2708 = vsel %vm1499, %v2706, %v2707
      %v2709 = vrot.slane %v2674, 6
      %v2710 = vrot.slane %v2675, 6
      %v2711 = vsel %vm1499, %v2709, %v2710
      %v2712 = vrot.slane %v2676, 6
      %v2713 = vrot.slane %v2677, 6
      %v2714 = vsel %vm1499, %v2712, %v2713
      %v2715 = vrot.slane %v2678, 6
      %v2716 = vrot.slane %v2679, 6
      %v2717 = vsel %vm1499, %v2715, %v2716
      %v2718 = vrot.slane %v2680, 6
      %v2719 = vrot.slane %v2681, 6
      %v2720 = vsel %vm1499, %v2718, %v2719
      %v2721 = vrot.slane %v2682, 6
      %v2722 = vrot.slane %v2683, 6
      %v2723 = vsel %vm1499, %v2721, %v2722
      %v2724 = vrot.slane %v2684, 6
      %v2725 = vrot.slane %v2685, 6
      %v2726 = vsel %vm1499, %v2724, %v2725
      %v2727 = vrot.slane %v2686, 6
      %v2728 = vrot.slane %v2687, 6
      %v2729 = vsel %vm1499, %v2727, %v2728
      %v2730 = vrot.slane %v2688, 6
      %v2731 = vrot.slane %v2689, 6
      %v2732 = vsel %vm1499, %v2730, %v2731
      %v2733 = vrot.slane %v2690, 6
      %v2734 = vrot.slane %v2691, 6
      %v2735 = vsel %vm1499, %v2733, %v2734
      %v2736 = vrot.slane %v2692, 6
      %v2737 = vrot.slane %v2693, 6
      %v2738 = vsel %vm1499, %v2736, %v2737
      %v2739 = vrot.slane %v2694, 6
      %v2740 = vrot.slane %v2695, 6
      %v2741 = vsel %vm1499, %v2739, %v2740
      %v2742 = vrot.slane %v2696, 6
      %v2743 = vrot.slane %v2697, 6
      %v2744 = vsel %vm1499, %v2742, %v2743
      %v2745 = vrot.slane %v2698, 6
      %v2746 = vrot.slane %v2699, 6
      %v2747 = vsel %vm1499, %v2745, %v2746
      %2748 = vrot.lane.b32.xlu0 %v2700, 28
      %v2749 = vpop.permute.xlu0 %2748
      %2750 = vrot.lane.b32.xlu0 %v2702, 28
      %v2751 = vpop.permute.xlu0 %2750
      %2752 = vrot.lane.b32.xlu0 %v2703, 28
      %v2753 = vpop.permute.xlu0 %2752
      %2754 = vrot.lane.b32.xlu0 %v2705, 28
      %v2755 = vpop.permute.xlu0 %2754
      %2756 = vrot.lane.b32.xlu0 %v2706, 28
      %v2757 = vpop.permute.xlu0 %2756
      %2758 = vrot.lane.b32.xlu0 %v2708, 28
      %v2759 = vpop.permute.xlu0 %2758
      %2760 = vrot.lane.b32.xlu0 %v2709, 28
      %v2761 = vpop.permute.xlu0 %2760
      %2762 = vrot.lane.b32.xlu0 %v2711, 28
      %v2763 = vpop.permute.xlu0 %2762
      %2764 = vrot.lane.b32.xlu0 %v2712, 28
      %v2765 = vpop.permute.xlu0 %2764
      %2766 = vrot.lane.b32.xlu0 %v2714, 28
      %v2767 = vpop.permute.xlu0 %2766
      %2768 = vrot.lane.b32.xlu0 %v2715, 28
      %v2769 = vpop.permute.xlu0 %2768
      %2770 = vrot.lane.b32.xlu0 %v2717, 28
      %v2771 = vpop.permute.xlu0 %2770
      %2772 = vrot.lane.b32.xlu0 %v2718, 28
      %v2773 = vpop.permute.xlu0 %2772
      %2774 = vrot.lane.b32.xlu0 %v2720, 28
      %v2775 = vpop.permute.xlu0 %2774
      %2776 = vrot.lane.b32.xlu0 %v2721, 28
      %v2777 = vpop.permute.xlu0 %2776
      %2778 = vrot.lane.b32.xlu0 %v2723, 28
      %v2779 = vpop.permute.xlu0 %2778
      %2780 = vrot.lane.b32.xlu0 %v2724, 28
      %v2781 = vpop.permute.xlu0 %2780
      %2782 = vrot.lane.b32.xlu0 %v2726, 28
      %v2783 = vpop.permute.xlu0 %2782
      %2784 = vrot.lane.b32.xlu0 %v2727, 28
      %v2785 = vpop.permute.xlu0 %2784
      %2786 = vrot.lane.b32.xlu0 %v2729, 28
      %v2787 = vpop.permute.xlu0 %2786
      %2788 = vrot.lane.b32.xlu0 %v2730, 28
      %v2789 = vpop.permute.xlu0 %2788
      %2790 = vrot.lane.b32.xlu0 %v2732, 28
      %v2791 = vpop.permute.xlu0 %2790
      %2792 = vrot.lane.b32.xlu0 %v2733, 28
      %v2793 = vpop.permute.xlu0 %2792
      %2794 = vrot.lane.b32.xlu0 %v2735, 28
      %v2795 = vpop.permute.xlu0 %2794
      %2796 = vrot.lane.b32.xlu0 %v2736, 28
      %v2797 = vpop.permute.xlu0 %2796
      %2798 = vrot.lane.b32.xlu0 %v2738, 28
      %v2799 = vpop.permute.xlu0 %2798
      %2800 = vrot.lane.b32.xlu0 %v2739, 28
      %v2801 = vpop.permute.xlu0 %2800
      %2802 = vrot.lane.b32.xlu0 %v2741, 28
      %v2803 = vpop.permute.xlu0 %2802
      %2804 = vrot.lane.b32.xlu0 %v2742, 28
      %v2805 = vpop.permute.xlu0 %2804
      %2806 = vrot.lane.b32.xlu0 %v2744, 28
      %v2807 = vpop.permute.xlu0 %2806
      %2808 = vrot.lane.b32.xlu0 %v2745, 28
      %v2809 = vpop.permute.xlu0 %2808
      %2810 = vrot.lane.b32.xlu0 %v2747, 28
      %v2811 = vpop.permute.xlu0 %2810
      %v2860 = vunpack.c.l.b16 %v1195
      %v2861 = vunpack.c.l.b16 %v1196
      %v2862 = vunpack.c.l.b16 %v1197
      %v2863 = vunpack.c.l.b16 %v1198
      %v2864 = vunpack.c.l.b16 %v1199
      %v2865 = vunpack.c.l.b16 %v1200
      %v2866 = vunpack.c.l.b16 %v1201
      %v2867 = vunpack.c.l.b16 %v1202
      %v2868 = vunpack.c.l.b16 %v1203
      %v2869 = vunpack.c.l.b16 %v1204
      %v2870 = vunpack.c.l.b16 %v1205
      %v2871 = vunpack.c.l.b16 %v1206
      %v2872 = vunpack.c.l.b16 %v1207
      %v2873 = vunpack.c.l.b16 %v1208
      %v2874 = vunpack.c.l.b16 %v1209
      %v2875 = vunpack.c.l.b16 %v1210
      %v2876 = vunpack.c.l.b16 %v1211
      %v2877 = vunpack.c.l.b16 %v1212
      %v2878 = vunpack.c.l.b16 %v1213
      %v2879 = vunpack.c.l.b16 %v1214
      %v2880 = vunpack.c.l.b16 %v1215
      %v2881 = vunpack.c.l.b16 %v1216
      %v2882 = vunpack.c.l.b16 %v1217
      %v2883 = vunpack.c.l.b16 %v1218
      %v2884 = vunpack.c.l.b16 %v1219
      %v2885 = vunpack.c.l.b16 %v1220
      %v2886 = vunpack.c.l.b16 %v1221
      %v2887 = vunpack.c.l.b16 %v1222
      %v2888 = vunpack.c.l.b16 %v1223
      %v2889 = vunpack.c.l.b16 %v1224
      %v2890 = vunpack.c.l.b16 %v1225
      %v2891 = vunpack.c.l.b16 %v1226
      %v2892 = vunpack.c.l.b16 %v1227
      %v2893 = vunpack.c.l.b16 %v1228
      %v2894 = vunpack.c.l.b16 %v1229
      %v2895 = vunpack.c.l.b16 %v1230
      %v2896 = vunpack.c.l.b16 %v1231
      %v2897 = vunpack.c.l.b16 %v1232
      %v2898 = vunpack.c.l.b16 %v1233
      %v2899 = vunpack.c.l.b16 %v1234
      %v2900 = vunpack.c.l.b16 %v1235
      %v2901 = vunpack.c.l.b16 %v1236
      %v2902 = vunpack.c.l.b16 %v1237
      %v2903 = vunpack.c.l.b16 %v1238
      %v2904 = vunpack.c.l.b16 %v1239
      %v2905 = vunpack.c.l.b16 %v1240
      %v2906 = vunpack.c.l.b16 %v1241
      %v2907 = vunpack.c.l.b16 %v1242
      %v2908 = vpack.c.b16 %v2861, %v2860
      %v2909 = vpack.c.b16 %v2862, %v2862
      %v2910 = vpack.c.b16 %v2864, %v2863
      %v2911 = vpack.c.b16 %v2865, %v2865
      %v2912 = vpack.c.b16 %v2867, %v2866
      %v2913 = vpack.c.b16 %v2868, %v2868
      %v2914 = vpack.c.b16 %v2870, %v2869
      %v2915 = vpack.c.b16 %v2871, %v2871
      %v2916 = vpack.c.b16 %v2873, %v2872
      %v2917 = vpack.c.b16 %v2874, %v2874
      %v2918 = vpack.c.b16 %v2876, %v2875
      %v2919 = vpack.c.b16 %v2877, %v2877
      %v2920 = vpack.c.b16 %v2879, %v2878
      %v2921 = vpack.c.b16 %v2880, %v2880
      %v2922 = vpack.c.b16 %v2882, %v2881
      %v2923 = vpack.c.b16 %v2883, %v2883
      %v2924 = vpack.c.b16 %v2885, %v2884
      %v2925 = vpack.c.b16 %v2886, %v2886
      %v2926 = vpack.c.b16 %v2888, %v2887
      %v2927 = vpack.c.b16 %v2889, %v2889
      %v2928 = vpack.c.b16 %v2891, %v2890
      %v2929 = vpack.c.b16 %v2892, %v2892
      %v2930 = vpack.c.b16 %v2894, %v2893
      %v2931 = vpack.c.b16 %v2895, %v2895
      %v2932 = vpack.c.b16 %v2897, %v2896
      %v2933 = vpack.c.b16 %v2898, %v2898
      %v2934 = vpack.c.b16 %v2900, %v2899
      %v2935 = vpack.c.b16 %v2901, %v2901
      %v2936 = vpack.c.b16 %v2903, %v2902
      %v2937 = vpack.c.b16 %v2904, %v2904
      %v2938 = vpack.c.b16 %v2906, %v2905
      %v2939 = vpack.c.b16 %v2907, %v2907
      %2940 = vrot.lane.b32.xlu0 %v2908, 32
      %v2941 = vpop.permute.xlu0 %2940
      %2942 = vrot.lane.b32.xlu0 %v2909, 32
      %v2943 = vpop.permute.xlu0 %2942
      %2944 = vrot.lane.b32.xlu0 %v2910, 32
      %v2945 = vpop.permute.xlu0 %2944
      %2946 = vrot.lane.b32.xlu0 %v2911, 32
      %v2947 = vpop.permute.xlu0 %2946
      %2948 = vrot.lane.b32.xlu0 %v2912, 32
      %v2949 = vpop.permute.xlu0 %2948
      %2950 = vrot.lane.b32.xlu0 %v2913, 32
      %v2951 = vpop.permute.xlu0 %2950
      %2952 = vrot.lane.b32.xlu0 %v2914, 32
      %v2953 = vpop.permute.xlu0 %2952
      %2954 = vrot.lane.b32.xlu0 %v2915, 32
      %v2955 = vpop.permute.xlu0 %2954
      %2956 = vrot.lane.b32.xlu0 %v2916, 32
      %v2957 = vpop.permute.xlu0 %2956
      %2958 = vrot.lane.b32.xlu0 %v2917, 32
      %v2959 = vpop.permute.xlu0 %2958
      %2960 = vrot.lane.b32.xlu0 %v2918, 32
      %v2961 = vpop.permute.xlu0 %2960
      %2962 = vrot.lane.b32.xlu0 %v2919, 32
      %v2963 = vpop.permute.xlu0 %2962
      %2964 = vrot.lane.b32.xlu0 %v2920, 32
      %v2965 = vpop.permute.xlu0 %2964
      %2966 = vrot.lane.b32.xlu0 %v2921, 32
      %v2967 = vpop.permute.xlu0 %2966
      %2968 = vrot.lane.b32.xlu0 %v2922, 32
      %v2969 = vpop.permute.xlu0 %2968
      %2970 = vrot.lane.b32.xlu0 %v2923, 32
      %v2971 = vpop.permute.xlu0 %2970
      %2972 = vrot.lane.b32.xlu0 %v2924, 32
      %v2973 = vpop.permute.xlu0 %2972
      %2974 = vrot.lane.b32.xlu0 %v2925, 32
      %v2975 = vpop.permute.xlu0 %2974
      %2976 = vrot.lane.b32.xlu0 %v2926, 32
      %v2977 = vpop.permute.xlu0 %2976
      %2978 = vrot.lane.b32.xlu0 %v2927, 32
      %v2979 = vpop.permute.xlu0 %2978
      %2980 = vrot.lane.b32.xlu0 %v2928, 32
      %v2981 = vpop.permute.xlu0 %2980
      %2982 = vrot.lane.b32.xlu0 %v2929, 32
      %v2983 = vpop.permute.xlu0 %2982
      %2984 = vrot.lane.b32.xlu0 %v2930, 32
      %v2985 = vpop.permute.xlu0 %2984
      %2986 = vrot.lane.b32.xlu0 %v2931, 32
      %v2987 = vpop.permute.xlu0 %2986
      %2988 = vrot.lane.b32.xlu0 %v2932, 32
      %v2989 = vpop.permute.xlu0 %2988
      %2990 = vrot.lane.b32.xlu0 %v2933, 32
      %v2991 = vpop.permute.xlu0 %2990
      %2992 = vrot.lane.b32.xlu0 %v2934, 32
      %v2993 = vpop.permute.xlu0 %2992
      %2994 = vrot.lane.b32.xlu0 %v2935, 32
      %v2995 = vpop.permute.xlu0 %2994
      %2996 = vrot.lane.b32.xlu0 %v2936, 32
      %v2997 = vpop.permute.xlu0 %2996
      %2998 = vrot.lane.b32.xlu0 %v2937, 32
      %v2999 = vpop.permute.xlu0 %2998
      %3000 = vrot.lane.b32.xlu0 %v2938, 32
      %v3001 = vpop.permute.xlu0 %3000
      %3002 = vrot.lane.b32.xlu0 %v2939, 32
      %v3003 = vpop.permute.xlu0 %3002
      %v3006 = vsel %vm589, %v1339, %v1549
      %v3009 = vsel %vm589, %v1340, %v1551
      %v3012 = vsel %vm589, %v1341, %v1553
      %v3015 = vsel %vm589, %v1342, %v1555
      %v3018 = vsel %vm589, %v1343, %v1557
      %v3021 = vsel %vm589, %v1344, %v1559
      %v3024 = vsel %vm589, %v1345, %v1561
      %v3027 = vsel %vm589, %v1346, %v1563
      %v3030 = vsel %vm589, %v1347, %v1565
      %v3033 = vsel %vm589, %v1348, %v1567
      %v3036 = vsel %vm589, %v1349, %v1569
      %v3039 = vsel %vm589, %v1350, %v1571
      %v3042 = vsel %vm589, %v1351, %v1573
      %v3045 = vsel %vm589, %v1352, %v1575
      %v3048 = vsel %vm589, %v1353, %v1577
      %v3051 = vsel %vm589, %v1354, %v1579
      %v3054 = vsel %vm589, %v1355, %v1581
      %v3057 = vsel %vm589, %v1356, %v1583
      %v3060 = vsel %vm589, %v1357, %v1585
      %v3063 = vsel %vm589, %v1358, %v1587
      %v3066 = vsel %vm589, %v1359, %v1589
      %v3069 = vsel %vm589, %v1360, %v1591
      %v3072 = vsel %vm589, %v1361, %v1593
      %v3075 = vsel %vm589, %v1362, %v1595
      %v3078 = vsel %vm589, %v1363, %v1597
      %v3081 = vsel %vm589, %v1364, %v1599
      %v3084 = vsel %vm589, %v1365, %v1601
      %v3087 = vsel %vm589, %v1366, %v1603
      %v3090 = vsel %vm589, %v1367, %v1605
      %v3093 = vsel %vm589, %v1368, %v1607
      %v3096 = vsel %vm589, %v1369, %v1609
      %v3099 = vsel %vm589, %v1370, %v1611
      %vm3100 = vcmask 64512
      %v3102 = vsel %vm3100, %v3006, %v1741
      %v3104 = vsel %vm3100, %v3009, %v1743
      %v3106 = vsel %vm3100, %v3012, %v1745
      %v3108 = vsel %vm3100, %v3015, %v1747
      %v3110 = vsel %vm3100, %v3018, %v1749
      %v3112 = vsel %vm3100, %v3021, %v1751
      %v3114 = vsel %vm3100, %v3024, %v1753
      %v3116 = vsel %vm3100, %v3027, %v1755
      %v3118 = vsel %vm3100, %v3030, %v1757
      %v3120 = vsel %vm3100, %v3033, %v1759
      %v3122 = vsel %vm3100, %v3036, %v1761
      %v3124 = vsel %vm3100, %v3039, %v1763
      %v3126 = vsel %vm3100, %v3042, %v1765
      %v3128 = vsel %vm3100, %v3045, %v1767
      %v3130 = vsel %vm3100, %v3048, %v1769
      %v3132 = vsel %vm3100, %v3051, %v1771
      %v3134 = vsel %vm3100, %v3054, %v1773
      %v3136 = vsel %vm3100, %v3057, %v1775
      %v3138 = vsel %vm3100, %v3060, %v1777
      %v3140 = vsel %vm3100, %v3063, %v1779
      %v3142 = vsel %vm3100, %v3066, %v1781
      %v3144 = vsel %vm3100, %v3069, %v1783
      %v3146 = vsel %vm3100, %v3072, %v1785
      %v3148 = vsel %vm3100, %v3075, %v1787
      %v3150 = vsel %vm3100, %v3078, %v1789
      %v3152 = vsel %vm3100, %v3081, %v1791
      %v3154 = vsel %vm3100, %v3084, %v1793
      %v3156 = vsel %vm3100, %v3087, %v1795
      %v3158 = vsel %vm3100, %v3090, %v1797
      %v3160 = vsel %vm3100, %v3093, %v1799
      %v3162 = vsel %vm3100, %v3096, %v1801
      %v3164 = vsel %vm3100, %v3099, %v1803
      %vm3165 = vcmask 97280
      %v3167 = vsel %vm3165, %v3102, %v1933
      %v3169 = vsel %vm3165, %v3104, %v1935
      %v3171 = vsel %vm3165, %v3106, %v1937
      %v3173 = vsel %vm3165, %v3108, %v1939
      %v3175 = vsel %vm3165, %v3110, %v1941
      %v3177 = vsel %vm3165, %v3112, %v1943
      %v3179 = vsel %vm3165, %v3114, %v1945
      %v3181 = vsel %vm3165, %v3116, %v1947
      %v3183 = vsel %vm3165, %v3118, %v1949
      %v3185 = vsel %vm3165, %v3120, %v1951
      %v3187 = vsel %vm3165, %v3122, %v1953
      %v3189 = vsel %vm3165, %v3124, %v1955
      %v3191 = vsel %vm3165, %v3126, %v1957
      %v3193 = vsel %vm3165, %v3128, %v1959
      %v3195 = vsel %vm3165, %v3130, %v1961
      %v3197 = vsel %vm3165, %v3132, %v1963
      %v3199 = vsel %vm3165, %v3134, %v1965
      %v3201 = vsel %vm3165, %v3136, %v1967
      %v3203 = vsel %vm3165, %v3138, %v1969
      %v3205 = vsel %vm3165, %v3140, %v1971
      %v3207 = vsel %vm3165, %v3142, %v1973
      %v3209 = vsel %vm3165, %v3144, %v1975
      %v3211 = vsel %vm3165, %v3146, %v1977
      %v3213 = vsel %vm3165, %v3148, %v1979
      %v3215 = vsel %vm3165, %v3150, %v1981
      %v3217 = vsel %vm3165, %v3152, %v1983
      %v3219 = vsel %vm3165, %v3154, %v1985
      %v3221 = vsel %vm3165, %v3156, %v1987
      %v3223 = vsel %vm3165, %v3158, %v1989
      %v3225 = vsel %vm3165, %v3160, %v1991
      %v3227 = vsel %vm3165, %v3162, %v1993
      %v3229 = vsel %vm3165, %v3164, %v1995
      %vm3230 = vcmask 130048
      %v3232 = vsel %vm3230, %v3167, %v2125
      %v3234 = vsel %vm3230, %v3169, %v2127
      %v3236 = vsel %vm3230, %v3171, %v2129
      %v3238 = vsel %vm3230, %v3173, %v2131
      %v3240 = vsel %vm3230, %v3175, %v2133
      %v3242 = vsel %vm3230, %v3177, %v2135
      %v3244 = vsel %vm3230, %v3179, %v2137
      %v3246 = vsel %vm3230, %v3181, %v2139
      %v3248 = vsel %vm3230, %v3183, %v2141
      %v3250 = vsel %vm3230, %v3185, %v2143
      %v3252 = vsel %vm3230, %v3187, %v2145
      %v3254 = vsel %vm3230, %v3189, %v2147
      %v3256 = vsel %vm3230, %v3191, %v2149
      %v3258 = vsel %vm3230, %v3193, %v2151
      %v3260 = vsel %vm3230, %v3195, %v2153
      %v3262 = vsel %vm3230, %v3197, %v2155
      %v3264 = vsel %vm3230, %v3199, %v2157
      %v3266 = vsel %vm3230, %v3201, %v2159
      %v3268 = vsel %vm3230, %v3203, %v2161
      %v3270 = vsel %vm3230, %v3205, %v2163
      %v3272 = vsel %vm3230, %v3207, %v2165
      %v3274 = vsel %vm3230, %v3209, %v2167
      %v3276 = vsel %vm3230, %v3211, %v2169
      %v3278 = vsel %vm3230, %v3213, %v2171
      %v3280 = vsel %vm3230, %v3215, %v2173
      %v3282 = vsel %vm3230, %v3217, %v2175
      %v3284 = vsel %vm3230, %v3219, %v2177
      %v3286 = vsel %vm3230, %v3221, %v2179
      %v3288 = vsel %vm3230, %v3223, %v2181
      %v3290 = vsel %vm3230, %v3225, %v2183
      %v3292 = vsel %vm3230, %v3227, %v2185
      %v3294 = vsel %vm3230, %v3229, %v2187
      %vm3295 = vcmask 162816
      %v3297 = vsel %vm3295, %v3232, %v2317
      %v3299 = vsel %vm3295, %v3234, %v2319
      %v3301 = vsel %vm3295, %v3236, %v2321
      %v3303 = vsel %vm3295, %v3238, %v2323
      %v3305 = vsel %vm3295, %v3240, %v2325
      %v3307 = vsel %vm3295, %v3242, %v2327
      %v3309 = vsel %vm3295, %v3244, %v2329
      %v3311 = vsel %vm3295, %v3246, %v2331
      %v3313 = vsel %vm3295, %v3248, %v2333
      %v3315 = vsel %vm3295, %v3250, %v2335
      %v3317 = vsel %vm3295, %v3252, %v2337
      %v3319 = vsel %vm3295, %v3254, %v2339
      %v3321 = vsel %vm3295, %v3256, %v2341
      %v3323 = vsel %vm3295, %v3258, %v2343
      %v3325 = vsel %vm3295, %v3260, %v2345
      %v3327 = vsel %vm3295, %v3262, %v2347
      %v3329 = vsel %vm3295, %v3264, %v2349
      %v3331 = vsel %vm3295, %v3266, %v2351
      %v3333 = vsel %vm3295, %v3268, %v2353
      %v3335 = vsel %vm3295, %v3270, %v2355
      %v3337 = vsel %vm3295, %v3272, %v2357
      %v3339 = vsel %vm3295, %v3274, %v2359
      %v3341 = vsel %vm3295, %v3276, %v2361
      %v3343 = vsel %vm3295, %v3278, %v2363
      %v3345 = vsel %vm3295, %v3280, %v2365
      %v3347 = vsel %vm3295, %v3282, %v2367
      %v3349 = vsel %vm3295, %v3284, %v2369
      %v3351 = vsel %vm3295, %v3286, %v2371
      %v3353 = vsel %vm3295, %v3288, %v2373
      %v3355 = vsel %vm3295, %v3290, %v2375
      %v3357 = vsel %vm3295, %v3292, %v2377
      %v3359 = vsel %vm3295, %v3294, %v2379
      %vm3360 = vcmask 195584
      %v3362 = vsel %vm3360, %v3297, %v2509
      %v3364 = vsel %vm3360, %v3299, %v2511
      %v3366 = vsel %vm3360, %v3301, %v2513
      %v3368 = vsel %vm3360, %v3303, %v2515
      %v3370 = vsel %vm3360, %v3305, %v2517
      %v3372 = vsel %vm3360, %v3307, %v2519
      %v3374 = vsel %vm3360, %v3309, %v2521
      %v3376 = vsel %vm3360, %v3311, %v2523
      %v3378 = vsel %vm3360, %v3313, %v2525
      %v3380 = vsel %vm3360, %v3315, %v2527
      %v3382 = vsel %vm3360, %v3317, %v2529
      %v3384 = vsel %vm3360, %v3319, %v2531
      %v3386 = vsel %vm3360, %v3321, %v2533
      %v3388 = vsel %vm3360, %v3323, %v2535
      %v3390 = vsel %vm3360, %v3325, %v2537
      %v3392 = vsel %vm3360, %v3327, %v2539
      %v3394 = vsel %vm3360, %v3329, %v2541
      %v3396 = vsel %vm3360, %v3331, %v2543
      %v3398 = vsel %vm3360, %v3333, %v2545
      %v3400 = vsel %vm3360, %v3335, %v2547
      %v3402 = vsel %vm3360, %v3337, %v2549
      %v3404 = vsel %vm3360, %v3339, %v2551
      %v3406 = vsel %vm3360, %v3341, %v2553
      %v3408 = vsel %vm3360, %v3343, %v2555
      %v3410 = vsel %vm3360, %v3345, %v2557
      %v3412 = vsel %vm3360, %v3347, %v2559
      %v3414 = vsel %vm3360, %v3349, %v2561
      %v3416 = vsel %vm3360, %v3351, %v2563
      %v3418 = vsel %vm3360, %v3353, %v2565
      %v3420 = vsel %vm3360, %v3355, %v2567
      %v3422 = vsel %vm3360, %v3357, %v2569
      %v3424 = vsel %vm3360, %v3359, %v2571
      %vm3425 = vcmask 228352
      %v3427 = vsel %vm3425, %v3362, %v2749
      %v3429 = vsel %vm3425, %v3364, %v2751
      %v3431 = vsel %vm3425, %v3366, %v2753
      %v3433 = vsel %vm3425, %v3368, %v2755
      %v3435 = vsel %vm3425, %v3370, %v2757
      %v3437 = vsel %vm3425, %v3372, %v2759
      %v3439 = vsel %vm3425, %v3374, %v2761
      %v3441 = vsel %vm3425, %v3376, %v2763
      %v3443 = vsel %vm3425, %v3378, %v2765
      %v3445 = vsel %vm3425, %v3380, %v2767
      %v3447 = vsel %vm3425, %v3382, %v2769
      %v3449 = vsel %vm3425, %v3384, %v2771
      %v3451 = vsel %vm3425, %v3386, %v2773
      %v3453 = vsel %vm3425, %v3388, %v2775
      %v3455 = vsel %vm3425, %v3390, %v2777
      %v3457 = vsel %vm3425, %v3392, %v2779
      %v3459 = vsel %vm3425, %v3394, %v2781
      %v3461 = vsel %vm3425, %v3396, %v2783
      %v3463 = vsel %vm3425, %v3398, %v2785
      %v3465 = vsel %vm3425, %v3400, %v2787
      %v3467 = vsel %vm3425, %v3402, %v2789
      %v3469 = vsel %vm3425, %v3404, %v2791
      %v3471 = vsel %vm3425, %v3406, %v2793
      %v3473 = vsel %vm3425, %v3408, %v2795
      %v3475 = vsel %vm3425, %v3410, %v2797
      %v3477 = vsel %vm3425, %v3412, %v2799
      %v3479 = vsel %vm3425, %v3414, %v2801
      %v3481 = vsel %vm3425, %v3416, %v2803
      %v3483 = vsel %vm3425, %v3418, %v2805
      %v3485 = vsel %vm3425, %v3420, %v2807
      %v3487 = vsel %vm3425, %v3422, %v2809
      %v3489 = vsel %vm3425, %v3424, %v2811
      %vm3490 = vcmask 261120
      %v3492 = vsel %vm3490, %v3427, %v2941
      %v3494 = vsel %vm3490, %v3429, %v2943
      %v3496 = vsel %vm3490, %v3431, %v2945
      %v3498 = vsel %vm3490, %v3433, %v2947
      %v3500 = vsel %vm3490, %v3435, %v2949
      %v3502 = vsel %vm3490, %v3437, %v2951
      %v3504 = vsel %vm3490, %v3439, %v2953
      %v3506 = vsel %vm3490, %v3441, %v2955
      %v3508 = vsel %vm3490, %v3443, %v2957
      %v3510 = vsel %vm3490, %v3445, %v2959
      %v3512 = vsel %vm3490, %v3447, %v2961
      %v3514 = vsel %vm3490, %v3449, %v2963
      %v3516 = vsel %vm3490, %v3451, %v2965
      %v3518 = vsel %vm3490, %v3453, %v2967
      %v3520 = vsel %vm3490, %v3455, %v2969
      %v3522 = vsel %vm3490, %v3457, %v2971
      %v3524 = vsel %vm3490, %v3459, %v2973
      %v3526 = vsel %vm3490, %v3461, %v2975
      %v3528 = vsel %vm3490, %v3463, %v2977
      %v3530 = vsel %vm3490, %v3465, %v2979
      %v3532 = vsel %vm3490, %v3467, %v2981
      %v3534 = vsel %vm3490, %v3469, %v2983
      %v3536 = vsel %vm3490, %v3471, %v2985
      %v3538 = vsel %vm3490, %v3473, %v2987
      %v3540 = vsel %vm3490, %v3475, %v2989
      %v3542 = vsel %vm3490, %v3477, %v2991
      %v3544 = vsel %vm3490, %v3479, %v2993
      %v3546 = vsel %vm3490, %v3481, %v2995
      %v3548 = vsel %vm3490, %v3483, %v2997
      %v3550 = vsel %vm3490, %v3485, %v2999
      %v3552 = vsel %vm3490, %v3487, %v3001
      %v3554 = vsel %vm3490, %v3489, %v3003
      %vm3587 = vcmask 1044480
      %v3588 = vrot.slane %v3492, 3
      %v3589 = vrot.slane %v3494, 3
      %v3590 = vsel %vm3587, %v3588, %v3589
      %v3591 = vrot.slane %v3496, 3
      %v3592 = vrot.slane %v3498, 3
      %v3593 = vsel %vm3587, %v3591, %v3592
      %v3594 = vrot.slane %v3500, 3
      %v3595 = vrot.slane %v3502, 3
      %v3596 = vsel %vm3587, %v3594, %v3595
      %v3597 = vrot.slane %v3504, 3
      %v3598 = vrot.slane %v3506, 3
      %v3599 = vsel %vm3587, %v3597, %v3598
      %v3600 = vrot.slane %v3508, 3
      %v3601 = vrot.slane %v3510, 3
      %v3602 = vsel %vm3587, %v3600, %v3601
      %v3603 = vrot.slane %v3512, 3
      %v3604 = vrot.slane %v3514, 3
      %v3605 = vsel %vm3587, %v3603, %v3604
      %v3606 = vrot.slane %v3516, 3
      %v3607 = vrot.slane %v3518, 3
      %v3608 = vsel %vm3587, %v3606, %v3607
      %v3609 = vrot.slane %v3520, 3
      %v3610 = vrot.slane %v3522, 3
      %v3611 = vsel %vm3587, %v3609, %v3610
      %v3612 = vrot.slane %v3524, 3
      %v3613 = vrot.slane %v3526, 3
      %v3614 = vsel %vm3587, %v3612, %v3613
      %v3615 = vrot.slane %v3528, 3
      %v3616 = vrot.slane %v3530, 3
      %v3617 = vsel %vm3587, %v3615, %v3616
      %v3618 = vrot.slane %v3532, 3
      %v3619 = vrot.slane %v3534, 3
      %v3620 = vsel %vm3587, %v3618, %v3619
      %v3621 = vrot.slane %v3536, 3
      %v3622 = vrot.slane %v3538, 3
      %v3623 = vsel %vm3587, %v3621, %v3622
      %v3624 = vrot.slane %v3540, 3
      %v3625 = vrot.slane %v3542, 3
      %v3626 = vsel %vm3587, %v3624, %v3625
      %v3627 = vrot.slane %v3544, 3
      %v3628 = vrot.slane %v3546, 3
      %v3629 = vsel %vm3587, %v3627, %v3628
      %v3630 = vrot.slane %v3548, 3
      %v3631 = vrot.slane %v3550, 3
      %v3632 = vsel %vm3587, %v3630, %v3631
      %v3633 = vrot.slane %v3552, 3
      %v3634 = vrot.slane %v3554, 3
      %v3635 = vsel %vm3587, %v3633, %v3634
      %v3636 = vld [vmem:[%s3] sm:$0xf]
      %v3637 = vld [vmem:[%s3 + $0x4] sm:$0xf]
      %v3638 = vld [vmem:[%s3 + $0x8] sm:$0xf]
      %v3639 = vld [vmem:[%s3 + $0xc] sm:$0xf]
      %v3640 = vld [vmem:[%s3 + $0x10] sm:$0x3]
      %v3641 = vld [vmem:[%s4] sm:$0x1]
      %v3643 = vlaneseq
      %v3644 = vshrl.u32 %v3643, 7
      %v3645 = vsub.s32 0, %v3644
      %v3646 = vrot.slane %v3641, %v3645
      %v3653 = vunpack.c.l.b16 %v3636
      %v3654 = vunpack.c.l.b16 %v3637
      %v3655 = vunpack.c.l.b16 %v3638
      %v3656 = vunpack.c.l.b16 %v3639
      %v3657 = vunpack.c.l.b16 %v3640
      %v3658 = vpack.c.b16 %v3654, %v3653
      %v3659 = vpack.c.b16 %v3656, %v3655
      %v3660 = vpack.c.b16 %v3657, %v3657
      %vm3663 = vcmask 293888
      %v3665 = vsel %vm3663, %v3590, 0
      %v3668 = vsel %vm3663, %v3593, 0
      %v3671 = vsel %vm3663, %v3596, 0
      %v3674 = vsel %vm3663, %v3599, 0
      %v3677 = vsel %vm3663, %v3602, 0
      %v3680 = vsel %vm3663, %v3605, 0
      %v3683 = vsel %vm3663, %v3608, 0
      %v3686 = vsel %vm3663, %v3611, 0
      %v3689 = vsel %vm3663, %v3614, 0
      %v3692 = vsel %vm3663, %v3617, 0
      %v3695 = vsel %vm3663, %v3620, 0
      %v3698 = vsel %vm3663, %v3623, 0
      %v3701 = vsel %vm3663, %v3626, 0
      %v3704 = vsel %vm3663, %v3629, 0
      %v3707 = vsel %vm3663, %v3632, 0
      %v3710 = vsel %vm3663, %v3635, 0
      %v3713 = vsel %vm638, %v3660, 0
      %3715 = vmatprep.subr.bf16.mxu0 0
      %3716 = vmatpush1.bf16.msra.mxu0 %v3658
      %3717 = vmatprep.subr.bf16.mxu0 0
      %3718 = vmatpush1.bf16.msra.mxu0 %v3659
      %3719 = vmatprep.subr.bf16.mxu0 0
      %3720 = vmatpush1.bf16.msra.mxu0 %v3713
      %3721 = vmatprep.subr.bf16.mxu0 0
      %3722 = vmatpush1.bf16.msra.mxu0 0
      %3723 = vmatprep.subr.bf16.mxu0 0
      %3724 = vmatpush1.bf16.msra.mxu0 0
      %3725 = vmatprep.subr.bf16.mxu0 0
      %3726 = vmatpush1.bf16.msra.mxu0 0
      %3727 = vmatprep.subr.bf16.mxu0 0
      %3728 = vmatpush1.bf16.msra.mxu0 0
      %3729 = vmatprep.subr.bf16.mxu0 0
      %3730 = vmatpush1.bf16.msra.mxu0 0
      %3731 = vmatprep.subr.bf16.mxu0 0
      %3732 = vmatpush1.bf16.msra.mxu0 0
      %3733 = vmatprep.subr.bf16.mxu0 0
      %3734 = vmatpush1.bf16.msra.mxu0 0
      %3735 = vmatprep.subr.bf16.mxu0 0
      %3736 = vmatpush1.bf16.msra.mxu0 0
      %3737 = vmatprep.subr.bf16.mxu0 0
      %3738 = vmatpush1.bf16.msra.mxu0 0
      %3739 = vmatprep.subr.bf16.mxu0 0
      %3740 = vmatpush1.bf16.msra.mxu0 0
      %3741 = vmatprep.subr.bf16.mxu0 0
      %3742 = vmatpush1.bf16.msra.mxu0 0
      %3743 = vmatprep.subr.bf16.mxu0 0
      %3744 = vmatpush1.bf16.msra.mxu0 0
      %3745 = vmatprep.subr.bf16.mxu0 0
      %3746 = vmatpush1.bf16.msra.mxu0 0
      %3747 = vmatprep.mubr.bf16.mxu0 0
      %3748 = vmatmul.mubr.bf16.gmra.mrb[0].mxu0 %v3665
      %v3749 = vpop.f32.mrb[0].mxu0
      %v3750 = vadd.f32 %v3646, %v3749
      %v3751 = vpop.f32.mrb[0].mxu0
      %v3752 = vpop.f32.mrb[0].mxu0
      %v3753 = vadd.f32 %v3646, %v3752
      %v3754 = vpop.f32.mrb[0].mxu0
      %3755 = vmatprep.mubr.bf16.mxu0 0
      %3756 = vmatmul.mubr.bf16.gmra.mrb[0].mxu0 %v3668
      %v3757 = vpop.f32.mrb[0].mxu0
      %v3758 = vadd.f32 %v3646, %v3757
      %v3759 = vpop.f32.mrb[0].mxu0
      %v3760 = vpop.f32.mrb[0].mxu0
      %v3761 = vadd.f32 %v3646, %v3760
      %v3762 = vpop.f32.mrb[0].mxu0
      %3763 = vmatprep.mubr.bf16.mxu0 0
      %3764 = vmatmul.mubr.bf16.gmra.mrb[0].mxu0 %v3671
      %v3765 = vpop.f32.mrb[0].mxu0
      %v3766 = vadd.f32 %v3646, %v3765
      %v3767 = vpop.f32.mrb[0].mxu0
      %v3768 = vpop.f32.mrb[0].mxu0
      %v3769 = vadd.f32 %v3646, %v3768
      %v3770 = vpop.f32.mrb[0].mxu0
      %3771 = vmatprep.mubr.bf16.mxu0 0
      %3772 = vmatmul.mubr.bf16.gmra.mrb[0].mxu0 %v3674
      %v3773 = vpop.f32.mrb[0].mxu0
      %v3774 = vadd.f32 %v3646, %v3773
      %v3775 = vpop.f32.mrb[0].mxu0
      %v3776 = vpop.f32.mrb[0].mxu0
      %v3777 = vadd.f32 %v3646, %v3776
      %v3778 = vpop.f32.mrb[0].mxu0
      %3779 = vmatprep.mubr.bf16.mxu0 0
      %3780 = vmatmul.mubr.bf16.gmra.mrb[0].mxu0 %v3677
      %v3781 = vpop.f32.mrb[0].mxu0
      %v3782 = vadd.f32 %v3646, %v3781
      %v3783 = vpop.f32.mrb[0].mxu0
      %v3784 = vpop.f32.mrb[0].mxu0
      %v3785 = vadd.f32 %v3646, %v3784
      %v3786 = vpop.f32.mrb[0].mxu0
      %3787 = vmatprep.mubr.bf16.mxu0 0
      %3788 = vmatmul.mubr.bf16.gmra.mrb[0].mxu0 %v3680
      %v3789 = vpop.f32.mrb[0].mxu0
      %v3790 = vadd.f32 %v3646, %v3789
      %v3791 = vpop.f32.mrb[0].mxu0
      %v3792 = vpop.f32.mrb[0].mxu0
      %v3793 = vadd.f32 %v3646, %v3792
      %v3794 = vpop.f32.mrb[0].mxu0
      %3795 = vmatprep.mubr.bf16.mxu0 0
      %3796 = vmatmul.mubr.bf16.gmra.mrb[0].mxu0 %v3683
      %v3797 = vpop.f32.mrb[0].mxu0
      %v3798 = vadd.f32 %v3646, %v3797
      %v3799 = vpop.f32.mrb[0].mxu0
      %v3800 = vpop.f32.mrb[0].mxu0
      %v3801 = vadd.f32 %v3646, %v3800
      %v3802 = vpop.f32.mrb[0].mxu0
      %3803 = vmatprep.mubr.bf16.mxu0 0
      %3804 = vmatmul.mubr.bf16.gmra.mrb[0].mxu0 %v3686
      %v3805 = vpop.f32.mrb[0].mxu0
      %v3806 = vadd.f32 %v3646, %v3805
      %v3807 = vpop.f32.mrb[0].mxu0
      %v3808 = vpop.f32.mrb[0].mxu0
      %v3809 = vadd.f32 %v3646, %v3808
      %v3810 = vpop.f32.mrb[0].mxu0
      %3811 = vmatprep.mubr.bf16.mxu0 0
      %3812 = vmatmul.mubr.bf16.gmra.mrb[0].mxu0 %v3689
      %v3813 = vpop.f32.mrb[0].mxu0
      %v3814 = vadd.f32 %v3646, %v3813
      %v3815 = vpop.f32.mrb[0].mxu0
      %v3816 = vpop.f32.mrb[0].mxu0
      %v3817 = vadd.f32 %v3646, %v3816
      %v3818 = vpop.f32.mrb[0].mxu0
      %3819 = vmatprep.mubr.bf16.mxu0 0
      %3820 = vmatmul.mubr.bf16.gmra.mrb[0].mxu0 %v3692
      %v3821 = vpop.f32.mrb[0].mxu0
      %v3822 = vadd.f32 %v3646, %v3821
      %v3823 = vpop.f32.mrb[0].mxu0
      %v3824 = vpop.f32.mrb[0].mxu0
      %v3825 = vadd.f32 %v3646, %v3824
      %v3826 = vpop.f32.mrb[0].mxu0
      %3827 = vmatprep.mubr.bf16.mxu0 0
      %3828 = vmatmul.mubr.bf16.gmra.mrb[0].mxu0 %v3695
      %v3829 = vpop.f32.mrb[0].mxu0
      %v3830 = vadd.f32 %v3646, %v3829
      %v3831 = vpop.f32.mrb[0].mxu0
      %v3832 = vpop.f32.mrb[0].mxu0
      %v3833 = vadd.f32 %v3646, %v3832
      %v3834 = vpop.f32.mrb[0].mxu0
      %3835 = vmatprep.mubr.bf16.mxu0 0
      %3836 = vmatmul.mubr.bf16.gmra.mrb[0].mxu0 %v3698
      %v3837 = vpop.f32.mrb[0].mxu0
      %v3838 = vadd.f32 %v3646, %v3837
      %v3839 = vpop.f32.mrb[0].mxu0
      %v3840 = vpop.f32.mrb[0].mxu0
      %v3841 = vadd.f32 %v3646, %v3840
      %v3842 = vpop.f32.mrb[0].mxu0
      %3843 = vmatprep.mubr.bf16.mxu0 0
      %3844 = vmatmul.mubr.bf16.gmra.mrb[0].mxu0 %v3701
      %v3845 = vpop.f32.mrb[0].mxu0
      %v3846 = vadd.f32 %v3646, %v3845
      %v3847 = vpop.f32.mrb[0].mxu0
      %v3848 = vpop.f32.mrb[0].mxu0
      %v3849 = vadd.f32 %v3646, %v3848
      %v3850 = vpop.f32.mrb[0].mxu0
      %3851 = vmatprep.mubr.bf16.mxu0 0
      %3852 = vmatmul.mubr.bf16.gmra.mrb[0].mxu0 %v3704
      %v3853 = vpop.f32.mrb[0].mxu0
      %v3854 = vadd.f32 %v3646, %v3853
      %v3855 = vpop.f32.mrb[0].mxu0
      %v3856 = vpop.f32.mrb[0].mxu0
      %v3857 = vadd.f32 %v3646, %v3856
      %v3858 = vpop.f32.mrb[0].mxu0
      %3859 = vmatprep.mubr.bf16.mxu0 0
      %3860 = vmatmul.mubr.bf16.gmra.mrb[0].mxu0 %v3707
      %v3861 = vpop.f32.mrb[0].mxu0
      %v3862 = vadd.f32 %v3646, %v3861
      %v3863 = vpop.f32.mrb[0].mxu0
      %v3864 = vpop.f32.mrb[0].mxu0
      %v3865 = vadd.f32 %v3646, %v3864
      %v3866 = vpop.f32.mrb[0].mxu0
      %3867 = vmatprep.mubr.bf16.mxu0 0
      %3868 = vmatmul.mubr.bf16.gmra.mrb[0].mxu0 %v3710
      %v3869 = vpop.f32.mrb[0].mxu0
      %v3870 = vadd.f32 %v3646, %v3869
      %v3871 = vpop.f32.mrb[0].mxu0
      %v3872 = vpop.f32.mrb[0].mxu0
      %v3873 = vadd.f32 %v3646, %v3872
      %v3874 = vpop.f32.mrb[0].mxu0
      %3875 = vdwg.mxu0
      %v3876 = vmax.f32 %v3750, 0.0
      %v3877 = vmax.f32 %v3753, 0.0
      %v3878 = vmax.f32 %v3758, 0.0
      %v3879 = vmax.f32 %v3761, 0.0
      %v3880 = vmax.f32 %v3766, 0.0
      %v3881 = vmax.f32 %v3769, 0.0
      %v3882 = vmax.f32 %v3774, 0.0
      %v3883 = vmax.f32 %v3777, 0.0
      %v3884 = vmax.f32 %v3782, 0.0
      %v3885 = vmax.f32 %v3785, 0.0
      %v3886 = vmax.f32 %v3790, 0.0
      %v3887 = vmax.f32 %v3793, 0.0
      %v3888 = vmax.f32 %v3798, 0.0
      %v3889 = vmax.f32 %v3801, 0.0
      %v3890 = vmax.f32 %v3806, 0.0
      %v3891 = vmax.f32 %v3809, 0.0
      %v3892 = vmax.f32 %v3814, 0.0
      %v3893 = vmax.f32 %v3817, 0.0
      %v3894 = vmax.f32 %v3822, 0.0
      %v3895 = vmax.f32 %v3825, 0.0
      %v3896 = vmax.f32 %v3830, 0.0
      %v3897 = vmax.f32 %v3833, 0.0
      %v3898 = vmax.f32 %v3838, 0.0
      %v3899 = vmax.f32 %v3841, 0.0
      %v3900 = vmax.f32 %v3846, 0.0
      %v3901 = vmax.f32 %v3849, 0.0
      %v3902 = vmax.f32 %v3854, 0.0
      %v3903 = vmax.f32 %v3857, 0.0
      %v3904 = vmax.f32 %v3862, 0.0
      %v3905 = vmax.f32 %v3865, 0.0
      %v3906 = vmax.f32 %v3870, 0.0
      %v3907 = vmax.f32 %v3873, 0.0
      %v3908 = vpack.c.bf16 %v3877, %v3876
      %v3909 = vpack.c.bf16 %v3879, %v3878
      %v3910 = vpack.c.bf16 %v3881, %v3880
      %v3911 = vpack.c.bf16 %v3883, %v3882
      %v3912 = vpack.c.bf16 %v3885, %v3884
      %v3913 = vpack.c.bf16 %v3887, %v3886
      %v3914 = vpack.c.bf16 %v3889, %v3888
      %v3915 = vpack.c.bf16 %v3891, %v3890
      %v3916 = vpack.c.bf16 %v3893, %v3892
      %v3917 = vpack.c.bf16 %v3895, %v3894
      %v3918 = vpack.c.bf16 %v3897, %v3896
      %v3919 = vpack.c.bf16 %v3899, %v3898
      %v3920 = vpack.c.bf16 %v3901, %v3900
      %v3921 = vpack.c.bf16 %v3903, %v3902
      %v3922 = vpack.c.bf16 %v3905, %v3904
      %v3923 = vpack.c.bf16 %v3907, %v3906
      %s3924 = sadd.s32 %s317, 12
      %s3925 = smul.u32 %s3924, 7
      %s3926 = smul.addr %s3925, 4
      %s3927 = scalar_lea.vmem %s302, %s3926
      %v3928 = vld [vmem:[%s3927 + $0x4] sm:$0xc]
      %v3929 = vld [vmem:[%s3927 + $0x8] sm:$0xf]
      %v3930 = vld [vmem:[%s3927 + $0xc] sm:$0x3]
      %v3931 = vld [vmem:[%s3927 + $0x20] sm:$0xc]
      %v3932 = vld [vmem:[%s3927 + $0x24] sm:$0xf]
      %v3933 = vld [vmem:[%s3927 + $0x28] sm:$0x3]
      %v3934 = vld [vmem:[%s3927 + $0x3c] sm:$0xc]
      %v3935 = vld [vmem:[%s3927 + $0x40] sm:$0xf]
      %v3936 = vld [vmem:[%s3927 + $0x44] sm:$0x3]
      %v3937 = vld [vmem:[%s3927 + $0x58] sm:$0xc]
      %v3938 = vld [vmem:[%s3927 + $0x5c] sm:$0xf]
      %v3939 = vld [vmem:[%s3927 + $0x60] sm:$0x3]
      %v3940 = vld [vmem:[%s3927 + $0x74] sm:$0xc]
      %v3941 = vld [vmem:[%s3927 + $0x78] sm:$0xf]
      %v3942 = vld [vmem:[%s3927 + $0x7c] sm:$0x3]
      %v3943 = vld [vmem:[%s3927 + $0x90] sm:$0xc]
      %v3944 = vld [vmem:[%s3927 + $0x94] sm:$0xf]
      %v3945 = vld [vmem:[%s3927 + $0x98] sm:$0x3]
      %v3946 = vld [vmem:[%s3927 + $0xac] sm:$0xc]
      %v3947 = vld [vmem:[%s3927 + $0xb0] sm:$0xf]
      %v3948 = vld [vmem:[%s3927 + $0xb4] sm:$0x3]
      %v3949 = vld [vmem:[%s3927 + $0xc8] sm:$0xc]
      %v3950 = vld [vmem:[%s3927 + $0xcc] sm:$0xf]
      %v3951 = vld [vmem:[%s3927 + $0xd0] sm:$0x3]
      %v3952 = vld [vmem:[%s3927 + $0xe4] sm:$0xc]
      %v3953 = vld [vmem:[%s3927 + $0xe8] sm:$0xf]
      %v3954 = vld [vmem:[%s3927 + $0xec] sm:$0x3]
      %v3955 = vld [vmem:[%s3927 + $0x100] sm:$0xc]
      %v3956 = vld [vmem:[%s3927 + $0x104] sm:$0xf]
      %v3957 = vld [vmem:[%s3927 + $0x108] sm:$0x3]
      %v3958 = vld [vmem:[%s3927 + $0x11c] sm:$0xc]
      %v3959 = vld [vmem:[%s3927 + $0x120] sm:$0xf]
      %v3960 = vld [vmem:[%s3927 + $0x124] sm:$0x3]
      %v3961 = vld [vmem:[%s3927 + $0x138] sm:$0xc]
      %v3962 = vld [vmem:[%s3927 + $0x13c] sm:$0xf]
      %v3963 = vld [vmem:[%s3927 + $0x140] sm:$0x3]
      %v3964 = vld [vmem:[%s3927 + $0x154] sm:$0xc]
      %v3965 = vld [vmem:[%s3927 + $0x158] sm:$0xf]
      %v3966 = vld [vmem:[%s3927 + $0x15c] sm:$0x3]
      %v3967 = vld [vmem:[%s3927 + $0x170] sm:$0xc]
      %v3968 = vld [vmem:[%s3927 + $0x174] sm:$0xf]
      %v3969 = vld [vmem:[%s3927 + $0x178] sm:$0x3]
      %v3970 = vld [vmem:[%s3927 + $0x18c] sm:$0xc]
      %v3971 = vld [vmem:[%s3927 + $0x190] sm:$0xf]
      %v3972 = vld [vmem:[%s3927 + $0x194] sm:$0x3]
      %v3973 = vld [vmem:[%s3927 + $0x1a8] sm:$0xc]
      %v3974 = vld [vmem:[%s3927 + $0x1ac] sm:$0xf]
      %v3975 = vld [vmem:[%s3927 + $0x1b0] sm:$0x3]
      %v3976 = vld [vmem:[%s3927 + $0x8] sm:$0xe]
      %v3977 = vld [vmem:[%s3927 + $0xc] sm:$0xf]
      %v3978 = vld [vmem:[%s3927 + $0x10] sm:$0x1]
      %v3979 = vld [vmem:[%s3927 + $0x24] sm:$0xe]
      %v3980 = vld [vmem:[%s3927 + $0x28] sm:$0xf]
      %v3981 = vld [vmem:[%s3927 + $0x2c] sm:$0x1]
      %v3982 = vld [vmem:[%s3927 + $0x40] sm:$0xe]
      %v3983 = vld [vmem:[%s3927 + $0x44] sm:$0xf]
      %v3984 = vld [vmem:[%s3927 + $0x48] sm:$0x1]
      %v3985 = vld [vmem:[%s3927 + $0x5c] sm:$0xe]
      %v3986 = vld [vmem:[%s3927 + $0x60] sm:$0xf]
      %v3987 = vld [vmem:[%s3927 + $0x64] sm:$0x1]
      %v3988 = vld [vmem:[%s3927 + $0x78] sm:$0xe]
      %v3989 = vld [vmem:[%s3927 + $0x7c] sm:$0xf]
      %v3990 = vld [vmem:[%s3927 + $0x80] sm:$0x1]
      %v3991 = vld [vmem:[%s3927 + $0x94] sm:$0xe]
      %v3992 = vld [vmem:[%s3927 + $0x98] sm:$0xf]
      %v3993 = vld [vmem:[%s3927 + $0x9c] sm:$0x1]
      %v3994 = vld [vmem:[%s3927 + $0xb0] sm:$0xe]
      %v3995 = vld [vmem:[%s3927 + $0xb4] sm:$0xf]
      %v3996 = vld [vmem:[%s3927 + $0xb8] sm:$0x1]
      %v3997 = vld [vmem:[%s3927 + $0xcc] sm:$0xe]
      %v3998 = vld [vmem:[%s3927 + $0xd0] sm:$0xf]
      %v3999 = vld [vmem:[%s3927 + $0xd4] sm:$0x1]
      %v4000 = vld [vmem:[%s3927 + $0xe8] sm:$0xe]
      %v4001 = vld [vmem:[%s3927 + $0xec] sm:$0xf]
      %v4002 = vld [vmem:[%s3927 + $0xf0] sm:$0x1]
      %v4003 = vld [vmem:[%s3927 + $0x104] sm:$0xe]
      %v4004 = vld [vmem:[%s3927 + $0x108] sm:$0xf]
      %v4005 = vld [vmem:[%s3927 + $0x10c] sm:$0x1]
      %v4006 = vld [vmem:[%s3927 + $0x120] sm:$0xe]
      %v4007 = vld [vmem:[%s3927 + $0x124] sm:$0xf]
      %v4008 = vld [vmem:[%s3927 + $0x128] sm:$0x1]
      %v4009 = vld [vmem:[%s3927 + $0x13c] sm:$0xe]
      %v4010 = vld [vmem:[%s3927 + $0x140] sm:$0xf]
      %v4011 = vld [vmem:[%s3927 + $0x144] sm:$0x1]
      %v4012 = vld [vmem:[%s3927 + $0x158] sm:$0xe]
      %v4013 = vld [vmem:[%s3927 + $0x15c] sm:$0xf]
      %v4014 = vld [vmem:[%s3927 + $0x160] sm:$0x1]
      %v4015 = vld [vmem:[%s3927 + $0x174] sm:$0xe]
      %v4016 = vld [vmem:[%s3927 + $0x178] sm:$0xf]
      %v4017 = vld [vmem:[%s3927 + $0x17c] sm:$0x1]
      %v4018 = vld [vmem:[%s3927 + $0x190] sm:$0xe]
      %v4019 = vld [vmem:[%s3927 + $0x194] sm:$0xf]
      %v4020 = vld [vmem:[%s3927 + $0x198] sm:$0x1]
      %v4021 = vld [vmem:[%s3927 + $0x1ac] sm:$0xe]
      %v4022 = vld [vmem:[%s3927 + $0x1b0] sm:$0xf]
      %v4023 = vld [vmem:[%s3927 + $0x1b4] sm:$0x1]
      %v4024 = vld [vmem:[%s3927 + $0x10] sm:$0xf]
      %v4025 = vld [vmem:[%s3927 + $0x2c] sm:$0xf]
      %v4026 = vld [vmem:[%s3927 + $0x48] sm:$0xf]
      %v4027 = vld [vmem:[%s3927 + $0x64] sm:$0xf]
      %v4028 = vld [vmem:[%s3927 + $0x80] sm:$0xf]
      %v4029 = vld [vmem:[%s3927 + $0x9c] sm:$0xf]
      %v4030 = vld [vmem:[%s3927 + $0xb8] sm:$0xf]
      %v4031 = vld [vmem:[%s3927 + $0xd4] sm:$0xf]
      %v4032 = vld [vmem:[%s3927 + $0xf0] sm:$0xf]
      %v4033 = vld [vmem:[%s3927 + $0x10c] sm:$0xf]
      %v4034 = vld [vmem:[%s3927 + $0x128] sm:$0xf]
      %v4035 = vld [vmem:[%s3927 + $0x144] sm:$0xf]
      %v4036 = vld [vmem:[%s3927 + $0x160] sm:$0xf]
      %v4037 = vld [vmem:[%s3927 + $0x17c] sm:$0xf]
      %v4038 = vld [vmem:[%s3927 + $0x198] sm:$0xf]
      %v4039 = vld [vmem:[%s3927 + $0x1b4] sm:$0xf]
      %v4040 = vld [vmem:[%s321 + $0x4] sm:$0xc]
      %v4041 = vld [vmem:[%s321 + $0x8] sm:$0xf]
      %v4042 = vld [vmem:[%s321 + $0xc] sm:$0x3]
      %v4043 = vld [vmem:[%s321 + $0x20] sm:$0xc]
      %v4044 = vld [vmem:[%s321 + $0x24] sm:$0xf]
      %v4045 = vld [vmem:[%s321 + $0x28] sm:$0x3]
      %v4046 = vld [vmem:[%s321 + $0x3c] sm:$0xc]
      %v4047 = vld [vmem:[%s321 + $0x40] sm:$0xf]
      %v4048 = vld [vmem:[%s321 + $0x44] sm:$0x3]
      %v4049 = vld [vmem:[%s321 + $0x58] sm:$0xc]
      %v4050 = vld [vmem:[%s321 + $0x5c] sm:$0xf]
      %v4051 = vld [vmem:[%s321 + $0x60] sm:$0x3]
      %v4052 = vld [vmem:[%s321 + $0x74] sm:$0xc]
      %v4053 = vld [vmem:[%s321 + $0x78] sm:$0xf]
      %v4054 = vld [vmem:[%s321 + $0x7c] sm:$0x3]
      %v4055 = vld [vmem:[%s321 + $0x90] sm:$0xc]
      %v4056 = vld [vmem:[%s321 + $0x94] sm:$0xf]
      %v4057 = vld [vmem:[%s321 + $0x98] sm:$0x3]
      %v4058 = vld [vmem:[%s321 + $0xac] sm:$0xc]
      %v4059 = vld [vmem:[%s321 + $0xb0] sm:$0xf]
      %v4060 = vld [vmem:[%s321 + $0xb4] sm:$0x3]
      %v4061 = vld [vmem:[%s321 + $0xc8] sm:$0xc]
      %v4062 = vld [vmem:[%s321 + $0xcc] sm:$0xf]
      %v4063 = vld [vmem:[%s321 + $0xd0] sm:$0x3]
      %v4064 = vld [vmem:[%s321 + $0xe4] sm:$0xc]
      %v4065 = vld [vmem:[%s321 + $0xe8] sm:$0xf]
      %v4066 = vld [vmem:[%s321 + $0xec] sm:$0x3]
      %v4067 = vld [vmem:[%s321 + $0x100] sm:$0xc]
      %v4068 = vld [vmem:[%s321 + $0x104] sm:$0xf]
      %v4069 = vld [vmem:[%s321 + $0x108] sm:$0x3]
      %v4070 = vld [vmem:[%s321 + $0x11c] sm:$0xc]
      %v4071 = vld [vmem:[%s321 + $0x120] sm:$0xf]
      %v4072 = vld [vmem:[%s321 + $0x124] sm:$0x3]
      %v4073 = vld [vmem:[%s321 + $0x138] sm:$0xc]
      %v4074 = vld [vmem:[%s321 + $0x13c] sm:$0xf]
      %v4075 = vld [vmem:[%s321 + $0x140] sm:$0x3]
      %v4076 = vld [vmem:[%s321 + $0x154] sm:$0xc]
      %v4077 = vld [vmem:[%s321 + $0x158] sm:$0xf]
      %v4078 = vld [vmem:[%s321 + $0x15c] sm:$0x3]
      %v4079 = vld [vmem:[%s321 + $0x170] sm:$0xc]
      %v4080 = vld [vmem:[%s321 + $0x174] sm:$0xf]
      %v4081 = vld [vmem:[%s321 + $0x178] sm:$0x3]
      %v4082 = vld [vmem:[%s321 + $0x18c] sm:$0xc]
      %v4083 = vld [vmem:[%s321 + $0x190] sm:$0xf]
      %v4084 = vld [vmem:[%s321 + $0x194] sm:$0x3]
      %v4085 = vld [vmem:[%s321 + $0x1a8] sm:$0xc]
      %v4086 = vld [vmem:[%s321 + $0x1ac] sm:$0xf]
      %v4087 = vld [vmem:[%s321 + $0x1b0] sm:$0x3]
      %v4088 = vld [vmem:[%s321 + $0x10] sm:$0xf]
      %v4089 = vld [vmem:[%s321 + $0x2c] sm:$0xf]
      %v4090 = vld [vmem:[%s321 + $0x48] sm:$0xf]
      %v4091 = vld [vmem:[%s321 + $0x64] sm:$0xf]
      %v4092 = vld [vmem:[%s321 + $0x80] sm:$0xf]
      %v4093 = vld [vmem:[%s321 + $0x9c] sm:$0xf]
      %v4094 = vld [vmem:[%s321 + $0xb8] sm:$0xf]
      %v4095 = vld [vmem:[%s321 + $0xd4] sm:$0xf]
      %v4096 = vld [vmem:[%s321 + $0xf0] sm:$0xf]
      %v4097 = vld [vmem:[%s321 + $0x10c] sm:$0xf]
      %v4098 = vld [vmem:[%s321 + $0x128] sm:$0xf]
      %v4099 = vld [vmem:[%s321 + $0x144] sm:$0xf]
      %v4100 = vld [vmem:[%s321 + $0x160] sm:$0xf]
      %v4101 = vld [vmem:[%s321 + $0x17c] sm:$0xf]
      %v4102 = vld [vmem:[%s321 + $0x198] sm:$0xf]
      %v4103 = vld [vmem:[%s321 + $0x1b4] sm:$0xf]
      %s4104 = sadd.s32 %s317, 24
      %s4105 = smul.u32 %s4104, 7
      %s4106 = smul.addr %s4105, 4
      %s4107 = scalar_lea.vmem %s302, %s4106
      %v4108 = vld [vmem:[%s4107 + $0x4] sm:$0xc]
      %v4109 = vld [vmem:[%s4107 + $0x8] sm:$0xf]
      %v4110 = vld [vmem:[%s4107 + $0xc] sm:$0x3]
      %v4111 = vld [vmem:[%s4107 + $0x20] sm:$0xc]
      %v4112 = vld [vmem:[%s4107 + $0x24] sm:$0xf]
      %v4113 = vld [vmem:[%s4107 + $0x28] sm:$0x3]
      %v4114 = vld [vmem:[%s4107 + $0x3c] sm:$0xc]
      %v4115 = vld [vmem:[%s4107 + $0x40] sm:$0xf]
      %v4116 = vld [vmem:[%s4107 + $0x44] sm:$0x3]
      %v4117 = vld [vmem:[%s4107 + $0x58] sm:$0xc]
      %v4118 = vld [vmem:[%s4107 + $0x5c] sm:$0xf]
      %v4119 = vld [vmem:[%s4107 + $0x60] sm:$0x3]
      %v4120 = vld [vmem:[%s4107 + $0x74] sm:$0xc]
      %v4121 = vld [vmem:[%s4107 + $0x78] sm:$0xf]
      %v4122 = vld [vmem:[%s4107 + $0x7c] sm:$0x3]
      %v4123 = vld [vmem:[%s4107 + $0x90] sm:$0xc]
      %v4124 = vld [vmem:[%s4107 + $0x94] sm:$0xf]
      %v4125 = vld [vmem:[%s4107 + $0x98] sm:$0x3]
      %v4126 = vld [vmem:[%s4107 + $0xac] sm:$0xc]
      %v4127 = vld [vmem:[%s4107 + $0xb0] sm:$0xf]
      %v4128 = vld [vmem:[%s4107 + $0xb4] sm:$0x3]
      %v4129 = vld [vmem:[%s4107 + $0xc8] sm:$0xc]
      %v4130 = vld [vmem:[%s4107 + $0xcc] sm:$0xf]
      %v4131 = vld [vmem:[%s4107 + $0xd0] sm:$0x3]
      %v4132 = vld [vmem:[%s4107 + $0xe4] sm:$0xc]
      %v4133 = vld [vmem:[%s4107 + $0xe8] sm:$0xf]
      %v4134 = vld [vmem:[%s4107 + $0xec] sm:$0x3]
      %v4135 = vld [vmem:[%s4107 + $0x100] sm:$0xc]
      %v4136 = vld [vmem:[%s4107 + $0x104] sm:$0xf]
      %v4137 = vld [vmem:[%s4107 + $0x108] sm:$0x3]
      %v4138 = vld [vmem:[%s4107 + $0x11c] sm:$0xc]
      %v4139 = vld [vmem:[%s4107 + $0x120] sm:$0xf]
      %v4140 = vld [vmem:[%s4107 + $0x124] sm:$0x3]
      %v4141 = vld [vmem:[%s4107 + $0x138] sm:$0xc]
      %v4142 = vld [vmem:[%s4107 + $0x13c] sm:$0xf]
      %v4143 = vld [vmem:[%s4107 + $0x140] sm:$0x3]
      %v4144 = vld [vmem:[%s4107 + $0x154] sm:$0xc]
      %v4145 = vld [vmem:[%s4107 + $0x158] sm:$0xf]
      %v4146 = vld [vmem:[%s4107 + $0x15c] sm:$0x3]
      %v4147 = vld [vmem:[%s4107 + $0x170] sm:$0xc]
      %v4148 = vld [vmem:[%s4107 + $0x174] sm:$0xf]
      %v4149 = vld [vmem:[%s4107 + $0x178] sm:$0x3]
      %v4150 = vld [vmem:[%s4107 + $0x18c] sm:$0xc]
      %v4151 = vld [vmem:[%s4107 + $0x190] sm:$0xf]
      %v4152 = vld [vmem:[%s4107 + $0x194] sm:$0x3]
      %v4153 = vld [vmem:[%s4107 + $0x1a8] sm:$0xc]
      %v4154 = vld [vmem:[%s4107 + $0x1ac] sm:$0xf]
      %v4155 = vld [vmem:[%s4107 + $0x1b0] sm:$0x3]
      %v4156 = vld [vmem:[%s4107 + $0x8] sm:$0xe]
      %v4157 = vld [vmem:[%s4107 + $0xc] sm:$0xf]
      %v4158 = vld [vmem:[%s4107 + $0x10] sm:$0x1]
      %v4159 = vld [vmem:[%s4107 + $0x24] sm:$0xe]
      %v4160 = vld [vmem:[%s4107 + $0x28] sm:$0xf]
      %v4161 = vld [vmem:[%s4107 + $0x2c] sm:$0x1]
      %v4162 = vld [vmem:[%s4107 + $0x40] sm:$0xe]
      %v4163 = vld [vmem:[%s4107 + $0x44] sm:$0xf]
      %v4164 = vld [vmem:[%s4107 + $0x48] sm:$0x1]
      %v4165 = vld [vmem:[%s4107 + $0x5c] sm:$0xe]
      %v4166 = vld [vmem:[%s4107 + $0x60] sm:$0xf]
      %v4167 = vld [vmem:[%s4107 + $0x64] sm:$0x1]
      %v4168 = vld [vmem:[%s4107 + $0x78] sm:$0xe]
      %v4169 = vld [vmem:[%s4107 + $0x7c] sm:$0xf]
      %v4170 = vld [vmem:[%s4107 + $0x80] sm:$0x1]
      %v4171 = vld [vmem:[%s4107 + $0x94] sm:$0xe]
      %v4172 = vld [vmem:[%s4107 + $0x98] sm:$0xf]
      %v4173 = vld [vmem:[%s4107 + $0x9c] sm:$0x1]
      %v4174 = vld [vmem:[%s4107 + $0xb0] sm:$0xe]
      %v4175 = vld [vmem:[%s4107 + $0xb4] sm:$0xf]
      %v4176 = vld [vmem:[%s4107 + $0xb8] sm:$0x1]
      %v4177 = vld [vmem:[%s4107 + $0xcc] sm:$0xe]
      %v4178 = vld [vmem:[%s4107 + $0xd0] sm:$0xf]
      %v4179 = vld [vmem:[%s4107 + $0xd4] sm:$0x1]
      %v4180 = vld [vmem:[%s4107 + $0xe8] sm:$0xe]
      %v4181 = vld [vmem:[%s4107 + $0xec] sm:$0xf]
      %v4182 = vld [vmem:[%s4107 + $0xf0] sm:$0x1]
      %v4183 = vld [vmem:[%s4107 + $0x104] sm:$0xe]
      %v4184 = vld [vmem:[%s4107 + $0x108] sm:$0xf]
      %v4185 = vld [vmem:[%s4107 + $0x10c] sm:$0x1]
      %v4186 = vld [vmem:[%s4107 + $0x120] sm:$0xe]
      %v4187 = vld [vmem:[%s4107 + $0x124] sm:$0xf]
      %v4188 = vld [vmem:[%s4107 + $0x128] sm:$0x1]
      %v4189 = vld [vmem:[%s4107 + $0x13c] sm:$0xe]
      %v4190 = vld [vmem:[%s4107 + $0x140] sm:$0xf]
      %v4191 = vld [vmem:[%s4107 + $0x144] sm:$0x1]
      %v4192 = vld [vmem:[%s4107 + $0x158] sm:$0xe]
      %v4193 = vld [vmem:[%s4107 + $0x15c] sm:$0xf]
      %v4194 = vld [vmem:[%s4107 + $0x160] sm:$0x1]
      %v4195 = vld [vmem:[%s4107 + $0x174] sm:$0xe]
      %v4196 = vld [vmem:[%s4107 + $0x178] sm:$0xf]
      %v4197 = vld [vmem:[%s4107 + $0x17c] sm:$0x1]
      %v4198 = vld [vmem:[%s4107 + $0x190] sm:$0xe]
      %v4199 = vld [vmem:[%s4107 + $0x194] sm:$0xf]
      %v4200 = vld [vmem:[%s4107 + $0x198] sm:$0x1]
      %v4201 = vld [vmem:[%s4107 + $0x1ac] sm:$0xe]
      %v4202 = vld [vmem:[%s4107 + $0x1b0] sm:$0xf]
      %v4203 = vld [vmem:[%s4107 + $0x1b4] sm:$0x1]
      %v4204 = vld [vmem:[%s4107 + $0x10] sm:$0xf]
      %v4205 = vld [vmem:[%s4107 + $0x2c] sm:$0xf]
      %v4206 = vld [vmem:[%s4107 + $0x48] sm:$0xf]
      %v4207 = vld [vmem:[%s4107 + $0x64] sm:$0xf]
      %v4208 = vld [vmem:[%s4107 + $0x80] sm:$0xf]
      %v4209 = vld [vmem:[%s4107 + $0x9c] sm:$0xf]
      %v4210 = vld [vmem:[%s4107 + $0xb8] sm:$0xf]
      %v4211 = vld [vmem:[%s4107 + $0xd4] sm:$0xf]
      %v4212 = vld [vmem:[%s4107 + $0xf0] sm:$0xf]
      %v4213 = vld [vmem:[%s4107 + $0x10c] sm:$0xf]
      %v4214 = vld [vmem:[%s4107 + $0x128] sm:$0xf]
      %v4215 = vld [vmem:[%s4107 + $0x144] sm:$0xf]
      %v4216 = vld [vmem:[%s4107 + $0x160] sm:$0xf]
      %v4217 = vld [vmem:[%s4107 + $0x17c] sm:$0xf]
      %v4218 = vld [vmem:[%s4107 + $0x198] sm:$0xf]
      %v4219 = vld [vmem:[%s4107 + $0x1b4] sm:$0xf]
      %v4268 = vunpack.c.l.b16 %v3928
      %v4269 = vunpack.c.l.b16 %v3929
      %v4270 = vunpack.c.l.b16 %v3930
      %v4271 = vunpack.c.l.b16 %v3931
      %v4272 = vunpack.c.l.b16 %v3932
      %v4273 = vunpack.c.l.b16 %v3933
      %v4274 = vunpack.c.l.b16 %v3934
      %v4275 = vunpack.c.l.b16 %v3935
      %v4276 = vunpack.c.l.b16 %v3936
      %v4277 = vunpack.c.l.b16 %v3937
      %v4278 = vunpack.c.l.b16 %v3938
      %v4279 = vunpack.c.l.b16 %v3939
      %v4280 = vunpack.c.l.b16 %v3940
      %v4281 = vunpack.c.l.b16 %v3941
      %v4282 = vunpack.c.l.b16 %v3942
      %v4283 = vunpack.c.l.b16 %v3943
      %v4284 = vunpack.c.l.b16 %v3944
      %v4285 = vunpack.c.l.b16 %v3945
      %v4286 = vunpack.c.l.b16 %v3946
      %v4287 = vunpack.c.l.b16 %v3947
      %v4288 = vunpack.c.l.b16 %v3948
      %v4289 = vunpack.c.l.b16 %v3949
      %v4290 = vunpack.c.l.b16 %v3950
      %v4291 = vunpack.c.l.b16 %v3951
      %v4292 = vunpack.c.l.b16 %v3952
      %v4293 = vunpack.c.l.b16 %v3953
      %v4294 = vunpack.c.l.b16 %v3954
      %v4295 = vunpack.c.l.b16 %v3955
      %v4296 = vunpack.c.l.b16 %v3956
      %v4297 = vunpack.c.l.b16 %v3957
      %v4298 = vunpack.c.l.b16 %v3958
      %v4299 = vunpack.c.l.b16 %v3959
      %v4300 = vunpack.c.l.b16 %v3960
      %v4301 = vunpack.c.l.b16 %v3961
      %v4302 = vunpack.c.l.b16 %v3962
      %v4303 = vunpack.c.l.b16 %v3963
      %v4304 = vunpack.c.l.b16 %v3964
      %v4305 = vunpack.c.l.b16 %v3965
      %v4306 = vunpack.c.l.b16 %v3966
      %v4307 = vunpack.c.l.b16 %v3967
      %v4308 = vunpack.c.l.b16 %v3968
      %v4309 = vunpack.c.l.b16 %v3969
      %v4310 = vunpack.c.l.b16 %v3970
      %v4311 = vunpack.c.l.b16 %v3971
      %v4312 = vunpack.c.l.b16 %v3972
      %v4313 = vunpack.c.l.b16 %v3973
      %v4314 = vunpack.c.l.b16 %v3974
      %v4315 = vunpack.c.l.b16 %v3975
      %v4316 = vpack.c.b16 %v4269, %v4268
      %v4317 = vpack.c.b16 %v4270, %v4270
      %v4318 = vpack.c.b16 %v4272, %v4271
      %v4319 = vpack.c.b16 %v4273, %v4273
      %v4320 = vpack.c.b16 %v4275, %v4274
      %v4321 = vpack.c.b16 %v4276, %v4276
      %v4322 = vpack.c.b16 %v4278, %v4277
      %v4323 = vpack.c.b16 %v4279, %v4279
      %v4324 = vpack.c.b16 %v4281, %v4280
      %v4325 = vpack.c.b16 %v4282, %v4282
      %v4326 = vpack.c.b16 %v4284, %v4283
      %v4327 = vpack.c.b16 %v4285, %v4285
      %v4328 = vpack.c.b16 %v4287, %v4286
      %v4329 = vpack.c.b16 %v4288, %v4288
      %v4330 = vpack.c.b16 %v4290, %v4289
      %v4331 = vpack.c.b16 %v4291, %v4291
      %v4332 = vpack.c.b16 %v4293, %v4292
      %v4333 = vpack.c.b16 %v4294, %v4294
      %v4334 = vpack.c.b16 %v4296, %v4295
      %v4335 = vpack.c.b16 %v4297, %v4297
      %v4336 = vpack.c.b16 %v4299, %v4298
      %v4337 = vpack.c.b16 %v4300, %v4300
      %v4338 = vpack.c.b16 %v4302, %v4301
      %v4339 = vpack.c.b16 %v4303, %v4303
      %v4340 = vpack.c.b16 %v4305, %v4304
      %v4341 = vpack.c.b16 %v4306, %v4306
      %v4342 = vpack.c.b16 %v4308, %v4307
      %v4343 = vpack.c.b16 %v4309, %v4309
      %v4344 = vpack.c.b16 %v4311, %v4310
      %v4345 = vpack.c.b16 %v4312, %v4312
      %v4346 = vpack.c.b16 %v4314, %v4313
      %v4347 = vpack.c.b16 %v4315, %v4315
      %v4396 = vunpack.c.l.b16 %v3976
      %v4397 = vunpack.c.l.b16 %v3977
      %v4398 = vunpack.c.l.b16 %v3978
      %v4399 = vunpack.c.l.b16 %v3979
      %v4400 = vunpack.c.l.b16 %v3980
      %v4401 = vunpack.c.l.b16 %v3981
      %v4402 = vunpack.c.l.b16 %v3982
      %v4403 = vunpack.c.l.b16 %v3983
      %v4404 = vunpack.c.l.b16 %v3984
      %v4405 = vunpack.c.l.b16 %v3985
      %v4406 = vunpack.c.l.b16 %v3986
      %v4407 = vunpack.c.l.b16 %v3987
      %v4408 = vunpack.c.l.b16 %v3988
      %v4409 = vunpack.c.l.b16 %v3989
      %v4410 = vunpack.c.l.b16 %v3990
      %v4411 = vunpack.c.l.b16 %v3991
      %v4412 = vunpack.c.l.b16 %v3992
      %v4413 = vunpack.c.l.b16 %v3993
      %v4414 = vunpack.c.l.b16 %v3994
      %v4415 = vunpack.c.l.b16 %v3995
      %v4416 = vunpack.c.l.b16 %v3996
      %v4417 = vunpack.c.l.b16 %v3997
      %v4418 = vunpack.c.l.b16 %v3998
      %v4419 = vunpack.c.l.b16 %v3999
      %v4420 = vunpack.c.l.b16 %v4000
      %v4421 = vunpack.c.l.b16 %v4001
      %v4422 = vunpack.c.l.b16 %v4002
      %v4423 = vunpack.c.l.b16 %v4003
      %v4424 = vunpack.c.l.b16 %v4004
      %v4425 = vunpack.c.l.b16 %v4005
      %v4426 = vunpack.c.l.b16 %v4006
      %v4427 = vunpack.c.l.b16 %v4007
      %v4428 = vunpack.c.l.b16 %v4008
      %v4429 = vunpack.c.l.b16 %v4009
      %v4430 = vunpack.c.l.b16 %v4010
      %v4431 = vunpack.c.l.b16 %v4011
      %v4432 = vunpack.c.l.b16 %v4012
      %v4433 = vunpack.c.l.b16 %v4013
      %v4434 = vunpack.c.l.b16 %v4014
      %v4435 = vunpack.c.l.b16 %v4015
      %v4436 = vunpack.c.l.b16 %v4016
      %v4437 = vunpack.c.l.b16 %v4017
      %v4438 = vunpack.c.l.b16 %v4018
      %v4439 = vunpack.c.l.b16 %v4019
      %v4440 = vunpack.c.l.b16 %v4020
      %v4441 = vunpack.c.l.b16 %v4021
      %v4442 = vunpack.c.l.b16 %v4022
      %v4443 = vunpack.c.l.b16 %v4023
      %v4444 = vpack.c.b16 %v4397, %v4396
      %v4445 = vpack.c.b16 %v4398, %v4398
      %v4446 = vpack.c.b16 %v4400, %v4399
      %v4447 = vpack.c.b16 %v4401, %v4401
      %v4448 = vpack.c.b16 %v4403, %v4402
      %v4449 = vpack.c.b16 %v4404, %v4404
      %v4450 = vpack.c.b16 %v4406, %v4405
      %v4451 = vpack.c.b16 %v4407, %v4407
      %v4452 = vpack.c.b16 %v4409, %v4408
      %v4453 = vpack.c.b16 %v4410, %v4410
      %v4454 = vpack.c.b16 %v4412, %v4411
      %v4455 = vpack.c.b16 %v4413, %v4413
      %v4456 = vpack.c.b16 %v4415, %v4414
      %v4457 = vpack.c.b16 %v4416, %v4416
      %v4458 = vpack.c.b16 %v4418, %v4417
      %v4459 = vpack.c.b16 %v4419, %v4419
      %v4460 = vpack.c.b16 %v4421, %v4420
      %v4461 = vpack.c.b16 %v4422, %v4422
      %v4462 = vpack.c.b16 %v4424, %v4423
      %v4463 = vpack.c.b16 %v4425, %v4425
      %v4464 = vpack.c.b16 %v4427, %v4426
      %v4465 = vpack.c.b16 %v4428, %v4428
      %v4466 = vpack.c.b16 %v4430, %v4429
      %v4467 = vpack.c.b16 %v4431, %v4431
      %v4468 = vpack.c.b16 %v4433, %v4432
      %v4469 = vpack.c.b16 %v4434, %v4434
      %v4470 = vpack.c.b16 %v4436, %v4435
      %v4471 = vpack.c.b16 %v4437, %v4437
      %v4472 = vpack.c.b16 %v4439, %v4438
      %v4473 = vpack.c.b16 %v4440, %v4440
      %v4474 = vpack.c.b16 %v4442, %v4441
      %v4475 = vpack.c.b16 %v4443, %v4443
      %vm4476 = vcmask 1040384
      %v4477 = vrot.slane %v4444, 7
      %v4478 = vrot.slane %v4445, 7
      %v4479 = vsel %vm4476, %v4477, %v4478
      %v4480 = vrot.slane %v4446, 7
      %v4481 = vrot.slane %v4447, 7
      %v4482 = vsel %vm4476, %v4480, %v4481
      %v4483 = vrot.slane %v4448, 7
      %v4484 = vrot.slane %v4449, 7
      %v4485 = vsel %vm4476, %v4483, %v4484
      %v4486 = vrot.slane %v4450, 7
      %v4487 = vrot.slane %v4451, 7
      %v4488 = vsel %vm4476, %v4486, %v4487
      %v4489 = vrot.slane %v4452, 7
      %v4490 = vrot.slane %v4453, 7
      %v4491 = vsel %vm4476, %v4489, %v4490
      %v4492 = vrot.slane %v4454, 7
      %v4493 = vrot.slane %v4455, 7
      %v4494 = vsel %vm4476, %v4492, %v4493
      %v4495 = vrot.slane %v4456, 7
      %v4496 = vrot.slane %v4457, 7
      %v4497 = vsel %vm4476, %v4495, %v4496
      %v4498 = vrot.slane %v4458, 7
      %v4499 = vrot.slane %v4459, 7
      %v4500 = vsel %vm4476, %v4498, %v4499
      %v4501 = vrot.slane %v4460, 7
      %v4502 = vrot.slane %v4461, 7
      %v4503 = vsel %vm4476, %v4501, %v4502
      %v4504 = vrot.slane %v4462, 7
      %v4505 = vrot.slane %v4463, 7
      %v4506 = vsel %vm4476, %v4504, %v4505
      %v4507 = vrot.slane %v4464, 7
      %v4508 = vrot.slane %v4465, 7
      %v4509 = vsel %vm4476, %v4507, %v4508
      %v4510 = vrot.slane %v4466, 7
      %v4511 = vrot.slane %v4467, 7
      %v4512 = vsel %vm4476, %v4510, %v4511
      %v4513 = vrot.slane %v4468, 7
      %v4514 = vrot.slane %v4469, 7
      %v4515 = vsel %vm4476, %v4513, %v4514
      %v4516 = vrot.slane %v4470, 7
      %v4517 = vrot.slane %v4471, 7
      %v4518 = vsel %vm4476, %v4516, %v4517
      %v4519 = vrot.slane %v4472, 7
      %v4520 = vrot.slane %v4473, 7
      %v4521 = vsel %vm4476, %v4519, %v4520
      %v4522 = vrot.slane %v4474, 7
      %v4523 = vrot.slane %v4475, 7
      %v4524 = vsel %vm4476, %v4522, %v4523
      %4525 = vrot.lane.b32.xlu0 %v4477, 4
      %v4526 = vpop.permute.xlu0 %4525
      %4527 = vrot.lane.b32.xlu0 %v4479, 4
      %v4528 = vpop.permute.xlu0 %4527
      %4529 = vrot.lane.b32.xlu0 %v4480, 4
      %v4530 = vpop.permute.xlu0 %4529
      %4531 = vrot.lane.b32.xlu0 %v4482, 4
      %v4532 = vpop.permute.xlu0 %4531
      %4533 = vrot.lane.b32.xlu0 %v4483, 4
      %v4534 = vpop.permute.xlu0 %4533
      %4535 = vrot.lane.b32.xlu0 %v4485, 4
      %v4536 = vpop.permute.xlu0 %4535
      %4537 = vrot.lane.b32.xlu0 %v4486, 4
      %v4538 = vpop.permute.xlu0 %4537
      %4539 = vrot.lane.b32.xlu0 %v4488, 4
      %v4540 = vpop.permute.xlu0 %4539
      %4541 = vrot.lane.b32.xlu0 %v4489, 4
      %v4542 = vpop.permute.xlu0 %4541
      %4543 = vrot.lane.b32.xlu0 %v4491, 4
      %v4544 = vpop.permute.xlu0 %4543
      %4545 = vrot.lane.b32.xlu0 %v4492, 4
      %v4546 = vpop.permute.xlu0 %4545
      %4547 = vrot.lane.b32.xlu0 %v4494, 4
      %v4548 = vpop.permute.xlu0 %4547
      %4549 = vrot.lane.b32.xlu0 %v4495, 4
      %v4550 = vpop.permute.xlu0 %4549
      %4551 = vrot.lane.b32.xlu0 %v4497, 4
      %v4552 = vpop.permute.xlu0 %4551
      %4553 = vrot.lane.b32.xlu0 %v4498, 4
      %v4554 = vpop.permute.xlu0 %4553
      %4555 = vrot.lane.b32.xlu0 %v4500, 4
      %v4556 = vpop.permute.xlu0 %4555
      %4557 = vrot.lane.b32.xlu0 %v4501, 4
      %v4558 = vpop.permute.xlu0 %4557
      %4559 = vrot.lane.b32.xlu0 %v4503, 4
      %v4560 = vpop.permute.xlu0 %4559
      %4561 = vrot.lane.b32.xlu0 %v4504, 4
      %v4562 = vpop.permute.xlu0 %4561
      %4563 = vrot.lane.b32.xlu0 %v4506, 4
      %v4564 = vpop.permute.xlu0 %4563
      %4565 = vrot.lane.b32.xlu0 %v4507, 4
      %v4566 = vpop.permute.xlu0 %4565
      %4567 = vrot.lane.b32.xlu0 %v4509, 4
      %v4568 = vpop.permute.xlu0 %4567
      %4569 = vrot.lane.b32.xlu0 %v4510, 4
      %v4570 = vpop.permute.xlu0 %4569
      %4571 = vrot.lane.b32.xlu0 %v4512, 4
      %v4572 = vpop.permute.xlu0 %4571
      %4573 = vrot.lane.b32.xlu0 %v4513, 4
      %v4574 = vpop.permute.xlu0 %4573
      %4575 = vrot.lane.b32.xlu0 %v4515, 4
      %v4576 = vpop.permute.xlu0 %4575
      %4577 = vrot.lane.b32.xlu0 %v4516, 4
      %v4578 = vpop.permute.xlu0 %4577
      %4579 = vrot.lane.b32.xlu0 %v4518, 4
      %v4580 = vpop.permute.xlu0 %4579
      %4581 = vrot.lane.b32.xlu0 %v4519, 4
      %v4582 = vpop.permute.xlu0 %4581
      %4583 = vrot.lane.b32.xlu0 %v4521, 4
      %v4584 = vpop.permute.xlu0 %4583
      %4585 = vrot.lane.b32.xlu0 %v4522, 4
      %v4586 = vpop.permute.xlu0 %4585
      %4587 = vrot.lane.b32.xlu0 %v4524, 4
      %v4588 = vpop.permute.xlu0 %4587
      %v4605 = vunpack.c.l.b16 %v4024
      %v4606 = vunpack.c.l.b16 %v4025
      %v4607 = vunpack.c.l.b16 %v4026
      %v4608 = vunpack.c.l.b16 %v4027
      %v4609 = vunpack.c.l.b16 %v4028
      %v4610 = vunpack.c.l.b16 %v4029
      %v4611 = vunpack.c.l.b16 %v4030
      %v4612 = vunpack.c.l.b16 %v4031
      %v4613 = vunpack.c.l.b16 %v4032
      %v4614 = vunpack.c.l.b16 %v4033
      %v4615 = vunpack.c.l.b16 %v4034
      %v4616 = vunpack.c.l.b16 %v4035
      %v4617 = vunpack.c.l.b16 %v4036
      %v4618 = vunpack.c.l.b16 %v4037
      %v4619 = vunpack.c.l.b16 %v4038
      %v4620 = vunpack.c.l.b16 %v4039
      %v4621 = vpack.c.b16 %v4605, %v4397
      %v4622 = vpack.c.b16 %v4606, %v4400
      %v4623 = vpack.c.b16 %v4607, %v4403
      %v4624 = vpack.c.b16 %v4608, %v4406
      %v4625 = vpack.c.b16 %v4609, %v4409
      %v4626 = vpack.c.b16 %v4610, %v4412
      %v4627 = vpack.c.b16 %v4611, %v4415
      %v4628 = vpack.c.b16 %v4612, %v4418
      %v4629 = vpack.c.b16 %v4613, %v4421
      %v4630 = vpack.c.b16 %v4614, %v4424
      %v4631 = vpack.c.b16 %v4615, %v4427
      %v4632 = vpack.c.b16 %v4616, %v4430
      %v4633 = vpack.c.b16 %v4617, %v4433
      %v4634 = vpack.c.b16 %v4618, %v4436
      %v4635 = vpack.c.b16 %v4619, %v4439
      %v4636 = vpack.c.b16 %v4620, %v4442
      %v4637 = vrot.slane %v4621, 6
      %v4638 = vrot.slane %v4622, 6
      %v4639 = vrot.slane %v4623, 6
      %v4640 = vrot.slane %v4624, 6
      %v4641 = vrot.slane %v4625, 6
      %v4642 = vrot.slane %v4626, 6
      %v4643 = vrot.slane %v4627, 6
      %v4644 = vrot.slane %v4628, 6
      %v4645 = vrot.slane %v4629, 6
      %v4646 = vrot.slane %v4630, 6
      %v4647 = vrot.slane %v4631, 6
      %v4648 = vrot.slane %v4632, 6
      %v4649 = vrot.slane %v4633, 6
      %v4650 = vrot.slane %v4634, 6
      %v4651 = vrot.slane %v4635, 6
      %v4652 = vrot.slane %v4636, 6
      %4653 = vrot.lane.b32.xlu0 %v4637, 8
      %v4654 = vpop.permute.xlu0 %4653
      %4655 = vrot.lane.b32.xlu0 %v4638, 8
      %v4656 = vpop.permute.xlu0 %4655
      %4657 = vrot.lane.b32.xlu0 %v4639, 8
      %v4658 = vpop.permute.xlu0 %4657
      %4659 = vrot.lane.b32.xlu0 %v4640, 8
      %v4660 = vpop.permute.xlu0 %4659
      %4661 = vrot.lane.b32.xlu0 %v4641, 8
      %v4662 = vpop.permute.xlu0 %4661
      %4663 = vrot.lane.b32.xlu0 %v4642, 8
      %v4664 = vpop.permute.xlu0 %4663
      %4665 = vrot.lane.b32.xlu0 %v4643, 8
      %v4666 = vpop.permute.xlu0 %4665
      %4667 = vrot.lane.b32.xlu0 %v4644, 8
      %v4668 = vpop.permute.xlu0 %4667
      %4669 = vrot.lane.b32.xlu0 %v4645, 8
      %v4670 = vpop.permute.xlu0 %4669
      %4671 = vrot.lane.b32.xlu0 %v4646, 8
      %v4672 = vpop.permute.xlu0 %4671
      %4673 = vrot.lane.b32.xlu0 %v4647, 8
      %v4674 = vpop.permute.xlu0 %4673
      %4675 = vrot.lane.b32.xlu0 %v4648, 8
      %v4676 = vpop.permute.xlu0 %4675
      %4677 = vrot.lane.b32.xlu0 %v4649, 8
      %v4678 = vpop.permute.xlu0 %4677
      %4679 = vrot.lane.b32.xlu0 %v4650, 8
      %v4680 = vpop.permute.xlu0 %4679
      %4681 = vrot.lane.b32.xlu0 %v4651, 8
      %v4682 = vpop.permute.xlu0 %4681
      %4683 = vrot.lane.b32.xlu0 %v4652, 8
      %v4684 = vpop.permute.xlu0 %4683
      %v4733 = vunpack.c.l.b16 %v4040
      %v4734 = vunpack.c.l.b16 %v4041
      %v4735 = vunpack.c.l.b16 %v4042
      %v4736 = vunpack.c.l.b16 %v4043
      %v4737 = vunpack.c.l.b16 %v4044
      %v4738 = vunpack.c.l.b16 %v4045
      %v4739 = vunpack.c.l.b16 %v4046
      %v4740 = vunpack.c.l.b16 %v4047
      %v4741 = vunpack.c.l.b16 %v4048
      %v4742 = vunpack.c.l.b16 %v4049
      %v4743 = vunpack.c.l.b16 %v4050
      %v4744 = vunpack.c.l.b16 %v4051
      %v4745 = vunpack.c.l.b16 %v4052
      %v4746 = vunpack.c.l.b16 %v4053
      %v4747 = vunpack.c.l.b16 %v4054
      %v4748 = vunpack.c.l.b16 %v4055
      %v4749 = vunpack.c.l.b16 %v4056
      %v4750 = vunpack.c.l.b16 %v4057
      %v4751 = vunpack.c.l.b16 %v4058
      %v4752 = vunpack.c.l.b16 %v4059
      %v4753 = vunpack.c.l.b16 %v4060
      %v4754 = vunpack.c.l.b16 %v4061
      %v4755 = vunpack.c.l.b16 %v4062
      %v4756 = vunpack.c.l.b16 %v4063
      %v4757 = vunpack.c.l.b16 %v4064
      %v4758 = vunpack.c.l.b16 %v4065
      %v4759 = vunpack.c.l.b16 %v4066
      %v4760 = vunpack.c.l.b16 %v4067
      %v4761 = vunpack.c.l.b16 %v4068
      %v4762 = vunpack.c.l.b16 %v4069
      %v4763 = vunpack.c.l.b16 %v4070
      %v4764 = vunpack.c.l.b16 %v4071
      %v4765 = vunpack.c.l.b16 %v4072
      %v4766 = vunpack.c.l.b16 %v4073
      %v4767 = vunpack.c.l.b16 %v4074
      %v4768 = vunpack.c.l.b16 %v4075
      %v4769 = vunpack.c.l.b16 %v4076
      %v4770 = vunpack.c.l.b16 %v4077
      %v4771 = vunpack.c.l.b16 %v4078
      %v4772 = vunpack.c.l.b16 %v4079
      %v4773 = vunpack.c.l.b16 %v4080
      %v4774 = vunpack.c.l.b16 %v4081
      %v4775 = vunpack.c.l.b16 %v4082
      %v4776 = vunpack.c.l.b16 %v4083
      %v4777 = vunpack.c.l.b16 %v4084
      %v4778 = vunpack.c.l.b16 %v4085
      %v4779 = vunpack.c.l.b16 %v4086
      %v4780 = vunpack.c.l.b16 %v4087
      %v4781 = vpack.c.b16 %v4734, %v4733
      %v4782 = vpack.c.b16 %v4735, %v4735
      %v4783 = vpack.c.b16 %v4737, %v4736
      %v4784 = vpack.c.b16 %v4738, %v4738
      %v4785 = vpack.c.b16 %v4740, %v4739
      %v4786 = vpack.c.b16 %v4741, %v4741
      %v4787 = vpack.c.b16 %v4743, %v4742
      %v4788 = vpack.c.b16 %v4744, %v4744
      %v4789 = vpack.c.b16 %v4746, %v4745
      %v4790 = vpack.c.b16 %v4747, %v4747
      %v4791 = vpack.c.b16 %v4749, %v4748
      %v4792 = vpack.c.b16 %v4750, %v4750
      %v4793 = vpack.c.b16 %v4752, %v4751
      %v4794 = vpack.c.b16 %v4753, %v4753
      %v4795 = vpack.c.b16 %v4755, %v4754
      %v4796 = vpack.c.b16 %v4756, %v4756
      %v4797 = vpack.c.b16 %v4758, %v4757
      %v4798 = vpack.c.b16 %v4759, %v4759
      %v4799 = vpack.c.b16 %v4761, %v4760
      %v4800 = vpack.c.b16 %v4762, %v4762
      %v4801 = vpack.c.b16 %v4764, %v4763
      %v4802 = vpack.c.b16 %v4765, %v4765
      %v4803 = vpack.c.b16 %v4767, %v4766
      %v4804 = vpack.c.b16 %v4768, %v4768
      %v4805 = vpack.c.b16 %v4770, %v4769
      %v4806 = vpack.c.b16 %v4771, %v4771
      %v4807 = vpack.c.b16 %v4773, %v4772
      %v4808 = vpack.c.b16 %v4774, %v4774
      %v4809 = vpack.c.b16 %v4776, %v4775
      %v4810 = vpack.c.b16 %v4777, %v4777
      %v4811 = vpack.c.b16 %v4779, %v4778
      %v4812 = vpack.c.b16 %v4780, %v4780
      %4813 = vrot.lane.b32.xlu0 %v4781, 12
      %v4814 = vpop.permute.xlu0 %4813
      %4815 = vrot.lane.b32.xlu0 %v4782, 12
      %v4816 = vpop.permute.xlu0 %4815
      %4817 = vrot.lane.b32.xlu0 %v4783, 12
      %v4818 = vpop.permute.xlu0 %4817
      %4819 = vrot.lane.b32.xlu0 %v4784, 12
      %v4820 = vpop.permute.xlu0 %4819
      %4821 = vrot.lane.b32.xlu0 %v4785, 12
      %v4822 = vpop.permute.xlu0 %4821
      %4823 = vrot.lane.b32.xlu0 %v4786, 12
      %v4824 = vpop.permute.xlu0 %4823
      %4825 = vrot.lane.b32.xlu0 %v4787, 12
      %v4826 = vpop.permute.xlu0 %4825
      %4827 = vrot.lane.b32.xlu0 %v4788, 12
      %v4828 = vpop.permute.xlu0 %4827
      %4829 = vrot.lane.b32.xlu0 %v4789, 12
      %v4830 = vpop.permute.xlu0 %4829
      %4831 = vrot.lane.b32.xlu0 %v4790, 12
      %v4832 = vpop.permute.xlu0 %4831
      %4833 = vrot.lane.b32.xlu0 %v4791, 12
      %v4834 = vpop.permute.xlu0 %4833
      %4835 = vrot.lane.b32.xlu0 %v4792, 12
      %v4836 = vpop.permute.xlu0 %4835
      %4837 = vrot.lane.b32.xlu0 %v4793, 12
      %v4838 = vpop.permute.xlu0 %4837
      %4839 = vrot.lane.b32.xlu0 %v4794, 12
      %v4840 = vpop.permute.xlu0 %4839
      %4841 = vrot.lane.b32.xlu0 %v4795, 12
      %v4842 = vpop.permute.xlu0 %4841
      %4843 = vrot.lane.b32.xlu0 %v4796, 12
      %v4844 = vpop.permute.xlu0 %4843
      %4845 = vrot.lane.b32.xlu0 %v4797, 12
      %v4846 = vpop.permute.xlu0 %4845
      %4847 = vrot.lane.b32.xlu0 %v4798, 12
      %v4848 = vpop.permute.xlu0 %4847
      %4849 = vrot.lane.b32.xlu0 %v4799, 12
      %v4850 = vpop.permute.xlu0 %4849
      %4851 = vrot.lane.b32.xlu0 %v4800, 12
      %v4852 = vpop.permute.xlu0 %4851
      %4853 = vrot.lane.b32.xlu0 %v4801, 12
      %v4854 = vpop.permute.xlu0 %4853
      %4855 = vrot.lane.b32.xlu0 %v4802, 12
      %v4856 = vpop.permute.xlu0 %4855
      %4857 = vrot.lane.b32.xlu0 %v4803, 12
      %v4858 = vpop.permute.xlu0 %4857
      %4859 = vrot.lane.b32.xlu0 %v4804, 12
      %v4860 = vpop.permute.xlu0 %4859
      %4861 = vrot.lane.b32.xlu0 %v4805, 12
      %v4862 = vpop.permute.xlu0 %4861
      %4863 = vrot.lane.b32.xlu0 %v4806, 12
      %v4864 = vpop.permute.xlu0 %4863
      %4865 = vrot.lane.b32.xlu0 %v4807, 12
      %v4866 = vpop.permute.xlu0 %4865
      %4867 = vrot.lane.b32.xlu0 %v4808, 12
      %v4868 = vpop.permute.xlu0 %4867
      %4869 = vrot.lane.b32.xlu0 %v4809, 12
      %v4870 = vpop.permute.xlu0 %4869
      %4871 = vrot.lane.b32.xlu0 %v4810, 12
      %v4872 = vpop.permute.xlu0 %4871
      %4873 = vrot.lane.b32.xlu0 %v4811, 12
      %v4874 = vpop.permute.xlu0 %4873
      %4875 = vrot.lane.b32.xlu0 %v4812, 12
      %v4876 = vpop.permute.xlu0 %4875
      %v4877 = vrot.slane %v2044, 7
      %v4878 = vrot.slane %v2045, 7
      %v4879 = vsel %vm4476, %v4877, %v4878
      %v4880 = vrot.slane %v2046, 7
      %v4881 = vrot.slane %v2047, 7
      %v4882 = vsel %vm4476, %v4880, %v4881
      %v4883 = vrot.slane %v2048, 7
      %v4884 = vrot.slane %v2049, 7
      %v4885 = vsel %vm4476, %v4883, %v4884
      %v4886 = vrot.slane %v2050, 7
      %v4887 = vrot.slane %v2051, 7
      %v4888 = vsel %vm4476, %v4886, %v4887
      %v4889 = vrot.slane %v2052, 7
      %v4890 = vrot.slane %v2053, 7
      %v4891 = vsel %vm4476, %v4889, %v4890
      %v4892 = vrot.slane %v2054, 7
      %v4893 = vrot.slane %v2055, 7
      %v4894 = vsel %vm4476, %v4892, %v4893
      %v4895 = vrot.slane %v2056, 7
      %v4896 = vrot.slane %v2057, 7
      %v4897 = vsel %vm4476, %v4895, %v4896
      %v4898 = vrot.slane %v2058, 7
      %v4899 = vrot.slane %v2059, 7
      %v4900 = vsel %vm4476, %v4898, %v4899
      %v4901 = vrot.slane %v2060, 7
      %v4902 = vrot.slane %v2061, 7
      %v4903 = vsel %vm4476, %v4901, %v4902
      %v4904 = vrot.slane %v2062, 7
      %v4905 = vrot.slane %v2063, 7
      %v4906 = vsel %vm4476, %v4904, %v4905
      %v4907 = vrot.slane %v2064, 7
      %v4908 = vrot.slane %v2065, 7
      %v4909 = vsel %vm4476, %v4907, %v4908
      %v4910 = vrot.slane %v2066, 7
      %v4911 = vrot.slane %v2067, 7
      %v4912 = vsel %vm4476, %v4910, %v4911
      %v4913 = vrot.slane %v2068, 7
      %v4914 = vrot.slane %v2069, 7
      %v4915 = vsel %vm4476, %v4913, %v4914
      %v4916 = vrot.slane %v2070, 7
      %v4917 = vrot.slane %v2071, 7
      %v4918 = vsel %vm4476, %v4916, %v4917
      %v4919 = vrot.slane %v2072, 7
      %v4920 = vrot.slane %v2073, 7
      %v4921 = vsel %vm4476, %v4919, %v4920
      %v4922 = vrot.slane %v2074, 7
      %v4923 = vrot.slane %v2075, 7
      %v4924 = vsel %vm4476, %v4922, %v4923
      %4925 = vrot.lane.b32.xlu0 %v4877, 16
      %v4926 = vpop.permute.xlu0 %4925
      %4927 = vrot.lane.b32.xlu0 %v4879, 16
      %v4928 = vpop.permute.xlu0 %4927
      %4929 = vrot.lane.b32.xlu0 %v4880, 16
      %v4930 = vpop.permute.xlu0 %4929
      %4931 = vrot.lane.b32.xlu0 %v4882, 16
      %v4932 = vpop.permute.xlu0 %4931
      %4933 = vrot.lane.b32.xlu0 %v4883, 16
      %v4934 = vpop.permute.xlu0 %4933
      %4935 = vrot.lane.b32.xlu0 %v4885, 16
      %v4936 = vpop.permute.xlu0 %4935
      %4937 = vrot.lane.b32.xlu0 %v4886, 16
      %v4938 = vpop.permute.xlu0 %4937
      %4939 = vrot.lane.b32.xlu0 %v4888, 16
      %v4940 = vpop.permute.xlu0 %4939
      %4941 = vrot.lane.b32.xlu0 %v4889, 16
      %v4942 = vpop.permute.xlu0 %4941
      %4943 = vrot.lane.b32.xlu0 %v4891, 16
      %v4944 = vpop.permute.xlu0 %4943
      %4945 = vrot.lane.b32.xlu0 %v4892, 16
      %v4946 = vpop.permute.xlu0 %4945
      %4947 = vrot.lane.b32.xlu0 %v4894, 16
      %v4948 = vpop.permute.xlu0 %4947
      %4949 = vrot.lane.b32.xlu0 %v4895, 16
      %v4950 = vpop.permute.xlu0 %4949
      %4951 = vrot.lane.b32.xlu0 %v4897, 16
      %v4952 = vpop.permute.xlu0 %4951
      %4953 = vrot.lane.b32.xlu0 %v4898, 16
      %v4954 = vpop.permute.xlu0 %4953
      %4955 = vrot.lane.b32.xlu0 %v4900, 16
      %v4956 = vpop.permute.xlu0 %4955
      %4957 = vrot.lane.b32.xlu0 %v4901, 16
      %v4958 = vpop.permute.xlu0 %4957
      %4959 = vrot.lane.b32.xlu0 %v4903, 16
      %v4960 = vpop.permute.xlu0 %4959
      %4961 = vrot.lane.b32.xlu0 %v4904, 16
      %v4962 = vpop.permute.xlu0 %4961
      %4963 = vrot.lane.b32.xlu0 %v4906, 16
      %v4964 = vpop.permute.xlu0 %4963
      %4965 = vrot.lane.b32.xlu0 %v4907, 16
      %v4966 = vpop.permute.xlu0 %4965
      %4967 = vrot.lane.b32.xlu0 %v4909, 16
      %v4968 = vpop.permute.xlu0 %4967
      %4969 = vrot.lane.b32.xlu0 %v4910, 16
      %v4970 = vpop.permute.xlu0 %4969
      %4971 = vrot.lane.b32.xlu0 %v4912, 16
      %v4972 = vpop.permute.xlu0 %4971
      %4973 = vrot.lane.b32.xlu0 %v4913, 16
      %v4974 = vpop.permute.xlu0 %4973
      %4975 = vrot.lane.b32.xlu0 %v4915, 16
      %v4976 = vpop.permute.xlu0 %4975
      %4977 = vrot.lane.b32.xlu0 %v4916, 16
      %v4978 = vpop.permute.xlu0 %4977
      %4979 = vrot.lane.b32.xlu0 %v4918, 16
      %v4980 = vpop.permute.xlu0 %4979
      %4981 = vrot.lane.b32.xlu0 %v4919, 16
      %v4982 = vpop.permute.xlu0 %4981
      %4983 = vrot.lane.b32.xlu0 %v4921, 16
      %v4984 = vpop.permute.xlu0 %4983
      %4985 = vrot.lane.b32.xlu0 %v4922, 16
      %v4986 = vpop.permute.xlu0 %4985
      %4987 = vrot.lane.b32.xlu0 %v4924, 16
      %v4988 = vpop.permute.xlu0 %4987
      %v5005 = vunpack.c.l.b16 %v4088
      %v5006 = vunpack.c.l.b16 %v4089
      %v5007 = vunpack.c.l.b16 %v4090
      %v5008 = vunpack.c.l.b16 %v4091
      %v5009 = vunpack.c.l.b16 %v4092
      %v5010 = vunpack.c.l.b16 %v4093
      %v5011 = vunpack.c.l.b16 %v4094
      %v5012 = vunpack.c.l.b16 %v4095
      %v5013 = vunpack.c.l.b16 %v4096
      %v5014 = vunpack.c.l.b16 %v4097
      %v5015 = vunpack.c.l.b16 %v4098
      %v5016 = vunpack.c.l.b16 %v4099
      %v5017 = vunpack.c.l.b16 %v4100
      %v5018 = vunpack.c.l.b16 %v4101
      %v5019 = vunpack.c.l.b16 %v4102
      %v5020 = vunpack.c.l.b16 %v4103
      %v5021 = vpack.c.b16 %v5005, %v1997
      %v5022 = vpack.c.b16 %v5006, %v2000
      %v5023 = vpack.c.b16 %v5007, %v2003
      %v5024 = vpack.c.b16 %v5008, %v2006
      %v5025 = vpack.c.b16 %v5009, %v2009
      %v5026 = vpack.c.b16 %v5010, %v2012
      %v5027 = vpack.c.b16 %v5011, %v2015
      %v5028 = vpack.c.b16 %v5012, %v2018
      %v5029 = vpack.c.b16 %v5013, %v2021
      %v5030 = vpack.c.b16 %v5014, %v2024
      %v5031 = vpack.c.b16 %v5015, %v2027
      %v5032 = vpack.c.b16 %v5016, %v2030
      %v5033 = vpack.c.b16 %v5017, %v2033
      %v5034 = vpack.c.b16 %v5018, %v2036
      %v5035 = vpack.c.b16 %v5019, %v2039
      %v5036 = vpack.c.b16 %v5020, %v2042
      %v5037 = vrot.slane %v5021, 6
      %v5038 = vrot.slane %v5022, 6
      %v5039 = vrot.slane %v5023, 6
      %v5040 = vrot.slane %v5024, 6
      %v5041 = vrot.slane %v5025, 6
      %v5042 = vrot.slane %v5026, 6
      %v5043 = vrot.slane %v5027, 6
      %v5044 = vrot.slane %v5028, 6
      %v5045 = vrot.slane %v5029, 6
      %v5046 = vrot.slane %v5030, 6
      %v5047 = vrot.slane %v5031, 6
      %v5048 = vrot.slane %v5032, 6
      %v5049 = vrot.slane %v5033, 6
      %v5050 = vrot.slane %v5034, 6
      %v5051 = vrot.slane %v5035, 6
      %v5052 = vrot.slane %v5036, 6
      %5053 = vrot.lane.b32.xlu0 %v5037, 20
      %v5054 = vpop.permute.xlu0 %5053
      %5055 = vrot.lane.b32.xlu0 %v5038, 20
      %v5056 = vpop.permute.xlu0 %5055
      %5057 = vrot.lane.b32.xlu0 %v5039, 20
      %v5058 = vpop.permute.xlu0 %5057
      %5059 = vrot.lane.b32.xlu0 %v5040, 20
      %v5060 = vpop.permute.xlu0 %5059
      %5061 = vrot.lane.b32.xlu0 %v5041, 20
      %v5062 = vpop.permute.xlu0 %5061
      %5063 = vrot.lane.b32.xlu0 %v5042, 20
      %v5064 = vpop.permute.xlu0 %5063
      %5065 = vrot.lane.b32.xlu0 %v5043, 20
      %v5066 = vpop.permute.xlu0 %5065
      %5067 = vrot.lane.b32.xlu0 %v5044, 20
      %v5068 = vpop.permute.xlu0 %5067
      %5069 = vrot.lane.b32.xlu0 %v5045, 20
      %v5070 = vpop.permute.xlu0 %5069
      %5071 = vrot.lane.b32.xlu0 %v5046, 20
      %v5072 = vpop.permute.xlu0 %5071
      %5073 = vrot.lane.b32.xlu0 %v5047, 20
      %v5074 = vpop.permute.xlu0 %5073
      %5075 = vrot.lane.b32.xlu0 %v5048, 20
      %v5076 = vpop.permute.xlu0 %5075
      %5077 = vrot.lane.b32.xlu0 %v5049, 20
      %v5078 = vpop.permute.xlu0 %5077
      %5079 = vrot.lane.b32.xlu0 %v5050, 20
      %v5080 = vpop.permute.xlu0 %5079
      %5081 = vrot.lane.b32.xlu0 %v5051, 20
      %v5082 = vpop.permute.xlu0 %5081
      %5083 = vrot.lane.b32.xlu0 %v5052, 20
      %v5084 = vpop.permute.xlu0 %5083
      %v5133 = vunpack.c.l.b16 %v4108
      %v5134 = vunpack.c.l.b16 %v4109
      %v5135 = vunpack.c.l.b16 %v4110
      %v5136 = vunpack.c.l.b16 %v4111
      %v5137 = vunpack.c.l.b16 %v4112
      %v5138 = vunpack.c.l.b16 %v4113
      %v5139 = vunpack.c.l.b16 %v4114
      %v5140 = vunpack.c.l.b16 %v4115
      %v5141 = vunpack.c.l.b16 %v4116
      %v5142 = vunpack.c.l.b16 %v4117
      %v5143 = vunpack.c.l.b16 %v4118
      %v5144 = vunpack.c.l.b16 %v4119
      %v5145 = vunpack.c.l.b16 %v4120
      %v5146 = vunpack.c.l.b16 %v4121
      %v5147 = vunpack.c.l.b16 %v4122
      %v5148 = vunpack.c.l.b16 %v4123
      %v5149 = vunpack.c.l.b16 %v4124
      %v5150 = vunpack.c.l.b16 %v4125
      %v5151 = vunpack.c.l.b16 %v4126
      %v5152 = vunpack.c.l.b16 %v4127
      %v5153 = vunpack.c.l.b16 %v4128
      %v5154 = vunpack.c.l.b16 %v4129
      %v5155 = vunpack.c.l.b16 %v4130
      %v5156 = vunpack.c.l.b16 %v4131
      %v5157 = vunpack.c.l.b16 %v4132
      %v5158 = vunpack.c.l.b16 %v4133
      %v5159 = vunpack.c.l.b16 %v4134
      %v5160 = vunpack.c.l.b16 %v4135
      %v5161 = vunpack.c.l.b16 %v4136
      %v5162 = vunpack.c.l.b16 %v4137
      %v5163 = vunpack.c.l.b16 %v4138
      %v5164 = vunpack.c.l.b16 %v4139
      %v5165 = vunpack.c.l.b16 %v4140
      %v5166 = vunpack.c.l.b16 %v4141
      %v5167 = vunpack.c.l.b16 %v4142
      %v5168 = vunpack.c.l.b16 %v4143
      %v5169 = vunpack.c.l.b16 %v4144
      %v5170 = vunpack.c.l.b16 %v4145
      %v5171 = vunpack.c.l.b16 %v4146
      %v5172 = vunpack.c.l.b16 %v4147
      %v5173 = vunpack.c.l.b16 %v4148
      %v5174 = vunpack.c.l.b16 %v4149
      %v5175 = vunpack.c.l.b16 %v4150
      %v5176 = vunpack.c.l.b16 %v4151
      %v5177 = vunpack.c.l.b16 %v4152
      %v5178 = vunpack.c.l.b16 %v4153
      %v5179 = vunpack.c.l.b16 %v4154
      %v5180 = vunpack.c.l.b16 %v4155
      %v5181 = vpack.c.b16 %v5134, %v5133
      %v5182 = vpack.c.b16 %v5135, %v5135
      %v5183 = vpack.c.b16 %v5137, %v5136
      %v5184 = vpack.c.b16 %v5138, %v5138
      %v5185 = vpack.c.b16 %v5140, %v5139
      %v5186 = vpack.c.b16 %v5141, %v5141
      %v5187 = vpack.c.b16 %v5143, %v5142
      %v5188 = vpack.c.b16 %v5144, %v5144
      %v5189 = vpack.c.b16 %v5146, %v5145
      %v5190 = vpack.c.b16 %v5147, %v5147
      %v5191 = vpack.c.b16 %v5149, %v5148
      %v5192 = vpack.c.b16 %v5150, %v5150
      %v5193 = vpack.c.b16 %v5152, %v5151
      %v5194 = vpack.c.b16 %v5153, %v5153
      %v5195 = vpack.c.b16 %v5155, %v5154
      %v5196 = vpack.c.b16 %v5156, %v5156
      %v5197 = vpack.c.b16 %v5158, %v5157
      %v5198 = vpack.c.b16 %v5159, %v5159
      %v5199 = vpack.c.b16 %v5161, %v5160
      %v5200 = vpack.c.b16 %v5162, %v5162
      %v5201 = vpack.c.b16 %v5164, %v5163
      %v5202 = vpack.c.b16 %v5165, %v5165
      %v5203 = vpack.c.b16 %v5167, %v5166
      %v5204 = vpack.c.b16 %v5168, %v5168
      %v5205 = vpack.c.b16 %v5170, %v5169
      %v5206 = vpack.c.b16 %v5171, %v5171
      %v5207 = vpack.c.b16 %v5173, %v5172
      %v5208 = vpack.c.b16 %v5174, %v5174
      %v5209 = vpack.c.b16 %v5176, %v5175
      %v5210 = vpack.c.b16 %v5177, %v5177
      %v5211 = vpack.c.b16 %v5179, %v5178
      %v5212 = vpack.c.b16 %v5180, %v5180
      %5213 = vrot.lane.b32.xlu0 %v5181, 24
      %v5214 = vpop.permute.xlu0 %5213
      %5215 = vrot.lane.b32.xlu0 %v5182, 24
      %v5216 = vpop.permute.xlu0 %5215
      %5217 = vrot.lane.b32.xlu0 %v5183, 24
      %v5218 = vpop.permute.xlu0 %5217
      %5219 = vrot.lane.b32.xlu0 %v5184, 24
      %v5220 = vpop.permute.xlu0 %5219
      %5221 = vrot.lane.b32.xlu0 %v5185, 24
      %v5222 = vpop.permute.xlu0 %5221
      %5223 = vrot.lane.b32.xlu0 %v5186, 24
      %v5224 = vpop.permute.xlu0 %5223
      %5225 = vrot.lane.b32.xlu0 %v5187, 24
      %v5226 = vpop.permute.xlu0 %5225
      %5227 = vrot.lane.b32.xlu0 %v5188, 24
      %v5228 = vpop.permute.xlu0 %5227
      %5229 = vrot.lane.b32.xlu0 %v5189, 24
      %v5230 = vpop.permute.xlu0 %5229
      %5231 = vrot.lane.b32.xlu0 %v5190, 24
      %v5232 = vpop.permute.xlu0 %5231
      %5233 = vrot.lane.b32.xlu0 %v5191, 24
      %v5234 = vpop.permute.xlu0 %5233
      %5235 = vrot.lane.b32.xlu0 %v5192, 24
      %v5236 = vpop.permute.xlu0 %5235
      %5237 = vrot.lane.b32.xlu0 %v5193, 24
      %v5238 = vpop.permute.xlu0 %5237
      %5239 = vrot.lane.b32.xlu0 %v5194, 24
      %v5240 = vpop.permute.xlu0 %5239
      %5241 = vrot.lane.b32.xlu0 %v5195, 24
      %v5242 = vpop.permute.xlu0 %5241
      %5243 = vrot.lane.b32.xlu0 %v5196, 24
      %v5244 = vpop.permute.xlu0 %5243
      %5245 = vrot.lane.b32.xlu0 %v5197, 24
      %v5246 = vpop.permute.xlu0 %5245
      %5247 = vrot.lane.b32.xlu0 %v5198, 24
      %v5248 = vpop.permute.xlu0 %5247
      %5249 = vrot.lane.b32.xlu0 %v5199, 24
      %v5250 = vpop.permute.xlu0 %5249
      %5251 = vrot.lane.b32.xlu0 %v5200, 24
      %v5252 = vpop.permute.xlu0 %5251
      %5253 = vrot.lane.b32.xlu0 %v5201, 24
      %v5254 = vpop.permute.xlu0 %5253
      %5255 = vrot.lane.b32.xlu0 %v5202, 24
      %v5256 = vpop.permute.xlu0 %5255
      %5257 = vrot.lane.b32.xlu0 %v5203, 24
      %v5258 = vpop.permute.xlu0 %5257
      %5259 = vrot.lane.b32.xlu0 %v5204, 24
      %v5260 = vpop.permute.xlu0 %5259
      %5261 = vrot.lane.b32.xlu0 %v5205, 24
      %v5262 = vpop.permute.xlu0 %5261
      %5263 = vrot.lane.b32.xlu0 %v5206, 24
      %v5264 = vpop.permute.xlu0 %5263
      %5265 = vrot.lane.b32.xlu0 %v5207, 24
      %v5266 = vpop.permute.xlu0 %5265
      %5267 = vrot.lane.b32.xlu0 %v5208, 24
      %v5268 = vpop.permute.xlu0 %5267
      %5269 = vrot.lane.b32.xlu0 %v5209, 24
      %v5270 = vpop.permute.xlu0 %5269
      %5271 = vrot.lane.b32.xlu0 %v5210, 24
      %v5272 = vpop.permute.xlu0 %5271
      %5273 = vrot.lane.b32.xlu0 %v5211, 24
      %v5274 = vpop.permute.xlu0 %5273
      %5275 = vrot.lane.b32.xlu0 %v5212, 24
      %v5276 = vpop.permute.xlu0 %5275
      %v5325 = vunpack.c.l.b16 %v4156
      %v5326 = vunpack.c.l.b16 %v4157
      %v5327 = vunpack.c.l.b16 %v4158
      %v5328 = vunpack.c.l.b16 %v4159
      %v5329 = vunpack.c.l.b16 %v4160
      %v5330 = vunpack.c.l.b16 %v4161
      %v5331 = vunpack.c.l.b16 %v4162
      %v5332 = vunpack.c.l.b16 %v4163
      %v5333 = vunpack.c.l.b16 %v4164
      %v5334 = vunpack.c.l.b16 %v4165
      %v5335 = vunpack.c.l.b16 %v4166
      %v5336 = vunpack.c.l.b16 %v4167
      %v5337 = vunpack.c.l.b16 %v4168
      %v5338 = vunpack.c.l.b16 %v4169
      %v5339 = vunpack.c.l.b16 %v4170
      %v5340 = vunpack.c.l.b16 %v4171
      %v5341 = vunpack.c.l.b16 %v4172
      %v5342 = vunpack.c.l.b16 %v4173
      %v5343 = vunpack.c.l.b16 %v4174
      %v5344 = vunpack.c.l.b16 %v4175
      %v5345 = vunpack.c.l.b16 %v4176
      %v5346 = vunpack.c.l.b16 %v4177
      %v5347 = vunpack.c.l.b16 %v4178
      %v5348 = vunpack.c.l.b16 %v4179
      %v5349 = vunpack.c.l.b16 %v4180
      %v5350 = vunpack.c.l.b16 %v4181
      %v5351 = vunpack.c.l.b16 %v4182
      %v5352 = vunpack.c.l.b16 %v4183
      %v5353 = vunpack.c.l.b16 %v4184
      %v5354 = vunpack.c.l.b16 %v4185
      %v5355 = vunpack.c.l.b16 %v4186
      %v5356 = vunpack.c.l.b16 %v4187
      %v5357 = vunpack.c.l.b16 %v4188
      %v5358 = vunpack.c.l.b16 %v4189
      %v5359 = vunpack.c.l.b16 %v4190
      %v5360 = vunpack.c.l.b16 %v4191
      %v5361 = vunpack.c.l.b16 %v4192
      %v5362 = vunpack.c.l.b16 %v4193
      %v5363 = vunpack.c.l.b16 %v4194
      %v5364 = vunpack.c.l.b16 %v4195
      %v5365 = vunpack.c.l.b16 %v4196
      %v5366 = vunpack.c.l.b16 %v4197
      %v5367 = vunpack.c.l.b16 %v4198
      %v5368 = vunpack.c.l.b16 %v4199
      %v5369 = vunpack.c.l.b16 %v4200
      %v5370 = vunpack.c.l.b16 %v4201
      %v5371 = vunpack.c.l.b16 %v4202
      %v5372 = vunpack.c.l.b16 %v4203
      %v5373 = vpack.c.b16 %v5326, %v5325
      %v5374 = vpack.c.b16 %v5327, %v5327
      %v5375 = vpack.c.b16 %v5329, %v5328
      %v5376 = vpack.c.b16 %v5330, %v5330
      %v5377 = vpack.c.b16 %v5332, %v5331
      %v5378 = vpack.c.b16 %v5333, %v5333
      %v5379 = vpack.c.b16 %v5335, %v5334
      %v5380 = vpack.c.b16 %v5336, %v5336
      %v5381 = vpack.c.b16 %v5338, %v5337
      %v5382 = vpack.c.b16 %v5339, %v5339
      %v5383 = vpack.c.b16 %v5341, %v5340
      %v5384 = vpack.c.b16 %v5342, %v5342
      %v5385 = vpack.c.b16 %v5344, %v5343
      %v5386 = vpack.c.b16 %v5345, %v5345
      %v5387 = vpack.c.b16 %v5347, %v5346
      %v5388 = vpack.c.b16 %v5348, %v5348
      %v5389 = vpack.c.b16 %v5350, %v5349
      %v5390 = vpack.c.b16 %v5351, %v5351
      %v5391 = vpack.c.b16 %v5353, %v5352
      %v5392 = vpack.c.b16 %v5354, %v5354
      %v5393 = vpack.c.b16 %v5356, %v5355
      %v5394 = vpack.c.b16 %v5357, %v5357
      %v5395 = vpack.c.b16 %v5359, %v5358
      %v5396 = vpack.c.b16 %v5360, %v5360
      %v5397 = vpack.c.b16 %v5362, %v5361
      %v5398 = vpack.c.b16 %v5363, %v5363
      %v5399 = vpack.c.b16 %v5365, %v5364
      %v5400 = vpack.c.b16 %v5366, %v5366
      %v5401 = vpack.c.b16 %v5368, %v5367
      %v5402 = vpack.c.b16 %v5369, %v5369
      %v5403 = vpack.c.b16 %v5371, %v5370
      %v5404 = vpack.c.b16 %v5372, %v5372
      %v5405 = vrot.slane %v5373, 7
      %v5406 = vrot.slane %v5374, 7
      %v5407 = vsel %vm4476, %v5405, %v5406
      %v5408 = vrot.slane %v5375, 7
      %v5409 = vrot.slane %v5376, 7
      %v5410 = vsel %vm4476, %v5408, %v5409
      %v5411 = vrot.slane %v5377, 7
      %v5412 = vrot.slane %v5378, 7
      %v5413 = vsel %vm4476, %v5411, %v5412
      %v5414 = vrot.slane %v5379, 7
      %v5415 = vrot.slane %v5380, 7
      %v5416 = vsel %vm4476, %v5414, %v5415
      %v5417 = vrot.slane %v5381, 7
      %v5418 = vrot.slane %v5382, 7
      %v5419 = vsel %vm4476, %v5417, %v5418
      %v5420 = vrot.slane %v5383, 7
      %v5421 = vrot.slane %v5384, 7
      %v5422 = vsel %vm4476, %v5420, %v5421
      %v5423 = vrot.slane %v5385, 7
      %v5424 = vrot.slane %v5386, 7
      %v5425 = vsel %vm4476, %v5423, %v5424
      %v5426 = vrot.slane %v5387, 7
      %v5427 = vrot.slane %v5388, 7
      %v5428 = vsel %vm4476, %v5426, %v5427
      %v5429 = vrot.slane %v5389, 7
      %v5430 = vrot.slane %v5390, 7
      %v5431 = vsel %vm4476, %v5429, %v5430
      %v5432 = vrot.slane %v5391, 7
      %v5433 = vrot.slane %v5392, 7
      %v5434 = vsel %vm4476, %v5432, %v5433
      %v5435 = vrot.slane %v5393, 7
      %v5436 = vrot.slane %v5394, 7
      %v5437 = vsel %vm4476, %v5435, %v5436
      %v5438 = vrot.slane %v5395, 7
      %v5439 = vrot.slane %v5396, 7
      %v5440 = vsel %vm4476, %v5438, %v5439
      %v5441 = vrot.slane %v5397, 7
      %v5442 = vrot.slane %v5398, 7
      %v5443 = vsel %vm4476, %v5441, %v5442
      %v5444 = vrot.slane %v5399, 7
      %v5445 = vrot.slane %v5400, 7
      %v5446 = vsel %vm4476, %v5444, %v5445
      %v5447 = vrot.slane %v5401, 7
      %v5448 = vrot.slane %v5402, 7
      %v5449 = vsel %vm4476, %v5447, %v5448
      %v5450 = vrot.slane %v5403, 7
      %v5451 = vrot.slane %v5404, 7
      %v5452 = vsel %vm4476, %v5450, %v5451
      %5453 = vrot.lane.b32.xlu0 %v5405, 28
      %v5454 = vpop.permute.xlu0 %5453
      %5455 = vrot.lane.b32.xlu0 %v5407, 28
      %v5456 = vpop.permute.xlu0 %5455
      %5457 = vrot.lane.b32.xlu0 %v5408, 28
      %v5458 = vpop.permute.xlu0 %5457
      %5459 = vrot.lane.b32.xlu0 %v5410, 28
      %v5460 = vpop.permute.xlu0 %5459
      %5461 = vrot.lane.b32.xlu0 %v5411, 28
      %v5462 = vpop.permute.xlu0 %5461
      %5463 = vrot.lane.b32.xlu0 %v5413, 28
      %v5464 = vpop.permute.xlu0 %5463
      %5465 = vrot.lane.b32.xlu0 %v5414, 28
      %v5466 = vpop.permute.xlu0 %5465
      %5467 = vrot.lane.b32.xlu0 %v5416, 28
      %v5468 = vpop.permute.xlu0 %5467
      %5469 = vrot.lane.b32.xlu0 %v5417, 28
      %v5470 = vpop.permute.xlu0 %5469
      %5471 = vrot.lane.b32.xlu0 %v5419, 28
      %v5472 = vpop.permute.xlu0 %5471
      %5473 = vrot.lane.b32.xlu0 %v5420, 28
      %v5474 = vpop.permute.xlu0 %5473
      %5475 = vrot.lane.b32.xlu0 %v5422, 28
      %v5476 = vpop.permute.xlu0 %5475
      %5477 = vrot.lane.b32.xlu0 %v5423, 28
      %v5478 = vpop.permute.xlu0 %5477
      %5479 = vrot.lane.b32.xlu0 %v5425, 28
      %v5480 = vpop.permute.xlu0 %5479
      %5481 = vrot.lane.b32.xlu0 %v5426, 28
      %v5482 = vpop.permute.xlu0 %5481
      %5483 = vrot.lane.b32.xlu0 %v5428, 28
      %v5484 = vpop.permute.xlu0 %5483
      %5485 = vrot.lane.b32.xlu0 %v5429, 28
      %v5486 = vpop.permute.xlu0 %5485
      %5487 = vrot.lane.b32.xlu0 %v5431, 28
      %v5488 = vpop.permute.xlu0 %5487
      %5489 = vrot.lane.b32.xlu0 %v5432, 28
      %v5490 = vpop.permute.xlu0 %5489
      %5491 = vrot.lane.b32.xlu0 %v5434, 28
      %v5492 = vpop.permute.xlu0 %5491
      %5493 = vrot.lane.b32.xlu0 %v5435, 28
      %v5494 = vpop.permute.xlu0 %5493
      %5495 = vrot.lane.b32.xlu0 %v5437, 28
      %v5496 = vpop.permute.xlu0 %5495
      %5497 = vrot.lane.b32.xlu0 %v5438, 28
      %v5498 = vpop.permute.xlu0 %5497
      %5499 = vrot.lane.b32.xlu0 %v5440, 28
      %v5500 = vpop.permute.xlu0 %5499
      %5501 = vrot.lane.b32.xlu0 %v5441, 28
      %v5502 = vpop.permute.xlu0 %5501
      %5503 = vrot.lane.b32.xlu0 %v5443, 28
      %v5504 = vpop.permute.xlu0 %5503
      %5505 = vrot.lane.b32.xlu0 %v5444, 28
      %v5506 = vpop.permute.xlu0 %5505
      %5507 = vrot.lane.b32.xlu0 %v5446, 28
      %v5508 = vpop.permute.xlu0 %5507
      %5509 = vrot.lane.b32.xlu0 %v5447, 28
      %v5510 = vpop.permute.xlu0 %5509
      %5511 = vrot.lane.b32.xlu0 %v5449, 28
      %v5512 = vpop.permute.xlu0 %5511
      %5513 = vrot.lane.b32.xlu0 %v5450, 28
      %v5514 = vpop.permute.xlu0 %5513
      %5515 = vrot.lane.b32.xlu0 %v5452, 28
      %v5516 = vpop.permute.xlu0 %5515
      %v5533 = vunpack.c.l.b16 %v4204
      %v5534 = vunpack.c.l.b16 %v4205
      %v5535 = vunpack.c.l.b16 %v4206
      %v5536 = vunpack.c.l.b16 %v4207
      %v5537 = vunpack.c.l.b16 %v4208
      %v5538 = vunpack.c.l.b16 %v4209
      %v5539 = vunpack.c.l.b16 %v4210
      %v5540 = vunpack.c.l.b16 %v4211
      %v5541 = vunpack.c.l.b16 %v4212
      %v5542 = vunpack.c.l.b16 %v4213
      %v5543 = vunpack.c.l.b16 %v4214
      %v5544 = vunpack.c.l.b16 %v4215
      %v5545 = vunpack.c.l.b16 %v4216
      %v5546 = vunpack.c.l.b16 %v4217
      %v5547 = vunpack.c.l.b16 %v4218
      %v5548 = vunpack.c.l.b16 %v4219
      %v5549 = vpack.c.b16 %v5533, %v5326
      %v5550 = vpack.c.b16 %v5534, %v5329
      %v5551 = vpack.c.b16 %v5535, %v5332
      %v5552 = vpack.c.b16 %v5536, %v5335
      %v5553 = vpack.c.b16 %v5537, %v5338
      %v5554 = vpack.c.b16 %v5538, %v5341
      %v5555 = vpack.c.b16 %v5539, %v5344
      %v5556 = vpack.c.b16 %v5540, %v5347
      %v5557 = vpack.c.b16 %v5541, %v5350
      %v5558 = vpack.c.b16 %v5542, %v5353
      %v5559 = vpack.c.b16 %v5543, %v5356
      %v5560 = vpack.c.b16 %v5544, %v5359
      %v5561 = vpack.c.b16 %v5545, %v5362
      %v5562 = vpack.c.b16 %v5546, %v5365
      %v5563 = vpack.c.b16 %v5547, %v5368
      %v5564 = vpack.c.b16 %v5548, %v5371
      %v5565 = vrot.slane %v5549, 6
      %v5566 = vrot.slane %v5550, 6
      %v5567 = vrot.slane %v5551, 6
      %v5568 = vrot.slane %v5552, 6
      %v5569 = vrot.slane %v5553, 6
      %v5570 = vrot.slane %v5554, 6
      %v5571 = vrot.slane %v5555, 6
      %v5572 = vrot.slane %v5556, 6
      %v5573 = vrot.slane %v5557, 6
      %v5574 = vrot.slane %v5558, 6
      %v5575 = vrot.slane %v5559, 6
      %v5576 = vrot.slane %v5560, 6
      %v5577 = vrot.slane %v5561, 6
      %v5578 = vrot.slane %v5562, 6
      %v5579 = vrot.slane %v5563, 6
      %v5580 = vrot.slane %v5564, 6
      %5581 = vrot.lane.b32.xlu0 %v5565, 32
      %v5582 = vpop.permute.xlu0 %5581
      %5583 = vrot.lane.b32.xlu0 %v5566, 32
      %v5584 = vpop.permute.xlu0 %5583
      %5585 = vrot.lane.b32.xlu0 %v5567, 32
      %v5586 = vpop.permute.xlu0 %5585
      %5587 = vrot.lane.b32.xlu0 %v5568, 32
      %v5588 = vpop.permute.xlu0 %5587
      %5589 = vrot.lane.b32.xlu0 %v5569, 32
      %v5590 = vpop.permute.xlu0 %5589
      %5591 = vrot.lane.b32.xlu0 %v5570, 32
      %v5592 = vpop.permute.xlu0 %5591
      %5593 = vrot.lane.b32.xlu0 %v5571, 32
      %v5594 = vpop.permute.xlu0 %5593
      %5595 = vrot.lane.b32.xlu0 %v5572, 32
      %v5596 = vpop.permute.xlu0 %5595
      %5597 = vrot.lane.b32.xlu0 %v5573, 32
      %v5598 = vpop.permute.xlu0 %5597
      %5599 = vrot.lane.b32.xlu0 %v5574, 32
      %v5600 = vpop.permute.xlu0 %5599
      %5601 = vrot.lane.b32.xlu0 %v5575, 32
      %v5602 = vpop.permute.xlu0 %5601
      %5603 = vrot.lane.b32.xlu0 %v5576, 32
      %v5604 = vpop.permute.xlu0 %5603
      %5605 = vrot.lane.b32.xlu0 %v5577, 32
      %v5606 = vpop.permute.xlu0 %5605
      %5607 = vrot.lane.b32.xlu0 %v5578, 32
      %v5608 = vpop.permute.xlu0 %5607
      %5609 = vrot.lane.b32.xlu0 %v5579, 32
      %v5610 = vpop.permute.xlu0 %5609
      %5611 = vrot.lane.b32.xlu0 %v5580, 32
      %v5612 = vpop.permute.xlu0 %5611
      %v5615 = vsel %vm589, %v4316, %v4526
      %v5618 = vsel %vm589, %v4317, %v4528
      %v5621 = vsel %vm589, %v4318, %v4530
      %v5624 = vsel %vm589, %v4319, %v4532
      %v5627 = vsel %vm589, %v4320, %v4534
      %v5630 = vsel %vm589, %v4321, %v4536
      %v5633 = vsel %vm589, %v4322, %v4538
      %v5636 = vsel %vm589, %v4323, %v4540
      %v5639 = vsel %vm589, %v4324, %v4542
      %v5642 = vsel %vm589, %v4325, %v4544
      %v5645 = vsel %vm589, %v4326, %v4546
      %v5648 = vsel %vm589, %v4327, %v4548
      %v5651 = vsel %vm589, %v4328, %v4550
      %v5654 = vsel %vm589, %v4329, %v4552
      %v5657 = vsel %vm589, %v4330, %v4554
      %v5660 = vsel %vm589, %v4331, %v4556
      %v5663 = vsel %vm589, %v4332, %v4558
      %v5666 = vsel %vm589, %v4333, %v4560
      %v5669 = vsel %vm589, %v4334, %v4562
      %v5672 = vsel %vm589, %v4335, %v4564
      %v5675 = vsel %vm589, %v4336, %v4566
      %v5678 = vsel %vm589, %v4337, %v4568
      %v5681 = vsel %vm589, %v4338, %v4570
      %v5684 = vsel %vm589, %v4339, %v4572
      %v5687 = vsel %vm589, %v4340, %v4574
      %v5690 = vsel %vm589, %v4341, %v4576
      %v5693 = vsel %vm589, %v4342, %v4578
      %v5696 = vsel %vm589, %v4343, %v4580
      %v5699 = vsel %vm589, %v4344, %v4582
      %v5702 = vsel %vm589, %v4345, %v4584
      %v5705 = vsel %vm589, %v4346, %v4586
      %v5708 = vsel %vm589, %v4347, %v4588
      %v5710 = vsel %vm3100, %v5615, %v4654
      %v5711 = vsel %vm3100, %v5618, %v4654
      %v5713 = vsel %vm3100, %v5621, %v4656
      %v5714 = vsel %vm3100, %v5624, %v4656
      %v5716 = vsel %vm3100, %v5627, %v4658
      %v5717 = vsel %vm3100, %v5630, %v4658
      %v5719 = vsel %vm3100, %v5633, %v4660
      %v5720 = vsel %vm3100, %v5636, %v4660
      %v5722 = vsel %vm3100, %v5639, %v4662
      %v5723 = vsel %vm3100, %v5642, %v4662
      %v5725 = vsel %vm3100, %v5645, %v4664
      %v5726 = vsel %vm3100, %v5648, %v4664
      %v5728 = vsel %vm3100, %v5651, %v4666
      %v5729 = vsel %vm3100, %v5654, %v4666
      %v5731 = vsel %vm3100, %v5657, %v4668
      %v5732 = vsel %vm3100, %v5660, %v4668
      %v5734 = vsel %vm3100, %v5663, %v4670
      %v5735 = vsel %vm3100, %v5666, %v4670
      %v5737 = vsel %vm3100, %v5669, %v4672
      %v5738 = vsel %vm3100, %v5672, %v4672
      %v5740 = vsel %vm3100, %v5675, %v4674
      %v5741 = vsel %vm3100, %v5678, %v4674
      %v5743 = vsel %vm3100, %v5681, %v4676
      %v5744 = vsel %vm3100, %v5684, %v4676
      %v5746 = vsel %vm3100, %v5687, %v4678
      %v5747 = vsel %vm3100, %v5690, %v4678
      %v5749 = vsel %vm3100, %v5693, %v4680
      %v5750 = vsel %vm3100, %v5696, %v4680
      %v5752 = vsel %vm3100, %v5699, %v4682
      %v5753 = vsel %vm3100, %v5702, %v4682
      %v5755 = vsel %vm3100, %v5705, %v4684
      %v5756 = vsel %vm3100, %v5708, %v4684
      %v5758 = vsel %vm3165, %v5710, %v4814
      %v5760 = vsel %vm3165, %v5711, %v4816
      %v5762 = vsel %vm3165, %v5713, %v4818
      %v5764 = vsel %vm3165, %v5714, %v4820
      %v5766 = vsel %vm3165, %v5716, %v4822
      %v5768 = vsel %vm3165, %v5717, %v4824
      %v5770 = vsel %vm3165, %v5719, %v4826
      %v5772 = vsel %vm3165, %v5720, %v4828
      %v5774 = vsel %vm3165, %v5722, %v4830
      %v5776 = vsel %vm3165, %v5723, %v4832
      %v5778 = vsel %vm3165, %v5725, %v4834
      %v5780 = vsel %vm3165, %v5726, %v4836
      %v5782 = vsel %vm3165, %v5728, %v4838
      %v5784 = vsel %vm3165, %v5729, %v4840
      %v5786 = vsel %vm3165, %v5731, %v4842
      %v5788 = vsel %vm3165, %v5732, %v4844
      %v5790 = vsel %vm3165, %v5734, %v4846
      %v5792 = vsel %vm3165, %v5735, %v4848
      %v5794 = vsel %vm3165, %v5737, %v4850
      %v5796 = vsel %vm3165, %v5738, %v4852
      %v5798 = vsel %vm3165, %v5740, %v4854
      %v5800 = vsel %vm3165, %v5741, %v4856
      %v5802 = vsel %vm3165, %v5743, %v4858
      %v5804 = vsel %vm3165, %v5744, %v4860
      %v5806 = vsel %vm3165, %v5746, %v4862
      %v5808 = vsel %vm3165, %v5747, %v4864
      %v5810 = vsel %vm3165, %v5749, %v4866
      %v5812 = vsel %vm3165, %v5750, %v4868
      %v5814 = vsel %vm3165, %v5752, %v4870
      %v5816 = vsel %vm3165, %v5753, %v4872
      %v5818 = vsel %vm3165, %v5755, %v4874
      %v5820 = vsel %vm3165, %v5756, %v4876
      %v5822 = vsel %vm3230, %v5758, %v4926
      %v5824 = vsel %vm3230, %v5760, %v4928
      %v5826 = vsel %vm3230, %v5762, %v4930
      %v5828 = vsel %vm3230, %v5764, %v4932
      %v5830 = vsel %vm3230, %v5766, %v4934
      %v5832 = vsel %vm3230, %v5768, %v4936
      %v5834 = vsel %vm3230, %v5770, %v4938
      %v5836 = vsel %vm3230, %v5772, %v4940
      %v5838 = vsel %vm3230, %v5774, %v4942
      %v5840 = vsel %vm3230, %v5776, %v4944
      %v5842 = vsel %vm3230, %v5778, %v4946
      %v5844 = vsel %vm3230, %v5780, %v4948
      %v5846 = vsel %vm3230, %v5782, %v4950
      %v5848 = vsel %vm3230, %v5784, %v4952
      %v5850 = vsel %vm3230, %v5786, %v4954
      %v5852 = vsel %vm3230, %v5788, %v4956
      %v5854 = vsel %vm3230, %v5790, %v4958
      %v5856 = vsel %vm3230, %v5792, %v4960
      %v5858 = vsel %vm3230, %v5794, %v4962
      %v5860 = vsel %vm3230, %v5796, %v4964
      %v5862 = vsel %vm3230, %v5798, %v4966
      %v5864 = vsel %vm3230, %v5800, %v4968
      %v5866 = vsel %vm3230, %v5802, %v4970
      %v5868 = vsel %vm3230, %v5804, %v4972
      %v5870 = vsel %vm3230, %v5806, %v4974
      %v5872 = vsel %vm3230, %v5808, %v4976
      %v5874 = vsel %vm3230, %v5810, %v4978
      %v5876 = vsel %vm3230, %v5812, %v4980
      %v5878 = vsel %vm3230, %v5814, %v4982
      %v5880 = vsel %vm3230, %v5816, %v4984
      %v5882 = vsel %vm3230, %v5818, %v4986
      %v5884 = vsel %vm3230, %v5820, %v4988
      %v5886 = vsel %vm3295, %v5822, %v5054
      %v5887 = vsel %vm3295, %v5824, %v5054
      %v5889 = vsel %vm3295, %v5826, %v5056
      %v5890 = vsel %vm3295, %v5828, %v5056
      %v5892 = vsel %vm3295, %v5830, %v5058
      %v5893 = vsel %vm3295, %v5832, %v5058
      %v5895 = vsel %vm3295, %v5834, %v5060
      %v5896 = vsel %vm3295, %v5836, %v5060
      %v5898 = vsel %vm3295, %v5838, %v5062
      %v5899 = vsel %vm3295, %v5840, %v5062
      %v5901 = vsel %vm3295, %v5842, %v5064
      %v5902 = vsel %vm3295, %v5844, %v5064
      %v5904 = vsel %vm3295, %v5846, %v5066
      %v5905 = vsel %vm3295, %v5848, %v5066
      %v5907 = vsel %vm3295, %v5850, %v5068
      %v5908 = vsel %vm3295, %v5852, %v5068
      %v5910 = vsel %vm3295, %v5854, %v5070
      %v5911 = vsel %vm3295, %v5856, %v5070
      %v5913 = vsel %vm3295, %v5858, %v5072
      %v5914 = vsel %vm3295, %v5860, %v5072
      %v5916 = vsel %vm3295, %v5862, %v5074
      %v5917 = vsel %vm3295, %v5864, %v5074
      %v5919 = vsel %vm3295, %v5866, %v5076
      %v5920 = vsel %vm3295, %v5868, %v5076
      %v5922 = vsel %vm3295, %v5870, %v5078
      %v5923 = vsel %vm3295, %v5872, %v5078
      %v5925 = vsel %vm3295, %v5874, %v5080
      %v5926 = vsel %vm3295, %v5876, %v5080
      %v5928 = vsel %vm3295, %v5878, %v5082
      %v5929 = vsel %vm3295, %v5880, %v5082
      %v5931 = vsel %vm3295, %v5882, %v5084
      %v5932 = vsel %vm3295, %v5884, %v5084
      %v5934 = vsel %vm3360, %v5886, %v5214
      %v5936 = vsel %vm3360, %v5887, %v5216
      %v5938 = vsel %vm3360, %v5889, %v5218
      %v5940 = vsel %vm3360, %v5890, %v5220
      %v5942 = vsel %vm3360, %v5892, %v5222
      %v5944 = vsel %vm3360, %v5893, %v5224
      %v5946 = vsel %vm3360, %v5895, %v5226
      %v5948 = vsel %vm3360, %v5896, %v5228
      %v5950 = vsel %vm3360, %v5898, %v5230
      %v5952 = vsel %vm3360, %v5899, %v5232
      %v5954 = vsel %vm3360, %v5901, %v5234
      %v5956 = vsel %vm3360, %v5902, %v5236
      %v5958 = vsel %vm3360, %v5904, %v5238
      %v5960 = vsel %vm3360, %v5905, %v5240
      %v5962 = vsel %vm3360, %v5907, %v5242
      %v5964 = vsel %vm3360, %v5908, %v5244
      %v5966 = vsel %vm3360, %v5910, %v5246
      %v5968 = vsel %vm3360, %v5911, %v5248
      %v5970 = vsel %vm3360, %v5913, %v5250
      %v5972 = vsel %vm3360, %v5914, %v5252
      %v5974 = vsel %vm3360, %v5916, %v5254
      %v5976 = vsel %vm3360, %v5917, %v5256
      %v5978 = vsel %vm3360, %v5919, %v5258
      %v5980 = vsel %vm3360, %v5920, %v5260
      %v5982 = vsel %vm3360, %v5922, %v5262
      %v5984 = vsel %vm3360, %v5923, %v5264
      %v5986 = vsel %vm3360, %v5925, %v5266
      %v5988 = vsel %vm3360, %v5926, %v5268
      %v5990 = vsel %vm3360, %v5928, %v5270
      %v5992 = vsel %vm3360, %v5929, %v5272
      %v5994 = vsel %vm3360, %v5931, %v5274
      %v5996 = vsel %vm3360, %v5932, %v5276
      %v5998 = vsel %vm3425, %v5934, %v5454
      %v6000 = vsel %vm3425, %v5936, %v5456
      %v6002 = vsel %vm3425, %v5938, %v5458
      %v6004 = vsel %vm3425, %v5940, %v5460
      %v6006 = vsel %vm3425, %v5942, %v5462
      %v6008 = vsel %vm3425, %v5944, %v5464
      %v6010 = vsel %vm3425, %v5946, %v5466
      %v6012 = vsel %vm3425, %v5948, %v5468
      %v6014 = vsel %vm3425, %v5950, %v5470
      %v6016 = vsel %vm3425, %v5952, %v5472
      %v6018 = vsel %vm3425, %v5954, %v5474
      %v6020 = vsel %vm3425, %v5956, %v5476
      %v6022 = vsel %vm3425, %v5958, %v5478
      %v6024 = vsel %vm3425, %v5960, %v5480
      %v6026 = vsel %vm3425, %v5962, %v5482
      %v6028 = vsel %vm3425, %v5964, %v5484
      %v6030 = vsel %vm3425, %v5966, %v5486
      %v6032 = vsel %vm3425, %v5968, %v5488
      %v6034 = vsel %vm3425, %v5970, %v5490
      %v6036 = vsel %vm3425, %v5972, %v5492
      %v6038 = vsel %vm3425, %v5974, %v5494
      %v6040 = vsel %vm3425, %v5976, %v5496
      %v6042 = vsel %vm3425, %v5978, %v5498
      %v6044 = vsel %vm3425, %v5980, %v5500
      %v6046 = vsel %vm3425, %v5982, %v5502
      %v6048 = vsel %vm3425, %v5984, %v5504
      %v6050 = vsel %vm3425, %v5986, %v5506
      %v6052 = vsel %vm3425, %v5988, %v5508
      %v6054 = vsel %vm3425, %v5990, %v5510
      %v6056 = vsel %vm3425, %v5992, %v5512
      %v6058 = vsel %vm3425, %v5994, %v5514
      %v6060 = vsel %vm3425, %v5996, %v5516
      %v6062 = vsel %vm3490, %v5998, %v5582
      %v6063 = vsel %vm3490, %v6000, %v5582
      %v6065 = vsel %vm3490, %v6002, %v5584
      %v6066 = vsel %vm3490, %v6004, %v5584
      %v6068 = vsel %vm3490, %v6006, %v5586
      %v6069 = vsel %vm3490, %v6008, %v5586
      %v6071 = vsel %vm3490, %v6010, %v5588
      %v6072 = vsel %vm3490, %v6012, %v5588
      %v6074 = vsel %vm3490, %v6014, %v5590
      %v6075 = vsel %vm3490, %v6016, %v5590
      %v6077 = vsel %vm3490, %v6018, %v5592
      %v6078 = vsel %vm3490, %v6020, %v5592
      %v6080 = vsel %vm3490, %v6022, %v5594
      %v6081 = vsel %vm3490, %v6024, %v5594
      %v6083 = vsel %vm3490, %v6026, %v5596
      %v6084 = vsel %vm3490, %v6028, %v5596
      %v6086 = vsel %vm3490, %v6030, %v5598
      %v6087 = vsel %vm3490, %v6032, %v5598
      %v6089 = vsel %vm3490, %v6034, %v5600
      %v6090 = vsel %vm3490, %v6036, %v5600
      %v6092 = vsel %vm3490, %v6038, %v5602
      %v6093 = vsel %vm3490, %v6040, %v5602
      %v6095 = vsel %vm3490, %v6042, %v5604
      %v6096 = vsel %vm3490, %v6044, %v5604
      %v6098 = vsel %vm3490, %v6046, %v5606
      %v6099 = vsel %vm3490, %v6048, %v5606
      %v6101 = vsel %vm3490, %v6050, %v5608
      %v6102 = vsel %vm3490, %v6052, %v5608
      %v6104 = vsel %vm3490, %v6054, %v5610
      %v6105 = vsel %vm3490, %v6056, %v5610
      %v6107 = vsel %vm3490, %v6058, %v5612
      %v6108 = vsel %vm3490, %v6060, %v5612
      %vm6141 = vcmask 1045504
      %v6142 = vrot.slane %v6062, 2
      %v6143 = vrot.slane %v6063, 2
      %v6144 = vsel %vm6141, %v6142, %v6143
      %v6145 = vrot.slane %v6065, 2
      %v6146 = vrot.slane %v6066, 2
      %v6147 = vsel %vm6141, %v6145, %v6146
      %v6148 = vrot.slane %v6068, 2
      %v6149 = vrot.slane %v6069, 2
      %v6150 = vsel %vm6141, %v6148, %v6149
      %v6151 = vrot.slane %v6071, 2
      %v6152 = vrot.slane %v6072, 2
      %v6153 = vsel %vm6141, %v6151, %v6152
      %v6154 = vrot.slane %v6074, 2
      %v6155 = vrot.slane %v6075, 2
      %v6156 = vsel %vm6141, %v6154, %v6155
      %v6157 = vrot.slane %v6077, 2
      %v6158 = vrot.slane %v6078, 2
      %v6159 = vsel %vm6141, %v6157, %v6158
      %v6160 = vrot.slane %v6080, 2
      %v6161 = vrot.slane %v6081, 2
      %v6162 = vsel %vm6141, %v6160, %v6161
      %v6163 = vrot.slane %v6083, 2
      %v6164 = vrot.slane %v6084, 2
      %v6165 = vsel %vm6141, %v6163, %v6164
      %v6166 = vrot.slane %v6086, 2
      %v6167 = vrot.slane %v6087, 2
      %v6168 = vsel %vm6141, %v6166, %v6167
      %v6169 = vrot.slane %v6089, 2
      %v6170 = vrot.slane %v6090, 2
      %v6171 = vsel %vm6141, %v6169, %v6170
      %v6172 = vrot.slane %v6092, 2
      %v6173 = vrot.slane %v6093, 2
      %v6174 = vsel %vm6141, %v6172, %v6173
      %v6175 = vrot.slane %v6095, 2
      %v6176 = vrot.slane %v6096, 2
      %v6177 = vsel %vm6141, %v6175, %v6176
      %v6178 = vrot.slane %v6098, 2
      %v6179 = vrot.slane %v6099, 2
      %v6180 = vsel %vm6141, %v6178, %v6179
      %v6181 = vrot.slane %v6101, 2
      %v6182 = vrot.slane %v6102, 2
      %v6183 = vsel %vm6141, %v6181, %v6182
      %v6184 = vrot.slane %v6104, 2
      %v6185 = vrot.slane %v6105, 2
      %v6186 = vsel %vm6141, %v6184, %v6185
      %v6187 = vrot.slane %v6107, 2
      %v6188 = vrot.slane %v6108, 2
      %v6189 = vsel %vm6141, %v6187, %v6188
      %s6190 = scalar_lea.vmem %s3, 20
      %v6191 = vld [vmem:[%s6190] sm:$0xf]
      %v6192 = vld [vmem:[%s6190 + $0x4] sm:$0xf]
      %v6193 = vld [vmem:[%s6190 + $0x8] sm:$0xf]
      %v6194 = vld [vmem:[%s6190 + $0xc] sm:$0xf]
      %v6195 = vld [vmem:[%s6190 + $0x10] sm:$0x3]
      %s6196 = scalar_lea.vmem %s4, 1
      %v6197 = vld [vmem:[%s6196] sm:$0x1]
      %v6199 = vlaneseq
      %v6200 = vshrl.u32 %v6199, 7
      %v6201 = vsub.s32 0, %v6200
      %v6202 = vrot.slane %v6197, %v6201
      %v6209 = vunpack.c.l.b16 %v6191
      %v6210 = vunpack.c.l.b16 %v6192
      %v6211 = vunpack.c.l.b16 %v6193
      %v6212 = vunpack.c.l.b16 %v6194
      %v6213 = vunpack.c.l.b16 %v6195
      %v6214 = vpack.c.b16 %v6210, %v6209
      %v6215 = vpack.c.b16 %v6212, %v6211
      %v6216 = vpack.c.b16 %v6213, %v6213
      %v6220 = vsel %vm3663, %v6144, 0
      %v6223 = vsel %vm3663, %v6147, 0
      %v6226 = vsel %vm3663, %v6150, 0
      %v6229 = vsel %vm3663, %v6153, 0
      %v6232 = vsel %vm3663, %v6156, 0
      %v6235 = vsel %vm3663, %v6159, 0
      %v6238 = vsel %vm3663, %v6162, 0
      %v6241 = vsel %vm3663, %v6165, 0
      %v6244 = vsel %vm3663, %v6168, 0
      %v6247 = vsel %vm3663, %v6171, 0
      %v6250 = vsel %vm3663, %v6174, 0
      %v6253 = vsel %vm3663, %v6177, 0
      %v6256 = vsel %vm3663, %v6180, 0
      %v6259 = vsel %vm3663, %v6183, 0
      %v6262 = vsel %vm3663, %v6186, 0
      %v6265 = vsel %vm3663, %v6189, 0
      %v6268 = vsel %vm638, %v6216, 0
      %6270 = vmatprep.subr.bf16.mxu0 0
      %6271 = vmatpush1.bf16.msra.mxu0 %v6214
      %6272 = vmatprep.subr.bf16.mxu0 0
      %6273 = vmatpush1.bf16.msra.mxu0 %v6215
      %6274 = vmatprep.subr.bf16.mxu0 0
      %6275 = vmatpush1.bf16.msra.mxu0 %v6268
      %6276 = vmatprep.subr.bf16.mxu0 0
      %6277 = vmatpush1.bf16.msra.mxu0 0
      %6278 = vmatprep.subr.bf16.mxu0 0
      %6279 = vmatpush1.bf16.msra.mxu0 0
      %6280 = vmatprep.subr.bf16.mxu0 0
      %6281 = vmatpush1.bf16.msra.mxu0 0
      %6282 = vmatprep.subr.bf16.mxu0 0
      %6283 = vmatpush1.bf16.msra.mxu0 0
      %6284 = vmatprep.subr.bf16.mxu0 0
      %6285 = vmatpush1.bf16.msra.mxu0 0
      %6286 = vmatprep.subr.bf16.mxu0 0
      %6287 = vmatpush1.bf16.msra.mxu0 0
      %6288 = vmatprep.subr.bf16.mxu0 0
      %6289 = vmatpush1.bf16.msra.mxu0 0
      %6290 = vmatprep.subr.bf16.mxu0 0
      %6291 = vmatpush1.bf16.msra.mxu0 0
      %6292 = vmatprep.subr.bf16.mxu0 0
      %6293 = vmatpush1.bf16.msra.mxu0 0
      %6294 = vmatprep.subr.bf16.mxu0 0
      %6295 = vmatpush1.bf16.msra.mxu0 0
      %6296 = vmatprep.subr.bf16.mxu0 0
      %6297 = vmatpush1.bf16.msra.mxu0 0
      %6298 = vmatprep.subr.bf16.mxu0 0
      %6299 = vmatpush1.bf16.msra.mxu0 0
      %6300 = vmatprep.subr.bf16.mxu0 0
      %6301 = vmatpush1.bf16.msra.mxu0 0
      %6302 = vmatprep.mubr.bf16.mxu0 0
      %6303 = vmatmul.mubr.bf16.gmra.mrb[0].mxu0 %v6220
      %v6304 = vpop.f32.mrb[0].mxu0
      %v6305 = vadd.f32 %v6202, %v6304
      %v6306 = vpop.f32.mrb[0].mxu0
      %v6307 = vpop.f32.mrb[0].mxu0
      %v6308 = vadd.f32 %v6202, %v6307
      %v6309 = vpop.f32.mrb[0].mxu0
      %6310 = vmatprep.mubr.bf16.mxu0 0
      %6311 = vmatmul.mubr.bf16.gmra.mrb[0].mxu0 %v6223
      %v6312 = vpop.f32.mrb[0].mxu0
      %v6313 = vadd.f32 %v6202, %v6312
      %v6314 = vpop.f32.mrb[0].mxu0
      %v6315 = vpop.f32.mrb[0].mxu0
      %v6316 = vadd.f32 %v6202, %v6315
      %v6317 = vpop.f32.mrb[0].mxu0
      %6318 = vmatprep.mubr.bf16.mxu0 0
      %6319 = vmatmul.mubr.bf16.gmra.mrb[0].mxu0 %v6226
      %v6320 = vpop.f32.mrb[0].mxu0
      %v6321 = vadd.f32 %v6202, %v6320
      %v6322 = vpop.f32.mrb[0].mxu0
      %v6323 = vpop.f32.mrb[0].mxu0
      %v6324 = vadd.f32 %v6202, %v6323
      %v6325 = vpop.f32.mrb[0].mxu0
      %6326 = vmatprep.mubr.bf16.mxu0 0
      %6327 = vmatmul.mubr.bf16.gmra.mrb[0].mxu0 %v6229
      %v6328 = vpop.f32.mrb[0].mxu0
      %v6329 = vadd.f32 %v6202, %v6328
      %v6330 = vpop.f32.mrb[0].mxu0
      %v6331 = vpop.f32.mrb[0].mxu0
      %v6332 = vadd.f32 %v6202, %v6331
      %v6333 = vpop.f32.mrb[0].mxu0
      %6334 = vmatprep.mubr.bf16.mxu0 0
      %6335 = vmatmul.mubr.bf16.gmra.mrb[0].mxu0 %v6232
      %v6336 = vpop.f32.mrb[0].mxu0
      %v6337 = vadd.f32 %v6202, %v6336
      %v6338 = vpop.f32.mrb[0].mxu0
      %v6339 = vpop.f32.mrb[0].mxu0
      %v6340 = vadd.f32 %v6202, %v6339
      %v6341 = vpop.f32.mrb[0].mxu0
      %6342 = vmatprep.mubr.bf16.mxu0 0
      %6343 = vmatmul.mubr.bf16.gmra.mrb[0].mxu0 %v6235
      %v6344 = vpop.f32.mrb[0].mxu0
      %v6345 = vadd.f32 %v6202, %v6344
      %v6346 = vpop.f32.mrb[0].mxu0
      %v6347 = vpop.f32.mrb[0].mxu0
      %v6348 = vadd.f32 %v6202, %v6347
      %v6349 = vpop.f32.mrb[0].mxu0
      %6350 = vmatprep.mubr.bf16.mxu0 0
      %6351 = vmatmul.mubr.bf16.gmra.mrb[0].mxu0 %v6238
      %v6352 = vpop.f32.mrb[0].mxu0
      %v6353 = vadd.f32 %v6202, %v6352
      %v6354 = vpop.f32.mrb[0].mxu0
      %v6355 = vpop.f32.mrb[0].mxu0
      %v6356 = vadd.f32 %v6202, %v6355
      %v6357 = vpop.f32.mrb[0].mxu0
      %6358 = vmatprep.mubr.bf16.mxu0 0
      %6359 = vmatmul.mubr.bf16.gmra.mrb[0].mxu0 %v6241
      %v6360 = vpop.f32.mrb[0].mxu0
      %v6361 = vadd.f32 %v6202, %v6360
      %v6362 = vpop.f32.mrb[0].mxu0
      %v6363 = vpop.f32.mrb[0].mxu0
      %v6364 = vadd.f32 %v6202, %v6363
      %v6365 = vpop.f32.mrb[0].mxu0
      %6366 = vmatprep.mubr.bf16.mxu0 0
      %6367 = vmatmul.mubr.bf16.gmra.mrb[0].mxu0 %v6244
      %v6368 = vpop.f32.mrb[0].mxu0
      %v6369 = vadd.f32 %v6202, %v6368
      %v6370 = vpop.f32.mrb[0].mxu0
      %v6371 = vpop.f32.mrb[0].mxu0
      %v6372 = vadd.f32 %v6202, %v6371
      %v6373 = vpop.f32.mrb[0].mxu0
      %6374 = vmatprep.mubr.bf16.mxu0 0
      %6375 = vmatmul.mubr.bf16.gmra.mrb[0].mxu0 %v6247
      %v6376 = vpop.f32.mrb[0].mxu0
      %v6377 = vadd.f32 %v6202, %v6376
      %v6378 = vpop.f32.mrb[0].mxu0
      %v6379 = vpop.f32.mrb[0].mxu0
      %v6380 = vadd.f32 %v6202, %v6379
      %v6381 = vpop.f32.mrb[0].mxu0
      %6382 = vmatprep.mubr.bf16.mxu0 0
      %6383 = vmatmul.mubr.bf16.gmra.mrb[0].mxu0 %v6250
      %v6384 = vpop.f32.mrb[0].mxu0
      %v6385 = vadd.f32 %v6202, %v6384
      %v6386 = vpop.f32.mrb[0].mxu0
      %v6387 = vpop.f32.mrb[0].mxu0
      %v6388 = vadd.f32 %v6202, %v6387
      %v6389 = vpop.f32.mrb[0].mxu0
      %6390 = vmatprep.mubr.bf16.mxu0 0
      %6391 = vmatmul.mubr.bf16.gmra.mrb[0].mxu0 %v6253
      %v6392 = vpop.f32.mrb[0].mxu0
      %v6393 = vadd.f32 %v6202, %v6392
      %v6394 = vpop.f32.mrb[0].mxu0
      %v6395 = vpop.f32.mrb[0].mxu0
      %v6396 = vadd.f32 %v6202, %v6395
      %v6397 = vpop.f32.mrb[0].mxu0
      %6398 = vmatprep.mubr.bf16.mxu0 0
      %6399 = vmatmul.mubr.bf16.gmra.mrb[0].mxu0 %v6256
      %v6400 = vpop.f32.mrb[0].mxu0
      %v6401 = vadd.f32 %v6202, %v6400
      %v6402 = vpop.f32.mrb[0].mxu0
      %v6403 = vpop.f32.mrb[0].mxu0
      %v6404 = vadd.f32 %v6202, %v6403
      %v6405 = vpop.f32.mrb[0].mxu0
      %6406 = vmatprep.mubr.bf16.mxu0 0
      %6407 = vmatmul.mubr.bf16.gmra.mrb[0].mxu0 %v6259
      %v6408 = vpop.f32.mrb[0].mxu0
      %v6409 = vadd.f32 %v6202, %v6408
      %v6410 = vpop.f32.mrb[0].mxu0
      %v6411 = vpop.f32.mrb[0].mxu0
      %v6412 = vadd.f32 %v6202, %v6411
      %v6413 = vpop.f32.mrb[0].mxu0
      %6414 = vmatprep.mubr.bf16.mxu0 0
      %6415 = vmatmul.mubr.bf16.gmra.mrb[0].mxu0 %v6262
      %v6416 = vpop.f32.mrb[0].mxu0
      %v6417 = vadd.f32 %v6202, %v6416
      %v6418 = vpop.f32.mrb[0].mxu0
      %v6419 = vpop.f32.mrb[0].mxu0
      %v6420 = vadd.f32 %v6202, %v6419
      %v6421 = vpop.f32.mrb[0].mxu0
      %6422 = vmatprep.mubr.bf16.mxu0 0
      %6423 = vmatmul.mubr.bf16.gmra.mrb[0].mxu0 %v6265
      %v6424 = vpop.f32.mrb[0].mxu0
      %v6425 = vadd.f32 %v6202, %v6424
      %v6426 = vpop.f32.mrb[0].mxu0
      %v6427 = vpop.f32.mrb[0].mxu0
      %v6428 = vadd.f32 %v6202, %v6427
      %v6429 = vpop.f32.mrb[0].mxu0
      %6430 = vdwg.mxu0
      %v6431 = vmax.f32 %v6305, 0.0
      %v6432 = vmax.f32 %v6308, 0.0
      %v6433 = vmax.f32 %v6313, 0.0
      %v6434 = vmax.f32 %v6316, 0.0
      %v6435 = vmax.f32 %v6321, 0.0
      %v6436 = vmax.f32 %v6324, 0.0
      %v6437 = vmax.f32 %v6329, 0.0
      %v6438 = vmax.f32 %v6332, 0.0
      %v6439 = vmax.f32 %v6337, 0.0
      %v6440 = vmax.f32 %v6340, 0.0
      %v6441 = vmax.f32 %v6345, 0.0
      %v6442 = vmax.f32 %v6348, 0.0
      %v6443 = vmax.f32 %v6353, 0.0
      %v6444 = vmax.f32 %v6356, 0.0
      %v6445 = vmax.f32 %v6361, 0.0
      %v6446 = vmax.f32 %v6364, 0.0
      %v6447 = vmax.f32 %v6369, 0.0
      %v6448 = vmax.f32 %v6372, 0.0
      %v6449 = vmax.f32 %v6377, 0.0
      %v6450 = vmax.f32 %v6380, 0.0
      %v6451 = vmax.f32 %v6385, 0.0
      %v6452 = vmax.f32 %v6388, 0.0
      %v6453 = vmax.f32 %v6393, 0.0
      %v6454 = vmax.f32 %v6396, 0.0
      %v6455 = vmax.f32 %v6401, 0.0
      %v6456 = vmax.f32 %v6404, 0.0
      %v6457 = vmax.f32 %v6409, 0.0
      %v6458 = vmax.f32 %v6412, 0.0
      %v6459 = vmax.f32 %v6417, 0.0
      %v6460 = vmax.f32 %v6420, 0.0
      %v6461 = vmax.f32 %v6425, 0.0
      %v6462 = vmax.f32 %v6428, 0.0
      %v6463 = vpack.c.bf16 %v6432, %v6431
      %v6464 = vpack.c.bf16 %v6434, %v6433
      %v6465 = vpack.c.bf16 %v6436, %v6435
      %v6466 = vpack.c.bf16 %v6438, %v6437
      %v6467 = vpack.c.bf16 %v6440, %v6439
      %v6468 = vpack.c.bf16 %v6442, %v6441
      %v6469 = vpack.c.bf16 %v6444, %v6443
      %v6470 = vpack.c.bf16 %v6446, %v6445
      %v6471 = vpack.c.bf16 %v6448, %v6447
      %v6472 = vpack.c.bf16 %v6450, %v6449
      %v6473 = vpack.c.bf16 %v6452, %v6451
      %v6474 = vpack.c.bf16 %v6454, %v6453
      %v6475 = vpack.c.bf16 %v6456, %v6455
      %v6476 = vpack.c.bf16 %v6458, %v6457
      %v6477 = vpack.c.bf16 %v6460, %v6459
      %v6478 = vpack.c.bf16 %v6462, %v6461
      %s6479 = smul.u32 %s317, 7
      %s6480 = smul.addr %s6479, 4
      %s6481 = scalar_lea.vmem %s302, %s6480
      %v6482 = vld [vmem:[%s6481] sm:$0xf]
      %v6483 = vld [vmem:[%s6481 + $0x4] sm:$0xf]
      %v6484 = vld [vmem:[%s6481 + $0x1c] sm:$0xf]
      %v6485 = vld [vmem:[%s6481 + $0x20] sm:$0xf]
      %v6486 = vld [vmem:[%s6481 + $0x38] sm:$0xf]
      %v6487 = vld [vmem:[%s6481 + $0x3c] sm:$0xf]
      %v6488 = vld [vmem:[%s6481 + $0x54] sm:$0xf]
      %v6489 = vld [vmem:[%s6481 + $0x58] sm:$0xf]
      %v6490 = vld [vmem:[%s6481 + $0x70] sm:$0xf]
      %v6491 = vld [vmem:[%s6481 + $0x74] sm:$0xf]
      %v6492 = vld [vmem:[%s6481 + $0x8c] sm:$0xf]
      %v6493 = vld [vmem:[%s6481 + $0x90] sm:$0xf]
      %v6494 = vld [vmem:[%s6481 + $0xa8] sm:$0xf]
      %v6495 = vld [vmem:[%s6481 + $0xac] sm:$0xf]
      %v6496 = vld [vmem:[%s6481 + $0xc4] sm:$0xf]
      %v6497 = vld [vmem:[%s6481 + $0xc8] sm:$0xf]
      %v6498 = vld [vmem:[%s6481 + $0xe0] sm:$0xf]
      %v6499 = vld [vmem:[%s6481 + $0xe4] sm:$0xf]
      %v6500 = vld [vmem:[%s6481 + $0xfc] sm:$0xf]
      %v6501 = vld [vmem:[%s6481 + $0x100] sm:$0xf]
      %v6502 = vld [vmem:[%s6481 + $0x118] sm:$0xf]
      %v6503 = vld [vmem:[%s6481 + $0x11c] sm:$0xf]
      %v6504 = vld [vmem:[%s6481 + $0x134] sm:$0xf]
      %v6505 = vld [vmem:[%s6481 + $0x138] sm:$0xf]
      %v6506 = vld [vmem:[%s6481 + $0x150] sm:$0xf]
      %v6507 = vld [vmem:[%s6481 + $0x154] sm:$0xf]
      %v6508 = vld [vmem:[%s6481 + $0x16c] sm:$0xf]
      %v6509 = vld [vmem:[%s6481 + $0x170] sm:$0xf]
      %v6510 = vld [vmem:[%s6481 + $0x188] sm:$0xf]
      %v6511 = vld [vmem:[%s6481 + $0x18c] sm:$0xf]
      %v6512 = vld [vmem:[%s6481 + $0x1a4] sm:$0xf]
      %v6513 = vld [vmem:[%s6481 + $0x1a8] sm:$0xf]
      %v6514 = vld [vmem:[%s6481 + $0x8] sm:$0xe]
      %v6515 = vld [vmem:[%s6481 + $0xc] sm:$0xf]
      %v6516 = vld [vmem:[%s6481 + $0x10] sm:$0x1]
      %v6517 = vld [vmem:[%s6481 + $0x24] sm:$0xe]
      %v6518 = vld [vmem:[%s6481 + $0x28] sm:$0xf]
      %v6519 = vld [vmem:[%s6481 + $0x2c] sm:$0x1]
      %v6520 = vld [vmem:[%s6481 + $0x40] sm:$0xe]
      %v6521 = vld [vmem:[%s6481 + $0x44] sm:$0xf]
      %v6522 = vld [vmem:[%s6481 + $0x48] sm:$0x1]
      %v6523 = vld [vmem:[%s6481 + $0x5c] sm:$0xe]
      %v6524 = vld [vmem:[%s6481 + $0x60] sm:$0xf]
      %v6525 = vld [vmem:[%s6481 + $0x64] sm:$0x1]
      %v6526 = vld [vmem:[%s6481 + $0x78] sm:$0xe]
      %v6527 = vld [vmem:[%s6481 + $0x7c] sm:$0xf]
      %v6528 = vld [vmem:[%s6481 + $0x80] sm:$0x1]
      %v6529 = vld [vmem:[%s6481 + $0x94] sm:$0xe]
      %v6530 = vld [vmem:[%s6481 + $0x98] sm:$0xf]
      %v6531 = vld [vmem:[%s6481 + $0x9c] sm:$0x1]
      %v6532 = vld [vmem:[%s6481 + $0xb0] sm:$0xe]
      %v6533 = vld [vmem:[%s6481 + $0xb4] sm:$0xf]
      %v6534 = vld [vmem:[%s6481 + $0xb8] sm:$0x1]
      %v6535 = vld [vmem:[%s6481 + $0xcc] sm:$0xe]
      %v6536 = vld [vmem:[%s6481 + $0xd0] sm:$0xf]
      %v6537 = vld [vmem:[%s6481 + $0xd4] sm:$0x1]
      %v6538 = vld [vmem:[%s6481 + $0xe8] sm:$0xe]
      %v6539 = vld [vmem:[%s6481 + $0xec] sm:$0xf]
      %v6540 = vld [vmem:[%s6481 + $0xf0] sm:$0x1]
      %v6541 = vld [vmem:[%s6481 + $0x104] sm:$0xe]
      %v6542 = vld [vmem:[%s6481 + $0x108] sm:$0xf]
      %v6543 = vld [vmem:[%s6481 + $0x10c] sm:$0x1]
      %v6544 = vld [vmem:[%s6481 + $0x120] sm:$0xe]
      %v6545 = vld [vmem:[%s6481 + $0x124] sm:$0xf]
      %v6546 = vld [vmem:[%s6481 + $0x128] sm:$0x1]
      %v6547 = vld [vmem:[%s6481 + $0x13c] sm:$0xe]
      %v6548 = vld [vmem:[%s6481 + $0x140] sm:$0xf]
      %v6549 = vld [vmem:[%s6481 + $0x144] sm:$0x1]
      %v6550 = vld [vmem:[%s6481 + $0x158] sm:$0xe]
      %v6551 = vld [vmem:[%s6481 + $0x15c] sm:$0xf]
      %v6552 = vld [vmem:[%s6481 + $0x160] sm:$0x1]
      %v6553 = vld [vmem:[%s6481 + $0x174] sm:$0xe]
      %v6554 = vld [vmem:[%s6481 + $0x178] sm:$0xf]
      %v6555 = vld [vmem:[%s6481 + $0x17c] sm:$0x1]
      %v6556 = vld [vmem:[%s6481 + $0x190] sm:$0xe]
      %v6557 = vld [vmem:[%s6481 + $0x194] sm:$0xf]
      %v6558 = vld [vmem:[%s6481 + $0x198] sm:$0x1]
      %v6559 = vld [vmem:[%s6481 + $0x1ac] sm:$0xe]
      %v6560 = vld [vmem:[%s6481 + $0x1b0] sm:$0xf]
      %v6561 = vld [vmem:[%s6481 + $0x1b4] sm:$0x1]
      %v6562 = vld [vmem:[%s6481 + $0x10] sm:$0xc]
      %v6563 = vld [vmem:[%s6481 + $0x14] sm:$0xf]
      %v6564 = vld [vmem:[%s6481 + $0x18] sm:$0x3]
      %v6565 = vld [vmem:[%s6481 + $0x2c] sm:$0xc]
      %v6566 = vld [vmem:[%s6481 + $0x30] sm:$0xf]
      %v6567 = vld [vmem:[%s6481 + $0x34] sm:$0x3]
      %v6568 = vld [vmem:[%s6481 + $0x48] sm:$0xc]
      %v6569 = vld [vmem:[%s6481 + $0x4c] sm:$0xf]
      %v6570 = vld [vmem:[%s6481 + $0x50] sm:$0x3]
      %v6571 = vld [vmem:[%s6481 + $0x64] sm:$0xc]
      %v6572 = vld [vmem:[%s6481 + $0x68] sm:$0xf]
      %v6573 = vld [vmem:[%s6481 + $0x6c] sm:$0x3]
      %v6574 = vld [vmem:[%s6481 + $0x80] sm:$0xc]
      %v6575 = vld [vmem:[%s6481 + $0x84] sm:$0xf]
      %v6576 = vld [vmem:[%s6481 + $0x88] sm:$0x3]
      %v6577 = vld [vmem:[%s6481 + $0x9c] sm:$0xc]
      %v6578 = vld [vmem:[%s6481 + $0xa0] sm:$0xf]
      %v6579 = vld [vmem:[%s6481 + $0xa4] sm:$0x3]
      %v6580 = vld [vmem:[%s6481 + $0xb8] sm:$0xc]
      %v6581 = vld [vmem:[%s6481 + $0xbc] sm:$0xf]
      %v6582 = vld [vmem:[%s6481 + $0xc0] sm:$0x3]
      %v6583 = vld [vmem:[%s6481 + $0xd4] sm:$0xc]
      %v6584 = vld [vmem:[%s6481 + $0xd8] sm:$0xf]
      %v6585 = vld [vmem:[%s6481 + $0xdc] sm:$0x3]
      %v6586 = vld [vmem:[%s6481 + $0xf0] sm:$0xc]
      %v6587 = vld [vmem:[%s6481 + $0xf4] sm:$0xf]
      %v6588 = vld [vmem:[%s6481 + $0xf8] sm:$0x3]
      %v6589 = vld [vmem:[%s6481 + $0x10c] sm:$0xc]
      %v6590 = vld [vmem:[%s6481 + $0x110] sm:$0xf]
      %v6591 = vld [vmem:[%s6481 + $0x114] sm:$0x3]
      %v6592 = vld [vmem:[%s6481 + $0x128] sm:$0xc]
      %v6593 = vld [vmem:[%s6481 + $0x12c] sm:$0xf]
      %v6594 = vld [vmem:[%s6481 + $0x130] sm:$0x3]
      %v6595 = vld [vmem:[%s6481 + $0x144] sm:$0xc]
      %v6596 = vld [vmem:[%s6481 + $0x148] sm:$0xf]
      %v6597 = vld [vmem:[%s6481 + $0x14c] sm:$0x3]
      %v6598 = vld [vmem:[%s6481 + $0x160] sm:$0xc]
      %v6599 = vld [vmem:[%s6481 + $0x164] sm:$0xf]
      %v6600 = vld [vmem:[%s6481 + $0x168] sm:$0x3]
      %v6601 = vld [vmem:[%s6481 + $0x17c] sm:$0xc]
      %v6602 = vld [vmem:[%s6481 + $0x180] sm:$0xf]
      %v6603 = vld [vmem:[%s6481 + $0x184] sm:$0x3]
      %v6604 = vld [vmem:[%s6481 + $0x198] sm:$0xc]
      %v6605 = vld [vmem:[%s6481 + $0x19c] sm:$0xf]
      %v6606 = vld [vmem:[%s6481 + $0x1a0] sm:$0x3]
      %v6607 = vld [vmem:[%s6481 + $0x1b4] sm:$0xc]
      %v6608 = vld [vmem:[%s6481 + $0x1b8] sm:$0xf]
      %v6609 = vld [vmem:[%s6481 + $0x1bc] sm:$0x3]
      %v6610 = vld [vmem:[%s321] sm:$0xf]
      %v6611 = vld [vmem:[%s321 + $0x4] sm:$0xf]
      %v6612 = vld [vmem:[%s321 + $0x1c] sm:$0xf]
      %v6613 = vld [vmem:[%s321 + $0x20] sm:$0xf]
      %v6614 = vld [vmem:[%s321 + $0x38] sm:$0xf]
      %v6615 = vld [vmem:[%s321 + $0x3c] sm:$0xf]
      %v6616 = vld [vmem:[%s321 + $0x54] sm:$0xf]
      %v6617 = vld [vmem:[%s321 + $0x58] sm:$0xf]
      %v6618 = vld [vmem:[%s321 + $0x70] sm:$0xf]
      %v6619 = vld [vmem:[%s321 + $0x74] sm:$0xf]
      %v6620 = vld [vmem:[%s321 + $0x8c] sm:$0xf]
      %v6621 = vld [vmem:[%s321 + $0x90] sm:$0xf]
      %v6622 = vld [vmem:[%s321 + $0xa8] sm:$0xf]
      %v6623 = vld [vmem:[%s321 + $0xac] sm:$0xf]
      %v6624 = vld [vmem:[%s321 + $0xc4] sm:$0xf]
      %v6625 = vld [vmem:[%s321 + $0xc8] sm:$0xf]
      %v6626 = vld [vmem:[%s321 + $0xe0] sm:$0xf]
      %v6627 = vld [vmem:[%s321 + $0xe4] sm:$0xf]
      %v6628 = vld [vmem:[%s321 + $0xfc] sm:$0xf]
      %v6629 = vld [vmem:[%s321 + $0x100] sm:$0xf]
      %v6630 = vld [vmem:[%s321 + $0x118] sm:$0xf]
      %v6631 = vld [vmem:[%s321 + $0x11c] sm:$0xf]
      %v6632 = vld [vmem:[%s321 + $0x134] sm:$0xf]
      %v6633 = vld [vmem:[%s321 + $0x138] sm:$0xf]
      %v6634 = vld [vmem:[%s321 + $0x150] sm:$0xf]
      %v6635 = vld [vmem:[%s321 + $0x154] sm:$0xf]
      %v6636 = vld [vmem:[%s321 + $0x16c] sm:$0xf]
      %v6637 = vld [vmem:[%s321 + $0x170] sm:$0xf]
      %v6638 = vld [vmem:[%s321 + $0x188] sm:$0xf]
      %v6639 = vld [vmem:[%s321 + $0x18c] sm:$0xf]
      %v6640 = vld [vmem:[%s321 + $0x1a4] sm:$0xf]
      %v6641 = vld [vmem:[%s321 + $0x1a8] sm:$0xf]
      %v6642 = vld [vmem:[%s321 + $0x10] sm:$0xc]
      %v6643 = vld [vmem:[%s321 + $0x14] sm:$0xf]
      %v6644 = vld [vmem:[%s321 + $0x18] sm:$0x3]
      %v6645 = vld [vmem:[%s321 + $0x2c] sm:$0xc]
      %v6646 = vld [vmem:[%s321 + $0x30] sm:$0xf]
      %v6647 = vld [vmem:[%s321 + $0x34] sm:$0x3]
      %v6648 = vld [vmem:[%s321 + $0x48] sm:$0xc]
      %v6649 = vld [vmem:[%s321 + $0x4c] sm:$0xf]
      %v6650 = vld [vmem:[%s321 + $0x50] sm:$0x3]
      %v6651 = vld [vmem:[%s321 + $0x64] sm:$0xc]
      %v6652 = vld [vmem:[%s321 + $0x68] sm:$0xf]
      %v6653 = vld [vmem:[%s321 + $0x6c] sm:$0x3]
      %v6654 = vld [vmem:[%s321 + $0x80] sm:$0xc]
      %v6655 = vld [vmem:[%s321 + $0x84] sm:$0xf]
      %v6656 = vld [vmem:[%s321 + $0x88] sm:$0x3]
      %v6657 = vld [vmem:[%s321 + $0x9c] sm:$0xc]
      %v6658 = vld [vmem:[%s321 + $0xa0] sm:$0xf]
      %v6659 = vld [vmem:[%s321 + $0xa4] sm:$0x3]
      %v6660 = vld [vmem:[%s321 + $0xb8] sm:$0xc]
      %v6661 = vld [vmem:[%s321 + $0xbc] sm:$0xf]
      %v6662 = vld [vmem:[%s321 + $0xc0] sm:$0x3]
      %v6663 = vld [vmem:[%s321 + $0xd4] sm:$0xc]
      %v6664 = vld [vmem:[%s321 + $0xd8] sm:$0xf]
      %v6665 = vld [vmem:[%s321 + $0xdc] sm:$0x3]
      %v6666 = vld [vmem:[%s321 + $0xf0] sm:$0xc]
      %v6667 = vld [vmem:[%s321 + $0xf4] sm:$0xf]
      %v6668 = vld [vmem:[%s321 + $0xf8] sm:$0x3]
      %v6669 = vld [vmem:[%s321 + $0x10c] sm:$0xc]
      %v6670 = vld [vmem:[%s321 + $0x110] sm:$0xf]
      %v6671 = vld [vmem:[%s321 + $0x114] sm:$0x3]
      %v6672 = vld [vmem:[%s321 + $0x128] sm:$0xc]
      %v6673 = vld [vmem:[%s321 + $0x12c] sm:$0xf]
      %v6674 = vld [vmem:[%s321 + $0x130] sm:$0x3]
      %v6675 = vld [vmem:[%s321 + $0x144] sm:$0xc]
      %v6676 = vld [vmem:[%s321 + $0x148] sm:$0xf]
      %v6677 = vld [vmem:[%s321 + $0x14c] sm:$0x3]
      %v6678 = vld [vmem:[%s321 + $0x160] sm:$0xc]
      %v6679 = vld [vmem:[%s321 + $0x164] sm:$0xf]
      %v6680 = vld [vmem:[%s321 + $0x168] sm:$0x3]
      %v6681 = vld [vmem:[%s321 + $0x17c] sm:$0xc]
      %v6682 = vld [vmem:[%s321 + $0x180] sm:$0xf]
      %v6683 = vld [vmem:[%s321 + $0x184] sm:$0x3]
      %v6684 = vld [vmem:[%s321 + $0x198] sm:$0xc]
      %v6685 = vld [vmem:[%s321 + $0x19c] sm:$0xf]
      %v6686 = vld [vmem:[%s321 + $0x1a0] sm:$0x3]
      %v6687 = vld [vmem:[%s321 + $0x1b4] sm:$0xc]
      %v6688 = vld [vmem:[%s321 + $0x1b8] sm:$0xf]
      %v6689 = vld [vmem:[%s321 + $0x1bc] sm:$0x3]
      %s6690 = sadd.s32 %s317, 36
      %s6691 = smul.u32 %s6690, 7
      %s6692 = smul.addr %s6691, 4
      %s6693 = scalar_lea.vmem %s302, %s6692
      %v6694 = vld [vmem:[%s6693] sm:$0xf]
      %v6695 = vld [vmem:[%s6693 + $0x4] sm:$0xf]
      %v6696 = vld [vmem:[%s6693 + $0x1c] sm:$0xf]
      %v6697 = vld [vmem:[%s6693 + $0x20] sm:$0xf]
      %v6698 = vld [vmem:[%s6693 + $0x38] sm:$0xf]
      %v6699 = vld [vmem:[%s6693 + $0x3c] sm:$0xf]
      %v6700 = vld [vmem:[%s6693 + $0x54] sm:$0xf]
      %v6701 = vld [vmem:[%s6693 + $0x58] sm:$0xf]
      %v6702 = vld [vmem:[%s6693 + $0x70] sm:$0xf]
      %v6703 = vld [vmem:[%s6693 + $0x74] sm:$0xf]
      %v6704 = vld [vmem:[%s6693 + $0x8c] sm:$0xf]
      %v6705 = vld [vmem:[%s6693 + $0x90] sm:$0xf]
      %v6706 = vld [vmem:[%s6693 + $0xa8] sm:$0xf]
      %v6707 = vld [vmem:[%s6693 + $0xac] sm:$0xf]
      %v6708 = vld [vmem:[%s6693 + $0xc4] sm:$0xf]
      %v6709 = vld [vmem:[%s6693 + $0xc8] sm:$0xf]
      %v6710 = vld [vmem:[%s6693 + $0xe0] sm:$0xf]
      %v6711 = vld [vmem:[%s6693 + $0xe4] sm:$0xf]
      %v6712 = vld [vmem:[%s6693 + $0xfc] sm:$0xf]
      %v6713 = vld [vmem:[%s6693 + $0x100] sm:$0xf]
      %v6714 = vld [vmem:[%s6693 + $0x118] sm:$0xf]
      %v6715 = vld [vmem:[%s6693 + $0x11c] sm:$0xf]
      %v6716 = vld [vmem:[%s6693 + $0x134] sm:$0xf]
      %v6717 = vld [vmem:[%s6693 + $0x138] sm:$0xf]
      %v6718 = vld [vmem:[%s6693 + $0x150] sm:$0xf]
      %v6719 = vld [vmem:[%s6693 + $0x154] sm:$0xf]
      %v6720 = vld [vmem:[%s6693 + $0x16c] sm:$0xf]
      %v6721 = vld [vmem:[%s6693 + $0x170] sm:$0xf]
      %v6722 = vld [vmem:[%s6693 + $0x188] sm:$0xf]
      %v6723 = vld [vmem:[%s6693 + $0x18c] sm:$0xf]
      %v6724 = vld [vmem:[%s6693 + $0x1a4] sm:$0xf]
      %v6725 = vld [vmem:[%s6693 + $0x1a8] sm:$0xf]
      %v6726 = vld [vmem:[%s6693 + $0x8] sm:$0xe]
      %v6727 = vld [vmem:[%s6693 + $0xc] sm:$0xf]
      %v6728 = vld [vmem:[%s6693 + $0x10] sm:$0x1]
      %v6729 = vld [vmem:[%s6693 + $0x24] sm:$0xe]
      %v6730 = vld [vmem:[%s6693 + $0x28] sm:$0xf]
      %v6731 = vld [vmem:[%s6693 + $0x2c] sm:$0x1]
      %v6732 = vld [vmem:[%s6693 + $0x40] sm:$0xe]
      %v6733 = vld [vmem:[%s6693 + $0x44] sm:$0xf]
      %v6734 = vld [vmem:[%s6693 + $0x48] sm:$0x1]
      %v6735 = vld [vmem:[%s6693 + $0x5c] sm:$0xe]
      %v6736 = vld [vmem:[%s6693 + $0x60] sm:$0xf]
      %v6737 = vld [vmem:[%s6693 + $0x64] sm:$0x1]
      %v6738 = vld [vmem:[%s6693 + $0x78] sm:$0xe]
      %v6739 = vld [vmem:[%s6693 + $0x7c] sm:$0xf]
      %v6740 = vld [vmem:[%s6693 + $0x80] sm:$0x1]
      %v6741 = vld [vmem:[%s6693 + $0x94] sm:$0xe]
      %v6742 = vld [vmem:[%s6693 + $0x98] sm:$0xf]
      %v6743 = vld [vmem:[%s6693 + $0x9c] sm:$0x1]
      %v6744 = vld [vmem:[%s6693 + $0xb0] sm:$0xe]
      %v6745 = vld [vmem:[%s6693 + $0xb4] sm:$0xf]
      %v6746 = vld [vmem:[%s6693 + $0xb8] sm:$0x1]
      %v6747 = vld [vmem:[%s6693 + $0xcc] sm:$0xe]
      %v6748 = vld [vmem:[%s6693 + $0xd0] sm:$0xf]
      %v6749 = vld [vmem:[%s6693 + $0xd4] sm:$0x1]
      %v6750 = vld [vmem:[%s6693 + $0xe8] sm:$0xe]
      %v6751 = vld [vmem:[%s6693 + $0xec] sm:$0xf]
      %v6752 = vld [vmem:[%s6693 + $0xf0] sm:$0x1]
      %v6753 = vld [vmem:[%s6693 + $0x104] sm:$0xe]
      %v6754 = vld [vmem:[%s6693 + $0x108] sm:$0xf]
      %v6755 = vld [vmem:[%s6693 + $0x10c] sm:$0x1]
      %v6756 = vld [vmem:[%s6693 + $0x120] sm:$0xe]
      %v6757 = vld [vmem:[%s6693 + $0x124] sm:$0xf]
      %v6758 = vld [vmem:[%s6693 + $0x128] sm:$0x1]
      %v6759 = vld [vmem:[%s6693 + $0x13c] sm:$0xe]
      %v6760 = vld [vmem:[%s6693 + $0x140] sm:$0xf]
      %v6761 = vld [vmem:[%s6693 + $0x144] sm:$0x1]
      %v6762 = vld [vmem:[%s6693 + $0x158] sm:$0xe]
      %v6763 = vld [vmem:[%s6693 + $0x15c] sm:$0xf]
      %v6764 = vld [vmem:[%s6693 + $0x160] sm:$0x1]
      %v6765 = vld [vmem:[%s6693 + $0x174] sm:$0xe]
      %v6766 = vld [vmem:[%s6693 + $0x178] sm:$0xf]
      %v6767 = vld [vmem:[%s6693 + $0x17c] sm:$0x1]
      %v6768 = vld [vmem:[%s6693 + $0x190] sm:$0xe]
      %v6769 = vld [vmem:[%s6693 + $0x194] sm:$0xf]
      %v6770 = vld [vmem:[%s6693 + $0x198] sm:$0x1]
      %v6771 = vld [vmem:[%s6693 + $0x1ac] sm:$0xe]
      %v6772 = vld [vmem:[%s6693 + $0x1b0] sm:$0xf]
      %v6773 = vld [vmem:[%s6693 + $0x1b4] sm:$0x1]
      %v6774 = vld [vmem:[%s6693 + $0x10] sm:$0xc]
      %v6775 = vld [vmem:[%s6693 + $0x14] sm:$0xf]
      %v6776 = vld [vmem:[%s6693 + $0x18] sm:$0x3]
      %v6777 = vld [vmem:[%s6693 + $0x2c] sm:$0xc]
      %v6778 = vld [vmem:[%s6693 + $0x30] sm:$0xf]
      %v6779 = vld [vmem:[%s6693 + $0x34] sm:$0x3]
      %v6780 = vld [vmem:[%s6693 + $0x48] sm:$0xc]
      %v6781 = vld [vmem:[%s6693 + $0x4c] sm:$0xf]
      %v6782 = vld [vmem:[%s6693 + $0x50] sm:$0x3]
      %v6783 = vld [vmem:[%s6693 + $0x64] sm:$0xc]
      %v6784 = vld [vmem:[%s6693 + $0x68] sm:$0xf]
      %v6785 = vld [vmem:[%s6693 + $0x6c] sm:$0x3]
      %v6786 = vld [vmem:[%s6693 + $0x80] sm:$0xc]
      %v6787 = vld [vmem:[%s6693 + $0x84] sm:$0xf]
      %v6788 = vld [vmem:[%s6693 + $0x88] sm:$0x3]
      %v6789 = vld [vmem:[%s6693 + $0x9c] sm:$0xc]
      %v6790 = vld [vmem:[%s6693 + $0xa0] sm:$0xf]
      %v6791 = vld [vmem:[%s6693 + $0xa4] sm:$0x3]
      %v6792 = vld [vmem:[%s6693 + $0xb8] sm:$0xc]
      %v6793 = vld [vmem:[%s6693 + $0xbc] sm:$0xf]
      %v6794 = vld [vmem:[%s6693 + $0xc0] sm:$0x3]
      %v6795 = vld [vmem:[%s6693 + $0xd4] sm:$0xc]
      %v6796 = vld [vmem:[%s6693 + $0xd8] sm:$0xf]
      %v6797 = vld [vmem:[%s6693 + $0xdc] sm:$0x3]
      %v6798 = vld [vmem:[%s6693 + $0xf0] sm:$0xc]
      %v6799 = vld [vmem:[%s6693 + $0xf4] sm:$0xf]
      %v6800 = vld [vmem:[%s6693 + $0xf8] sm:$0x3]
      %v6801 = vld [vmem:[%s6693 + $0x10c] sm:$0xc]
      %v6802 = vld [vmem:[%s6693 + $0x110] sm:$0xf]
      %v6803 = vld [vmem:[%s6693 + $0x114] sm:$0x3]
      %v6804 = vld [vmem:[%s6693 + $0x128] sm:$0xc]
      %v6805 = vld [vmem:[%s6693 + $0x12c] sm:$0xf]
      %v6806 = vld [vmem:[%s6693 + $0x130] sm:$0x3]
      %v6807 = vld [vmem:[%s6693 + $0x144] sm:$0xc]
      %v6808 = vld [vmem:[%s6693 + $0x148] sm:$0xf]
      %v6809 = vld [vmem:[%s6693 + $0x14c] sm:$0x3]
      %v6810 = vld [vmem:[%s6693 + $0x160] sm:$0xc]
      %v6811 = vld [vmem:[%s6693 + $0x164] sm:$0xf]
      %v6812 = vld [vmem:[%s6693 + $0x168] sm:$0x3]
      %v6813 = vld [vmem:[%s6693 + $0x17c] sm:$0xc]
      %v6814 = vld [vmem:[%s6693 + $0x180] sm:$0xf]
      %v6815 = vld [vmem:[%s6693 + $0x184] sm:$0x3]
      %v6816 = vld [vmem:[%s6693 + $0x198] sm:$0xc]
      %v6817 = vld [vmem:[%s6693 + $0x19c] sm:$0xf]
      %v6818 = vld [vmem:[%s6693 + $0x1a0] sm:$0x3]
      %v6819 = vld [vmem:[%s6693 + $0x1b4] sm:$0xc]
      %v6820 = vld [vmem:[%s6693 + $0x1b8] sm:$0xf]
      %v6821 = vld [vmem:[%s6693 + $0x1bc] sm:$0x3]
      %v6854 = vunpack.c.l.b16 %v6482
      %v6855 = vunpack.c.l.b16 %v6483
      %v6856 = vunpack.c.l.b16 %v6484
      %v6857 = vunpack.c.l.b16 %v6485
      %v6858 = vunpack.c.l.b16 %v6486
      %v6859 = vunpack.c.l.b16 %v6487
      %v6860 = vunpack.c.l.b16 %v6488
      %v6861 = vunpack.c.l.b16 %v6489
      %v6862 = vunpack.c.l.b16 %v6490
      %v6863 = vunpack.c.l.b16 %v6491
      %v6864 = vunpack.c.l.b16 %v6492
      %v6865 = vunpack.c.l.b16 %v6493
      %v6866 = vunpack.c.l.b16 %v6494
      %v6867 = vunpack.c.l.b16 %v6495
      %v6868 = vunpack.c.l.b16 %v6496
      %v6869 = vunpack.c.l.b16 %v6497
      %v6870 = vunpack.c.l.b16 %v6498
      %v6871 = vunpack.c.l.b16 %v6499
      %v6872 = vunpack.c.l.b16 %v6500
      %v6873 = vunpack.c.l.b16 %v6501
      %v6874 = vunpack.c.l.b16 %v6502
      %v6875 = vunpack.c.l.b16 %v6503
      %v6876 = vunpack.c.l.b16 %v6504
      %v6877 = vunpack.c.l.b16 %v6505
      %v6878 = vunpack.c.l.b16 %v6506
      %v6879 = vunpack.c.l.b16 %v6507
      %v6880 = vunpack.c.l.b16 %v6508
      %v6881 = vunpack.c.l.b16 %v6509
      %v6882 = vunpack.c.l.b16 %v6510
      %v6883 = vunpack.c.l.b16 %v6511
      %v6884 = vunpack.c.l.b16 %v6512
      %v6885 = vunpack.c.l.b16 %v6513
      %v6886 = vpack.c.b16 %v6855, %v6854
      %v6887 = vpack.c.b16 %v6857, %v6856
      %v6888 = vpack.c.b16 %v6859, %v6858
      %v6889 = vpack.c.b16 %v6861, %v6860
      %v6890 = vpack.c.b16 %v6863, %v6862
      %v6891 = vpack.c.b16 %v6865, %v6864
      %v6892 = vpack.c.b16 %v6867, %v6866
      %v6893 = vpack.c.b16 %v6869, %v6868
      %v6894 = vpack.c.b16 %v6871, %v6870
      %v6895 = vpack.c.b16 %v6873, %v6872
      %v6896 = vpack.c.b16 %v6875, %v6874
      %v6897 = vpack.c.b16 %v6877, %v6876
      %v6898 = vpack.c.b16 %v6879, %v6878
      %v6899 = vpack.c.b16 %v6881, %v6880
      %v6900 = vpack.c.b16 %v6883, %v6882
      %v6901 = vpack.c.b16 %v6885, %v6884
      %v6950 = vunpack.c.l.b16 %v6514
      %v6951 = vunpack.c.l.b16 %v6515
      %v6952 = vunpack.c.l.b16 %v6516
      %v6953 = vunpack.c.l.b16 %v6517
      %v6954 = vunpack.c.l.b16 %v6518
      %v6955 = vunpack.c.l.b16 %v6519
      %v6956 = vunpack.c.l.b16 %v6520
      %v6957 = vunpack.c.l.b16 %v6521
      %v6958 = vunpack.c.l.b16 %v6522
      %v6959 = vunpack.c.l.b16 %v6523
      %v6960 = vunpack.c.l.b16 %v6524
      %v6961 = vunpack.c.l.b16 %v6525
      %v6962 = vunpack.c.l.b16 %v6526
      %v6963 = vunpack.c.l.b16 %v6527
      %v6964 = vunpack.c.l.b16 %v6528
      %v6965 = vunpack.c.l.b16 %v6529
      %v6966 = vunpack.c.l.b16 %v6530
      %v6967 = vunpack.c.l.b16 %v6531
      %v6968 = vunpack.c.l.b16 %v6532
      %v6969 = vunpack.c.l.b16 %v6533
      %v6970 = vunpack.c.l.b16 %v6534
      %v6971 = vunpack.c.l.b16 %v6535
      %v6972 = vunpack.c.l.b16 %v6536
      %v6973 = vunpack.c.l.b16 %v6537
      %v6974 = vunpack.c.l.b16 %v6538
      %v6975 = vunpack.c.l.b16 %v6539
      %v6976 = vunpack.c.l.b16 %v6540
      %v6977 = vunpack.c.l.b16 %v6541
      %v6978 = vunpack.c.l.b16 %v6542
      %v6979 = vunpack.c.l.b16 %v6543
      %v6980 = vunpack.c.l.b16 %v6544
      %v6981 = vunpack.c.l.b16 %v6545
      %v6982 = vunpack.c.l.b16 %v6546
      %v6983 = vunpack.c.l.b16 %v6547
      %v6984 = vunpack.c.l.b16 %v6548
      %v6985 = vunpack.c.l.b16 %v6549
      %v6986 = vunpack.c.l.b16 %v6550
      %v6987 = vunpack.c.l.b16 %v6551
      %v6988 = vunpack.c.l.b16 %v6552
      %v6989 = vunpack.c.l.b16 %v6553
      %v6990 = vunpack.c.l.b16 %v6554
      %v6991 = vunpack.c.l.b16 %v6555
      %v6992 = vunpack.c.l.b16 %v6556
      %v6993 = vunpack.c.l.b16 %v6557
      %v6994 = vunpack.c.l.b16 %v6558
      %v6995 = vunpack.c.l.b16 %v6559
      %v6996 = vunpack.c.l.b16 %v6560
      %v6997 = vunpack.c.l.b16 %v6561
      %v6998 = vpack.c.b16 %v6951, %v6950
      %v6999 = vpack.c.b16 %v6952, %v6952
      %v7000 = vpack.c.b16 %v6954, %v6953
      %v7001 = vpack.c.b16 %v6955, %v6955
      %v7002 = vpack.c.b16 %v6957, %v6956
      %v7003 = vpack.c.b16 %v6958, %v6958
      %v7004 = vpack.c.b16 %v6960, %v6959
      %v7005 = vpack.c.b16 %v6961, %v6961
      %v7006 = vpack.c.b16 %v6963, %v6962
      %v7007 = vpack.c.b16 %v6964, %v6964
      %v7008 = vpack.c.b16 %v6966, %v6965
      %v7009 = vpack.c.b16 %v6967, %v6967
      %v7010 = vpack.c.b16 %v6969, %v6968
      %v7011 = vpack.c.b16 %v6970, %v6970
      %v7012 = vpack.c.b16 %v6972, %v6971
      %v7013 = vpack.c.b16 %v6973, %v6973
      %v7014 = vpack.c.b16 %v6975, %v6974
      %v7015 = vpack.c.b16 %v6976, %v6976
      %v7016 = vpack.c.b16 %v6978, %v6977
      %v7017 = vpack.c.b16 %v6979, %v6979
      %v7018 = vpack.c.b16 %v6981, %v6980
      %v7019 = vpack.c.b16 %v6982, %v6982
      %v7020 = vpack.c.b16 %v6984, %v6983
      %v7021 = vpack.c.b16 %v6985, %v6985
      %v7022 = vpack.c.b16 %v6987, %v6986
      %v7023 = vpack.c.b16 %v6988, %v6988
      %v7024 = vpack.c.b16 %v6990, %v6989
      %v7025 = vpack.c.b16 %v6991, %v6991
      %v7026 = vpack.c.b16 %v6993, %v6992
      %v7027 = vpack.c.b16 %v6994, %v6994
      %v7028 = vpack.c.b16 %v6996, %v6995
      %v7029 = vpack.c.b16 %v6997, %v6997
      %vm7030 = vcmask 1046528
      %v7031 = vrot.slane %v6998, 1
      %v7032 = vrot.slane %v6999, 1
      %v7033 = vsel %vm7030, %v7031, %v7032
      %v7034 = vrot.slane %v7000, 1
      %v7035 = vrot.slane %v7001, 1
      %v7036 = vsel %vm7030, %v7034, %v7035
      %v7037 = vrot.slane %v7002, 1
      %v7038 = vrot.slane %v7003, 1
      %v7039 = vsel %vm7030, %v7037, %v7038
      %v7040 = vrot.slane %v7004, 1
      %v7041 = vrot.slane %v7005, 1
      %v7042 = vsel %vm7030, %v7040, %v7041
      %v7043 = vrot.slane %v7006, 1
      %v7044 = vrot.slane %v7007, 1
      %v7045 = vsel %vm7030, %v7043, %v7044
      %v7046 = vrot.slane %v7008, 1
      %v7047 = vrot.slane %v7009, 1
      %v7048 = vsel %vm7030, %v7046, %v7047
      %v7049 = vrot.slane %v7010, 1
      %v7050 = vrot.slane %v7011, 1
      %v7051 = vsel %vm7030, %v7049, %v7050
      %v7052 = vrot.slane %v7012, 1
      %v7053 = vrot.slane %v7013, 1
      %v7054 = vsel %vm7030, %v7052, %v7053
      %v7055 = vrot.slane %v7014, 1
      %v7056 = vrot.slane %v7015, 1
      %v7057 = vsel %vm7030, %v7055, %v7056
      %v7058 = vrot.slane %v7016, 1
      %v7059 = vrot.slane %v7017, 1
      %v7060 = vsel %vm7030, %v7058, %v7059
      %v7061 = vrot.slane %v7018, 1
      %v7062 = vrot.slane %v7019, 1
      %v7063 = vsel %vm7030, %v7061, %v7062
      %v7064 = vrot.slane %v7020, 1
      %v7065 = vrot.slane %v7021, 1
      %v7066 = vsel %vm7030, %v7064, %v7065
      %v7067 = vrot.slane %v7022, 1
      %v7068 = vrot.slane %v7023, 1
      %v7069 = vsel %vm7030, %v7067, %v7068
      %v7070 = vrot.slane %v7024, 1
      %v7071 = vrot.slane %v7025, 1
      %v7072 = vsel %vm7030, %v7070, %v7071
      %v7073 = vrot.slane %v7026, 1
      %v7074 = vrot.slane %v7027, 1
      %v7075 = vsel %vm7030, %v7073, %v7074
      %v7076 = vrot.slane %v7028, 1
      %v7077 = vrot.slane %v7029, 1
      %v7078 = vsel %vm7030, %v7076, %v7077
      %7079 = vrot.lane.b32.xlu0 %v7033, 4
      %v7080 = vpop.permute.xlu0 %7079
      %7081 = vrot.lane.b32.xlu0 %v7036, 4
      %v7082 = vpop.permute.xlu0 %7081
      %7083 = vrot.lane.b32.xlu0 %v7039, 4
      %v7084 = vpop.permute.xlu0 %7083
      %7085 = vrot.lane.b32.xlu0 %v7042, 4
      %v7086 = vpop.permute.xlu0 %7085
      %7087 = vrot.lane.b32.xlu0 %v7045, 4
      %v7088 = vpop.permute.xlu0 %7087
      %7089 = vrot.lane.b32.xlu0 %v7048, 4
      %v7090 = vpop.permute.xlu0 %7089
      %7091 = vrot.lane.b32.xlu0 %v7051, 4
      %v7092 = vpop.permute.xlu0 %7091
      %7093 = vrot.lane.b32.xlu0 %v7054, 4
      %v7094 = vpop.permute.xlu0 %7093
      %7095 = vrot.lane.b32.xlu0 %v7057, 4
      %v7096 = vpop.permute.xlu0 %7095
      %7097 = vrot.lane.b32.xlu0 %v7060, 4
      %v7098 = vpop.permute.xlu0 %7097
      %7099 = vrot.lane.b32.xlu0 %v7063, 4
      %v7100 = vpop.permute.xlu0 %7099
      %7101 = vrot.lane.b32.xlu0 %v7066, 4
      %v7102 = vpop.permute.xlu0 %7101
      %7103 = vrot.lane.b32.xlu0 %v7069, 4
      %v7104 = vpop.permute.xlu0 %7103
      %7105 = vrot.lane.b32.xlu0 %v7072, 4
      %v7106 = vpop.permute.xlu0 %7105
      %7107 = vrot.lane.b32.xlu0 %v7075, 4
      %v7108 = vpop.permute.xlu0 %7107
      %7109 = vrot.lane.b32.xlu0 %v7078, 4
      %v7110 = vpop.permute.xlu0 %7109
      %v7159 = vunpack.c.l.b16 %v6562
      %v7160 = vunpack.c.l.b16 %v6563
      %v7161 = vunpack.c.l.b16 %v6564
      %v7162 = vunpack.c.l.b16 %v6565
      %v7163 = vunpack.c.l.b16 %v6566
      %v7164 = vunpack.c.l.b16 %v6567
      %v7165 = vunpack.c.l.b16 %v6568
      %v7166 = vunpack.c.l.b16 %v6569
      %v7167 = vunpack.c.l.b16 %v6570
      %v7168 = vunpack.c.l.b16 %v6571
      %v7169 = vunpack.c.l.b16 %v6572
      %v7170 = vunpack.c.l.b16 %v6573
      %v7171 = vunpack.c.l.b16 %v6574
      %v7172 = vunpack.c.l.b16 %v6575
      %v7173 = vunpack.c.l.b16 %v6576
      %v7174 = vunpack.c.l.b16 %v6577
      %v7175 = vunpack.c.l.b16 %v6578
      %v7176 = vunpack.c.l.b16 %v6579
      %v7177 = vunpack.c.l.b16 %v6580
      %v7178 = vunpack.c.l.b16 %v6581
      %v7179 = vunpack.c.l.b16 %v6582
      %v7180 = vunpack.c.l.b16 %v6583
      %v7181 = vunpack.c.l.b16 %v6584
      %v7182 = vunpack.c.l.b16 %v6585
      %v7183 = vunpack.c.l.b16 %v6586
      %v7184 = vunpack.c.l.b16 %v6587
      %v7185 = vunpack.c.l.b16 %v6588
      %v7186 = vunpack.c.l.b16 %v6589
      %v7187 = vunpack.c.l.b16 %v6590
      %v7188 = vunpack.c.l.b16 %v6591
      %v7189 = vunpack.c.l.b16 %v6592
      %v7190 = vunpack.c.l.b16 %v6593
      %v7191 = vunpack.c.l.b16 %v6594
      %v7192 = vunpack.c.l.b16 %v6595
      %v7193 = vunpack.c.l.b16 %v6596
      %v7194 = vunpack.c.l.b16 %v6597
      %v7195 = vunpack.c.l.b16 %v6598
      %v7196 = vunpack.c.l.b16 %v6599
      %v7197 = vunpack.c.l.b16 %v6600
      %v7198 = vunpack.c.l.b16 %v6601
      %v7199 = vunpack.c.l.b16 %v6602
      %v7200 = vunpack.c.l.b16 %v6603
      %v7201 = vunpack.c.l.b16 %v6604
      %v7202 = vunpack.c.l.b16 %v6605
      %v7203 = vunpack.c.l.b16 %v6606
      %v7204 = vunpack.c.l.b16 %v6607
      %v7205 = vunpack.c.l.b16 %v6608
      %v7206 = vunpack.c.l.b16 %v6609
      %v7207 = vpack.c.b16 %v7160, %v7159
      %v7208 = vpack.c.b16 %v7161, %v7161
      %v7209 = vpack.c.b16 %v7163, %v7162
      %v7210 = vpack.c.b16 %v7164, %v7164
      %v7211 = vpack.c.b16 %v7166, %v7165
      %v7212 = vpack.c.b16 %v7167, %v7167
      %v7213 = vpack.c.b16 %v7169, %v7168
      %v7214 = vpack.c.b16 %v7170, %v7170
      %v7215 = vpack.c.b16 %v7172, %v7171
      %v7216 = vpack.c.b16 %v7173, %v7173
      %v7217 = vpack.c.b16 %v7175, %v7174
      %v7218 = vpack.c.b16 %v7176, %v7176
      %v7219 = vpack.c.b16 %v7178, %v7177
      %v7220 = vpack.c.b16 %v7179, %v7179
      %v7221 = vpack.c.b16 %v7181, %v7180
      %v7222 = vpack.c.b16 %v7182, %v7182
      %v7223 = vpack.c.b16 %v7184, %v7183
      %v7224 = vpack.c.b16 %v7185, %v7185
      %v7225 = vpack.c.b16 %v7187, %v7186
      %v7226 = vpack.c.b16 %v7188, %v7188
      %v7227 = vpack.c.b16 %v7190, %v7189
      %v7228 = vpack.c.b16 %v7191, %v7191
      %v7229 = vpack.c.b16 %v7193, %v7192
      %v7230 = vpack.c.b16 %v7194, %v7194
      %v7231 = vpack.c.b16 %v7196, %v7195
      %v7232 = vpack.c.b16 %v7197, %v7197
      %v7233 = vpack.c.b16 %v7199, %v7198
      %v7234 = vpack.c.b16 %v7200, %v7200
      %v7235 = vpack.c.b16 %v7202, %v7201
      %v7236 = vpack.c.b16 %v7203, %v7203
      %v7237 = vpack.c.b16 %v7205, %v7204
      %v7238 = vpack.c.b16 %v7206, %v7206
      %v7239 = vrot.slane %v7207, 2
      %v7240 = vrot.slane %v7208, 2
      %v7241 = vsel %vm6141, %v7239, %v7240
      %v7242 = vrot.slane %v7209, 2
      %v7243 = vrot.slane %v7210, 2
      %v7244 = vsel %vm6141, %v7242, %v7243
      %v7245 = vrot.slane %v7211, 2
      %v7246 = vrot.slane %v7212, 2
      %v7247 = vsel %vm6141, %v7245, %v7246
      %v7248 = vrot.slane %v7213, 2
      %v7249 = vrot.slane %v7214, 2
      %v7250 = vsel %vm6141, %v7248, %v7249
      %v7251 = vrot.slane %v7215, 2
      %v7252 = vrot.slane %v7216, 2
      %v7253 = vsel %vm6141, %v7251, %v7252
      %v7254 = vrot.slane %v7217, 2
      %v7255 = vrot.slane %v7218, 2
      %v7256 = vsel %vm6141, %v7254, %v7255
      %v7257 = vrot.slane %v7219, 2
      %v7258 = vrot.slane %v7220, 2
      %v7259 = vsel %vm6141, %v7257, %v7258
      %v7260 = vrot.slane %v7221, 2
      %v7261 = vrot.slane %v7222, 2
      %v7262 = vsel %vm6141, %v7260, %v7261
      %v7263 = vrot.slane %v7223, 2
      %v7264 = vrot.slane %v7224, 2
      %v7265 = vsel %vm6141, %v7263, %v7264
      %v7266 = vrot.slane %v7225, 2
      %v7267 = vrot.slane %v7226, 2
      %v7268 = vsel %vm6141, %v7266, %v7267
      %v7269 = vrot.slane %v7227, 2
      %v7270 = vrot.slane %v7228, 2
      %v7271 = vsel %vm6141, %v7269, %v7270
      %v7272 = vrot.slane %v7229, 2
      %v7273 = vrot.slane %v7230, 2
      %v7274 = vsel %vm6141, %v7272, %v7273
      %v7275 = vrot.slane %v7231, 2
      %v7276 = vrot.slane %v7232, 2
      %v7277 = vsel %vm6141, %v7275, %v7276
      %v7278 = vrot.slane %v7233, 2
      %v7279 = vrot.slane %v7234, 2
      %v7280 = vsel %vm6141, %v7278, %v7279
      %v7281 = vrot.slane %v7235, 2
      %v7282 = vrot.slane %v7236, 2
      %v7283 = vsel %vm6141, %v7281, %v7282
      %v7284 = vrot.slane %v7237, 2
      %v7285 = vrot.slane %v7238, 2
      %v7286 = vsel %vm6141, %v7284, %v7285
      %7287 = vrot.lane.b32.xlu0 %v7241, 8
      %v7288 = vpop.permute.xlu0 %7287
      %7289 = vrot.lane.b32.xlu0 %v7244, 8
      %v7290 = vpop.permute.xlu0 %7289
      %7291 = vrot.lane.b32.xlu0 %v7247, 8
      %v7292 = vpop.permute.xlu0 %7291
      %7293 = vrot.lane.b32.xlu0 %v7250, 8
      %v7294 = vpop.permute.xlu0 %7293
      %7295 = vrot.lane.b32.xlu0 %v7253, 8
      %v7296 = vpop.permute.xlu0 %7295
      %7297 = vrot.lane.b32.xlu0 %v7256, 8
      %v7298 = vpop.permute.xlu0 %7297
      %7299 = vrot.lane.b32.xlu0 %v7259, 8
      %v7300 = vpop.permute.xlu0 %7299
      %7301 = vrot.lane.b32.xlu0 %v7262, 8
      %v7302 = vpop.permute.xlu0 %7301
      %7303 = vrot.lane.b32.xlu0 %v7265, 8
      %v7304 = vpop.permute.xlu0 %7303
      %7305 = vrot.lane.b32.xlu0 %v7268, 8
      %v7306 = vpop.permute.xlu0 %7305
      %7307 = vrot.lane.b32.xlu0 %v7271, 8
      %v7308 = vpop.permute.xlu0 %7307
      %7309 = vrot.lane.b32.xlu0 %v7274, 8
      %v7310 = vpop.permute.xlu0 %7309
      %7311 = vrot.lane.b32.xlu0 %v7277, 8
      %v7312 = vpop.permute.xlu0 %7311
      %7313 = vrot.lane.b32.xlu0 %v7280, 8
      %v7314 = vpop.permute.xlu0 %7313
      %7315 = vrot.lane.b32.xlu0 %v7283, 8
      %v7316 = vpop.permute.xlu0 %7315
      %7317 = vrot.lane.b32.xlu0 %v7286, 8
      %v7318 = vpop.permute.xlu0 %7317
      %v7351 = vunpack.c.l.b16 %v6610
      %v7352 = vunpack.c.l.b16 %v6611
      %v7353 = vunpack.c.l.b16 %v6612
      %v7354 = vunpack.c.l.b16 %v6613
      %v7355 = vunpack.c.l.b16 %v6614
      %v7356 = vunpack.c.l.b16 %v6615
      %v7357 = vunpack.c.l.b16 %v6616
      %v7358 = vunpack.c.l.b16 %v6617
      %v7359 = vunpack.c.l.b16 %v6618
      %v7360 = vunpack.c.l.b16 %v6619
      %v7361 = vunpack.c.l.b16 %v6620
      %v7362 = vunpack.c.l.b16 %v6621
      %v7363 = vunpack.c.l.b16 %v6622
      %v7364 = vunpack.c.l.b16 %v6623
      %v7365 = vunpack.c.l.b16 %v6624
      %v7366 = vunpack.c.l.b16 %v6625
      %v7367 = vunpack.c.l.b16 %v6626
      %v7368 = vunpack.c.l.b16 %v6627
      %v7369 = vunpack.c.l.b16 %v6628
      %v7370 = vunpack.c.l.b16 %v6629
      %v7371 = vunpack.c.l.b16 %v6630
      %v7372 = vunpack.c.l.b16 %v6631
      %v7373 = vunpack.c.l.b16 %v6632
      %v7374 = vunpack.c.l.b16 %v6633
      %v7375 = vunpack.c.l.b16 %v6634
      %v7376 = vunpack.c.l.b16 %v6635
      %v7377 = vunpack.c.l.b16 %v6636
      %v7378 = vunpack.c.l.b16 %v6637
      %v7379 = vunpack.c.l.b16 %v6638
      %v7380 = vunpack.c.l.b16 %v6639
      %v7381 = vunpack.c.l.b16 %v6640
      %v7382 = vunpack.c.l.b16 %v6641
      %v7383 = vpack.c.b16 %v7352, %v7351
      %v7384 = vpack.c.b16 %v7354, %v7353
      %v7385 = vpack.c.b16 %v7356, %v7355
      %v7386 = vpack.c.b16 %v7358, %v7357
      %v7387 = vpack.c.b16 %v7360, %v7359
      %v7388 = vpack.c.b16 %v7362, %v7361
      %v7389 = vpack.c.b16 %v7364, %v7363
      %v7390 = vpack.c.b16 %v7366, %v7365
      %v7391 = vpack.c.b16 %v7368, %v7367
      %v7392 = vpack.c.b16 %v7370, %v7369
      %v7393 = vpack.c.b16 %v7372, %v7371
      %v7394 = vpack.c.b16 %v7374, %v7373
      %v7395 = vpack.c.b16 %v7376, %v7375
      %v7396 = vpack.c.b16 %v7378, %v7377
      %v7397 = vpack.c.b16 %v7380, %v7379
      %v7398 = vpack.c.b16 %v7382, %v7381
      %7399 = vrot.lane.b32.xlu0 %v7383, 12
      %v7400 = vpop.permute.xlu0 %7399
      %7401 = vrot.lane.b32.xlu0 %v7384, 12
      %v7402 = vpop.permute.xlu0 %7401
      %7403 = vrot.lane.b32.xlu0 %v7385, 12
      %v7404 = vpop.permute.xlu0 %7403
      %7405 = vrot.lane.b32.xlu0 %v7386, 12
      %v7406 = vpop.permute.xlu0 %7405
      %7407 = vrot.lane.b32.xlu0 %v7387, 12
      %v7408 = vpop.permute.xlu0 %7407
      %7409 = vrot.lane.b32.xlu0 %v7388, 12
      %v7410 = vpop.permute.xlu0 %7409
      %7411 = vrot.lane.b32.xlu0 %v7389, 12
      %v7412 = vpop.permute.xlu0 %7411
      %7413 = vrot.lane.b32.xlu0 %v7390, 12
      %v7414 = vpop.permute.xlu0 %7413
      %7415 = vrot.lane.b32.xlu0 %v7391, 12
      %v7416 = vpop.permute.xlu0 %7415
      %7417 = vrot.lane.b32.xlu0 %v7392, 12
      %v7418 = vpop.permute.xlu0 %7417
      %7419 = vrot.lane.b32.xlu0 %v7393, 12
      %v7420 = vpop.permute.xlu0 %7419
      %7421 = vrot.lane.b32.xlu0 %v7394, 12
      %v7422 = vpop.permute.xlu0 %7421
      %7423 = vrot.lane.b32.xlu0 %v7395, 12
      %v7424 = vpop.permute.xlu0 %7423
      %7425 = vrot.lane.b32.xlu0 %v7396, 12
      %v7426 = vpop.permute.xlu0 %7425
      %7427 = vrot.lane.b32.xlu0 %v7397, 12
      %v7428 = vpop.permute.xlu0 %7427
      %7429 = vrot.lane.b32.xlu0 %v7398, 12
      %v7430 = vpop.permute.xlu0 %7429
      %v7431 = vrot.slane %v2044, 1
      %v7432 = vrot.slane %v2045, 1
      %v7433 = vsel %vm7030, %v7431, %v7432
      %v7434 = vrot.slane %v2046, 1
      %v7435 = vrot.slane %v2047, 1
      %v7436 = vsel %vm7030, %v7434, %v7435
      %v7437 = vrot.slane %v2048, 1
      %v7438 = vrot.slane %v2049, 1
      %v7439 = vsel %vm7030, %v7437, %v7438
      %v7440 = vrot.slane %v2050, 1
      %v7441 = vrot.slane %v2051, 1
      %v7442 = vsel %vm7030, %v7440, %v7441
      %v7443 = vrot.slane %v2052, 1
      %v7444 = vrot.slane %v2053, 1
      %v7445 = vsel %vm7030, %v7443, %v7444
      %v7446 = vrot.slane %v2054, 1
      %v7447 = vrot.slane %v2055, 1
      %v7448 = vsel %vm7030, %v7446, %v7447
      %v7449 = vrot.slane %v2056, 1
      %v7450 = vrot.slane %v2057, 1
      %v7451 = vsel %vm7030, %v7449, %v7450
      %v7452 = vrot.slane %v2058, 1
      %v7453 = vrot.slane %v2059, 1
      %v7454 = vsel %vm7030, %v7452, %v7453
      %v7455 = vrot.slane %v2060, 1
      %v7456 = vrot.slane %v2061, 1
      %v7457 = vsel %vm7030, %v7455, %v7456
      %v7458 = vrot.slane %v2062, 1
      %v7459 = vrot.slane %v2063, 1
      %v7460 = vsel %vm7030, %v7458, %v7459
      %v7461 = vrot.slane %v2064, 1
      %v7462 = vrot.slane %v2065, 1
      %v7463 = vsel %vm7030, %v7461, %v7462
      %v7464 = vrot.slane %v2066, 1
      %v7465 = vrot.slane %v2067, 1
      %v7466 = vsel %vm7030, %v7464, %v7465
      %v7467 = vrot.slane %v2068, 1
      %v7468 = vrot.slane %v2069, 1
      %v7469 = vsel %vm7030, %v7467, %v7468
      %v7470 = vrot.slane %v2070, 1
      %v7471 = vrot.slane %v2071, 1
      %v7472 = vsel %vm7030, %v7470, %v7471
      %v7473 = vrot.slane %v2072, 1
      %v7474 = vrot.slane %v2073, 1
      %v7475 = vsel %vm7030, %v7473, %v7474
      %v7476 = vrot.slane %v2074, 1
      %v7477 = vrot.slane %v2075, 1
      %v7478 = vsel %vm7030, %v7476, %v7477
      %7479 = vrot.lane.b32.xlu0 %v7433, 16
      %v7480 = vpop.permute.xlu0 %7479
      %7481 = vrot.lane.b32.xlu0 %v7436, 16
      %v7482 = vpop.permute.xlu0 %7481
      %7483 = vrot.lane.b32.xlu0 %v7439, 16
      %v7484 = vpop.permute.xlu0 %7483
      %7485 = vrot.lane.b32.xlu0 %v7442, 16
      %v7486 = vpop.permute.xlu0 %7485
      %7487 = vrot.lane.b32.xlu0 %v7445, 16
      %v7488 = vpop.permute.xlu0 %7487
      %7489 = vrot.lane.b32.xlu0 %v7448, 16
      %v7490 = vpop.permute.xlu0 %7489
      %7491 = vrot.lane.b32.xlu0 %v7451, 16
      %v7492 = vpop.permute.xlu0 %7491
      %7493 = vrot.lane.b32.xlu0 %v7454, 16
      %v7494 = vpop.permute.xlu0 %7493
      %7495 = vrot.lane.b32.xlu0 %v7457, 16
      %v7496 = vpop.permute.xlu0 %7495
      %7497 = vrot.lane.b32.xlu0 %v7460, 16
      %v7498 = vpop.permute.xlu0 %7497
      %7499 = vrot.lane.b32.xlu0 %v7463, 16
      %v7500 = vpop.permute.xlu0 %7499
      %7501 = vrot.lane.b32.xlu0 %v7466, 16
      %v7502 = vpop.permute.xlu0 %7501
      %7503 = vrot.lane.b32.xlu0 %v7469, 16
      %v7504 = vpop.permute.xlu0 %7503
      %7505 = vrot.lane.b32.xlu0 %v7472, 16
      %v7506 = vpop.permute.xlu0 %7505
      %7507 = vrot.lane.b32.xlu0 %v7475, 16
      %v7508 = vpop.permute.xlu0 %7507
      %7509 = vrot.lane.b32.xlu0 %v7478, 16
      %v7510 = vpop.permute.xlu0 %7509
      %v7559 = vunpack.c.l.b16 %v6642
      %v7560 = vunpack.c.l.b16 %v6643
      %v7561 = vunpack.c.l.b16 %v6644
      %v7562 = vunpack.c.l.b16 %v6645
      %v7563 = vunpack.c.l.b16 %v6646
      %v7564 = vunpack.c.l.b16 %v6647
      %v7565 = vunpack.c.l.b16 %v6648
      %v7566 = vunpack.c.l.b16 %v6649
      %v7567 = vunpack.c.l.b16 %v6650
      %v7568 = vunpack.c.l.b16 %v6651
      %v7569 = vunpack.c.l.b16 %v6652
      %v7570 = vunpack.c.l.b16 %v6653
      %v7571 = vunpack.c.l.b16 %v6654
      %v7572 = vunpack.c.l.b16 %v6655
      %v7573 = vunpack.c.l.b16 %v6656
      %v7574 = vunpack.c.l.b16 %v6657
      %v7575 = vunpack.c.l.b16 %v6658
      %v7576 = vunpack.c.l.b16 %v6659
      %v7577 = vunpack.c.l.b16 %v6660
      %v7578 = vunpack.c.l.b16 %v6661
      %v7579 = vunpack.c.l.b16 %v6662
      %v7580 = vunpack.c.l.b16 %v6663
      %v7581 = vunpack.c.l.b16 %v6664
      %v7582 = vunpack.c.l.b16 %v6665
      %v7583 = vunpack.c.l.b16 %v6666
      %v7584 = vunpack.c.l.b16 %v6667
      %v7585 = vunpack.c.l.b16 %v6668
      %v7586 = vunpack.c.l.b16 %v6669
      %v7587 = vunpack.c.l.b16 %v6670
      %v7588 = vunpack.c.l.b16 %v6671
      %v7589 = vunpack.c.l.b16 %v6672
      %v7590 = vunpack.c.l.b16 %v6673
      %v7591 = vunpack.c.l.b16 %v6674
      %v7592 = vunpack.c.l.b16 %v6675
      %v7593 = vunpack.c.l.b16 %v6676
      %v7594 = vunpack.c.l.b16 %v6677
      %v7595 = vunpack.c.l.b16 %v6678
      %v7596 = vunpack.c.l.b16 %v6679
      %v7597 = vunpack.c.l.b16 %v6680
      %v7598 = vunpack.c.l.b16 %v6681
      %v7599 = vunpack.c.l.b16 %v6682
      %v7600 = vunpack.c.l.b16 %v6683
      %v7601 = vunpack.c.l.b16 %v6684
      %v7602 = vunpack.c.l.b16 %v6685
      %v7603 = vunpack.c.l.b16 %v6686
      %v7604 = vunpack.c.l.b16 %v6687
      %v7605 = vunpack.c.l.b16 %v6688
      %v7606 = vunpack.c.l.b16 %v6689
      %v7607 = vpack.c.b16 %v7560, %v7559
      %v7608 = vpack.c.b16 %v7561, %v7561
      %v7609 = vpack.c.b16 %v7563, %v7562
      %v7610 = vpack.c.b16 %v7564, %v7564
      %v7611 = vpack.c.b16 %v7566, %v7565
      %v7612 = vpack.c.b16 %v7567, %v7567
      %v7613 = vpack.c.b16 %v7569, %v7568
      %v7614 = vpack.c.b16 %v7570, %v7570
      %v7615 = vpack.c.b16 %v7572, %v7571
      %v7616 = vpack.c.b16 %v7573, %v7573
      %v7617 = vpack.c.b16 %v7575, %v7574
      %v7618 = vpack.c.b16 %v7576, %v7576
      %v7619 = vpack.c.b16 %v7578, %v7577
      %v7620 = vpack.c.b16 %v7579, %v7579
      %v7621 = vpack.c.b16 %v7581, %v7580
      %v7622 = vpack.c.b16 %v7582, %v7582
      %v7623 = vpack.c.b16 %v7584, %v7583
      %v7624 = vpack.c.b16 %v7585, %v7585
      %v7625 = vpack.c.b16 %v7587, %v7586
      %v7626 = vpack.c.b16 %v7588, %v7588
      %v7627 = vpack.c.b16 %v7590, %v7589
      %v7628 = vpack.c.b16 %v7591, %v7591
      %v7629 = vpack.c.b16 %v7593, %v7592
      %v7630 = vpack.c.b16 %v7594, %v7594
      %v7631 = vpack.c.b16 %v7596, %v7595
      %v7632 = vpack.c.b16 %v7597, %v7597
      %v7633 = vpack.c.b16 %v7599, %v7598
      %v7634 = vpack.c.b16 %v7600, %v7600
      %v7635 = vpack.c.b16 %v7602, %v7601
      %v7636 = vpack.c.b16 %v7603, %v7603
      %v7637 = vpack.c.b16 %v7605, %v7604
      %v7638 = vpack.c.b16 %v7606, %v7606
      %v7639 = vrot.slane %v7607, 2
      %v7640 = vrot.slane %v7608, 2
      %v7641 = vsel %vm6141, %v7639, %v7640
      %v7642 = vrot.slane %v7609, 2
      %v7643 = vrot.slane %v7610, 2
      %v7644 = vsel %vm6141, %v7642, %v7643
      %v7645 = vrot.slane %v7611, 2
      %v7646 = vrot.slane %v7612, 2
      %v7647 = vsel %vm6141, %v7645, %v7646
      %v7648 = vrot.slane %v7613, 2
      %v7649 = vrot.slane %v7614, 2
      %v7650 = vsel %vm6141, %v7648, %v7649
      %v7651 = vrot.slane %v7615, 2
      %v7652 = vrot.slane %v7616, 2
      %v7653 = vsel %vm6141, %v7651, %v7652
      %v7654 = vrot.slane %v7617, 2
      %v7655 = vrot.slane %v7618, 2
      %v7656 = vsel %vm6141, %v7654, %v7655
      %v7657 = vrot.slane %v7619, 2
      %v7658 = vrot.slane %v7620, 2
      %v7659 = vsel %vm6141, %v7657, %v7658
      %v7660 = vrot.slane %v7621, 2
      %v7661 = vrot.slane %v7622, 2
      %v7662 = vsel %vm6141, %v7660, %v7661
      %v7663 = vrot.slane %v7623, 2
      %v7664 = vrot.slane %v7624, 2
      %v7665 = vsel %vm6141, %v7663, %v7664
      %v7666 = vrot.slane %v7625, 2
      %v7667 = vrot.slane %v7626, 2
      %v7668 = vsel %vm6141, %v7666, %v7667
      %v7669 = vrot.slane %v7627, 2
      %v7670 = vrot.slane %v7628, 2
      %v7671 = vsel %vm6141, %v7669, %v7670
      %v7672 = vrot.slane %v7629, 2
      %v7673 = vrot.slane %v7630, 2
      %v7674 = vsel %vm6141, %v7672, %v7673
      %v7675 = vrot.slane %v7631, 2
      %v7676 = vrot.slane %v7632, 2
      %v7677 = vsel %vm6141, %v7675, %v7676
      %v7678 = vrot.slane %v7633, 2
      %v7679 = vrot.slane %v7634, 2
      %v7680 = vsel %vm6141, %v7678, %v7679
      %v7681 = vrot.slane %v7635, 2
      %v7682 = vrot.slane %v7636, 2
      %v7683 = vsel %vm6141, %v7681, %v7682
      %v7684 = vrot.slane %v7637, 2
      %v7685 = vrot.slane %v7638, 2
      %v7686 = vsel %vm6141, %v7684, %v7685
      %7687 = vrot.lane.b32.xlu0 %v7641, 20
      %v7688 = vpop.permute.xlu0 %7687
      %7689 = vrot.lane.b32.xlu0 %v7644, 20
      %v7690 = vpop.permute.xlu0 %7689
      %7691 = vrot.lane.b32.xlu0 %v7647, 20
      %v7692 = vpop.permute.xlu0 %7691
      %7693 = vrot.lane.b32.xlu0 %v7650, 20
      %v7694 = vpop.permute.xlu0 %7693
      %7695 = vrot.lane.b32.xlu0 %v7653, 20
      %v7696 = vpop.permute.xlu0 %7695
      %7697 = vrot.lane.b32.xlu0 %v7656, 20
      %v7698 = vpop.permute.xlu0 %7697
      %7699 = vrot.lane.b32.xlu0 %v7659, 20
      %v7700 = vpop.permute.xlu0 %7699
      %7701 = vrot.lane.b32.xlu0 %v7662, 20
      %v7702 = vpop.permute.xlu0 %7701
      %7703 = vrot.lane.b32.xlu0 %v7665, 20
      %v7704 = vpop.permute.xlu0 %7703
      %7705 = vrot.lane.b32.xlu0 %v7668, 20
      %v7706 = vpop.permute.xlu0 %7705
      %7707 = vrot.lane.b32.xlu0 %v7671, 20
      %v7708 = vpop.permute.xlu0 %7707
      %7709 = vrot.lane.b32.xlu0 %v7674, 20
      %v7710 = vpop.permute.xlu0 %7709
      %7711 = vrot.lane.b32.xlu0 %v7677, 20
      %v7712 = vpop.permute.xlu0 %7711
      %7713 = vrot.lane.b32.xlu0 %v7680, 20
      %v7714 = vpop.permute.xlu0 %7713
      %7715 = vrot.lane.b32.xlu0 %v7683, 20
      %v7716 = vpop.permute.xlu0 %7715
      %7717 = vrot.lane.b32.xlu0 %v7686, 20
      %v7718 = vpop.permute.xlu0 %7717
      %v7751 = vunpack.c.l.b16 %v6694
      %v7752 = vunpack.c.l.b16 %v6695
      %v7753 = vunpack.c.l.b16 %v6696
      %v7754 = vunpack.c.l.b16 %v6697
      %v7755 = vunpack.c.l.b16 %v6698
      %v7756 = vunpack.c.l.b16 %v6699
      %v7757 = vunpack.c.l.b16 %v6700
      %v7758 = vunpack.c.l.b16 %v6701
      %v7759 = vunpack.c.l.b16 %v6702
      %v7760 = vunpack.c.l.b16 %v6703
      %v7761 = vunpack.c.l.b16 %v6704
      %v7762 = vunpack.c.l.b16 %v6705
      %v7763 = vunpack.c.l.b16 %v6706
      %v7764 = vunpack.c.l.b16 %v6707
      %v7765 = vunpack.c.l.b16 %v6708
      %v7766 = vunpack.c.l.b16 %v6709
      %v7767 = vunpack.c.l.b16 %v6710
      %v7768 = vunpack.c.l.b16 %v6711
      %v7769 = vunpack.c.l.b16 %v6712
      %v7770 = vunpack.c.l.b16 %v6713
      %v7771 = vunpack.c.l.b16 %v6714
      %v7772 = vunpack.c.l.b16 %v6715
      %v7773 = vunpack.c.l.b16 %v6716
      %v7774 = vunpack.c.l.b16 %v6717
      %v7775 = vunpack.c.l.b16 %v6718
      %v7776 = vunpack.c.l.b16 %v6719
      %v7777 = vunpack.c.l.b16 %v6720
      %v7778 = vunpack.c.l.b16 %v6721
      %v7779 = vunpack.c.l.b16 %v6722
      %v7780 = vunpack.c.l.b16 %v6723
      %v7781 = vunpack.c.l.b16 %v6724
      %v7782 = vunpack.c.l.b16 %v6725
      %v7783 = vpack.c.b16 %v7752, %v7751
      %v7784 = vpack.c.b16 %v7754, %v7753
      %v7785 = vpack.c.b16 %v7756, %v7755
      %v7786 = vpack.c.b16 %v7758, %v7757
      %v7787 = vpack.c.b16 %v7760, %v7759
      %v7788 = vpack.c.b16 %v7762, %v7761
      %v7789 = vpack.c.b16 %v7764, %v7763
      %v7790 = vpack.c.b16 %v7766, %v7765
      %v7791 = vpack.c.b16 %v7768, %v7767
      %v7792 = vpack.c.b16 %v7770, %v7769
      %v7793 = vpack.c.b16 %v7772, %v7771
      %v7794 = vpack.c.b16 %v7774, %v7773
      %v7795 = vpack.c.b16 %v7776, %v7775
      %v7796 = vpack.c.b16 %v7778, %v7777
      %v7797 = vpack.c.b16 %v7780, %v7779
      %v7798 = vpack.c.b16 %v7782, %v7781
      %7799 = vrot.lane.b32.xlu0 %v7783, 24
      %v7800 = vpop.permute.xlu0 %7799
      %7801 = vrot.lane.b32.xlu0 %v7784, 24
      %v7802 = vpop.permute.xlu0 %7801
      %7803 = vrot.lane.b32.xlu0 %v7785, 24
      %v7804 = vpop.permute.xlu0 %7803
      %7805 = vrot.lane.b32.xlu0 %v7786, 24
      %v7806 = vpop.permute.xlu0 %7805
      %7807 = vrot.lane.b32.xlu0 %v7787, 24
      %v7808 = vpop.permute.xlu0 %7807
      %7809 = vrot.lane.b32.xlu0 %v7788, 24
      %v7810 = vpop.permute.xlu0 %7809
      %7811 = vrot.lane.b32.xlu0 %v7789, 24
      %v7812 = vpop.permute.xlu0 %7811
      %7813 = vrot.lane.b32.xlu0 %v7790, 24
      %v7814 = vpop.permute.xlu0 %7813
      %7815 = vrot.lane.b32.xlu0 %v7791, 24
      %v7816 = vpop.permute.xlu0 %7815
      %7817 = vrot.lane.b32.xlu0 %v7792, 24
      %v7818 = vpop.permute.xlu0 %7817
      %7819 = vrot.lane.b32.xlu0 %v7793, 24
      %v7820 = vpop.permute.xlu0 %7819
      %7821 = vrot.lane.b32.xlu0 %v7794, 24
      %v7822 = vpop.permute.xlu0 %7821
      %7823 = vrot.lane.b32.xlu0 %v7795, 24
      %v7824 = vpop.permute.xlu0 %7823
      %7825 = vrot.lane.b32.xlu0 %v7796, 24
      %v7826 = vpop.permute.xlu0 %7825
      %7827 = vrot.lane.b32.xlu0 %v7797, 24
      %v7828 = vpop.permute.xlu0 %7827
      %7829 = vrot.lane.b32.xlu0 %v7798, 24
      %v7830 = vpop.permute.xlu0 %7829
      %v7879 = vunpack.c.l.b16 %v6726
      %v7880 = vunpack.c.l.b16 %v6727
      %v7881 = vunpack.c.l.b16 %v6728
      %v7882 = vunpack.c.l.b16 %v6729
      %v7883 = vunpack.c.l.b16 %v6730
      %v7884 = vunpack.c.l.b16 %v6731
      %v7885 = vunpack.c.l.b16 %v6732
      %v7886 = vunpack.c.l.b16 %v6733
      %v7887 = vunpack.c.l.b16 %v6734
      %v7888 = vunpack.c.l.b16 %v6735
      %v7889 = vunpack.c.l.b16 %v6736
      %v7890 = vunpack.c.l.b16 %v6737
      %v7891 = vunpack.c.l.b16 %v6738
      %v7892 = vunpack.c.l.b16 %v6739
      %v7893 = vunpack.c.l.b16 %v6740
      %v7894 = vunpack.c.l.b16 %v6741
      %v7895 = vunpack.c.l.b16 %v6742
      %v7896 = vunpack.c.l.b16 %v6743
      %v7897 = vunpack.c.l.b16 %v6744
      %v7898 = vunpack.c.l.b16 %v6745
      %v7899 = vunpack.c.l.b16 %v6746
      %v7900 = vunpack.c.l.b16 %v6747
      %v7901 = vunpack.c.l.b16 %v6748
      %v7902 = vunpack.c.l.b16 %v6749
      %v7903 = vunpack.c.l.b16 %v6750
      %v7904 = vunpack.c.l.b16 %v6751
      %v7905 = vunpack.c.l.b16 %v6752
      %v7906 = vunpack.c.l.b16 %v6753
      %v7907 = vunpack.c.l.b16 %v6754
      %v7908 = vunpack.c.l.b16 %v6755
      %v7909 = vunpack.c.l.b16 %v6756
      %v7910 = vunpack.c.l.b16 %v6757
      %v7911 = vunpack.c.l.b16 %v6758
      %v7912 = vunpack.c.l.b16 %v6759
      %v7913 = vunpack.c.l.b16 %v6760
      %v7914 = vunpack.c.l.b16 %v6761
      %v7915 = vunpack.c.l.b16 %v6762
      %v7916 = vunpack.c.l.b16 %v6763
      %v7917 = vunpack.c.l.b16 %v6764
      %v7918 = vunpack.c.l.b16 %v6765
      %v7919 = vunpack.c.l.b16 %v6766
      %v7920 = vunpack.c.l.b16 %v6767
      %v7921 = vunpack.c.l.b16 %v6768
      %v7922 = vunpack.c.l.b16 %v6769
      %v7923 = vunpack.c.l.b16 %v6770
      %v7924 = vunpack.c.l.b16 %v6771
      %v7925 = vunpack.c.l.b16 %v6772
      %v7926 = vunpack.c.l.b16 %v6773
      %v7927 = vpack.c.b16 %v7880, %v7879
      %v7928 = vpack.c.b16 %v7881, %v7881
      %v7929 = vpack.c.b16 %v7883, %v7882
      %v7930 = vpack.c.b16 %v7884, %v7884
      %v7931 = vpack.c.b16 %v7886, %v7885
      %v7932 = vpack.c.b16 %v7887, %v7887
      %v7933 = vpack.c.b16 %v7889, %v7888
      %v7934 = vpack.c.b16 %v7890, %v7890
      %v7935 = vpack.c.b16 %v7892, %v7891
      %v7936 = vpack.c.b16 %v7893, %v7893
      %v7937 = vpack.c.b16 %v7895, %v7894
      %v7938 = vpack.c.b16 %v7896, %v7896
      %v7939 = vpack.c.b16 %v7898, %v7897
      %v7940 = vpack.c.b16 %v7899, %v7899
      %v7941 = vpack.c.b16 %v7901, %v7900
      %v7942 = vpack.c.b16 %v7902, %v7902
      %v7943 = vpack.c.b16 %v7904, %v7903
      %v7944 = vpack.c.b16 %v7905, %v7905
      %v7945 = vpack.c.b16 %v7907, %v7906
      %v7946 = vpack.c.b16 %v7908, %v7908
      %v7947 = vpack.c.b16 %v7910, %v7909
      %v7948 = vpack.c.b16 %v7911, %v7911
      %v7949 = vpack.c.b16 %v7913, %v7912
      %v7950 = vpack.c.b16 %v7914, %v7914
      %v7951 = vpack.c.b16 %v7916, %v7915
      %v7952 = vpack.c.b16 %v7917, %v7917
      %v7953 = vpack.c.b16 %v7919, %v7918
      %v7954 = vpack.c.b16 %v7920, %v7920
      %v7955 = vpack.c.b16 %v7922, %v7921
      %v7956 = vpack.c.b16 %v7923, %v7923
      %v7957 = vpack.c.b16 %v7925, %v7924
      %v7958 = vpack.c.b16 %v7926, %v7926
      %v7959 = vrot.slane %v7927, 1
      %v7960 = vrot.slane %v7928, 1
      %v7961 = vsel %vm7030, %v7959, %v7960
      %v7962 = vrot.slane %v7929, 1
      %v7963 = vrot.slane %v7930, 1
      %v7964 = vsel %vm7030, %v7962, %v7963
      %v7965 = vrot.slane %v7931, 1
      %v7966 = vrot.slane %v7932, 1
      %v7967 = vsel %vm7030, %v7965, %v7966
      %v7968 = vrot.slane %v7933, 1
      %v7969 = vrot.slane %v7934, 1
      %v7970 = vsel %vm7030, %v7968, %v7969
      %v7971 = vrot.slane %v7935, 1
      %v7972 = vrot.slane %v7936, 1
      %v7973 = vsel %vm7030, %v7971, %v7972
      %v7974 = vrot.slane %v7937, 1
      %v7975 = vrot.slane %v7938, 1
      %v7976 = vsel %vm7030, %v7974, %v7975
      %v7977 = vrot.slane %v7939, 1
      %v7978 = vrot.slane %v7940, 1
      %v7979 = vsel %vm7030, %v7977, %v7978
      %v7980 = vrot.slane %v7941, 1
      %v7981 = vrot.slane %v7942, 1
      %v7982 = vsel %vm7030, %v7980, %v7981
      %v7983 = vrot.slane %v7943, 1
      %v7984 = vrot.slane %v7944, 1
      %v7985 = vsel %vm7030, %v7983, %v7984
      %v7986 = vrot.slane %v7945, 1
      %v7987 = vrot.slane %v7946, 1
      %v7988 = vsel %vm7030, %v7986, %v7987
      %v7989 = vrot.slane %v7947, 1
      %v7990 = vrot.slane %v7948, 1
      %v7991 = vsel %vm7030, %v7989, %v7990
      %v7992 = vrot.slane %v7949, 1
      %v7993 = vrot.slane %v7950, 1
      %v7994 = vsel %vm7030, %v7992, %v7993
      %v7995 = vrot.slane %v7951, 1
      %v7996 = vrot.slane %v7952, 1
      %v7997 = vsel %vm7030, %v7995, %v7996
      %v7998 = vrot.slane %v7953, 1
      %v7999 = vrot.slane %v7954, 1
      %v8000 = vsel %vm7030, %v7998, %v7999
      %v8001 = vrot.slane %v7955, 1
      %v8002 = vrot.slane %v7956, 1
      %v8003 = vsel %vm7030, %v8001, %v8002
      %v8004 = vrot.slane %v7957, 1
      %v8005 = vrot.slane %v7958, 1
      %v8006 = vsel %vm7030, %v8004, %v8005
      %8007 = vrot.lane.b32.xlu0 %v7961, 28
      %v8008 = vpop.permute.xlu0 %8007
      %8009 = vrot.lane.b32.xlu0 %v7964, 28
      %v8010 = vpop.permute.xlu0 %8009
      %8011 = vrot.lane.b32.xlu0 %v7967, 28
      %v8012 = vpop.permute.xlu0 %8011
      %8013 = vrot.lane.b32.xlu0 %v7970, 28
      %v8014 = vpop.permute.xlu0 %8013
      %8015 = vrot.lane.b32.xlu0 %v7973, 28
      %v8016 = vpop.permute.xlu0 %8015
      %8017 = vrot.lane.b32.xlu0 %v7976, 28
      %v8018 = vpop.permute.xlu0 %8017
      %8019 = vrot.lane.b32.xlu0 %v7979, 28
      %v8020 = vpop.permute.xlu0 %8019
      %8021 = vrot.lane.b32.xlu0 %v7982, 28
      %v8022 = vpop.permute.xlu0 %8021
      %8023 = vrot.lane.b32.xlu0 %v7985, 28
      %v8024 = vpop.permute.xlu0 %8023
      %8025 = vrot.lane.b32.xlu0 %v7988, 28
      %v8026 = vpop.permute.xlu0 %8025
      %8027 = vrot.lane.b32.xlu0 %v7991, 28
      %v8028 = vpop.permute.xlu0 %8027
      %8029 = vrot.lane.b32.xlu0 %v7994, 28
      %v8030 = vpop.permute.xlu0 %8029
      %8031 = vrot.lane.b32.xlu0 %v7997, 28
      %v8032 = vpop.permute.xlu0 %8031
      %8033 = vrot.lane.b32.xlu0 %v8000, 28
      %v8034 = vpop.permute.xlu0 %8033
      %8035 = vrot.lane.b32.xlu0 %v8003, 28
      %v8036 = vpop.permute.xlu0 %8035
      %8037 = vrot.lane.b32.xlu0 %v8006, 28
      %v8038 = vpop.permute.xlu0 %8037
      %v8087 = vunpack.c.l.b16 %v6774
      %v8088 = vunpack.c.l.b16 %v6775
      %v8089 = vunpack.c.l.b16 %v6776
      %v8090 = vunpack.c.l.b16 %v6777
      %v8091 = vunpack.c.l.b16 %v6778
      %v8092 = vunpack.c.l.b16 %v6779
      %v8093 = vunpack.c.l.b16 %v6780
      %v8094 = vunpack.c.l.b16 %v6781
      %v8095 = vunpack.c.l.b16 %v6782
      %v8096 = vunpack.c.l.b16 %v6783
      %v8097 = vunpack.c.l.b16 %v6784
      %v8098 = vunpack.c.l.b16 %v6785
      %v8099 = vunpack.c.l.b16 %v6786
      %v8100 = vunpack.c.l.b16 %v6787
      %v8101 = vunpack.c.l.b16 %v6788
      %v8102 = vunpack.c.l.b16 %v6789
      %v8103 = vunpack.c.l.b16 %v6790
      %v8104 = vunpack.c.l.b16 %v6791
      %v8105 = vunpack.c.l.b16 %v6792
      %v8106 = vunpack.c.l.b16 %v6793
      %v8107 = vunpack.c.l.b16 %v6794
      %v8108 = vunpack.c.l.b16 %v6795
      %v8109 = vunpack.c.l.b16 %v6796
      %v8110 = vunpack.c.l.b16 %v6797
      %v8111 = vunpack.c.l.b16 %v6798
      %v8112 = vunpack.c.l.b16 %v6799
      %v8113 = vunpack.c.l.b16 %v6800
      %v8114 = vunpack.c.l.b16 %v6801
      %v8115 = vunpack.c.l.b16 %v6802
      %v8116 = vunpack.c.l.b16 %v6803
      %v8117 = vunpack.c.l.b16 %v6804
      %v8118 = vunpack.c.l.b16 %v6805
      %v8119 = vunpack.c.l.b16 %v6806
      %v8120 = vunpack.c.l.b16 %v6807
      %v8121 = vunpack.c.l.b16 %v6808
      %v8122 = vunpack.c.l.b16 %v6809
      %v8123 = vunpack.c.l.b16 %v6810
      %v8124 = vunpack.c.l.b16 %v6811
      %v8125 = vunpack.c.l.b16 %v6812
      %v8126 = vunpack.c.l.b16 %v6813
      %v8127 = vunpack.c.l.b16 %v6814
      %v8128 = vunpack.c.l.b16 %v6815
      %v8129 = vunpack.c.l.b16 %v6816
      %v8130 = vunpack.c.l.b16 %v6817
      %v8131 = vunpack.c.l.b16 %v6818
      %v8132 = vunpack.c.l.b16 %v6819
      %v8133 = vunpack.c.l.b16 %v6820
      %v8134 = vunpack.c.l.b16 %v6821
      %v8135 = vpack.c.b16 %v8088, %v8087
      %v8136 = vpack.c.b16 %v8089, %v8089
      %v8137 = vpack.c.b16 %v8091, %v8090
      %v8138 = vpack.c.b16 %v8092, %v8092
      %v8139 = vpack.c.b16 %v8094, %v8093
      %v8140 = vpack.c.b16 %v8095, %v8095
      %v8141 = vpack.c.b16 %v8097, %v8096
      %v8142 = vpack.c.b16 %v8098, %v8098
      %v8143 = vpack.c.b16 %v8100, %v8099
      %v8144 = vpack.c.b16 %v8101, %v8101
      %v8145 = vpack.c.b16 %v8103, %v8102
      %v8146 = vpack.c.b16 %v8104, %v8104
      %v8147 = vpack.c.b16 %v8106, %v8105
      %v8148 = vpack.c.b16 %v8107, %v8107
      %v8149 = vpack.c.b16 %v8109, %v8108
      %v8150 = vpack.c.b16 %v8110, %v8110
      %v8151 = vpack.c.b16 %v8112, %v8111
      %v8152 = vpack.c.b16 %v8113, %v8113
      %v8153 = vpack.c.b16 %v8115, %v8114
      %v8154 = vpack.c.b16 %v8116, %v8116
      %v8155 = vpack.c.b16 %v8118, %v8117
      %v8156 = vpack.c.b16 %v8119, %v8119
      %v8157 = vpack.c.b16 %v8121, %v8120
      %v8158 = vpack.c.b16 %v8122, %v8122
      %v8159 = vpack.c.b16 %v8124, %v8123
      %v8160 = vpack.c.b16 %v8125, %v8125
      %v8161 = vpack.c.b16 %v8127, %v8126
      %v8162 = vpack.c.b16 %v8128, %v8128
      %v8163 = vpack.c.b16 %v8130, %v8129
      %v8164 = vpack.c.b16 %v8131, %v8131
      %v8165 = vpack.c.b16 %v8133, %v8132
      %v8166 = vpack.c.b16 %v8134, %v8134
      %v8167 = vrot.slane %v8135, 2
      %v8168 = vrot.slane %v8136, 2
      %v8169 = vsel %vm6141, %v8167, %v8168
      %v8170 = vrot.slane %v8137, 2
      %v8171 = vrot.slane %v8138, 2
      %v8172 = vsel %vm6141, %v8170, %v8171
      %v8173 = vrot.slane %v8139, 2
      %v8174 = vrot.slane %v8140, 2
      %v8175 = vsel %vm6141, %v8173, %v8174
      %v8176 = vrot.slane %v8141, 2
      %v8177 = vrot.slane %v8142, 2
      %v8178 = vsel %vm6141, %v8176, %v8177
      %v8179 = vrot.slane %v8143, 2
      %v8180 = vrot.slane %v8144, 2
      %v8181 = vsel %vm6141, %v8179, %v8180
      %v8182 = vrot.slane %v8145, 2
      %v8183 = vrot.slane %v8146, 2
      %v8184 = vsel %vm6141, %v8182, %v8183
      %v8185 = vrot.slane %v8147, 2
      %v8186 = vrot.slane %v8148, 2
      %v8187 = vsel %vm6141, %v8185, %v8186
      %v8188 = vrot.slane %v8149, 2
      %v8189 = vrot.slane %v8150, 2
      %v8190 = vsel %vm6141, %v8188, %v8189
      %v8191 = vrot.slane %v8151, 2
      %v8192 = vrot.slane %v8152, 2
      %v8193 = vsel %vm6141, %v8191, %v8192
      %v8194 = vrot.slane %v8153, 2
      %v8195 = vrot.slane %v8154, 2
      %v8196 = vsel %vm6141, %v8194, %v8195
      %v8197 = vrot.slane %v8155, 2
      %v8198 = vrot.slane %v8156, 2
      %v8199 = vsel %vm6141, %v8197, %v8198
      %v8200 = vrot.slane %v8157, 2
      %v8201 = vrot.slane %v8158, 2
      %v8202 = vsel %vm6141, %v8200, %v8201
      %v8203 = vrot.slane %v8159, 2
      %v8204 = vrot.slane %v8160, 2
      %v8205 = vsel %vm6141, %v8203, %v8204
      %v8206 = vrot.slane %v8161, 2
      %v8207 = vrot.slane %v8162, 2
      %v8208 = vsel %vm6141, %v8206, %v8207
      %v8209 = vrot.slane %v8163, 2
      %v8210 = vrot.slane %v8164, 2
      %v8211 = vsel %vm6141, %v8209, %v8210
      %v8212 = vrot.slane %v8165, 2
      %v8213 = vrot.slane %v8166, 2
      %v8214 = vsel %vm6141, %v8212, %v8213
      %8215 = vrot.lane.b32.xlu0 %v8169, 32
      %v8216 = vpop.permute.xlu0 %8215
      %8217 = vrot.lane.b32.xlu0 %v8172, 32
      %v8218 = vpop.permute.xlu0 %8217
      %8219 = vrot.lane.b32.xlu0 %v8175, 32
      %v8220 = vpop.permute.xlu0 %8219
      %8221 = vrot.lane.b32.xlu0 %v8178, 32
      %v8222 = vpop.permute.xlu0 %8221
      %8223 = vrot.lane.b32.xlu0 %v8181, 32
      %v8224 = vpop.permute.xlu0 %8223
      %8225 = vrot.lane.b32.xlu0 %v8184, 32
      %v8226 = vpop.permute.xlu0 %8225
      %8227 = vrot.lane.b32.xlu0 %v8187, 32
      %v8228 = vpop.permute.xlu0 %8227
      %8229 = vrot.lane.b32.xlu0 %v8190, 32
      %v8230 = vpop.permute.xlu0 %8229
      %8231 = vrot.lane.b32.xlu0 %v8193, 32
      %v8232 = vpop.permute.xlu0 %8231
      %8233 = vrot.lane.b32.xlu0 %v8196, 32
      %v8234 = vpop.permute.xlu0 %8233
      %8235 = vrot.lane.b32.xlu0 %v8199, 32
      %v8236 = vpop.permute.xlu0 %8235
      %8237 = vrot.lane.b32.xlu0 %v8202, 32
      %v8238 = vpop.permute.xlu0 %8237
      %8239 = vrot.lane.b32.xlu0 %v8205, 32
      %v8240 = vpop.permute.xlu0 %8239
      %8241 = vrot.lane.b32.xlu0 %v8208, 32
      %v8242 = vpop.permute.xlu0 %8241
      %8243 = vrot.lane.b32.xlu0 %v8211, 32
      %v8244 = vpop.permute.xlu0 %8243
      %8245 = vrot.lane.b32.xlu0 %v8214, 32
      %v8246 = vpop.permute.xlu0 %8245
      %v8249 = vsel %vm589, %v6886, %v7080
      %v8252 = vsel %vm589, %v6887, %v7082
      %v8255 = vsel %vm589, %v6888, %v7084
      %v8258 = vsel %vm589, %v6889, %v7086
      %v8261 = vsel %vm589, %v6890, %v7088
      %v8264 = vsel %vm589, %v6891, %v7090
      %v8267 = vsel %vm589, %v6892, %v7092
      %v8270 = vsel %vm589, %v6893, %v7094
      %v8273 = vsel %vm589, %v6894, %v7096
      %v8276 = vsel %vm589, %v6895, %v7098
      %v8279 = vsel %vm589, %v6896, %v7100
      %v8282 = vsel %vm589, %v6897, %v7102
      %v8285 = vsel %vm589, %v6898, %v7104
      %v8288 = vsel %vm589, %v6899, %v7106
      %v8291 = vsel %vm589, %v6900, %v7108
      %v8294 = vsel %vm589, %v6901, %v7110
      %v8296 = vsel %vm3100, %v8249, %v7288
      %v8298 = vsel %vm3100, %v8252, %v7290
      %v8300 = vsel %vm3100, %v8255, %v7292
      %v8302 = vsel %vm3100, %v8258, %v7294
      %v8304 = vsel %vm3100, %v8261, %v7296
      %v8306 = vsel %vm3100, %v8264, %v7298
      %v8308 = vsel %vm3100, %v8267, %v7300
      %v8310 = vsel %vm3100, %v8270, %v7302
      %v8312 = vsel %vm3100, %v8273, %v7304
      %v8314 = vsel %vm3100, %v8276, %v7306
      %v8316 = vsel %vm3100, %v8279, %v7308
      %v8318 = vsel %vm3100, %v8282, %v7310
      %v8320 = vsel %vm3100, %v8285, %v7312
      %v8322 = vsel %vm3100, %v8288, %v7314
      %v8324 = vsel %vm3100, %v8291, %v7316
      %v8326 = vsel %vm3100, %v8294, %v7318
      %v8328 = vsel %vm3165, %v8296, %v7400
      %v8330 = vsel %vm3165, %v8298, %v7402
      %v8332 = vsel %vm3165, %v8300, %v7404
      %v8334 = vsel %vm3165, %v8302, %v7406
      %v8336 = vsel %vm3165, %v8304, %v7408
      %v8338 = vsel %vm3165, %v8306, %v7410
      %v8340 = vsel %vm3165, %v8308, %v7412
      %v8342 = vsel %vm3165, %v8310, %v7414
      %v8344 = vsel %vm3165, %v8312, %v7416
      %v8346 = vsel %vm3165, %v8314, %v7418
      %v8348 = vsel %vm3165, %v8316, %v7420
      %v8350 = vsel %vm3165, %v8318, %v7422
      %v8352 = vsel %vm3165, %v8320, %v7424
      %v8354 = vsel %vm3165, %v8322, %v7426
      %v8356 = vsel %vm3165, %v8324, %v7428
      %v8358 = vsel %vm3165, %v8326, %v7430
      %v8360 = vsel %vm3230, %v8328, %v7480
      %v8362 = vsel %vm3230, %v8330, %v7482
      %v8364 = vsel %vm3230, %v8332, %v7484
      %v8366 = vsel %vm3230, %v8334, %v7486
      %v8368 = vsel %vm3230, %v8336, %v7488
      %v8370 = vsel %vm3230, %v8338, %v7490
      %v8372 = vsel %vm3230, %v8340, %v7492
      %v8374 = vsel %vm3230, %v8342, %v7494
      %v8376 = vsel %vm3230, %v8344, %v7496
      %v8378 = vsel %vm3230, %v8346, %v7498
      %v8380 = vsel %vm3230, %v8348, %v7500
      %v8382 = vsel %vm3230, %v8350, %v7502
      %v8384 = vsel %vm3230, %v8352, %v7504
      %v8386 = vsel %vm3230, %v8354, %v7506
      %v8388 = vsel %vm3230, %v8356, %v7508
      %v8390 = vsel %vm3230, %v8358, %v7510
      %v8392 = vsel %vm3295, %v8360, %v7688
      %v8394 = vsel %vm3295, %v8362, %v7690
      %v8396 = vsel %vm3295, %v8364, %v7692
      %v8398 = vsel %vm3295, %v8366, %v7694
      %v8400 = vsel %vm3295, %v8368, %v7696
      %v8402 = vsel %vm3295, %v8370, %v7698
      %v8404 = vsel %vm3295, %v8372, %v7700
      %v8406 = vsel %vm3295, %v8374, %v7702
      %v8408 = vsel %vm3295, %v8376, %v7704
      %v8410 = vsel %vm3295, %v8378, %v7706
      %v8412 = vsel %vm3295, %v8380, %v7708
      %v8414 = vsel %vm3295, %v8382, %v7710
      %v8416 = vsel %vm3295, %v8384, %v7712
      %v8418 = vsel %vm3295, %v8386, %v7714
      %v8420 = vsel %vm3295, %v8388, %v7716
      %v8422 = vsel %vm3295, %v8390, %v7718
      %v8424 = vsel %vm3360, %v8392, %v7800
      %v8426 = vsel %vm3360, %v8394, %v7802
      %v8428 = vsel %vm3360, %v8396, %v7804
      %v8430 = vsel %vm3360, %v8398, %v7806
      %v8432 = vsel %vm3360, %v8400, %v7808
      %v8434 = vsel %vm3360, %v8402, %v7810
      %v8436 = vsel %vm3360, %v8404, %v7812
      %v8438 = vsel %vm3360, %v8406, %v7814
      %v8440 = vsel %vm3360, %v8408, %v7816
      %v8442 = vsel %vm3360, %v8410, %v7818
      %v8444 = vsel %vm3360, %v8412, %v7820
      %v8446 = vsel %vm3360, %v8414, %v7822
      %v8448 = vsel %vm3360, %v8416, %v7824
      %v8450 = vsel %vm3360, %v8418, %v7826
      %v8452 = vsel %vm3360, %v8420, %v7828
      %v8454 = vsel %vm3360, %v8422, %v7830
      %v8456 = vsel %vm3425, %v8424, %v8008
      %v8458 = vsel %vm3425, %v8426, %v8010
      %v8460 = vsel %vm3425, %v8428, %v8012
      %v8462 = vsel %vm3425, %v8430, %v8014
      %v8464 = vsel %vm3425, %v8432, %v8016
      %v8466 = vsel %vm3425, %v8434, %v8018
      %v8468 = vsel %vm3425, %v8436, %v8020
      %v8470 = vsel %vm3425, %v8438, %v8022
      %v8472 = vsel %vm3425, %v8440, %v8024
      %v8474 = vsel %vm3425, %v8442, %v8026
      %v8476 = vsel %vm3425, %v8444, %v8028
      %v8478 = vsel %vm3425, %v8446, %v8030
      %v8480 = vsel %vm3425, %v8448, %v8032
      %v8482 = vsel %vm3425, %v8450, %v8034
      %v8484 = vsel %vm3425, %v8452, %v8036
      %v8486 = vsel %vm3425, %v8454, %v8038
      %v8488 = vsel %vm3490, %v8456, %v8216
      %v8490 = vsel %vm3490, %v8458, %v8218
      %v8492 = vsel %vm3490, %v8460, %v8220
      %v8494 = vsel %vm3490, %v8462, %v8222
      %v8496 = vsel %vm3490, %v8464, %v8224
      %v8498 = vsel %vm3490, %v8466, %v8226
      %v8500 = vsel %vm3490, %v8468, %v8228
      %v8502 = vsel %vm3490, %v8470, %v8230
      %v8504 = vsel %vm3490, %v8472, %v8232
      %v8506 = vsel %vm3490, %v8474, %v8234
      %v8508 = vsel %vm3490, %v8476, %v8236
      %v8510 = vsel %vm3490, %v8478, %v8238
      %v8512 = vsel %vm3490, %v8480, %v8240
      %v8514 = vsel %vm3490, %v8482, %v8242
      %v8516 = vsel %vm3490, %v8484, %v8244
      %v8518 = vsel %vm3490, %v8486, %v8246
      %s8519 = scalar_lea.vmem %s3, 40
      %v8520 = vld [vmem:[%s8519] sm:$0xf]
      %v8521 = vld [vmem:[%s8519 + $0x4] sm:$0xf]
      %v8522 = vld [vmem:[%s8519 + $0x8] sm:$0xf]
      %v8523 = vld [vmem:[%s8519 + $0xc] sm:$0xf]
      %v8524 = vld [vmem:[%s8519 + $0x10] sm:$0x3]
      %s8525 = scalar_lea.vmem %s4, 2
      %v8526 = vld [vmem:[%s8525] sm:$0x1]
      %v8528 = vlaneseq
      %v8529 = vshrl.u32 %v8528, 7
      %v8530 = vsub.s32 0, %v8529
      %v8531 = vrot.slane %v8526, %v8530
      %v8538 = vunpack.c.l.b16 %v8520
      %v8539 = vunpack.c.l.b16 %v8521
      %v8540 = vunpack.c.l.b16 %v8522
      %v8541 = vunpack.c.l.b16 %v8523
      %v8542 = vunpack.c.l.b16 %v8524
      %v8543 = vpack.c.b16 %v8539, %v8538
      %v8544 = vpack.c.b16 %v8541, %v8540
      %v8545 = vpack.c.b16 %v8542, %v8542
      %v8548 = vsel %vm3663, %v8488, 0
      %v8550 = vsel %vm3663, %v8490, 0
      %v8552 = vsel %vm3663, %v8492, 0
      %v8554 = vsel %vm3663, %v8494, 0
      %v8556 = vsel %vm3663, %v8496, 0
      %v8558 = vsel %vm3663, %v8498, 0
      %v8560 = vsel %vm3663, %v8500, 0
      %v8562 = vsel %vm3663, %v8502, 0
      %v8564 = vsel %vm3663, %v8504, 0
      %v8566 = vsel %vm3663, %v8506, 0
      %v8568 = vsel %vm3663, %v8508, 0
      %v8570 = vsel %vm3663, %v8510, 0
      %v8572 = vsel %vm3663, %v8512, 0
      %v8574 = vsel %vm3663, %v8514, 0
      %v8576 = vsel %vm3663, %v8516, 0
      %v8578 = vsel %vm3663, %v8518, 0
      %v8581 = vsel %vm638, %v8545, 0
      %8583 = vmatprep.subr.bf16.mxu0 0
      %8584 = vmatpush1.bf16.msra.mxu0 %v8543
      %8585 = vmatprep.subr.bf16.mxu0 0
      %8586 = vmatpush1.bf16.msra.mxu0 %v8544
      %8587 = vmatprep.subr.bf16.mxu0 0
      %8588 = vmatpush1.bf16.msra.mxu0 %v8581
      %8589 = vmatprep.subr.bf16.mxu0 0
      %8590 = vmatpush1.bf16.msra.mxu0 0
      %8591 = vmatprep.subr.bf16.mxu0 0
      %8592 = vmatpush1.bf16.msra.mxu0 0
      %8593 = vmatprep.subr.bf16.mxu0 0
      %8594 = vmatpush1.bf16.msra.mxu0 0
      %8595 = vmatprep.subr.bf16.mxu0 0
      %8596 = vmatpush1.bf16.msra.mxu0 0
      %8597 = vmatprep.subr.bf16.mxu0 0
      %8598 = vmatpush1.bf16.msra.mxu0 0
      %8599 = vmatprep.subr.bf16.mxu0 0
      %8600 = vmatpush1.bf16.msra.mxu0 0
      %8601 = vmatprep.subr.bf16.mxu0 0
      %8602 = vmatpush1.bf16.msra.mxu0 0
      %8603 = vmatprep.subr.bf16.mxu0 0
      %8604 = vmatpush1.bf16.msra.mxu0 0
      %8605 = vmatprep.subr.bf16.mxu0 0
      %8606 = vmatpush1.bf16.msra.mxu0 0
      %8607 = vmatprep.subr.bf16.mxu0 0
      %8608 = vmatpush1.bf16.msra.mxu0 0
      %8609 = vmatprep.subr.bf16.mxu0 0
      %8610 = vmatpush1.bf16.msra.mxu0 0
      %8611 = vmatprep.subr.bf16.mxu0 0
      %8612 = vmatpush1.bf16.msra.mxu0 0
      %8613 = vmatprep.subr.bf16.mxu0 0
      %8614 = vmatpush1.bf16.msra.mxu0 0
      %8615 = vmatprep.mubr.bf16.mxu0 0
      %8616 = vmatmul.mubr.bf16.gmra.mrb[0].mxu0 %v8548
      %v8617 = vpop.f32.mrb[0].mxu0
      %v8618 = vadd.f32 %v8531, %v8617
      %v8619 = vpop.f32.mrb[0].mxu0
      %v8620 = vpop.f32.mrb[0].mxu0
      %v8621 = vadd.f32 %v8531, %v8620
      %v8622 = vpop.f32.mrb[0].mxu0
      %8623 = vmatprep.mubr.bf16.mxu0 0
      %8624 = vmatmul.mubr.bf16.gmra.mrb[0].mxu0 %v8550
      %v8625 = vpop.f32.mrb[0].mxu0
      %v8626 = vadd.f32 %v8531, %v8625
      %v8627 = vpop.f32.mrb[0].mxu0
      %v8628 = vpop.f32.mrb[0].mxu0
      %v8629 = vadd.f32 %v8531, %v8628
      %v8630 = vpop.f32.mrb[0].mxu0
      %8631 = vmatprep.mubr.bf16.mxu0 0
      %8632 = vmatmul.mubr.bf16.gmra.mrb[0].mxu0 %v8552
      %v8633 = vpop.f32.mrb[0].mxu0
      %v8634 = vadd.f32 %v8531, %v8633
      %v8635 = vpop.f32.mrb[0].mxu0
      %v8636 = vpop.f32.mrb[0].mxu0
      %v8637 = vadd.f32 %v8531, %v8636
      %v8638 = vpop.f32.mrb[0].mxu0
      %8639 = vmatprep.mubr.bf16.mxu0 0
      %8640 = vmatmul.mubr.bf16.gmra.mrb[0].mxu0 %v8554
      %v8641 = vpop.f32.mrb[0].mxu0
      %v8642 = vadd.f32 %v8531, %v8641
      %v8643 = vpop.f32.mrb[0].mxu0
      %v8644 = vpop.f32.mrb[0].mxu0
      %v8645 = vadd.f32 %v8531, %v8644
      %v8646 = vpop.f32.mrb[0].mxu0
      %8647 = vmatprep.mubr.bf16.mxu0 0
      %8648 = vmatmul.mubr.bf16.gmra.mrb[0].mxu0 %v8556
      %v8649 = vpop.f32.mrb[0].mxu0
      %v8650 = vadd.f32 %v8531, %v8649
      %v8651 = vpop.f32.mrb[0].mxu0
      %v8652 = vpop.f32.mrb[0].mxu0
      %v8653 = vadd.f32 %v8531, %v8652
      %v8654 = vpop.f32.mrb[0].mxu0
      %8655 = vmatprep.mubr.bf16.mxu0 0
      %8656 = vmatmul.mubr.bf16.gmra.mrb[0].mxu0 %v8558
      %v8657 = vpop.f32.mrb[0].mxu0
      %v8658 = vadd.f32 %v8531, %v8657
      %v8659 = vpop.f32.mrb[0].mxu0
      %v8660 = vpop.f32.mrb[0].mxu0
      %v8661 = vadd.f32 %v8531, %v8660
      %v8662 = vpop.f32.mrb[0].mxu0
      %8663 = vmatprep.mubr.bf16.mxu0 0
      %8664 = vmatmul.mubr.bf16.gmra.mrb[0].mxu0 %v8560
      %v8665 = vpop.f32.mrb[0].mxu0
      %v8666 = vadd.f32 %v8531, %v8665
      %v8667 = vpop.f32.mrb[0].mxu0
      %v8668 = vpop.f32.mrb[0].mxu0
      %v8669 = vadd.f32 %v8531, %v8668
      %v8670 = vpop.f32.mrb[0].mxu0
      %8671 = vmatprep.mubr.bf16.mxu0 0
      %8672 = vmatmul.mubr.bf16.gmra.mrb[0].mxu0 %v8562
      %v8673 = vpop.f32.mrb[0].mxu0
      %v8674 = vadd.f32 %v8531, %v8673
      %v8675 = vpop.f32.mrb[0].mxu0
      %v8676 = vpop.f32.mrb[0].mxu0
      %v8677 = vadd.f32 %v8531, %v8676
      %v8678 = vpop.f32.mrb[0].mxu0
      %8679 = vmatprep.mubr.bf16.mxu0 0
      %8680 = vmatmul.mubr.bf16.gmra.mrb[0].mxu0 %v8564
      %v8681 = vpop.f32.mrb[0].mxu0
      %v8682 = vadd.f32 %v8531, %v8681
      %v8683 = vpop.f32.mrb[0].mxu0
      %v8684 = vpop.f32.mrb[0].mxu0
      %v8685 = vadd.f32 %v8531, %v8684
      %v8686 = vpop.f32.mrb[0].mxu0
      %8687 = vmatprep.mubr.bf16.mxu0 0
      %8688 = vmatmul.mubr.bf16.gmra.mrb[0].mxu0 %v8566
      %v8689 = vpop.f32.mrb[0].mxu0
      %v8690 = vadd.f32 %v8531, %v8689
      %v8691 = vpop.f32.mrb[0].mxu0
      %v8692 = vpop.f32.mrb[0].mxu0
      %v8693 = vadd.f32 %v8531, %v8692
      %v8694 = vpop.f32.mrb[0].mxu0
      %8695 = vmatprep.mubr.bf16.mxu0 0
      %8696 = vmatmul.mubr.bf16.gmra.mrb[0].mxu0 %v8568
      %v8697 = vpop.f32.mrb[0].mxu0
      %v8698 = vadd.f32 %v8531, %v8697
      %v8699 = vpop.f32.mrb[0].mxu0
      %v8700 = vpop.f32.mrb[0].mxu0
      %v8701 = vadd.f32 %v8531, %v8700
      %v8702 = vpop.f32.mrb[0].mxu0
      %8703 = vmatprep.mubr.bf16.mxu0 0
      %8704 = vmatmul.mubr.bf16.gmra.mrb[0].mxu0 %v8570
      %v8705 = vpop.f32.mrb[0].mxu0
      %v8706 = vadd.f32 %v8531, %v8705
      %v8707 = vpop.f32.mrb[0].mxu0
      %v8708 = vpop.f32.mrb[0].mxu0
      %v8709 = vadd.f32 %v8531, %v8708
      %v8710 = vpop.f32.mrb[0].mxu0
      %8711 = vmatprep.mubr.bf16.mxu0 0
      %8712 = vmatmul.mubr.bf16.gmra.mrb[0].mxu0 %v8572
      %v8713 = vpop.f32.mrb[0].mxu0
      %v8714 = vadd.f32 %v8531, %v8713
      %v8715 = vpop.f32.mrb[0].mxu0
      %v8716 = vpop.f32.mrb[0].mxu0
      %v8717 = vadd.f32 %v8531, %v8716
      %v8718 = vpop.f32.mrb[0].mxu0
      %8719 = vmatprep.mubr.bf16.mxu0 0
      %8720 = vmatmul.mubr.bf16.gmra.mrb[0].mxu0 %v8574
      %v8721 = vpop.f32.mrb[0].mxu0
      %v8722 = vadd.f32 %v8531, %v8721
      %v8723 = vpop.f32.mrb[0].mxu0
      %v8724 = vpop.f32.mrb[0].mxu0
      %v8725 = vadd.f32 %v8531, %v8724
      %v8726 = vpop.f32.mrb[0].mxu0
      %8727 = vmatprep.mubr.bf16.mxu0 0
      %8728 = vmatmul.mubr.bf16.gmra.mrb[0].mxu0 %v8576
      %v8729 = vpop.f32.mrb[0].mxu0
      %v8730 = vadd.f32 %v8531, %v8729
      %v8731 = vpop.f32.mrb[0].mxu0
      %v8732 = vpop.f32.mrb[0].mxu0
      %v8733 = vadd.f32 %v8531, %v8732
      %v8734 = vpop.f32.mrb[0].mxu0
      %8735 = vmatprep.mubr.bf16.mxu0 0
      %8736 = vmatmul.mubr.bf16.gmra.mrb[0].mxu0 %v8578
      %v8737 = vpop.f32.mrb[0].mxu0
      %v8738 = vadd.f32 %v8531, %v8737
      %v8739 = vpop.f32.mrb[0].mxu0
      %v8740 = vpop.f32.mrb[0].mxu0
      %v8741 = vadd.f32 %v8531, %v8740
      %v8742 = vpop.f32.mrb[0].mxu0
      %8743 = vdwg.mxu0
      %v8744 = vmax.f32 %v8618, 0.0
      %v8745 = vmax.f32 %v8621, 0.0
      %v8746 = vmax.f32 %v8626, 0.0
      %v8747 = vmax.f32 %v8629, 0.0
      %v8748 = vmax.f32 %v8634, 0.0
      %v8749 = vmax.f32 %v8637, 0.0
      %v8750 = vmax.f32 %v8642, 0.0
      %v8751 = vmax.f32 %v8645, 0.0
      %v8752 = vmax.f32 %v8650, 0.0
      %v8753 = vmax.f32 %v8653, 0.0
      %v8754 = vmax.f32 %v8658, 0.0
      %v8755 = vmax.f32 %v8661, 0.0
      %v8756 = vmax.f32 %v8666, 0.0
      %v8757 = vmax.f32 %v8669, 0.0
      %v8758 = vmax.f32 %v8674, 0.0
      %v8759 = vmax.f32 %v8677, 0.0
      %v8760 = vmax.f32 %v8682, 0.0
      %v8761 = vmax.f32 %v8685, 0.0
      %v8762 = vmax.f32 %v8690, 0.0
      %v8763 = vmax.f32 %v8693, 0.0
      %v8764 = vmax.f32 %v8698, 0.0
      %v8765 = vmax.f32 %v8701, 0.0
      %v8766 = vmax.f32 %v8706, 0.0
      %v8767 = vmax.f32 %v8709, 0.0
      %v8768 = vmax.f32 %v8714, 0.0
      %v8769 = vmax.f32 %v8717, 0.0
      %v8770 = vmax.f32 %v8722, 0.0
      %v8771 = vmax.f32 %v8725, 0.0
      %v8772 = vmax.f32 %v8730, 0.0
      %v8773 = vmax.f32 %v8733, 0.0
      %v8774 = vmax.f32 %v8738, 0.0
      %v8775 = vmax.f32 %v8741, 0.0
      %v8776 = vpack.c.bf16 %v8745, %v8744
      %v8777 = vpack.c.bf16 %v8747, %v8746
      %v8778 = vpack.c.bf16 %v8749, %v8748
      %v8779 = vpack.c.bf16 %v8751, %v8750
      %v8780 = vpack.c.bf16 %v8753, %v8752
      %v8781 = vpack.c.bf16 %v8755, %v8754
      %v8782 = vpack.c.bf16 %v8757, %v8756
      %v8783 = vpack.c.bf16 %v8759, %v8758
      %v8784 = vpack.c.bf16 %v8761, %v8760
      %v8785 = vpack.c.bf16 %v8763, %v8762
      %v8786 = vpack.c.bf16 %v8765, %v8764
      %v8787 = vpack.c.bf16 %v8767, %v8766
      %v8788 = vpack.c.bf16 %v8769, %v8768
      %v8789 = vpack.c.bf16 %v8771, %v8770
      %v8790 = vpack.c.bf16 %v8773, %v8772
      %v8791 = vpack.c.bf16 %v8775, %v8774
      %8808 = vrot.lane.b32.xlu0 %v3908, 32
      %v8809 = vpop.permute.xlu0 %8808
      %8810 = vrot.lane.b32.xlu0 %v3909, 32
      %v8811 = vpop.permute.xlu0 %8810
      %8812 = vrot.lane.b32.xlu0 %v3910, 32
      %v8813 = vpop.permute.xlu0 %8812
      %8814 = vrot.lane.b32.xlu0 %v3911, 32
      %v8815 = vpop.permute.xlu0 %8814
      %8816 = vrot.lane.b32.xlu0 %v3912, 32
      %v8817 = vpop.permute.xlu0 %8816
      %8818 = vrot.lane.b32.xlu0 %v3913, 32
      %v8819 = vpop.permute.xlu0 %8818
      %8820 = vrot.lane.b32.xlu0 %v3914, 32
      %v8821 = vpop.permute.xlu0 %8820
      %8822 = vrot.lane.b32.xlu0 %v3915, 32
      %v8823 = vpop.permute.xlu0 %8822
      %8824 = vrot.lane.b32.xlu0 %v3916, 32
      %v8825 = vpop.permute.xlu0 %8824
      %8826 = vrot.lane.b32.xlu0 %v3917, 32
      %v8827 = vpop.permute.xlu0 %8826
      %8828 = vrot.lane.b32.xlu0 %v3918, 32
      %v8829 = vpop.permute.xlu0 %8828
      %8830 = vrot.lane.b32.xlu0 %v3919, 32
      %v8831 = vpop.permute.xlu0 %8830
      %8832 = vrot.lane.b32.xlu0 %v3920, 32
      %v8833 = vpop.permute.xlu0 %8832
      %8834 = vrot.lane.b32.xlu0 %v3921, 32
      %v8835 = vpop.permute.xlu0 %8834
      %8836 = vrot.lane.b32.xlu0 %v3922, 32
      %v8837 = vpop.permute.xlu0 %8836
      %8838 = vrot.lane.b32.xlu0 %v3923, 32
      %v8839 = vpop.permute.xlu0 %8838
      %8856 = vrot.lane.b32.xlu0 %v6463, 64
      %v8857 = vpop.permute.xlu0 %8856
      %8858 = vrot.lane.b32.xlu0 %v6464, 64
      %v8859 = vpop.permute.xlu0 %8858
      %8860 = vrot.lane.b32.xlu0 %v6465, 64
      %v8861 = vpop.permute.xlu0 %8860
      %8862 = vrot.lane.b32.xlu0 %v6466, 64
      %v8863 = vpop.permute.xlu0 %8862
      %8864 = vrot.lane.b32.xlu0 %v6467, 64
      %v8865 = vpop.permute.xlu0 %8864
      %8866 = vrot.lane.b32.xlu0 %v6468, 64
      %v8867 = vpop.permute.xlu0 %8866
      %8868 = vrot.lane.b32.xlu0 %v6469, 64
      %v8869 = vpop.permute.xlu0 %8868
      %8870 = vrot.lane.b32.xlu0 %v6470, 64
      %v8871 = vpop.permute.xlu0 %8870
      %8872 = vrot.lane.b32.xlu0 %v6471, 64
      %v8873 = vpop.permute.xlu0 %8872
      %8874 = vrot.lane.b32.xlu0 %v6472, 64
      %v8875 = vpop.permute.xlu0 %8874
      %8876 = vrot.lane.b32.xlu0 %v6473, 64
      %v8877 = vpop.permute.xlu0 %8876
      %8878 = vrot.lane.b32.xlu0 %v6474, 64
      %v8879 = vpop.permute.xlu0 %8878
      %8880 = vrot.lane.b32.xlu0 %v6475, 64
      %v8881 = vpop.permute.xlu0 %8880
      %8882 = vrot.lane.b32.xlu0 %v6476, 64
      %v8883 = vpop.permute.xlu0 %8882
      %8884 = vrot.lane.b32.xlu0 %v6477, 64
      %v8885 = vpop.permute.xlu0 %8884
      %8886 = vrot.lane.b32.xlu0 %v6478, 64
      %v8887 = vpop.permute.xlu0 %8886
      %8904 = vrot.lane.b32.xlu0 %v8776, 96
      %v8905 = vpop.permute.xlu0 %8904
      %8906 = vrot.lane.b32.xlu0 %v8777, 96
      %v8907 = vpop.permute.xlu0 %8906
      %8908 = vrot.lane.b32.xlu0 %v8778, 96
      %v8909 = vpop.permute.xlu0 %8908
      %8910 = vrot.lane.b32.xlu0 %v8779, 96
      %v8911 = vpop.permute.xlu0 %8910
      %8912 = vrot.lane.b32.xlu0 %v8780, 96
      %v8913 = vpop.permute.xlu0 %8912
      %8914 = vrot.lane.b32.xlu0 %v8781, 96
      %v8915 = vpop.permute.xlu0 %8914
      %8916 = vrot.lane.b32.xlu0 %v8782, 96
      %v8917 = vpop.permute.xlu0 %8916
      %8918 = vrot.lane.b32.xlu0 %v8783, 96
      %v8919 = vpop.permute.xlu0 %8918
      %8920 = vrot.lane.b32.xlu0 %v8784, 96
      %v8921 = vpop.permute.xlu0 %8920
      %8922 = vrot.lane.b32.xlu0 %v8785, 96
      %v8923 = vpop.permute.xlu0 %8922
      %8924 = vrot.lane.b32.xlu0 %v8786, 96
      %v8925 = vpop.permute.xlu0 %8924
      %8926 = vrot.lane.b32.xlu0 %v8787, 96
      %v8927 = vpop.permute.xlu0 %8926
      %8928 = vrot.lane.b32.xlu0 %v8788, 96
      %v8929 = vpop.permute.xlu0 %8928
      %8930 = vrot.lane.b32.xlu0 %v8789, 96
      %v8931 = vpop.permute.xlu0 %8930
      %8932 = vrot.lane.b32.xlu0 %v8790, 96
      %v8933 = vpop.permute.xlu0 %8932
      %8934 = vrot.lane.b32.xlu0 %v8791, 96
      %v8935 = vpop.permute.xlu0 %8934
      %v8938 = vsel %vm3490, %v835, %v8809
      %v8941 = vsel %vm3490, %v836, %v8811
      %v8944 = vsel %vm3490, %v837, %v8813
      %v8947 = vsel %vm3490, %v838, %v8815
      %v8950 = vsel %vm3490, %v839, %v8817
      %v8953 = vsel %vm3490, %v840, %v8819
      %v8956 = vsel %vm3490, %v841, %v8821
      %v8959 = vsel %vm3490, %v842, %v8823
      %v8962 = vsel %vm3490, %v843, %v8825
      %v8965 = vsel %vm3490, %v844, %v8827
      %v8968 = vsel %vm3490, %v845, %v8829
      %v8971 = vsel %vm3490, %v846, %v8831
      %v8974 = vsel %vm3490, %v847, %v8833
      %v8977 = vsel %vm3490, %v848, %v8835
      %v8980 = vsel %vm3490, %v849, %v8837
      %v8983 = vsel %vm3490, %v850, %v8839
      %vm8984 = vcmask 523264
      %v8986 = vsel %vm8984, %v8938, %v8857
      %v8988 = vsel %vm8984, %v8941, %v8859
      %v8990 = vsel %vm8984, %v8944, %v8861
      %v8992 = vsel %vm8984, %v8947, %v8863
      %v8994 = vsel %vm8984, %v8950, %v8865
      %v8996 = vsel %vm8984, %v8953, %v8867
      %v8998 = vsel %vm8984, %v8956, %v8869
      %v9000 = vsel %vm8984, %v8959, %v8871
      %v9002 = vsel %vm8984, %v8962, %v8873
      %v9004 = vsel %vm8984, %v8965, %v8875
      %v9006 = vsel %vm8984, %v8968, %v8877
      %v9008 = vsel %vm8984, %v8971, %v8879
      %v9010 = vsel %vm8984, %v8974, %v8881
      %v9012 = vsel %vm8984, %v8977, %v8883
      %v9014 = vsel %vm8984, %v8980, %v8885
      %v9016 = vsel %vm8984, %v8983, %v8887
      %vm9017 = vcmask 785408
      %v9019 = vsel %vm9017, %v8986, %v8905
      %v9022 = vsel %vm9017, %v8988, %v8907
      %v9025 = vsel %vm9017, %v8990, %v8909
      %v9028 = vsel %vm9017, %v8992, %v8911
      %v9031 = vsel %vm9017, %v8994, %v8913
      %v9034 = vsel %vm9017, %v8996, %v8915
      %v9037 = vsel %vm9017, %v8998, %v8917
      %v9040 = vsel %vm9017, %v9000, %v8919
      %v9043 = vsel %vm9017, %v9002, %v8921
      %v9046 = vsel %vm9017, %v9004, %v8923
      %v9049 = vsel %vm9017, %v9006, %v8925
      %v9052 = vsel %vm9017, %v9008, %v8927
      %v9055 = vsel %vm9017, %v9010, %v8929
      %v9058 = vsel %vm9017, %v9012, %v8931
      %v9061 = vsel %vm9017, %v9014, %v8933
      %v9064 = vsel %vm9017, %v9016, %v8935
      %v9066 = vld [vmem:[%s5] sm:$0xf]
      %v9067 = vld [vmem:[%s5 + $0x4] sm:$0xf]
      %v9068 = vld [vmem:[%s5 + $0x8] sm:$0xf]
      %v9069 = vld [vmem:[%s5 + $0xc] sm:$0xf]
      %v9070 = vld [vmem:[%s5 + $0x10] sm:$0xf]
      %v9071 = vld [vmem:[%s5 + $0x14] sm:$0xf]
      %v9072 = vld [vmem:[%s5 + $0x18] sm:$0xf]
      %v9073 = vld [vmem:[%s5 + $0x1c] sm:$0xf]
      %v9074 = vld [vmem:[%s5 + $0x20] sm:$0xf]
      %v9075 = vld [vmem:[%s5 + $0x24] sm:$0xf]
      %v9076 = vld [vmem:[%s5 + $0x28] sm:$0xf]
      %v9077 = vld [vmem:[%s5 + $0x2c] sm:$0xf]
      %v9078 = vld [vmem:[%s5 + $0x30] sm:$0xf]
      %v9079 = vld [vmem:[%s5 + $0x34] sm:$0xf]
      %v9080 = vld [vmem:[%s5 + $0x38] sm:$0xf]
      %v9081 = vld [vmem:[%s5 + $0x3c] sm:$0xf]
      %v9082 = vld [vmem:[%s305] sm:$0x1]
      %v9084 = vlaneseq
      %v9085 = vshrl.u32 %v9084, 7
      %v9086 = vsub.s32 0, %v9085
      %v9087 = vrot.slane %v9082, %v9086
      %v9105 = vunpack.c.l.b16 %v9066
      %v9106 = vunpack.c.l.b16 %v9067
      %v9107 = vunpack.c.l.b16 %v9068
      %v9108 = vunpack.c.l.b16 %v9069
      %v9109 = vunpack.c.l.b16 %v9070
      %v9110 = vunpack.c.l.b16 %v9071
      %v9111 = vunpack.c.l.b16 %v9072
      %v9112 = vunpack.c.l.b16 %v9073
      %v9113 = vunpack.c.l.b16 %v9074
      %v9114 = vunpack.c.l.b16 %v9075
      %v9115 = vunpack.c.l.b16 %v9076
      %v9116 = vunpack.c.l.b16 %v9077
      %v9117 = vunpack.c.l.b16 %v9078
      %v9118 = vunpack.c.l.b16 %v9079
      %v9119 = vunpack.c.l.b16 %v9080
      %v9120 = vunpack.c.l.b16 %v9081
      %v9121 = vpack.c.b16 %v9106, %v9105
      %v9122 = vpack.c.b16 %v9108, %v9107
      %v9123 = vpack.c.b16 %v9110, %v9109
      %v9124 = vpack.c.b16 %v9112, %v9111
      %v9125 = vpack.c.b16 %v9114, %v9113
      %v9126 = vpack.c.b16 %v9116, %v9115
      %v9127 = vpack.c.b16 %v9118, %v9117
      %v9128 = vpack.c.b16 %v9120, %v9119
      %9137 = vmatprep.subr.bf16.mxu0 0
      %9138 = vmatpush1.bf16.msra.mxu0 %v9121
      %9139 = vmatprep.subr.bf16.mxu0 0
      %9140 = vmatpush1.bf16.msra.mxu0 %v9122
      %9141 = vmatprep.subr.bf16.mxu0 0
      %9142 = vmatpush1.bf16.msra.mxu0 %v9123
      %9143 = vmatprep.subr.bf16.mxu0 0
      %9144 = vmatpush1.bf16.msra.mxu0 %v9124
      %9145 = vmatprep.subr.bf16.mxu0 0
      %9146 = vmatpush1.bf16.msra.mxu0 %v9125
      %9147 = vmatprep.subr.bf16.mxu0 0
      %9148 = vmatpush1.bf16.msra.mxu0 %v9126
      %9149 = vmatprep.subr.bf16.mxu0 0
      %9150 = vmatpush1.bf16.msra.mxu0 %v9127
      %9151 = vmatprep.subr.bf16.mxu0 0
      %9152 = vmatpush1.bf16.msra.mxu0 %v9128
      %9153 = vmatprep.subr.bf16.mxu0 0
      %9154 = vmatpush1.bf16.msra.mxu0 0
      %9155 = vmatprep.subr.bf16.mxu0 0
      %9156 = vmatpush1.bf16.msra.mxu0 0
      %9157 = vmatprep.subr.bf16.mxu0 0
      %9158 = vmatpush1.bf16.msra.mxu0 0
      %9159 = vmatprep.subr.bf16.mxu0 0
      %9160 = vmatpush1.bf16.msra.mxu0 0
      %9161 = vmatprep.subr.bf16.mxu0 0
      %9162 = vmatpush1.bf16.msra.mxu0 0
      %9163 = vmatprep.subr.bf16.mxu0 0
      %9164 = vmatpush1.bf16.msra.mxu0 0
      %9165 = vmatprep.subr.bf16.mxu0 0
      %9166 = vmatpush1.bf16.msra.mxu0 0
      %9167 = vmatprep.subr.bf16.mxu0 0
      %9168 = vmatpush1.bf16.msra.mxu0 0
      %9169 = vmatprep.mubr.bf16.mxu0 0
      %9170 = vmatmul.mubr.bf16.gmra.mrb[0].mxu0 %v9019
      %v9171 = vpop.f32.mrb[0].mxu0
      %v9172 = vadd.f32 %v9087, %v9171
      %v9173 = vpop.f32.mrb[0].mxu0
      %v9174 = vpop.f32.mrb[0].mxu0
      %v9175 = vadd.f32 %v9087, %v9174
      %v9176 = vpop.f32.mrb[0].mxu0
      %9177 = vmatprep.mubr.bf16.mxu0 0
      %9178 = vmatmul.mubr.bf16.gmra.mrb[0].mxu0 %v9022
      %v9179 = vpop.f32.mrb[0].mxu0
      %v9180 = vadd.f32 %v9087, %v9179
      %v9181 = vpop.f32.mrb[0].mxu0
      %v9182 = vpop.f32.mrb[0].mxu0
      %v9183 = vadd.f32 %v9087, %v9182
      %v9184 = vpop.f32.mrb[0].mxu0
      %9185 = vmatprep.mubr.bf16.mxu0 0
      %9186 = vmatmul.mubr.bf16.gmra.mrb[0].mxu0 %v9025
      %v9187 = vpop.f32.mrb[0].mxu0
      %v9188 = vadd.f32 %v9087, %v9187
      %v9189 = vpop.f32.mrb[0].mxu0
      %v9190 = vpop.f32.mrb[0].mxu0
      %v9191 = vadd.f32 %v9087, %v9190
      %v9192 = vpop.f32.mrb[0].mxu0
      %9193 = vmatprep.mubr.bf16.mxu0 0
      %9194 = vmatmul.mubr.bf16.gmra.mrb[0].mxu0 %v9028
      %v9195 = vpop.f32.mrb[0].mxu0
      %v9196 = vadd.f32 %v9087, %v9195
      %v9197 = vpop.f32.mrb[0].mxu0
      %v9198 = vpop.f32.mrb[0].mxu0
      %v9199 = vadd.f32 %v9087, %v9198
      %v9200 = vpop.f32.mrb[0].mxu0
      %9201 = vmatprep.mubr.bf16.mxu0 0
      %9202 = vmatmul.mubr.bf16.gmra.mrb[0].mxu0 %v9031
      %v9203 = vpop.f32.mrb[0].mxu0
      %v9204 = vadd.f32 %v9087, %v9203
      %v9205 = vpop.f32.mrb[0].mxu0
      %v9206 = vpop.f32.mrb[0].mxu0
      %v9207 = vadd.f32 %v9087, %v9206
      %v9208 = vpop.f32.mrb[0].mxu0
      %9209 = vmatprep.mubr.bf16.mxu0 0
      %9210 = vmatmul.mubr.bf16.gmra.mrb[0].mxu0 %v9034
      %v9211 = vpop.f32.mrb[0].mxu0
      %v9212 = vadd.f32 %v9087, %v9211
      %v9213 = vpop.f32.mrb[0].mxu0
      %v9214 = vpop.f32.mrb[0].mxu0
      %v9215 = vadd.f32 %v9087, %v9214
      %v9216 = vpop.f32.mrb[0].mxu0
      %9217 = vmatprep.mubr.bf16.mxu0 0
      %9218 = vmatmul.mubr.bf16.gmra.mrb[0].mxu0 %v9037
      %v9219 = vpop.f32.mrb[0].mxu0
      %v9220 = vadd.f32 %v9087, %v9219
      %v9221 = vpop.f32.mrb[0].mxu0
      %v9222 = vpop.f32.mrb[0].mxu0
      %v9223 = vadd.f32 %v9087, %v9222
      %v9224 = vpop.f32.mrb[0].mxu0
      %9225 = vmatprep.mubr.bf16.mxu0 0
      %9226 = vmatmul.mubr.bf16.gmra.mrb[0].mxu0 %v9040
      %v9227 = vpop.f32.mrb[0].mxu0
      %v9228 = vadd.f32 %v9087, %v9227
      %v9229 = vpop.f32.mrb[0].mxu0
      %v9230 = vpop.f32.mrb[0].mxu0
      %v9231 = vadd.f32 %v9087, %v9230
      %v9232 = vpop.f32.mrb[0].mxu0
      %9233 = vmatprep.mubr.bf16.mxu0 0
      %9234 = vmatmul.mubr.bf16.gmra.mrb[0].mxu0 %v9043
      %v9235 = vpop.f32.mrb[0].mxu0
      %v9236 = vadd.f32 %v9087, %v9235
      %v9237 = vpop.f32.mrb[0].mxu0
      %v9238 = vpop.f32.mrb[0].mxu0
      %v9239 = vadd.f32 %v9087, %v9238
      %v9240 = vpop.f32.mrb[0].mxu0
      %9241 = vmatprep.mubr.bf16.mxu0 0
      %9242 = vmatmul.mubr.bf16.gmra.mrb[0].mxu0 %v9046
      %v9243 = vpop.f32.mrb[0].mxu0
      %v9244 = vadd.f32 %v9087, %v9243
      %v9245 = vpop.f32.mrb[0].mxu0
      %v9246 = vpop.f32.mrb[0].mxu0
      %v9247 = vadd.f32 %v9087, %v9246
      %v9248 = vpop.f32.mrb[0].mxu0
      %9249 = vmatprep.mubr.bf16.mxu0 0
      %9250 = vmatmul.mubr.bf16.gmra.mrb[0].mxu0 %v9049
      %v9251 = vpop.f32.mrb[0].mxu0
      %v9252 = vadd.f32 %v9087, %v9251
      %v9253 = vpop.f32.mrb[0].mxu0
      %v9254 = vpop.f32.mrb[0].mxu0
      %v9255 = vadd.f32 %v9087, %v9254
      %v9256 = vpop.f32.mrb[0].mxu0
      %9257 = vmatprep.mubr.bf16.mxu0 0
      %9258 = vmatmul.mubr.bf16.gmra.mrb[0].mxu0 %v9052
      %v9259 = vpop.f32.mrb[0].mxu0
      %v9260 = vadd.f32 %v9087, %v9259
      %v9261 = vpop.f32.mrb[0].mxu0
      %v9262 = vpop.f32.mrb[0].mxu0
      %v9263 = vadd.f32 %v9087, %v9262
      %v9264 = vpop.f32.mrb[0].mxu0
      %9265 = vmatprep.mubr.bf16.mxu0 0
      %9266 = vmatmul.mubr.bf16.gmra.mrb[0].mxu0 %v9055
      %v9267 = vpop.f32.mrb[0].mxu0
      %v9268 = vadd.f32 %v9087, %v9267
      %v9269 = vpop.f32.mrb[0].mxu0
      %v9270 = vpop.f32.mrb[0].mxu0
      %v9271 = vadd.f32 %v9087, %v9270
      %v9272 = vpop.f32.mrb[0].mxu0
      %9273 = vmatprep.mubr.bf16.mxu0 0
      %9274 = vmatmul.mubr.bf16.gmra.mrb[0].mxu0 %v9058
      %v9275 = vpop.f32.mrb[0].mxu0
      %v9276 = vadd.f32 %v9087, %v9275
      %v9277 = vpop.f32.mrb[0].mxu0
      %v9278 = vpop.f32.mrb[0].mxu0
      %v9279 = vadd.f32 %v9087, %v9278
      %v9280 = vpop.f32.mrb[0].mxu0
      %9281 = vmatprep.mubr.bf16.mxu0 0
      %9282 = vmatmul.mubr.bf16.gmra.mrb[0].mxu0 %v9061
      %v9283 = vpop.f32.mrb[0].mxu0
      %v9284 = vadd.f32 %v9087, %v9283
      %v9285 = vpop.f32.mrb[0].mxu0
      %v9286 = vpop.f32.mrb[0].mxu0
      %v9287 = vadd.f32 %v9087, %v9286
      %v9288 = vpop.f32.mrb[0].mxu0
      %9289 = vmatprep.mubr.bf16.mxu0 0
      %9290 = vmatmul.mubr.bf16.gmra.mrb[0].mxu0 %v9064
      %v9291 = vpop.f32.mrb[0].mxu0
      %v9292 = vadd.f32 %v9087, %v9291
      %v9293 = vpop.f32.mrb[0].mxu0
      %v9294 = vpop.f32.mrb[0].mxu0
      %v9295 = vadd.f32 %v9087, %v9294
      %v9296 = vpop.f32.mrb[0].mxu0
      %9297 = vdwg.mxu0
      %9298 = vxpose.xlu0.b32.start [1/16] %v9172, 128
      %9299 = vxpose.xlu0.b32.cont [2/16] %v9175, 128
      %9300 = vxpose.xlu0.b32.cont [3/16] %v9180, 128
      %9301 = vxpose.xlu0.b32.cont [4/16] %v9183, 128
      %9302 = vxpose.xlu0.b32.cont [5/16] %v9188, 128
      %9303 = vxpose.xlu0.b32.cont [6/16] %v9191, 128
      %9304 = vxpose.xlu0.b32.cont [7/16] %v9196, 128
      %9305 = vxpose.xlu0.b32.cont [8/16] %v9199, 128
      %9306 = vxpose.xlu0.b32.cont [9/16] %v9204, 128
      %9307 = vxpose.xlu0.b32.cont [10/16] %v9207, 128
      %9308 = vxpose.xlu0.b32.cont [11/16] %v9212, 128
      %9309 = vxpose.xlu0.b32.cont [12/16] %v9215, 128
      %9310 = vxpose.xlu0.b32.cont [13/16] %v9220, 128
      %9311 = vxpose.xlu0.b32.cont [14/16] %v9223, 128
      %9312 = vxpose.xlu0.b32.cont [15/16] %v9228, 128
      %9313 = vxpose.xlu0.b32.end [16/16] %v9231, 128
      %v9314 = vpop.trf.xlu0
      %v9315 = vpop.trf.xlu0
      %v9316 = vpop.trf.xlu0
      %v9317 = vpop.trf.xlu0
      %v9318 = vpop.trf.xlu0
      %v9319 = vpop.trf.xlu0
      %v9320 = vpop.trf.xlu0
      %v9321 = vpop.trf.xlu0
      %v9322 = vpop.trf.xlu0
      %v9323 = vpop.trf.xlu0
      %v9324 = vpop.trf.xlu0
      %v9325 = vpop.trf.xlu0
      %v9326 = vpop.trf.xlu0
      %v9327 = vpop.trf.xlu0
      %v9328 = vpop.trf.xlu0
      %v9329 = vpop.trf.xlu0
      %9330 = vxpose.xlu0.b32.start [1/16] %v9236, 128
      %9331 = vxpose.xlu0.b32.cont [2/16] %v9239, 128
      %9332 = vxpose.xlu0.b32.cont [3/16] %v9244, 128
      %9333 = vxpose.xlu0.b32.cont [4/16] %v9247, 128
      %9334 = vxpose.xlu0.b32.cont [5/16] %v9252, 128
      %9335 = vxpose.xlu0.b32.cont [6/16] %v9255, 128
      %9336 = vxpose.xlu0.b32.cont [7/16] %v9260, 128
      %9337 = vxpose.xlu0.b32.cont [8/16] %v9263, 128
      %9338 = vxpose.xlu0.b32.cont [9/16] %v9268, 128
      %9339 = vxpose.xlu0.b32.cont [10/16] %v9271, 128
      %9340 = vxpose.xlu0.b32.cont [11/16] %v9276, 128
      %9341 = vxpose.xlu0.b32.cont [12/16] %v9279, 128
      %9342 = vxpose.xlu0.b32.cont [13/16] %v9284, 128
      %9343 = vxpose.xlu0.b32.cont [14/16] %v9287, 128
      %9344 = vxpose.xlu0.b32.cont [15/16] %v9292, 128
      %9345 = vxpose.xlu0.b32.end [16/16] %v9295, 128
      %v9346 = vpop.trf.xlu0
      %v9347 = vpop.trf.xlu0
      %v9348 = vpop.trf.xlu0
      %v9349 = vpop.trf.xlu0
      %v9350 = vpop.trf.xlu0
      %v9351 = vpop.trf.xlu0
      %v9352 = vpop.trf.xlu0
      %v9353 = vpop.trf.xlu0
      %v9354 = vpop.trf.xlu0
      %v9355 = vpop.trf.xlu0
      %v9356 = vpop.trf.xlu0
      %v9357 = vpop.trf.xlu0
      %v9358 = vpop.trf.xlu0
      %v9359 = vpop.trf.xlu0
      %v9360 = vpop.trf.xlu0
      %v9361 = vpop.trf.xlu0
      %9362 = vst [vmem:[%s314] sm:$0xff] %v9314
      %9363 = vst [vmem:[%s314 + $0x8] sm:$0xff] %v9346
      %9364 = vst [vmem:[%s314 + $0x10] sm:$0xff] %v9315
      %9365 = vst [vmem:[%s314 + $0x18] sm:$0xff] %v9347
      %9366 = vst [vmem:[%s314 + $0x20] sm:$0xff] %v9316
      %9367 = vst [vmem:[%s314 + $0x28] sm:$0xff] %v9348
      %9368 = vst [vmem:[%s314 + $0x30] sm:$0xff] %v9317
      %9369 = vst [vmem:[%s314 + $0x38] sm:$0xff] %v9349
      %s9370 = smul.u32 2, %s23
      %p9371 = scmp.lt.s32.totalorder %s22, 1
      %s9372 = scalar_select %p9371, %s22, 1
      %p9373 = scmp.lt.s32.totalorder %s9370, 1
      %s9374 = scalar_select %p9373, %s9370, 1
      %s9375 = smul.addr %s9372, 8
      %s9376 = sadd.s32 %s9374, %s9375
      %s9377 = smul.addr %s9376, 8
      %s9378 = scalar_lea.vmem %s7, %s9377
      // Predicated region
      $region49: #{aspp_forward.1} parent=47 // pred_check
        %p9379 = pneg %p207
      $region50: #{aspp_forward.1} parent=47 // pred_check_branch
        %9381 = sbr.rel (%p9379) target = $region52
      $region51: #{aspp_forward.1} parent=47 // pred_region
        %s9382 = smul.u32 2, %s23
      $region52: #{aspp_forward.1} parent=47 // pred_fallthru
        _
    $region48: #{aspp_forward.1} parent=5 // pred_fallthru
      _
    %p9383 = scmp.le.s32.totalorder 2, %s13
    // Predicated region
    $region53: #{aspp_forward.1} parent=5 // pred_check
      %p9384 = pneg %p9383
    $region54: #{aspp_forward.1} parent=5 // pred_check_branch
      %9386 = sbr.rel (%p9384) target = $region56
    $region55: #{aspp_forward.1} parent=5 // pred_region
      %s9387 = ssub.s32 %s13, 2
      // Predicated region
      $region57: #{aspp_forward.1} parent=55 // pred_check
        %p9388 = pneg %p213
      $region58: #{aspp_forward.1} parent=55 // pred_check_branch
        %9390 = sbr.rel (%p9388) target = $region60
      $region59: #{aspp_forward.1} parent=55 // pred_region
        %s9391 = smul.u32 2, %s25
        %p9392 = scmp.lt.s32.totalorder %s24, 1
        %s9393 = scalar_select %p9392, %s24, 1
        %p9394 = scmp.lt.s32.totalorder %s9391, 1
        %s9395 = scalar_select %p9394, %s9391, 1
        %s9396 = smul.addr %s9393, 8
        %s9397 = sadd.s32 %s9395, %s9396
        %s9398 = smul.addr %s9397, 8
        %s9399 = scalar_lea.vmem %s7, %s9398
      $region60: #{aspp_forward.1} parent=55 // pred_fallthru
        _
    $region56: #{aspp_forward.1} parent=5 // pred_fallthru
      _
  $region6: #{aspp_forward.1} parent=0 // loop_footer
    %s17 = sadd.s32 1, %s13
  $region7: #{aspp_forward.1} parent=0 // loop_footer_branch
    %12 = sbr.rel target = $region3
  $region8: #{aspp_forward.1} parent=0 // loop_exit
    _

</llo_original>
